<compile_context>
chip_gen: v5e
topology: v5e:2x2
jax: 0.10.0
libtpu: 0.0.40
codegen_flags: <defaults>
</compile_context>

<pallas_src>
import functools

import jax
import jax.numpy as jnp
from jax.experimental import pallas as pl
from jax.experimental.pallas import tpu as pltpu

BN_EPS = 1e-5
LANE = 128


# --------------------------------------------------------------------------- #
# Kernel
# --------------------------------------------------------------------------- #
def head_kernel(feat_ref, w1q_ref, s1_ref, b1_ref,
                w2q_ref, s2_ref, b2_ref, w3_ref, b3_ref, out_ref):
    # Dropout(p=0.2) is identity in eval mode; BatchNorm1d (running stats) is
    # folded into the linear weights/biases in the wrapper.

    # Layer 1: int8 weights -> bf16 on the VPU (exact), bf16 MXU, f32 accumulate,
    # per-output-column dequant scale, bias, ReLU.
    w1 = w1q_ref[...].astype(jnp.float32).astype(jnp.bfloat16)
    h = jnp.dot(feat_ref[...], w1, preferred_element_type=jnp.float32)
    h = jnp.maximum(h * s1_ref[...] + b1_ref[...], 0.0)

    # Layer 2: same recipe.
    w2 = w2q_ref[...].astype(jnp.float32).astype(jnp.bfloat16)
    h = jnp.dot(h.astype(jnp.bfloat16), w2, preferred_element_type=jnp.float32)
    h = jnp.maximum(h * s2_ref[...] + b2_ref[...], 0.0)

    # Layer 3: tiny, kept in f32 for tighter logits. Output width padded to 128
    # lanes (unmasked store); wrapper slices back to num_classes.
    out = jnp.dot(h, w3_ref[...], preferred_element_type=jnp.float32) + b3_ref[...]
    out_ref[...] = out.astype(out_ref.dtype)


def _full_spec(shape):
    # Whole array resident in VMEM (block == full array; grid is a single step).
    return pl.BlockSpec(shape, lambda i: (0,) * len(shape))


@functools.partial(jax.jit, static_argnames=("num_classes",))
def efficientnet_custom_head(x_nchw, params, num_classes):
    """x_nchw: [B, C=1280, H, W] backbone feature map (PyTorch NCHW layout)."""
    B = x_nchw.shape[0]
    # Global average pool in the wrapper: XLA fuses it into the producer; the
    # kernel then sees a lane-dense bf16 [B, 1280] instead of a 49-lane slab.
    feat = jnp.mean(x_nchw, axis=(2, 3)).astype(jnp.bfloat16)

    ins = (feat,
           params["w1q"], params["s1"], params["b1"],
           params["w2q"], params["s2"], params["b2"],
           params["w3"], params["b3"])
    in_specs = [_full_spec(a.shape) for a in ins]
    n_pad = params["w3"].shape[1]          # 128-lane padded output width

    out_pad = pl.pallas_call(
        head_kernel,
        out_shape=jax.ShapeDtypeStruct((B, n_pad), jnp.float32),
        grid=(1,),
        in_specs=in_specs,
        out_specs=_full_spec((B, n_pad)),
        compiler_params=pltpu.CompilerParams(
            dimension_semantics=("arbitrary",),
            vmem_limit_bytes=32 << 20,     # params ~2 MB; plenty of headroom on all gens
        ),
    )(*ins)
    return out_pad[:, :num_classes]


# --------------------------------------------------------------------------- #
# Parameter preparation (BN folding + int8 weight quant + lane padding)
# --------------------------------------------------------------------------- #
def _quantize_per_col(w_f32):
    """Symmetric per-output-column int8 quantization of a [in, out] weight."""
    amax = jnp.max(jnp.abs(w_f32), axis=0)                       # [out]
    scale = jnp.maximum(amax / 127.0, 1e-12)
    wq = jnp.clip(jnp.round(w_f32 / scale), -127.0, 127.0).astype(jnp.int8)
    return wq, scale.reshape(1, -1).astype(jnp.float32)


def fold_params(raw, num_classes, n_pad=LANE):
    """Fold eval-mode BatchNorm1d into the preceding Linear, then int8-quantize."""
    def fold(w, b, g, be, m, v):
        s = g * jax.lax.rsqrt(v + BN_EPS)            # [out]
        w_f = (w * s[:, None]).T                     # torch [out,in] -> [in,out], scaled
        b_f = (b - m) * s + be                       # [out]
        return w_f, b_f.reshape(1, -1).astype(jnp.float32)

    w1f, b1 = fold(raw["w1"], raw["b1"], raw["g1"], raw["be1"], raw["m1"], raw["v1"])
    w2f, b2 = fold(raw["w2"], raw["b2"], raw["g2"], raw["be2"], raw["m2"], raw["v2"])
    w1q, s1 = _quantize_per_col(w1f)
    w2q, s2 = _quantize_per_col(w2f)

    # Final linear: f32, pad output features to a full 128-lane register so the
    # kernel's store is unmasked; the wrapper slices back to num_classes.
    w3 = raw["w3"].T                                 # [512, NC]
    w3p = jnp.zeros((w3.shape[0], n_pad), jnp.float32).at[:, :num_classes].set(w3)
    b3p = jnp.zeros((1, n_pad), jnp.float32).at[0, :num_classes].set(raw["b3"])

    return {"w1q": w1q, "s1": s1, "b1": b1,
            "w2q": w2q, "s2": s2, "b2": b2,
            "w3": w3p, "b3": b3p}


def _init_raw_params(key, in_features=1280, num_classes=10):
    """Torch-layout parameters for the custom classifier (Linear [out,in] + BN stats)."""
    ks = jax.random.split(key, 16)

    def lin(kw, kb, fan_in, fan_out):
        bound = 1.0 / jnp.sqrt(fan_in)
        w = jax.random.uniform(kw, (fan_out, fan_in), jnp.float32, -bound, bound)
        b = jax.random.uniform(kb, (fan_out,), jnp.float32, -bound, bound)
        return w, b

    w1, b1 = lin(ks[0], ks[1], in_features, 1024)
    w2, b2 = lin(ks[2], ks[3], 1024, 512)
    w3, b3 = lin(ks[4], ks[5], 512, num_classes)

    def bn(kg, kb, km, kv, n):
        g = 1.0 + 0.1 * jax.random.normal(kg, (n,), jnp.float32)
        be = 0.1 * jax.random.normal(kb, (n,), jnp.float32)
        m = 0.1 * jax.random.normal(km, (n,), jnp.float32)
        v = 1.0 + 0.1 * jax.random.uniform(kv, (n,), jnp.float32)
        return g, be, m, v

    g1, be1, m1, v1 = bn(ks[6], ks[7], ks[8], ks[9], 1024)
    g2, be2, m2, v2 = bn(ks[10], ks[11], ks[12], ks[13], 512)

    return dict(w1=w1, b1=b1, g1=g1, be1=be1, m1=m1, v1=v1,
                w2=w2, b2=b2, g2=g2, be2=be2, m2=m2, v2=v2,
                w3=w3, b3=b3)


# --------------------------------------------------------------------------- #
# Pure-JAX references
# --------------------------------------------------------------------------- #
def _reference_quantized(x_nchw, p, num_classes):
    """Mimics the kernel arithmetic exactly (int8-dequant weights, bf16 MXU, f32 acc)."""
    feat = jnp.mean(x_nchw, axis=(2, 3)).astype(jnp.bfloat16)
    w1 = p["w1q"].astype(jnp.float32).astype(jnp.bfloat16)
    h = jnp.dot(feat, w1, preferred_element_type=jnp.float32) * p["s1"] + p["b1"]
    h = jnp.maximum(h, 0.0)
    w2 = p["w2q"].astype(jnp.float32).astype(jnp.bfloat16)
    h = jnp.dot(h.astype(jnp.bfloat16), w2, preferred_element_type=jnp.float32) * p["s2"] + p["b2"]
    h = jnp.maximum(h, 0.0)
    out = jnp.dot(h, p["w3"], preferred_element_type=jnp.float32) + p["b3"]
    return out[:, :num_classes]


def _reference_torch_eval(x_nchw, r):
    """Original unfused f32 eval-mode forward of the custom classifier head."""
    feat = jnp.mean(x_nchw, axis=(2, 3))
    h = feat @ r["w1"].T + r["b1"]
    h = jnp.maximum((h - r["m1"]) * jax.lax.rsqrt(r["v1"] + BN_EPS) * r["g1"] + r["be1"], 0.0)
    h = h @ r["w2"].T + r["b2"]
    h = jnp.maximum((h - r["m2"]) * jax.lax.rsqrt(r["v2"] + BN_EPS) * r["g2"] + r["be2"], 0.0)
    return h @ r["w3"].T + r["b3"]


# --------------------------------------------------------------------------- #
# Main
# --------------------------------------------------------------------------- #
if __name__ == "__main__":
    key = jax.random.PRNGKey(0)
    k_x, k_p = jax.random.split(key)

    B, C, H, W = 2, 1280, 7, 7   # efficientnet_b0 final feature map (in_features = 1280)
    num_classes = 10

    x = jax.random.normal(k_x, (B, C, H, W), jnp.float32)
    raw = _init_raw_params(k_p, in_features=C, num_classes=num_classes)
    params = fold_params(raw, num_classes)

    out = efficientnet_custom_head(x, params, num_classes)
    out = jax.block_until_ready(out)
    assert out.shape == (B, num_classes)

    # Tight check: same int8-dequant / bf16-MXU arithmetic as the kernel.
    ref_exact = _reference_quantized(x, params, num_classes)
    assert jnp.allclose(out, ref_exact, atol=2e-3, rtol=2e-3), \
        "mismatch vs quantized-folded reference"

    # Semantics check: original unfused f32 eval-mode head (BN fold + int8
    # weight quant introduce only small rounding differences).
    ref_f32 = _reference_torch_eval(x, raw)
    assert jnp.allclose(out, ref_f32, atol=5e-2, rtol=5e-2), \
        "mismatch vs f32 unfused reference"

    print("KERNEL_OK")
</pallas_src>

<mosaic_0001>
module attributes {stable_mosaic.version = 11 : i64} {
  func.func @head_kernel(%arg0: i32, %arg1: memref<2x1280xbf16, #tpu.memory_space<vmem>>, %arg2: memref<1280x1024xi8, #tpu.memory_space<vmem>>, %arg3: memref<1x1024xf32, #tpu.memory_space<vmem>>, %arg4: memref<1x1024xf32, #tpu.memory_space<vmem>>, %arg5: memref<1024x512xi8, #tpu.memory_space<vmem>>, %arg6: memref<1x512xf32, #tpu.memory_space<vmem>>, %arg7: memref<1x512xf32, #tpu.memory_space<vmem>>, %arg8: memref<512x128xf32, #tpu.memory_space<vmem>>, %arg9: memref<1x128xf32, #tpu.memory_space<vmem>>, %arg10: memref<2x128xf32, #tpu.memory_space<vmem>>) attributes {dimension_semantics = [#tpu.dimension_semantics<arbitrary>], iteration_bounds = array<i64: 1>, scalar_prefetch = 0 : i64, scratch_operands = 0 : i64, tpu.core_type = #tpu.core_type<tc>, window_params = [{pipeline_mode = #tpu.pipeline_mode<synchronous>, transform_indices = @transform_0, window_bounds = array<i64: 2, 1280>}, {pipeline_mode = #tpu.pipeline_mode<synchronous>, transform_indices = @transform_1, window_bounds = array<i64: 1280, 1024>}, {pipeline_mode = #tpu.pipeline_mode<synchronous>, transform_indices = @transform_2, window_bounds = array<i64: 1, 1024>}, {pipeline_mode = #tpu.pipeline_mode<synchronous>, transform_indices = @transform_3, window_bounds = array<i64: 1, 1024>}, {pipeline_mode = #tpu.pipeline_mode<synchronous>, transform_indices = @transform_4, window_bounds = array<i64: 1024, 512>}, {pipeline_mode = #tpu.pipeline_mode<synchronous>, transform_indices = @transform_5, window_bounds = array<i64: 1, 512>}, {pipeline_mode = #tpu.pipeline_mode<synchronous>, transform_indices = @transform_6, window_bounds = array<i64: 1, 512>}, {pipeline_mode = #tpu.pipeline_mode<synchronous>, transform_indices = @transform_7, window_bounds = array<i64: 512, 128>}, {pipeline_mode = #tpu.pipeline_mode<synchronous>, transform_indices = @transform_8, window_bounds = array<i64: 1, 128>}, {pipeline_mode = #tpu.pipeline_mode<synchronous>, transform_indices = @transform_9, window_bounds = array<i64: 2, 128>}]} {
    %c0 = arith.constant 0 : index
    %c0_0 = arith.constant 0 : index
    %0 = vector.load %arg2[%c0, %c0_0] : memref<1280x1024xi8, #tpu.memory_space<vmem>>, vector<1280x1024xi8>
    %1 = arith.sitofp %0 : vector<1280x1024xi8> to vector<1280x1024xf32>
    %2 = arith.truncf %1 : vector<1280x1024xf32> to vector<1280x1024xbf16>
    %c0_1 = arith.constant 0 : index
    %c0_2 = arith.constant 0 : index
    %3 = vector.load %arg1[%c0_1, %c0_2] : memref<2x1280xbf16, #tpu.memory_space<vmem>>, vector<2x1280xbf16>
    %cst = arith.constant dense<0.000000e+00> : vector<2x1024xf32>
    %4 = tpu.matmul %3, %2, %cst {dimension_numbers = #tpu.dot_dimension_numbers<[1], [0], [0], [1], [0, 0, 1, 1], [], []>} : vector<2x1280xbf16>, vector<1280x1024xbf16>, vector<2x1024xf32> -> vector<2x1024xf32>
    %c0_3 = arith.constant 0 : index
    %c0_4 = arith.constant 0 : index
    %5 = vector.load %arg3[%c0_3, %c0_4] : memref<1x1024xf32, #tpu.memory_space<vmem>>, vector<1x1024xf32>
    %6 = vector.broadcast %5 : vector<1x1024xf32> to vector<2x1024xf32>
    %7 = arith.mulf %4, %6 : vector<2x1024xf32>
    %c0_5 = arith.constant 0 : index
    %c0_6 = arith.constant 0 : index
    %8 = vector.load %arg4[%c0_5, %c0_6] : memref<1x1024xf32, #tpu.memory_space<vmem>>, vector<1x1024xf32>
    %9 = vector.broadcast %8 : vector<1x1024xf32> to vector<2x1024xf32>
    %10 = arith.addf %7, %9 : vector<2x1024xf32>
    %cst_7 = arith.constant 0.000000e+00 : f32
    %11 = vector.broadcast %cst_7 : f32 to vector<2x1024xf32>
    %12 = arith.maximumf %10, %11 : vector<2x1024xf32>
    %c0_8 = arith.constant 0 : index
    %c0_9 = arith.constant 0 : index
    %13 = vector.load %arg5[%c0_8, %c0_9] : memref<1024x512xi8, #tpu.memory_space<vmem>>, vector<1024x512xi8>
    %14 = arith.sitofp %13 : vector<1024x512xi8> to vector<1024x512xf32>
    %15 = arith.truncf %14 : vector<1024x512xf32> to vector<1024x512xbf16>
    %16 = arith.truncf %12 : vector<2x1024xf32> to vector<2x1024xbf16>
    %cst_10 = arith.constant dense<0.000000e+00> : vector<2x512xf32>
    %17 = tpu.matmul %16, %15, %cst_10 {dimension_numbers = #tpu.dot_dimension_numbers<[1], [0], [0], [1], [0, 0, 1, 1], [], []>} : vector<2x1024xbf16>, vector<1024x512xbf16>, vector<2x512xf32> -> vector<2x512xf32>
    %c0_11 = arith.constant 0 : index
    %c0_12 = arith.constant 0 : index
    %18 = vector.load %arg6[%c0_11, %c0_12] : memref<1x512xf32, #tpu.memory_space<vmem>>, vector<1x512xf32>
    %19 = vector.broadcast %18 : vector<1x512xf32> to vector<2x512xf32>
    %20 = arith.mulf %17, %19 : vector<2x512xf32>
    %c0_13 = arith.constant 0 : index
    %c0_14 = arith.constant 0 : index
    %21 = vector.load %arg7[%c0_13, %c0_14] : memref<1x512xf32, #tpu.memory_space<vmem>>, vector<1x512xf32>
    %22 = vector.broadcast %21 : vector<1x512xf32> to vector<2x512xf32>
    %23 = arith.addf %20, %22 : vector<2x512xf32>
    %cst_15 = arith.constant 0.000000e+00 : f32
    %24 = vector.broadcast %cst_15 : f32 to vector<2x512xf32>
    %25 = arith.maximumf %23, %24 : vector<2x512xf32>
    %c0_16 = arith.constant 0 : index
    %c0_17 = arith.constant 0 : index
    %26 = vector.load %arg8[%c0_16, %c0_17] : memref<512x128xf32, #tpu.memory_space<vmem>>, vector<512x128xf32>
    %cst_18 = arith.constant dense<0.000000e+00> : vector<2x128xf32>
    %27 = tpu.matmul %25, %26, %cst_18 {dimension_numbers = #tpu.dot_dimension_numbers<[1], [0], [0], [1], [0, 0, 1, 1], [], []>} : vector<2x512xf32>, vector<512x128xf32>, vector<2x128xf32> -> vector<2x128xf32>
    %c0_19 = arith.constant 0 : index
    %c0_20 = arith.constant 0 : index
    %28 = vector.load %arg9[%c0_19, %c0_20] : memref<1x128xf32, #tpu.memory_space<vmem>>, vector<1x128xf32>
    %29 = vector.broadcast %28 : vector<1x128xf32> to vector<2x128xf32>
    %30 = arith.addf %27, %29 : vector<2x128xf32>
    %c0_21 = arith.constant 0 : index
    %c0_22 = arith.constant 0 : index
    %31 = vector.load %arg10[%c0_21, %c0_22] : memref<2x128xf32, #tpu.memory_space<vmem>>, vector<2x128xf32>
    tpu.vector_store %arg10[%c0_21, %c0_22], %30 {strides = array<i32>} : memref<2x128xf32, #tpu.memory_space<vmem>>, vector<2x128xf32>,
    return
  }
  func.func @transform_0(%arg0: i32) -> (i32, i32) {
    %c0_i32 = arith.constant 0 : i32
    %c0_i32_0 = arith.constant 0 : i32
    %c0_i32_1 = arith.constant 0 : i32
    return %c0_i32, %c0_i32_0 : i32, i32
  }
  func.func @transform_1(%arg0: i32) -> (i32, i32) {
    %c0_i32 = arith.constant 0 : i32
    %c0_i32_0 = arith.constant 0 : i32
    %c0_i32_1 = arith.constant 0 : i32
    return %c0_i32, %c0_i32_0 : i32, i32
  }
  func.func @transform_2(%arg0: i32) -> (i32, i32) {
    %c0_i32 = arith.constant 0 : i32
    %c0_i32_0 = arith.constant 0 : i32
    %c0_i32_1 = arith.constant 0 : i32
    return %c0_i32, %c0_i32_0 : i32, i32
  }
  func.func @transform_3(%arg0: i32) -> (i32, i32) {
    %c0_i32 = arith.constant 0 : i32
    %c0_i32_0 = arith.constant 0 : i32
    %c0_i32_1 = arith.constant 0 : i32
    return %c0_i32, %c0_i32_0 : i32, i32
  }
  func.func @transform_4(%arg0: i32) -> (i32, i32) {
    %c0_i32 = arith.constant 0 : i32
    %c0_i32_0 = arith.constant 0 : i32
    %c0_i32_1 = arith.constant 0 : i32
    return %c0_i32, %c0_i32_0 : i32, i32
  }
  func.func @transform_5(%arg0: i32) -> (i32, i32) {
    %c0_i32 = arith.constant 0 : i32
    %c0_i32_0 = arith.constant 0 : i32
    %c0_i32_1 = arith.constant 0 : i32
    return %c0_i32, %c0_i32_0 : i32, i32
  }
  func.func @transform_6(%arg0: i32) -> (i32, i32) {
    %c0_i32 = arith.constant 0 : i32
    %c0_i32_0 = arith.constant 0 : i32
    %c0_i32_1 = arith.constant 0 : i32
    return %c0_i32, %c0_i32_0 : i32, i32
  }
  func.func @transform_7(%arg0: i32) -> (i32, i32) {
    %c0_i32 = arith.constant 0 : i32
    %c0_i32_0 = arith.constant 0 : i32
    %c0_i32_1 = arith.constant 0 : i32
    return %c0_i32, %c0_i32_0 : i32, i32
  }
  func.func @transform_8(%arg0: i32) -> (i32, i32) {
    %c0_i32 = arith.constant 0 : i32
    %c0_i32_0 = arith.constant 0 : i32
    %c0_i32_1 = arith.constant 0 : i32
    return %c0_i32, %c0_i32_0 : i32, i32
  }
  func.func @transform_9(%arg0: i32) -> (i32, i32) {
    %c0_i32 = arith.constant 0 : i32
    %c0_i32_0 = arith.constant 0 : i32
    %c0_i32_1 = arith.constant 0 : i32
    return %c0_i32, %c0_i32_0 : i32, i32
  }
}

</mosaic_0001>

<llo_original>
// kernel: efficientnet_custom_head.1
$region0: #{efficientnet_custom_head.1}
  #allocation0 [shape = 'u32[]', space=smem, size = 0x4, offset = 0x4, fixed_abs, tag = 'smem constant byte address 0x4 - core index']
  #allocation1 [shape = 'u32[72,128]{1,0:T(1,128)}', space=vmem, size = 0x9000, scoped, tag = 'internal scratch']
  %s0 = inlined_call_operand.vmem [shape: bf16[2,1280], index: 0, kind: input, shape index: {}]
  %s1 = inlined_call_operand.hbm [shape: s8[1280,1024], index: 1, kind: input, shape index: {}]
  %s2 = inlined_call_operand.hbm [shape: f32[1,1024], index: 2, kind: input, shape index: {}]
  %s3 = inlined_call_operand.hbm [shape: f32[1,1024], index: 3, kind: input, shape index: {}]
  %s4 = inlined_call_operand.hbm [shape: s8[1024,512], index: 4, kind: input, shape index: {}]
  %s5 = inlined_call_operand.hbm [shape: f32[1,512], index: 5, kind: input, shape index: {}]
  %s6 = inlined_call_operand.hbm [shape: f32[1,512], index: 6, kind: input, shape index: {}]
  %s7 = inlined_call_operand.hbm [shape: f32[512,128], index: 7, kind: input, shape index: {}]
  %s8 = inlined_call_operand.hbm [shape: f32[1,128], index: 8, kind: input, shape index: {}]
  %s9 = inlined_call_operand.hbm [shape: f32[2,128], index: 9, kind: output, shape index: {}]
  %s10 = sld [smem:[#allocation0]]
  $region78: #{efficientnet_custom_head.1} parent=0
    _
  %s12 = ssub.s32 1, %s10
  %s13 = scalar_select 0, %s12, %s10
  $region1: #{efficientnet_custom_head.1} parent=0
    #allocation2 [shape = 'u8[1310720]{0}', space=vmem, size = 0x140000, scoped, tag = 'input window, operand 1, single buffered']
    #allocation3 [shape = 's32[1]{0}', space=sflag, size = 0x4, scoped, tag = 'scoped memory for efficientnet_custom_head.1']
    #allocation4 [shape = 's32[1]{0}', space=sflag, size = 0x4, scoped, tag = 'scoped memory for efficientnet_custom_head.1']
    #allocation5 [shape = 'u8[4096]{0}', space=vmem, size = 0x1000, scoped, tag = 'input window, operand 2, single buffered']
    #allocation6 [shape = 's32[1]{0}', space=sflag, size = 0x4, scoped, tag = 'scoped memory for efficientnet_custom_head.1']
    #allocation7 [shape = 'u8[4096]{0}', space=vmem, size = 0x1000, scoped, tag = 'input window, operand 3, single buffered']
    #allocation8 [shape = 'u8[524288]{0}', space=vmem, size = 0x80000, scoped, tag = 'input window, operand 4, single buffered']
    #allocation9 [shape = 's32[1]{0}', space=sflag, size = 0x4, scoped, tag = 'scoped memory for efficientnet_custom_head.1']
    #allocation10 [shape = 'u8[2048]{0}', space=vmem, size = 0x800, scoped, tag = 'input window, operand 5, single buffered']
    #allocation11 [shape = 'u8[2048]{0}', space=vmem, size = 0x800, scoped, tag = 'input window, operand 6, single buffered']
    #allocation12 [shape = 's32[1]{0}', space=sflag, size = 0x4, scoped, tag = 'scoped memory for efficientnet_custom_head.1']
    #allocation13 [shape = 'u8[262144]{0}', space=vmem, size = 0x40000, scoped, tag = 'input window, operand 7, single buffered']
    #allocation14 [shape = 'u8[512]{0}', space=vmem, size = 0x400, scoped, tag = 'input window, operand 8, single buffered']
    #allocation15 [shape = 's32[1]{0}', space=sflag, size = 0x4, scoped, tag = 'scoped memory for efficientnet_custom_head.1']
    #allocation16 [shape = 'u8[1024]{0}', space=vmem, size = 0x400, scoped, tag = 'output window, operand 0, single buffered']
    %14 = vsyncpa [#allocation3], 0
    %15 = vsyncpa [#allocation6], 0
    %16 = vsyncpa [#allocation9], 0
    %17 = vsyncpa [#allocation12], 0
    %18 = vsyncpa [#allocation15], 0
    %19 = vsyncpa [#allocation4], 0
    // Predicated region
    $region2: #{efficientnet_custom_head.1} parent=1 // pred_check
      _
    $region3: #{efficientnet_custom_head.1} parent=1 // pred_check_branch
      %21 = sbr.rel (0) target = $region5
    $region4: #{efficientnet_custom_head.1} parent=1 // pred_region
      _
    $region5: #{efficientnet_custom_head.1} parent=1 // pred_fallthru
      _
    // Predicated region
    $region6: #{efficientnet_custom_head.1} parent=1 // pred_check
      _
    $region7: #{efficientnet_custom_head.1} parent=1 // pred_check_branch
      %23 = sbr.rel (0) target = $region9
    $region8: #{efficientnet_custom_head.1} parent=1 // pred_region
      %25 = vsyncadd [#allocation3], 0
      %s26 = sshll.u32 %s1, 4
      %s27 = int_to_ptr.hbm [resolvable:$true] %s26
      %s28 = sshll.u32 [#allocation2], 4
      %s29 = int_to_ptr.vmem [resolvable:$true] %s28
      %34 = dma.hbm_to_vmem [thread:$0]  %s27, 40960, %s29, [#allocation3], 1024, 1024, 64
    $region9: #{efficientnet_custom_head.1} parent=1 // pred_fallthru
      _
    // Predicated region
    $region10: #{efficientnet_custom_head.1} parent=1 // pred_check
      _
    $region11: #{efficientnet_custom_head.1} parent=1 // pred_check_branch
      %36 = sbr.rel (0) target = $region13
    $region12: #{efficientnet_custom_head.1} parent=1 // pred_region
      %38 = vsyncadd [#allocation6], 0
      %s40 = sshll.u32 %s2, 4
      %s41 = int_to_ptr.hbm [resolvable:$true] %s40
      %s42 = sshll.u32 [#allocation5], 4
      %s43 = int_to_ptr.vmem [resolvable:$true] %s42
      %45 = dma.hbm_to_vmem [thread:$0]  %s41, 128, %s43, [#allocation6]
    $region13: #{efficientnet_custom_head.1} parent=1 // pred_fallthru
      _
    // Predicated region
    $region14: #{efficientnet_custom_head.1} parent=1 // pred_check
      _
    $region15: #{efficientnet_custom_head.1} parent=1 // pred_check_branch
      %47 = sbr.rel (0) target = $region17
    $region16: #{efficientnet_custom_head.1} parent=1 // pred_region
      %49 = vsyncadd [#allocation6], 0
      %s51 = sshll.u32 %s3, 4
      %s52 = int_to_ptr.hbm [resolvable:$true] %s51
      %s53 = sshll.u32 [#allocation7], 4
      %s54 = int_to_ptr.vmem [resolvable:$true] %s53
      %56 = dma.hbm_to_vmem [thread:$0]  %s52, 128, %s54, [#allocation6]
    $region17: #{efficientnet_custom_head.1} parent=1 // pred_fallthru
      _
    // Predicated region
    $region18: #{efficientnet_custom_head.1} parent=1 // pred_check
      _
    $region19: #{efficientnet_custom_head.1} parent=1 // pred_check_branch
      %58 = sbr.rel (0) target = $region21
    $region20: #{efficientnet_custom_head.1} parent=1 // pred_region
      %60 = vsyncadd [#allocation9], 0
      %s61 = sshll.u32 %s4, 4
      %s62 = int_to_ptr.hbm [resolvable:$true] %s61
      %s63 = sshll.u32 [#allocation8], 4
      %s64 = int_to_ptr.vmem [resolvable:$true] %s63
      %69 = dma.hbm_to_vmem [thread:$0]  %s62, 16384, %s64, [#allocation9], 512, 512, 32
    $region21: #{efficientnet_custom_head.1} parent=1 // pred_fallthru
      _
    // Predicated region
    $region22: #{efficientnet_custom_head.1} parent=1 // pred_check
      _
    $region23: #{efficientnet_custom_head.1} parent=1 // pred_check_branch
      %71 = sbr.rel (0) target = $region25
    $region24: #{efficientnet_custom_head.1} parent=1 // pred_region
      %73 = vsyncadd [#allocation9], 0
      %s75 = sshll.u32 %s5, 4
      %s76 = int_to_ptr.hbm [resolvable:$true] %s75
      %s77 = sshll.u32 [#allocation10], 4
      %s78 = int_to_ptr.vmem [resolvable:$true] %s77
      %80 = dma.hbm_to_vmem [thread:$0]  %s76, 64, %s78, [#allocation9]
    $region25: #{efficientnet_custom_head.1} parent=1 // pred_fallthru
      _
    // Predicated region
    $region26: #{efficientnet_custom_head.1} parent=1 // pred_check
      _
    $region27: #{efficientnet_custom_head.1} parent=1 // pred_check_branch
      %82 = sbr.rel (0) target = $region29
    $region28: #{efficientnet_custom_head.1} parent=1 // pred_region
      %84 = vsyncadd [#allocation12], 0
      %s86 = sshll.u32 %s6, 4
      %s87 = int_to_ptr.hbm [resolvable:$true] %s86
      %s88 = sshll.u32 [#allocation11], 4
      %s89 = int_to_ptr.vmem [resolvable:$true] %s88
      %91 = dma.hbm_to_vmem [thread:$0]  %s87, 64, %s89, [#allocation12]
    $region29: #{efficientnet_custom_head.1} parent=1 // pred_fallthru
      _
    // Predicated region
    $region30: #{efficientnet_custom_head.1} parent=1 // pred_check
      _
    $region31: #{efficientnet_custom_head.1} parent=1 // pred_check_branch
      %93 = sbr.rel (0) target = $region33
    $region32: #{efficientnet_custom_head.1} parent=1 // pred_region
      %95 = vsyncadd [#allocation12], 0
      %s96 = sshll.u32 %s7, 4
      %s97 = int_to_ptr.hbm [resolvable:$true] %s96
      %s98 = sshll.u32 [#allocation13], 4
      %s99 = int_to_ptr.vmem [resolvable:$true] %s98
      %104 = dma.hbm_to_vmem [thread:$0]  %s97, 8192, %s99, [#allocation12], 128, 128, 8
    $region33: #{efficientnet_custom_head.1} parent=1 // pred_fallthru
      _
    // Predicated region
    $region34: #{efficientnet_custom_head.1} parent=1 // pred_check
      _
    $region35: #{efficientnet_custom_head.1} parent=1 // pred_check_branch
      %106 = sbr.rel (0) target = $region37
    $region36: #{efficientnet_custom_head.1} parent=1 // pred_region
      %108 = vsyncadd [#allocation15], 0
      %s110 = sshll.u32 %s8, 4
      %s111 = int_to_ptr.hbm [resolvable:$true] %s110
      %s112 = sshll.u32 [#allocation14], 4
      %s113 = int_to_ptr.vmem [resolvable:$true] %s112
      %115 = dma.hbm_to_vmem [thread:$0]  %s111, 16, %s113, [#allocation15]
    $region37: #{efficientnet_custom_head.1} parent=1 // pred_fallthru
      _
    // Predicated region
    $region38: #{efficientnet_custom_head.1} parent=1 // pred_check
      _
    $region39: #{efficientnet_custom_head.1} parent=1 // pred_check_branch
      %117 = sbr.rel (0) target = $region41
    $region40: #{efficientnet_custom_head.1} parent=1 // pred_region
      %119 = dma.done [#allocation3], 40960
    $region41: #{efficientnet_custom_head.1} parent=1 // pred_fallthru
      _
    // Predicated region
    $region42: #{efficientnet_custom_head.1} parent=1 // pred_check
      _
    $region43: #{efficientnet_custom_head.1} parent=1 // pred_check_branch
      %121 = sbr.rel (0) target = $region45
    $region44: #{efficientnet_custom_head.1} parent=1 // pred_region
      %123 = dma.done [#allocation6], 128
    $region45: #{efficientnet_custom_head.1} parent=1 // pred_fallthru
      _
    // Predicated region
    $region46: #{efficientnet_custom_head.1} parent=1 // pred_check
      _
    $region47: #{efficientnet_custom_head.1} parent=1 // pred_check_branch
      %125 = sbr.rel (0) target = $region49
    $region48: #{efficientnet_custom_head.1} parent=1 // pred_region
      %127 = dma.done [#allocation6], 128
    $region49: #{efficientnet_custom_head.1} parent=1 // pred_fallthru
      _
    // Predicated region
    $region50: #{efficientnet_custom_head.1} parent=1 // pred_check
      _
    $region51: #{efficientnet_custom_head.1} parent=1 // pred_check_branch
      %129 = sbr.rel (0) target = $region53
    $region52: #{efficientnet_custom_head.1} parent=1 // pred_region
      %131 = dma.done [#allocation9], 16384
    $region53: #{efficientnet_custom_head.1} parent=1 // pred_fallthru
      _
    // Predicated region
    $region54: #{efficientnet_custom_head.1} parent=1 // pred_check
      _
    $region55: #{efficientnet_custom_head.1} parent=1 // pred_check_branch
      %133 = sbr.rel (0) target = $region57
    $region56: #{efficientnet_custom_head.1} parent=1 // pred_region
      %135 = dma.done [#allocation9], 64
    $region57: #{efficientnet_custom_head.1} parent=1 // pred_fallthru
      _
    // Predicated region
    $region58: #{efficientnet_custom_head.1} parent=1 // pred_check
      _
    $region59: #{efficientnet_custom_head.1} parent=1 // pred_check_branch
      %137 = sbr.rel (0) target = $region61
    $region60: #{efficientnet_custom_head.1} parent=1 // pred_region
      %139 = dma.done [#allocation12], 64
    $region61: #{efficientnet_custom_head.1} parent=1 // pred_fallthru
      _
    // Predicated region
    $region62: #{efficientnet_custom_head.1} parent=1 // pred_check
      _
    $region63: #{efficientnet_custom_head.1} parent=1 // pred_check_branch
      %141 = sbr.rel (0) target = $region65
    $region64: #{efficientnet_custom_head.1} parent=1 // pred_region
      %143 = dma.done [#allocation12], 8192
    $region65: #{efficientnet_custom_head.1} parent=1 // pred_fallthru
      _
    // Predicated region
    $region66: #{efficientnet_custom_head.1} parent=1 // pred_check
      _
    $region67: #{efficientnet_custom_head.1} parent=1 // pred_check_branch
      %145 = sbr.rel (0) target = $region69
    $region68: #{efficientnet_custom_head.1} parent=1 // pred_region
      %147 = dma.done [#allocation15], 16
    $region69: #{efficientnet_custom_head.1} parent=1 // pred_fallthru
      _
    %v148 = vld [vmem:[#allocation2] sm:$0xff]
    %v149 = vld [vmem:[#allocation2 + $0x8] sm:$0xff]
    %v150 = vld [vmem:[#allocation2 + $0x10] sm:$0xff]
    %v151 = vld [vmem:[#allocation2 + $0x18] sm:$0xff]
    %v152 = vld [vmem:[#allocation2 + $0x20] sm:$0xff]
    %v153 = vld [vmem:[#allocation2 + $0x28] sm:$0xff]
    %v154 = vld [vmem:[#allocation2 + $0x30] sm:$0xff]
    %v155 = vld [vmem:[#allocation2 + $0x38] sm:$0xff]
    %v156 = vld [vmem:[#allocation2 + $0x40] sm:$0xff]
    %v157 = vld [vmem:[#allocation2 + $0x48] sm:$0xff]
    %v158 = vld [vmem:[#allocation2 + $0x50] sm:$0xff]
    %v159 = vld [vmem:[#allocation2 + $0x58] sm:$0xff]
    %v160 = vld [vmem:[#allocation2 + $0x60] sm:$0xff]
    %v161 = vld [vmem:[#allocation2 + $0x68] sm:$0xff]
    %v162 = vld [vmem:[#allocation2 + $0x70] sm:$0xff]
    %v163 = vld [vmem:[#allocation2 + $0x78] sm:$0xff]
    %v164 = vld [vmem:[#allocation2 + $0x80] sm:$0xff]
    %v165 = vld [vmem:[#allocation2 + $0x88] sm:$0xff]
    %v166 = vld [vmem:[#allocation2 + $0x90] sm:$0xff]
    %v167 = vld [vmem:[#allocation2 + $0x98] sm:$0xff]
    %v168 = vld [vmem:[#allocation2 + $0xa0] sm:$0xff]
    %v169 = vld [vmem:[#allocation2 + $0xa8] sm:$0xff]
    %v170 = vld [vmem:[#allocation2 + $0xb0] sm:$0xff]
    %v171 = vld [vmem:[#allocation2 + $0xb8] sm:$0xff]
    %v172 = vld [vmem:[#allocation2 + $0xc0] sm:$0xff]
    %v173 = vld [vmem:[#allocation2 + $0xc8] sm:$0xff]
    %v174 = vld [vmem:[#allocation2 + $0xd0] sm:$0xff]
    %v175 = vld [vmem:[#allocation2 + $0xd8] sm:$0xff]
    %v176 = vld [vmem:[#allocation2 + $0xe0] sm:$0xff]
    %v177 = vld [vmem:[#allocation2 + $0xe8] sm:$0xff]
    %v178 = vld [vmem:[#allocation2 + $0xf0] sm:$0xff]
    %v179 = vld [vmem:[#allocation2 + $0xf8] sm:$0xff]
    %v180 = vld [vmem:[#allocation2 + $0x100] sm:$0xff]
    %v181 = vld [vmem:[#allocation2 + $0x108] sm:$0xff]
    %v182 = vld [vmem:[#allocation2 + $0x110] sm:$0xff]
    %v183 = vld [vmem:[#allocation2 + $0x118] sm:$0xff]
    %v184 = vld [vmem:[#allocation2 + $0x120] sm:$0xff]
    %v185 = vld [vmem:[#allocation2 + $0x128] sm:$0xff]
    %v186 = vld [vmem:[#allocation2 + $0x130] sm:$0xff]
    %v187 = vld [vmem:[#allocation2 + $0x138] sm:$0xff]
    %v188 = vld [vmem:[#allocation2 + $0x140] sm:$0xff]
    %v189 = vld [vmem:[#allocation2 + $0x148] sm:$0xff]
    %v190 = vld [vmem:[#allocation2 + $0x150] sm:$0xff]
    %v191 = vld [vmem:[#allocation2 + $0x158] sm:$0xff]
    %v192 = vld [vmem:[#allocation2 + $0x160] sm:$0xff]
    %v193 = vld [vmem:[#allocation2 + $0x168] sm:$0xff]
    %v194 = vld [vmem:[#allocation2 + $0x170] sm:$0xff]
    %v195 = vld [vmem:[#allocation2 + $0x178] sm:$0xff]
    %v196 = vld [vmem:[#allocation2 + $0x180] sm:$0xff]
    %v197 = vld [vmem:[#allocation2 + $0x188] sm:$0xff]
    %v198 = vld [vmem:[#allocation2 + $0x190] sm:$0xff]
    %v199 = vld [vmem:[#allocation2 + $0x198] sm:$0xff]
    %v200 = vld [vmem:[#allocation2 + $0x1a0] sm:$0xff]
    %v201 = vld [vmem:[#allocation2 + $0x1a8] sm:$0xff]
    %v202 = vld [vmem:[#allocation2 + $0x1b0] sm:$0xff]
    %v203 = vld [vmem:[#allocation2 + $0x1b8] sm:$0xff]
    %v204 = vld [vmem:[#allocation2 + $0x1c0] sm:$0xff]
    %v205 = vld [vmem:[#allocation2 + $0x1c8] sm:$0xff]
    %v206 = vld [vmem:[#allocation2 + $0x1d0] sm:$0xff]
    %v207 = vld [vmem:[#allocation2 + $0x1d8] sm:$0xff]
    %v208 = vld [vmem:[#allocation2 + $0x1e0] sm:$0xff]
    %v209 = vld [vmem:[#allocation2 + $0x1e8] sm:$0xff]
    %v210 = vld [vmem:[#allocation2 + $0x1f0] sm:$0xff]
    %v211 = vld [vmem:[#allocation2 + $0x1f8] sm:$0xff]
    %v212 = vld [vmem:[#allocation2 + $0x200] sm:$0xff]
    %v213 = vld [vmem:[#allocation2 + $0x208] sm:$0xff]
    %v214 = vld [vmem:[#allocation2 + $0x210] sm:$0xff]
    %v215 = vld [vmem:[#allocation2 + $0x218] sm:$0xff]
    %v216 = vld [vmem:[#allocation2 + $0x220] sm:$0xff]
    %v217 = vld [vmem:[#allocation2 + $0x228] sm:$0xff]
    %v218 = vld [vmem:[#allocation2 + $0x230] sm:$0xff]
    %v219 = vld [vmem:[#allocation2 + $0x238] sm:$0xff]
    %v220 = vld [vmem:[#allocation2 + $0x240] sm:$0xff]
    %v221 = vld [vmem:[#allocation2 + $0x248] sm:$0xff]
    %v222 = vld [vmem:[#allocation2 + $0x250] sm:$0xff]
    %v223 = vld [vmem:[#allocation2 + $0x258] sm:$0xff]
    %v224 = vld [vmem:[#allocation2 + $0x260] sm:$0xff]
    %v225 = vld [vmem:[#allocation2 + $0x268] sm:$0xff]
    %v226 = vld [vmem:[#allocation2 + $0x270] sm:$0xff]
    %v227 = vld [vmem:[#allocation2 + $0x278] sm:$0xff]
    %v228 = vld [vmem:[#allocation2 + $0x280] sm:$0xff]
    %v229 = vld [vmem:[#allocation2 + $0x288] sm:$0xff]
    %v230 = vld [vmem:[#allocation2 + $0x290] sm:$0xff]
    %v231 = vld [vmem:[#allocation2 + $0x298] sm:$0xff]
    %v232 = vld [vmem:[#allocation2 + $0x2a0] sm:$0xff]
    %v233 = vld [vmem:[#allocation2 + $0x2a8] sm:$0xff]
    %v234 = vld [vmem:[#allocation2 + $0x2b0] sm:$0xff]
    %v235 = vld [vmem:[#allocation2 + $0x2b8] sm:$0xff]
    %v236 = vld [vmem:[#allocation2 + $0x2c0] sm:$0xff]
    %v237 = vld [vmem:[#allocation2 + $0x2c8] sm:$0xff]
    %v238 = vld [vmem:[#allocation2 + $0x2d0] sm:$0xff]
    %v239 = vld [vmem:[#allocation2 + $0x2d8] sm:$0xff]
    %v240 = vld [vmem:[#allocation2 + $0x2e0] sm:$0xff]
    %v241 = vld [vmem:[#allocation2 + $0x2e8] sm:$0xff]
    %v242 = vld [vmem:[#allocation2 + $0x2f0] sm:$0xff]
    %v243 = vld [vmem:[#allocation2 + $0x2f8] sm:$0xff]
    %v244 = vld [vmem:[#allocation2 + $0x300] sm:$0xff]
    %v245 = vld [vmem:[#allocation2 + $0x308] sm:$0xff]
    %v246 = vld [vmem:[#allocation2 + $0x310] sm:$0xff]
    %v247 = vld [vmem:[#allocation2 + $0x318] sm:$0xff]
    %v248 = vld [vmem:[#allocation2 + $0x320] sm:$0xff]
    %v249 = vld [vmem:[#allocation2 + $0x328] sm:$0xff]
    %v250 = vld [vmem:[#allocation2 + $0x330] sm:$0xff]
    %v251 = vld [vmem:[#allocation2 + $0x338] sm:$0xff]
    %v252 = vld [vmem:[#allocation2 + $0x340] sm:$0xff]
    %v253 = vld [vmem:[#allocation2 + $0x348] sm:$0xff]
    %v254 = vld [vmem:[#allocation2 + $0x350] sm:$0xff]
    %v255 = vld [vmem:[#allocation2 + $0x358] sm:$0xff]
    %v256 = vld [vmem:[#allocation2 + $0x360] sm:$0xff]
    %v257 = vld [vmem:[#allocation2 + $0x368] sm:$0xff]
    %v258 = vld [vmem:[#allocation2 + $0x370] sm:$0xff]
    %v259 = vld [vmem:[#allocation2 + $0x378] sm:$0xff]
    %v260 = vld [vmem:[#allocation2 + $0x380] sm:$0xff]
    %v261 = vld [vmem:[#allocation2 + $0x388] sm:$0xff]
    %v262 = vld [vmem:[#allocation2 + $0x390] sm:$0xff]
    %v263 = vld [vmem:[#allocation2 + $0x398] sm:$0xff]
    %v264 = vld [vmem:[#allocation2 + $0x3a0] sm:$0xff]
    %v265 = vld [vmem:[#allocation2 + $0x3a8] sm:$0xff]
    %v266 = vld [vmem:[#allocation2 + $0x3b0] sm:$0xff]
    %v267 = vld [vmem:[#allocation2 + $0x3b8] sm:$0xff]
    %v268 = vld [vmem:[#allocation2 + $0x3c0] sm:$0xff]
    %v269 = vld [vmem:[#allocation2 + $0x3c8] sm:$0xff]
    %v270 = vld [vmem:[#allocation2 + $0x3d0] sm:$0xff]
    %v271 = vld [vmem:[#allocation2 + $0x3d8] sm:$0xff]
    %v272 = vld [vmem:[#allocation2 + $0x3e0] sm:$0xff]
    %v273 = vld [vmem:[#allocation2 + $0x3e8] sm:$0xff]
    %v274 = vld [vmem:[#allocation2 + $0x3f0] sm:$0xff]
    %v275 = vld [vmem:[#allocation2 + $0x3f8] sm:$0xff]
    %v276 = vld [vmem:[#allocation2 + $0x400] sm:$0xff]
    %v277 = vld [vmem:[#allocation2 + $0x408] sm:$0xff]
    %v278 = vld [vmem:[#allocation2 + $0x410] sm:$0xff]
    %v279 = vld [vmem:[#allocation2 + $0x418] sm:$0xff]
    %v280 = vld [vmem:[#allocation2 + $0x420] sm:$0xff]
    %v281 = vld [vmem:[#allocation2 + $0x428] sm:$0xff]
    %v282 = vld [vmem:[#allocation2 + $0x430] sm:$0xff]
    %v283 = vld [vmem:[#allocation2 + $0x438] sm:$0xff]
    %v284 = vld [vmem:[#allocation2 + $0x440] sm:$0xff]
    %v285 = vld [vmem:[#allocation2 + $0x448] sm:$0xff]
    %v286 = vld [vmem:[#allocation2 + $0x450] sm:$0xff]
    %v287 = vld [vmem:[#allocation2 + $0x458] sm:$0xff]
    %v288 = vld [vmem:[#allocation2 + $0x460] sm:$0xff]
    %v289 = vld [vmem:[#allocation2 + $0x468] sm:$0xff]
    %v290 = vld [vmem:[#allocation2 + $0x470] sm:$0xff]
    %v291 = vld [vmem:[#allocation2 + $0x478] sm:$0xff]
    %v292 = vld [vmem:[#allocation2 + $0x480] sm:$0xff]
    %v293 = vld [vmem:[#allocation2 + $0x488] sm:$0xff]
    %v294 = vld [vmem:[#allocation2 + $0x490] sm:$0xff]
    %v295 = vld [vmem:[#allocation2 + $0x498] sm:$0xff]
    %v296 = vld [vmem:[#allocation2 + $0x4a0] sm:$0xff]
    %v297 = vld [vmem:[#allocation2 + $0x4a8] sm:$0xff]
    %v298 = vld [vmem:[#allocation2 + $0x4b0] sm:$0xff]
    %v299 = vld [vmem:[#allocation2 + $0x4b8] sm:$0xff]
    %v300 = vld [vmem:[#allocation2 + $0x4c0] sm:$0xff]
    %v301 = vld [vmem:[#allocation2 + $0x4c8] sm:$0xff]
    %v302 = vld [vmem:[#allocation2 + $0x4d0] sm:$0xff]
    %v303 = vld [vmem:[#allocation2 + $0x4d8] sm:$0xff]
    %v304 = vld [vmem:[#allocation2 + $0x4e0] sm:$0xff]
    %v305 = vld [vmem:[#allocation2 + $0x4e8] sm:$0xff]
    %v306 = vld [vmem:[#allocation2 + $0x4f0] sm:$0xff]
    %v307 = vld [vmem:[#allocation2 + $0x4f8] sm:$0xff]
    %v308 = vld [vmem:[#allocation2 + $0x500] sm:$0xff]
    %v309 = vld [vmem:[#allocation2 + $0x508] sm:$0xff]
    %v310 = vld [vmem:[#allocation2 + $0x510] sm:$0xff]
    %v311 = vld [vmem:[#allocation2 + $0x518] sm:$0xff]
    %v312 = vld [vmem:[#allocation2 + $0x520] sm:$0xff]
    %v313 = vld [vmem:[#allocation2 + $0x528] sm:$0xff]
    %v314 = vld [vmem:[#allocation2 + $0x530] sm:$0xff]
    %v315 = vld [vmem:[#allocation2 + $0x538] sm:$0xff]
    %v316 = vld [vmem:[#allocation2 + $0x540] sm:$0xff]
    %v317 = vld [vmem:[#allocation2 + $0x548] sm:$0xff]
    %v318 = vld [vmem:[#allocation2 + $0x550] sm:$0xff]
    %v319 = vld [vmem:[#allocation2 + $0x558] sm:$0xff]
    %v320 = vld [vmem:[#allocation2 + $0x560] sm:$0xff]
    %v321 = vld [vmem:[#allocation2 + $0x568] sm:$0xff]
    %v322 = vld [vmem:[#allocation2 + $0x570] sm:$0xff]
    %v323 = vld [vmem:[#allocation2 + $0x578] sm:$0xff]
    %v324 = vld [vmem:[#allocation2 + $0x580] sm:$0xff]
    %v325 = vld [vmem:[#allocation2 + $0x588] sm:$0xff]
    %v326 = vld [vmem:[#allocation2 + $0x590] sm:$0xff]
    %v327 = vld [vmem:[#allocation2 + $0x598] sm:$0xff]
    %v328 = vld [vmem:[#allocation2 + $0x5a0] sm:$0xff]
    %v329 = vld [vmem:[#allocation2 + $0x5a8] sm:$0xff]
    %v330 = vld [vmem:[#allocation2 + $0x5b0] sm:$0xff]
    %v331 = vld [vmem:[#allocation2 + $0x5b8] sm:$0xff]
    %v332 = vld [vmem:[#allocation2 + $0x5c0] sm:$0xff]
    %v333 = vld [vmem:[#allocation2 + $0x5c8] sm:$0xff]
    %v334 = vld [vmem:[#allocation2 + $0x5d0] sm:$0xff]
    %v335 = vld [vmem:[#allocation2 + $0x5d8] sm:$0xff]
    %v336 = vld [vmem:[#allocation2 + $0x5e0] sm:$0xff]
    %v337 = vld [vmem:[#allocation2 + $0x5e8] sm:$0xff]
    %v338 = vld [vmem:[#allocation2 + $0x5f0] sm:$0xff]
    %v339 = vld [vmem:[#allocation2 + $0x5f8] sm:$0xff]
    %v340 = vld [vmem:[#allocation2 + $0x600] sm:$0xff]
    %v341 = vld [vmem:[#allocation2 + $0x608] sm:$0xff]
    %v342 = vld [vmem:[#allocation2 + $0x610] sm:$0xff]
    %v343 = vld [vmem:[#allocation2 + $0x618] sm:$0xff]
    %v344 = vld [vmem:[#allocation2 + $0x620] sm:$0xff]
    %v345 = vld [vmem:[#allocation2 + $0x628] sm:$0xff]
    %v346 = vld [vmem:[#allocation2 + $0x630] sm:$0xff]
    %v347 = vld [vmem:[#allocation2 + $0x638] sm:$0xff]
    %v348 = vld [vmem:[#allocation2 + $0x640] sm:$0xff]
    %v349 = vld [vmem:[#allocation2 + $0x648] sm:$0xff]
    %v350 = vld [vmem:[#allocation2 + $0x650] sm:$0xff]
    %v351 = vld [vmem:[#allocation2 + $0x658] sm:$0xff]
    %v352 = vld [vmem:[#allocation2 + $0x660] sm:$0xff]
    %v353 = vld [vmem:[#allocation2 + $0x668] sm:$0xff]
    %v354 = vld [vmem:[#allocation2 + $0x670] sm:$0xff]
    %v355 = vld [vmem:[#allocation2 + $0x678] sm:$0xff]
    %v356 = vld [vmem:[#allocation2 + $0x680] sm:$0xff]
    %v357 = vld [vmem:[#allocation2 + $0x688] sm:$0xff]
    %v358 = vld [vmem:[#allocation2 + $0x690] sm:$0xff]
    %v359 = vld [vmem:[#allocation2 + $0x698] sm:$0xff]
    %v360 = vld [vmem:[#allocation2 + $0x6a0] sm:$0xff]
    %v361 = vld [vmem:[#allocation2 + $0x6a8] sm:$0xff]
    %v362 = vld [vmem:[#allocation2 + $0x6b0] sm:$0xff]
    %v363 = vld [vmem:[#allocation2 + $0x6b8] sm:$0xff]
    %v364 = vld [vmem:[#allocation2 + $0x6c0] sm:$0xff]
    %v365 = vld [vmem:[#allocation2 + $0x6c8] sm:$0xff]
    %v366 = vld [vmem:[#allocation2 + $0x6d0] sm:$0xff]
    %v367 = vld [vmem:[#allocation2 + $0x6d8] sm:$0xff]
    %v368 = vld [vmem:[#allocation2 + $0x6e0] sm:$0xff]
    %v369 = vld [vmem:[#allocation2 + $0x6e8] sm:$0xff]
    %v370 = vld [vmem:[#allocation2 + $0x6f0] sm:$0xff]
    %v371 = vld [vmem:[#allocation2 + $0x6f8] sm:$0xff]
    %v372 = vld [vmem:[#allocation2 + $0x700] sm:$0xff]
    %v373 = vld [vmem:[#allocation2 + $0x708] sm:$0xff]
    %v374 = vld [vmem:[#allocation2 + $0x710] sm:$0xff]
    %v375 = vld [vmem:[#allocation2 + $0x718] sm:$0xff]
    %v376 = vld [vmem:[#allocation2 + $0x720] sm:$0xff]
    %v377 = vld [vmem:[#allocation2 + $0x728] sm:$0xff]
    %v378 = vld [vmem:[#allocation2 + $0x730] sm:$0xff]
    %v379 = vld [vmem:[#allocation2 + $0x738] sm:$0xff]
    %v380 = vld [vmem:[#allocation2 + $0x740] sm:$0xff]
    %v381 = vld [vmem:[#allocation2 + $0x748] sm:$0xff]
    %v382 = vld [vmem:[#allocation2 + $0x750] sm:$0xff]
    %v383 = vld [vmem:[#allocation2 + $0x758] sm:$0xff]
    %v384 = vld [vmem:[#allocation2 + $0x760] sm:$0xff]
    %v385 = vld [vmem:[#allocation2 + $0x768] sm:$0xff]
    %v386 = vld [vmem:[#allocation2 + $0x770] sm:$0xff]
    %v387 = vld [vmem:[#allocation2 + $0x778] sm:$0xff]
    %v388 = vld [vmem:[#allocation2 + $0x780] sm:$0xff]
    %v389 = vld [vmem:[#allocation2 + $0x788] sm:$0xff]
    %v390 = vld [vmem:[#allocation2 + $0x790] sm:$0xff]
    %v391 = vld [vmem:[#allocation2 + $0x798] sm:$0xff]
    %v392 = vld [vmem:[#allocation2 + $0x7a0] sm:$0xff]
    %v393 = vld [vmem:[#allocation2 + $0x7a8] sm:$0xff]
    %v394 = vld [vmem:[#allocation2 + $0x7b0] sm:$0xff]
    %v395 = vld [vmem:[#allocation2 + $0x7b8] sm:$0xff]
    %v396 = vld [vmem:[#allocation2 + $0x7c0] sm:$0xff]
    %v397 = vld [vmem:[#allocation2 + $0x7c8] sm:$0xff]
    %v398 = vld [vmem:[#allocation2 + $0x7d0] sm:$0xff]
    %v399 = vld [vmem:[#allocation2 + $0x7d8] sm:$0xff]
    %v400 = vld [vmem:[#allocation2 + $0x7e0] sm:$0xff]
    %v401 = vld [vmem:[#allocation2 + $0x7e8] sm:$0xff]
    %v402 = vld [vmem:[#allocation2 + $0x7f0] sm:$0xff]
    %v403 = vld [vmem:[#allocation2 + $0x7f8] sm:$0xff]
    %v404 = vld [vmem:[#allocation2 + $0x800] sm:$0xff]
    %v405 = vld [vmem:[#allocation2 + $0x808] sm:$0xff]
    %v406 = vld [vmem:[#allocation2 + $0x810] sm:$0xff]
    %v407 = vld [vmem:[#allocation2 + $0x818] sm:$0xff]
    %v408 = vld [vmem:[#allocation2 + $0x820] sm:$0xff]
    %v409 = vld [vmem:[#allocation2 + $0x828] sm:$0xff]
    %v410 = vld [vmem:[#allocation2 + $0x830] sm:$0xff]
    %v411 = vld [vmem:[#allocation2 + $0x838] sm:$0xff]
    %v412 = vld [vmem:[#allocation2 + $0x840] sm:$0xff]
    %v413 = vld [vmem:[#allocation2 + $0x848] sm:$0xff]
    %v414 = vld [vmem:[#allocation2 + $0x850] sm:$0xff]
    %v415 = vld [vmem:[#allocation2 + $0x858] sm:$0xff]
    %v416 = vld [vmem:[#allocation2 + $0x860] sm:$0xff]
    %v417 = vld [vmem:[#allocation2 + $0x868] sm:$0xff]
    %v418 = vld [vmem:[#allocation2 + $0x870] sm:$0xff]
    %v419 = vld [vmem:[#allocation2 + $0x878] sm:$0xff]
    %v420 = vld [vmem:[#allocation2 + $0x880] sm:$0xff]
    %v421 = vld [vmem:[#allocation2 + $0x888] sm:$0xff]
    %v422 = vld [vmem:[#allocation2 + $0x890] sm:$0xff]
    %v423 = vld [vmem:[#allocation2 + $0x898] sm:$0xff]
    %v424 = vld [vmem:[#allocation2 + $0x8a0] sm:$0xff]
    %v425 = vld [vmem:[#allocation2 + $0x8a8] sm:$0xff]
    %v426 = vld [vmem:[#allocation2 + $0x8b0] sm:$0xff]
    %v427 = vld [vmem:[#allocation2 + $0x8b8] sm:$0xff]
    %v428 = vld [vmem:[#allocation2 + $0x8c0] sm:$0xff]
    %v429 = vld [vmem:[#allocation2 + $0x8c8] sm:$0xff]
    %v430 = vld [vmem:[#allocation2 + $0x8d0] sm:$0xff]
    %v431 = vld [vmem:[#allocation2 + $0x8d8] sm:$0xff]
    %v432 = vld [vmem:[#allocation2 + $0x8e0] sm:$0xff]
    %v433 = vld [vmem:[#allocation2 + $0x8e8] sm:$0xff]
    %v434 = vld [vmem:[#allocation2 + $0x8f0] sm:$0xff]
    %v435 = vld [vmem:[#allocation2 + $0x8f8] sm:$0xff]
    %v436 = vld [vmem:[#allocation2 + $0x900] sm:$0xff]
    %v437 = vld [vmem:[#allocation2 + $0x908] sm:$0xff]
    %v438 = vld [vmem:[#allocation2 + $0x910] sm:$0xff]
    %v439 = vld [vmem:[#allocation2 + $0x918] sm:$0xff]
    %v440 = vld [vmem:[#allocation2 + $0x920] sm:$0xff]
    %v441 = vld [vmem:[#allocation2 + $0x928] sm:$0xff]
    %v442 = vld [vmem:[#allocation2 + $0x930] sm:$0xff]
    %v443 = vld [vmem:[#allocation2 + $0x938] sm:$0xff]
    %v444 = vld [vmem:[#allocation2 + $0x940] sm:$0xff]
    %v445 = vld [vmem:[#allocation2 + $0x948] sm:$0xff]
    %v446 = vld [vmem:[#allocation2 + $0x950] sm:$0xff]
    %v447 = vld [vmem:[#allocation2 + $0x958] sm:$0xff]
    %v448 = vld [vmem:[#allocation2 + $0x960] sm:$0xff]
    %v449 = vld [vmem:[#allocation2 + $0x968] sm:$0xff]
    %v450 = vld [vmem:[#allocation2 + $0x970] sm:$0xff]
    %v451 = vld [vmem:[#allocation2 + $0x978] sm:$0xff]
    %v452 = vld [vmem:[#allocation2 + $0x980] sm:$0xff]
    %v453 = vld [vmem:[#allocation2 + $0x988] sm:$0xff]
    %v454 = vld [vmem:[#allocation2 + $0x990] sm:$0xff]
    %v455 = vld [vmem:[#allocation2 + $0x998] sm:$0xff]
    %v456 = vld [vmem:[#allocation2 + $0x9a0] sm:$0xff]
    %v457 = vld [vmem:[#allocation2 + $0x9a8] sm:$0xff]
    %v458 = vld [vmem:[#allocation2 + $0x9b0] sm:$0xff]
    %v459 = vld [vmem:[#allocation2 + $0x9b8] sm:$0xff]
    %v460 = vld [vmem:[#allocation2 + $0x9c0] sm:$0xff]
    %v461 = vld [vmem:[#allocation2 + $0x9c8] sm:$0xff]
    %v462 = vld [vmem:[#allocation2 + $0x9d0] sm:$0xff]
    %v463 = vld [vmem:[#allocation2 + $0x9d8] sm:$0xff]
    %v464 = vld [vmem:[#allocation2 + $0x9e0] sm:$0xff]
    %v465 = vld [vmem:[#allocation2 + $0x9e8] sm:$0xff]
    %v466 = vld [vmem:[#allocation2 + $0x9f0] sm:$0xff]
    %v467 = vld [vmem:[#allocation2 + $0x9f8] sm:$0xff]
    %v468 = vunpack.c.0.s8 %v148
    %v469 = vunpack.c.0.s8 %v149
    %v470 = vunpack.c.0.s8 %v150
    %v471 = vunpack.c.0.s8 %v151
    %v472 = vunpack.c.0.s8 %v152
    %v473 = vunpack.c.0.s8 %v153
    %v474 = vunpack.c.0.s8 %v154
    %v475 = vunpack.c.0.s8 %v155
    %v476 = vunpack.c.1.s8 %v148
    %v477 = vunpack.c.1.s8 %v149
    %v478 = vunpack.c.1.s8 %v150
    %v479 = vunpack.c.1.s8 %v151
    %v480 = vunpack.c.1.s8 %v152
    %v481 = vunpack.c.1.s8 %v153
    %v482 = vunpack.c.1.s8 %v154
    %v483 = vunpack.c.1.s8 %v155
    %v484 = vunpack.c.2.s8 %v148
    %v485 = vunpack.c.2.s8 %v149
    %v486 = vunpack.c.2.s8 %v150
    %v487 = vunpack.c.2.s8 %v151
    %v488 = vunpack.c.2.s8 %v152
    %v489 = vunpack.c.2.s8 %v153
    %v490 = vunpack.c.2.s8 %v154
    %v491 = vunpack.c.2.s8 %v155
    %v492 = vunpack.c.3.s8 %v148
    %v493 = vunpack.c.3.s8 %v149
    %v494 = vunpack.c.3.s8 %v150
    %v495 = vunpack.c.3.s8 %v151
    %v496 = vunpack.c.3.s8 %v152
    %v497 = vunpack.c.3.s8 %v153
    %v498 = vunpack.c.3.s8 %v154
    %v499 = vunpack.c.3.s8 %v155
    %v500 = vunpack.c.0.s8 %v156
    %v501 = vunpack.c.0.s8 %v157
    %v502 = vunpack.c.0.s8 %v158
    %v503 = vunpack.c.0.s8 %v159
    %v504 = vunpack.c.0.s8 %v160
    %v505 = vunpack.c.0.s8 %v161
    %v506 = vunpack.c.0.s8 %v162
    %v507 = vunpack.c.0.s8 %v163
    %v508 = vunpack.c.1.s8 %v156
    %v509 = vunpack.c.1.s8 %v157
    %v510 = vunpack.c.1.s8 %v158
    %v511 = vunpack.c.1.s8 %v159
    %v512 = vunpack.c.1.s8 %v160
    %v513 = vunpack.c.1.s8 %v161
    %v514 = vunpack.c.1.s8 %v162
    %v515 = vunpack.c.1.s8 %v163
    %v516 = vunpack.c.2.s8 %v156
    %v517 = vunpack.c.2.s8 %v157
    %v518 = vunpack.c.2.s8 %v158
    %v519 = vunpack.c.2.s8 %v159
    %v520 = vunpack.c.2.s8 %v160
    %v521 = vunpack.c.2.s8 %v161
    %v522 = vunpack.c.2.s8 %v162
    %v523 = vunpack.c.2.s8 %v163
    %v524 = vunpack.c.3.s8 %v156
    %v525 = vunpack.c.3.s8 %v157
    %v526 = vunpack.c.3.s8 %v158
    %v527 = vunpack.c.3.s8 %v159
    %v528 = vunpack.c.3.s8 %v160
    %v529 = vunpack.c.3.s8 %v161
    %v530 = vunpack.c.3.s8 %v162
    %v531 = vunpack.c.3.s8 %v163
    %v532 = vunpack.c.0.s8 %v164
    %v533 = vunpack.c.0.s8 %v165
    %v534 = vunpack.c.0.s8 %v166
    %v535 = vunpack.c.0.s8 %v167
    %v536 = vunpack.c.0.s8 %v168
    %v537 = vunpack.c.0.s8 %v169
    %v538 = vunpack.c.0.s8 %v170
    %v539 = vunpack.c.0.s8 %v171
    %v540 = vunpack.c.1.s8 %v164
    %v541 = vunpack.c.1.s8 %v165
    %v542 = vunpack.c.1.s8 %v166
    %v543 = vunpack.c.1.s8 %v167
    %v544 = vunpack.c.1.s8 %v168
    %v545 = vunpack.c.1.s8 %v169
    %v546 = vunpack.c.1.s8 %v170
    %v547 = vunpack.c.1.s8 %v171
    %v548 = vunpack.c.2.s8 %v164
    %v549 = vunpack.c.2.s8 %v165
    %v550 = vunpack.c.2.s8 %v166
    %v551 = vunpack.c.2.s8 %v167
    %v552 = vunpack.c.2.s8 %v168
    %v553 = vunpack.c.2.s8 %v169
    %v554 = vunpack.c.2.s8 %v170
    %v555 = vunpack.c.2.s8 %v171
    %v556 = vunpack.c.3.s8 %v164
    %v557 = vunpack.c.3.s8 %v165
    %v558 = vunpack.c.3.s8 %v166
    %v559 = vunpack.c.3.s8 %v167
    %v560 = vunpack.c.3.s8 %v168
    %v561 = vunpack.c.3.s8 %v169
    %v562 = vunpack.c.3.s8 %v170
    %v563 = vunpack.c.3.s8 %v171
    %v564 = vunpack.c.0.s8 %v172
    %v565 = vunpack.c.0.s8 %v173
    %v566 = vunpack.c.0.s8 %v174
    %v567 = vunpack.c.0.s8 %v175
    %v568 = vunpack.c.0.s8 %v176
    %v569 = vunpack.c.0.s8 %v177
    %v570 = vunpack.c.0.s8 %v178
    %v571 = vunpack.c.0.s8 %v179
    %v572 = vunpack.c.1.s8 %v172
    %v573 = vunpack.c.1.s8 %v173
    %v574 = vunpack.c.1.s8 %v174
    %v575 = vunpack.c.1.s8 %v175
    %v576 = vunpack.c.1.s8 %v176
    %v577 = vunpack.c.1.s8 %v177
    %v578 = vunpack.c.1.s8 %v178
    %v579 = vunpack.c.1.s8 %v179
    %v580 = vunpack.c.2.s8 %v172
    %v581 = vunpack.c.2.s8 %v173
    %v582 = vunpack.c.2.s8 %v174
    %v583 = vunpack.c.2.s8 %v175
    %v584 = vunpack.c.2.s8 %v176
    %v585 = vunpack.c.2.s8 %v177
    %v586 = vunpack.c.2.s8 %v178
    %v587 = vunpack.c.2.s8 %v179
    %v588 = vunpack.c.3.s8 %v172
    %v589 = vunpack.c.3.s8 %v173
    %v590 = vunpack.c.3.s8 %v174
    %v591 = vunpack.c.3.s8 %v175
    %v592 = vunpack.c.3.s8 %v176
    %v593 = vunpack.c.3.s8 %v177
    %v594 = vunpack.c.3.s8 %v178
    %v595 = vunpack.c.3.s8 %v179
    %v596 = vunpack.c.0.s8 %v180
    %v597 = vunpack.c.0.s8 %v181
    %v598 = vunpack.c.0.s8 %v182
    %v599 = vunpack.c.0.s8 %v183
    %v600 = vunpack.c.0.s8 %v184
    %v601 = vunpack.c.0.s8 %v185
    %v602 = vunpack.c.0.s8 %v186
    %v603 = vunpack.c.0.s8 %v187
    %v604 = vunpack.c.1.s8 %v180
    %v605 = vunpack.c.1.s8 %v181
    %v606 = vunpack.c.1.s8 %v182
    %v607 = vunpack.c.1.s8 %v183
    %v608 = vunpack.c.1.s8 %v184
    %v609 = vunpack.c.1.s8 %v185
    %v610 = vunpack.c.1.s8 %v186
    %v611 = vunpack.c.1.s8 %v187
    %v612 = vunpack.c.2.s8 %v180
    %v613 = vunpack.c.2.s8 %v181
    %v614 = vunpack.c.2.s8 %v182
    %v615 = vunpack.c.2.s8 %v183
    %v616 = vunpack.c.2.s8 %v184
    %v617 = vunpack.c.2.s8 %v185
    %v618 = vunpack.c.2.s8 %v186
    %v619 = vunpack.c.2.s8 %v187
    %v620 = vunpack.c.3.s8 %v180
    %v621 = vunpack.c.3.s8 %v181
    %v622 = vunpack.c.3.s8 %v182
    %v623 = vunpack.c.3.s8 %v183
    %v624 = vunpack.c.3.s8 %v184
    %v625 = vunpack.c.3.s8 %v185
    %v626 = vunpack.c.3.s8 %v186
    %v627 = vunpack.c.3.s8 %v187
    %v628 = vunpack.c.0.s8 %v188
    %v629 = vunpack.c.0.s8 %v189
    %v630 = vunpack.c.0.s8 %v190
    %v631 = vunpack.c.0.s8 %v191
    %v632 = vunpack.c.0.s8 %v192
    %v633 = vunpack.c.0.s8 %v193
    %v634 = vunpack.c.0.s8 %v194
    %v635 = vunpack.c.0.s8 %v195
    %v636 = vunpack.c.1.s8 %v188
    %v637 = vunpack.c.1.s8 %v189
    %v638 = vunpack.c.1.s8 %v190
    %v639 = vunpack.c.1.s8 %v191
    %v640 = vunpack.c.1.s8 %v192
    %v641 = vunpack.c.1.s8 %v193
    %v642 = vunpack.c.1.s8 %v194
    %v643 = vunpack.c.1.s8 %v195
    %v644 = vunpack.c.2.s8 %v188
    %v645 = vunpack.c.2.s8 %v189
    %v646 = vunpack.c.2.s8 %v190
    %v647 = vunpack.c.2.s8 %v191
    %v648 = vunpack.c.2.s8 %v192
    %v649 = vunpack.c.2.s8 %v193
    %v650 = vunpack.c.2.s8 %v194
    %v651 = vunpack.c.2.s8 %v195
    %v652 = vunpack.c.3.s8 %v188
    %v653 = vunpack.c.3.s8 %v189
    %v654 = vunpack.c.3.s8 %v190
    %v655 = vunpack.c.3.s8 %v191
    %v656 = vunpack.c.3.s8 %v192
    %v657 = vunpack.c.3.s8 %v193
    %v658 = vunpack.c.3.s8 %v194
    %v659 = vunpack.c.3.s8 %v195
    %v660 = vunpack.c.0.s8 %v196
    %v661 = vunpack.c.0.s8 %v197
    %v662 = vunpack.c.0.s8 %v198
    %v663 = vunpack.c.0.s8 %v199
    %v664 = vunpack.c.0.s8 %v200
    %v665 = vunpack.c.0.s8 %v201
    %v666 = vunpack.c.0.s8 %v202
    %v667 = vunpack.c.0.s8 %v203
    %v668 = vunpack.c.1.s8 %v196
    %v669 = vunpack.c.1.s8 %v197
    %v670 = vunpack.c.1.s8 %v198
    %v671 = vunpack.c.1.s8 %v199
    %v672 = vunpack.c.1.s8 %v200
    %v673 = vunpack.c.1.s8 %v201
    %v674 = vunpack.c.1.s8 %v202
    %v675 = vunpack.c.1.s8 %v203
    %v676 = vunpack.c.2.s8 %v196
    %v677 = vunpack.c.2.s8 %v197
    %v678 = vunpack.c.2.s8 %v198
    %v679 = vunpack.c.2.s8 %v199
    %v680 = vunpack.c.2.s8 %v200
    %v681 = vunpack.c.2.s8 %v201
    %v682 = vunpack.c.2.s8 %v202
    %v683 = vunpack.c.2.s8 %v203
    %v684 = vunpack.c.3.s8 %v196
    %v685 = vunpack.c.3.s8 %v197
    %v686 = vunpack.c.3.s8 %v198
    %v687 = vunpack.c.3.s8 %v199
    %v688 = vunpack.c.3.s8 %v200
    %v689 = vunpack.c.3.s8 %v201
    %v690 = vunpack.c.3.s8 %v202
    %v691 = vunpack.c.3.s8 %v203
    %v692 = vunpack.c.0.s8 %v204
    %v693 = vunpack.c.0.s8 %v205
    %v694 = vunpack.c.0.s8 %v206
    %v695 = vunpack.c.0.s8 %v207
    %v696 = vunpack.c.0.s8 %v208
    %v697 = vunpack.c.0.s8 %v209
    %v698 = vunpack.c.0.s8 %v210
    %v699 = vunpack.c.0.s8 %v211
    %v700 = vunpack.c.1.s8 %v204
    %v701 = vunpack.c.1.s8 %v205
    %v702 = vunpack.c.1.s8 %v206
    %v703 = vunpack.c.1.s8 %v207
    %v704 = vunpack.c.1.s8 %v208
    %v705 = vunpack.c.1.s8 %v209
    %v706 = vunpack.c.1.s8 %v210
    %v707 = vunpack.c.1.s8 %v211
    %v708 = vunpack.c.2.s8 %v204
    %v709 = vunpack.c.2.s8 %v205
    %v710 = vunpack.c.2.s8 %v206
    %v711 = vunpack.c.2.s8 %v207
    %v712 = vunpack.c.2.s8 %v208
    %v713 = vunpack.c.2.s8 %v209
    %v714 = vunpack.c.2.s8 %v210
    %v715 = vunpack.c.2.s8 %v211
    %v716 = vunpack.c.3.s8 %v204
    %v717 = vunpack.c.3.s8 %v205
    %v718 = vunpack.c.3.s8 %v206
    %v719 = vunpack.c.3.s8 %v207
    %v720 = vunpack.c.3.s8 %v208
    %v721 = vunpack.c.3.s8 %v209
    %v722 = vunpack.c.3.s8 %v210
    %v723 = vunpack.c.3.s8 %v211
    %v724 = vunpack.c.0.s8 %v212
    %v725 = vunpack.c.0.s8 %v213
    %v726 = vunpack.c.0.s8 %v214
    %v727 = vunpack.c.0.s8 %v215
    %v728 = vunpack.c.0.s8 %v216
    %v729 = vunpack.c.0.s8 %v217
    %v730 = vunpack.c.0.s8 %v218
    %v731 = vunpack.c.0.s8 %v219
    %v732 = vunpack.c.1.s8 %v212
    %v733 = vunpack.c.1.s8 %v213
    %v734 = vunpack.c.1.s8 %v214
    %v735 = vunpack.c.1.s8 %v215
    %v736 = vunpack.c.1.s8 %v216
    %v737 = vunpack.c.1.s8 %v217
    %v738 = vunpack.c.1.s8 %v218
    %v739 = vunpack.c.1.s8 %v219
    %v740 = vunpack.c.2.s8 %v212
    %v741 = vunpack.c.2.s8 %v213
    %v742 = vunpack.c.2.s8 %v214
    %v743 = vunpack.c.2.s8 %v215
    %v744 = vunpack.c.2.s8 %v216
    %v745 = vunpack.c.2.s8 %v217
    %v746 = vunpack.c.2.s8 %v218
    %v747 = vunpack.c.2.s8 %v219
    %v748 = vunpack.c.3.s8 %v212
    %v749 = vunpack.c.3.s8 %v213
    %v750 = vunpack.c.3.s8 %v214
    %v751 = vunpack.c.3.s8 %v215
    %v752 = vunpack.c.3.s8 %v216
    %v753 = vunpack.c.3.s8 %v217
    %v754 = vunpack.c.3.s8 %v218
    %v755 = vunpack.c.3.s8 %v219
    %v756 = vunpack.c.0.s8 %v220
    %v757 = vunpack.c.0.s8 %v221
    %v758 = vunpack.c.0.s8 %v222
    %v759 = vunpack.c.0.s8 %v223
    %v760 = vunpack.c.0.s8 %v224
    %v761 = vunpack.c.0.s8 %v225
    %v762 = vunpack.c.0.s8 %v226
    %v763 = vunpack.c.0.s8 %v227
    %v764 = vunpack.c.1.s8 %v220
    %v765 = vunpack.c.1.s8 %v221
    %v766 = vunpack.c.1.s8 %v222
    %v767 = vunpack.c.1.s8 %v223
    %v768 = vunpack.c.1.s8 %v224
    %v769 = vunpack.c.1.s8 %v225
    %v770 = vunpack.c.1.s8 %v226
    %v771 = vunpack.c.1.s8 %v227
    %v772 = vunpack.c.2.s8 %v220
    %v773 = vunpack.c.2.s8 %v221
    %v774 = vunpack.c.2.s8 %v222
    %v775 = vunpack.c.2.s8 %v223
    %v776 = vunpack.c.2.s8 %v224
    %v777 = vunpack.c.2.s8 %v225
    %v778 = vunpack.c.2.s8 %v226
    %v779 = vunpack.c.2.s8 %v227
    %v780 = vunpack.c.3.s8 %v220
    %v781 = vunpack.c.3.s8 %v221
    %v782 = vunpack.c.3.s8 %v222
    %v783 = vunpack.c.3.s8 %v223
    %v784 = vunpack.c.3.s8 %v224
    %v785 = vunpack.c.3.s8 %v225
    %v786 = vunpack.c.3.s8 %v226
    %v787 = vunpack.c.3.s8 %v227
    %v788 = vunpack.c.0.s8 %v228
    %v789 = vunpack.c.0.s8 %v229
    %v790 = vunpack.c.0.s8 %v230
    %v791 = vunpack.c.0.s8 %v231
    %v792 = vunpack.c.0.s8 %v232
    %v793 = vunpack.c.0.s8 %v233
    %v794 = vunpack.c.0.s8 %v234
    %v795 = vunpack.c.0.s8 %v235
    %v796 = vunpack.c.1.s8 %v228
    %v797 = vunpack.c.1.s8 %v229
    %v798 = vunpack.c.1.s8 %v230
    %v799 = vunpack.c.1.s8 %v231
    %v800 = vunpack.c.1.s8 %v232
    %v801 = vunpack.c.1.s8 %v233
    %v802 = vunpack.c.1.s8 %v234
    %v803 = vunpack.c.1.s8 %v235
    %v804 = vunpack.c.2.s8 %v228
    %v805 = vunpack.c.2.s8 %v229
    %v806 = vunpack.c.2.s8 %v230
    %v807 = vunpack.c.2.s8 %v231
    %v808 = vunpack.c.2.s8 %v232
    %v809 = vunpack.c.2.s8 %v233
    %v810 = vunpack.c.2.s8 %v234
    %v811 = vunpack.c.2.s8 %v235
    %v812 = vunpack.c.3.s8 %v228
    %v813 = vunpack.c.3.s8 %v229
    %v814 = vunpack.c.3.s8 %v230
    %v815 = vunpack.c.3.s8 %v231
    %v816 = vunpack.c.3.s8 %v232
    %v817 = vunpack.c.3.s8 %v233
    %v818 = vunpack.c.3.s8 %v234
    %v819 = vunpack.c.3.s8 %v235
    %v820 = vunpack.c.0.s8 %v236
    %v821 = vunpack.c.0.s8 %v237
    %v822 = vunpack.c.0.s8 %v238
    %v823 = vunpack.c.0.s8 %v239
    %v824 = vunpack.c.0.s8 %v240
    %v825 = vunpack.c.0.s8 %v241
    %v826 = vunpack.c.0.s8 %v242
    %v827 = vunpack.c.0.s8 %v243
    %v828 = vunpack.c.1.s8 %v236
    %v829 = vunpack.c.1.s8 %v237
    %v830 = vunpack.c.1.s8 %v238
    %v831 = vunpack.c.1.s8 %v239
    %v832 = vunpack.c.1.s8 %v240
    %v833 = vunpack.c.1.s8 %v241
    %v834 = vunpack.c.1.s8 %v242
    %v835 = vunpack.c.1.s8 %v243
    %v836 = vunpack.c.2.s8 %v236
    %v837 = vunpack.c.2.s8 %v237
    %v838 = vunpack.c.2.s8 %v238
    %v839 = vunpack.c.2.s8 %v239
    %v840 = vunpack.c.2.s8 %v240
    %v841 = vunpack.c.2.s8 %v241
    %v842 = vunpack.c.2.s8 %v242
    %v843 = vunpack.c.2.s8 %v243
    %v844 = vunpack.c.3.s8 %v236
    %v845 = vunpack.c.3.s8 %v237
    %v846 = vunpack.c.3.s8 %v238
    %v847 = vunpack.c.3.s8 %v239
    %v848 = vunpack.c.3.s8 %v240
    %v849 = vunpack.c.3.s8 %v241
    %v850 = vunpack.c.3.s8 %v242
    %v851 = vunpack.c.3.s8 %v243
    %v852 = vunpack.c.0.s8 %v244
    %v853 = vunpack.c.0.s8 %v245
    %v854 = vunpack.c.0.s8 %v246
    %v855 = vunpack.c.0.s8 %v247
    %v856 = vunpack.c.0.s8 %v248
    %v857 = vunpack.c.0.s8 %v249
    %v858 = vunpack.c.0.s8 %v250
    %v859 = vunpack.c.0.s8 %v251
    %v860 = vunpack.c.1.s8 %v244
    %v861 = vunpack.c.1.s8 %v245
    %v862 = vunpack.c.1.s8 %v246
    %v863 = vunpack.c.1.s8 %v247
    %v864 = vunpack.c.1.s8 %v248
    %v865 = vunpack.c.1.s8 %v249
    %v866 = vunpack.c.1.s8 %v250
    %v867 = vunpack.c.1.s8 %v251
    %v868 = vunpack.c.2.s8 %v244
    %v869 = vunpack.c.2.s8 %v245
    %v870 = vunpack.c.2.s8 %v246
    %v871 = vunpack.c.2.s8 %v247
    %v872 = vunpack.c.2.s8 %v248
    %v873 = vunpack.c.2.s8 %v249
    %v874 = vunpack.c.2.s8 %v250
    %v875 = vunpack.c.2.s8 %v251
    %v876 = vunpack.c.3.s8 %v244
    %v877 = vunpack.c.3.s8 %v245
    %v878 = vunpack.c.3.s8 %v246
    %v879 = vunpack.c.3.s8 %v247
    %v880 = vunpack.c.3.s8 %v248
    %v881 = vunpack.c.3.s8 %v249
    %v882 = vunpack.c.3.s8 %v250
    %v883 = vunpack.c.3.s8 %v251
    %v884 = vunpack.c.0.s8 %v252
    %v885 = vunpack.c.0.s8 %v253
    %v886 = vunpack.c.0.s8 %v254
    %v887 = vunpack.c.0.s8 %v255
    %v888 = vunpack.c.0.s8 %v256
    %v889 = vunpack.c.0.s8 %v257
    %v890 = vunpack.c.0.s8 %v258
    %v891 = vunpack.c.0.s8 %v259
    %v892 = vunpack.c.1.s8 %v252
    %v893 = vunpack.c.1.s8 %v253
    %v894 = vunpack.c.1.s8 %v254
    %v895 = vunpack.c.1.s8 %v255
    %v896 = vunpack.c.1.s8 %v256
    %v897 = vunpack.c.1.s8 %v257
    %v898 = vunpack.c.1.s8 %v258
    %v899 = vunpack.c.1.s8 %v259
    %v900 = vunpack.c.2.s8 %v252
    %v901 = vunpack.c.2.s8 %v253
    %v902 = vunpack.c.2.s8 %v254
    %v903 = vunpack.c.2.s8 %v255
    %v904 = vunpack.c.2.s8 %v256
    %v905 = vunpack.c.2.s8 %v257
    %v906 = vunpack.c.2.s8 %v258
    %v907 = vunpack.c.2.s8 %v259
    %v908 = vunpack.c.3.s8 %v252
    %v909 = vunpack.c.3.s8 %v253
    %v910 = vunpack.c.3.s8 %v254
    %v911 = vunpack.c.3.s8 %v255
    %v912 = vunpack.c.3.s8 %v256
    %v913 = vunpack.c.3.s8 %v257
    %v914 = vunpack.c.3.s8 %v258
    %v915 = vunpack.c.3.s8 %v259
    %v916 = vunpack.c.0.s8 %v260
    %v917 = vunpack.c.0.s8 %v261
    %v918 = vunpack.c.0.s8 %v262
    %v919 = vunpack.c.0.s8 %v263
    %v920 = vunpack.c.0.s8 %v264
    %v921 = vunpack.c.0.s8 %v265
    %v922 = vunpack.c.0.s8 %v266
    %v923 = vunpack.c.0.s8 %v267
    %v924 = vunpack.c.1.s8 %v260
    %v925 = vunpack.c.1.s8 %v261
    %v926 = vunpack.c.1.s8 %v262
    %v927 = vunpack.c.1.s8 %v263
    %v928 = vunpack.c.1.s8 %v264
    %v929 = vunpack.c.1.s8 %v265
    %v930 = vunpack.c.1.s8 %v266
    %v931 = vunpack.c.1.s8 %v267
    %v932 = vunpack.c.2.s8 %v260
    %v933 = vunpack.c.2.s8 %v261
    %v934 = vunpack.c.2.s8 %v262
    %v935 = vunpack.c.2.s8 %v263
    %v936 = vunpack.c.2.s8 %v264
    %v937 = vunpack.c.2.s8 %v265
    %v938 = vunpack.c.2.s8 %v266
    %v939 = vunpack.c.2.s8 %v267
    %v940 = vunpack.c.3.s8 %v260
    %v941 = vunpack.c.3.s8 %v261
    %v942 = vunpack.c.3.s8 %v262
    %v943 = vunpack.c.3.s8 %v263
    %v944 = vunpack.c.3.s8 %v264
    %v945 = vunpack.c.3.s8 %v265
    %v946 = vunpack.c.3.s8 %v266
    %v947 = vunpack.c.3.s8 %v267
    %v948 = vunpack.c.0.s8 %v268
    %v949 = vunpack.c.0.s8 %v269
    %v950 = vunpack.c.0.s8 %v270
    %v951 = vunpack.c.0.s8 %v271
    %v952 = vunpack.c.0.s8 %v272
    %v953 = vunpack.c.0.s8 %v273
    %v954 = vunpack.c.0.s8 %v274
    %v955 = vunpack.c.0.s8 %v275
    %v956 = vunpack.c.1.s8 %v268
    %v957 = vunpack.c.1.s8 %v269
    %v958 = vunpack.c.1.s8 %v270
    %v959 = vunpack.c.1.s8 %v271
    %v960 = vunpack.c.1.s8 %v272
    %v961 = vunpack.c.1.s8 %v273
    %v962 = vunpack.c.1.s8 %v274
    %v963 = vunpack.c.1.s8 %v275
    %v964 = vunpack.c.2.s8 %v268
    %v965 = vunpack.c.2.s8 %v269
    %v966 = vunpack.c.2.s8 %v270
    %v967 = vunpack.c.2.s8 %v271
    %v968 = vunpack.c.2.s8 %v272
    %v969 = vunpack.c.2.s8 %v273
    %v970 = vunpack.c.2.s8 %v274
    %v971 = vunpack.c.2.s8 %v275
    %v972 = vunpack.c.3.s8 %v268
    %v973 = vunpack.c.3.s8 %v269
    %v974 = vunpack.c.3.s8 %v270
    %v975 = vunpack.c.3.s8 %v271
    %v976 = vunpack.c.3.s8 %v272
    %v977 = vunpack.c.3.s8 %v273
    %v978 = vunpack.c.3.s8 %v274
    %v979 = vunpack.c.3.s8 %v275
    %v980 = vunpack.c.0.s8 %v276
    %v981 = vunpack.c.0.s8 %v277
    %v982 = vunpack.c.0.s8 %v278
    %v983 = vunpack.c.0.s8 %v279
    %v984 = vunpack.c.0.s8 %v280
    %v985 = vunpack.c.0.s8 %v281
    %v986 = vunpack.c.0.s8 %v282
    %v987 = vunpack.c.0.s8 %v283
    %v988 = vunpack.c.1.s8 %v276
    %v989 = vunpack.c.1.s8 %v277
    %v990 = vunpack.c.1.s8 %v278
    %v991 = vunpack.c.1.s8 %v279
    %v992 = vunpack.c.1.s8 %v280
    %v993 = vunpack.c.1.s8 %v281
    %v994 = vunpack.c.1.s8 %v282
    %v995 = vunpack.c.1.s8 %v283
    %v996 = vunpack.c.2.s8 %v276
    %v997 = vunpack.c.2.s8 %v277
    %v998 = vunpack.c.2.s8 %v278
    %v999 = vunpack.c.2.s8 %v279
    %v1000 = vunpack.c.2.s8 %v280
    %v1001 = vunpack.c.2.s8 %v281
    %v1002 = vunpack.c.2.s8 %v282
    %v1003 = vunpack.c.2.s8 %v283
    %v1004 = vunpack.c.3.s8 %v276
    %v1005 = vunpack.c.3.s8 %v277
    %v1006 = vunpack.c.3.s8 %v278
    %v1007 = vunpack.c.3.s8 %v279
    %v1008 = vunpack.c.3.s8 %v280
    %v1009 = vunpack.c.3.s8 %v281
    %v1010 = vunpack.c.3.s8 %v282
    %v1011 = vunpack.c.3.s8 %v283
    %v1012 = vunpack.c.0.s8 %v284
    %v1013 = vunpack.c.0.s8 %v285
    %v1014 = vunpack.c.0.s8 %v286
    %v1015 = vunpack.c.0.s8 %v287
    %v1016 = vunpack.c.0.s8 %v288
    %v1017 = vunpack.c.0.s8 %v289
    %v1018 = vunpack.c.0.s8 %v290
    %v1019 = vunpack.c.0.s8 %v291
    %v1020 = vunpack.c.1.s8 %v284
    %v1021 = vunpack.c.1.s8 %v285
    %v1022 = vunpack.c.1.s8 %v286
    %v1023 = vunpack.c.1.s8 %v287
    %v1024 = vunpack.c.1.s8 %v288
    %v1025 = vunpack.c.1.s8 %v289
    %v1026 = vunpack.c.1.s8 %v290
    %v1027 = vunpack.c.1.s8 %v291
    %v1028 = vunpack.c.2.s8 %v284
    %v1029 = vunpack.c.2.s8 %v285
    %v1030 = vunpack.c.2.s8 %v286
    %v1031 = vunpack.c.2.s8 %v287
    %v1032 = vunpack.c.2.s8 %v288
    %v1033 = vunpack.c.2.s8 %v289
    %v1034 = vunpack.c.2.s8 %v290
    %v1035 = vunpack.c.2.s8 %v291
    %v1036 = vunpack.c.3.s8 %v284
    %v1037 = vunpack.c.3.s8 %v285
    %v1038 = vunpack.c.3.s8 %v286
    %v1039 = vunpack.c.3.s8 %v287
    %v1040 = vunpack.c.3.s8 %v288
    %v1041 = vunpack.c.3.s8 %v289
    %v1042 = vunpack.c.3.s8 %v290
    %v1043 = vunpack.c.3.s8 %v291
    %v1044 = vunpack.c.0.s8 %v292
    %v1045 = vunpack.c.0.s8 %v293
    %v1046 = vunpack.c.0.s8 %v294
    %v1047 = vunpack.c.0.s8 %v295
    %v1048 = vunpack.c.0.s8 %v296
    %v1049 = vunpack.c.0.s8 %v297
    %v1050 = vunpack.c.0.s8 %v298
    %v1051 = vunpack.c.0.s8 %v299
    %v1052 = vunpack.c.1.s8 %v292
    %v1053 = vunpack.c.1.s8 %v293
    %v1054 = vunpack.c.1.s8 %v294
    %v1055 = vunpack.c.1.s8 %v295
    %v1056 = vunpack.c.1.s8 %v296
    %v1057 = vunpack.c.1.s8 %v297
    %v1058 = vunpack.c.1.s8 %v298
    %v1059 = vunpack.c.1.s8 %v299
    %v1060 = vunpack.c.2.s8 %v292
    %v1061 = vunpack.c.2.s8 %v293
    %v1062 = vunpack.c.2.s8 %v294
    %v1063 = vunpack.c.2.s8 %v295
    %v1064 = vunpack.c.2.s8 %v296
    %v1065 = vunpack.c.2.s8 %v297
    %v1066 = vunpack.c.2.s8 %v298
    %v1067 = vunpack.c.2.s8 %v299
    %v1068 = vunpack.c.3.s8 %v292
    %v1069 = vunpack.c.3.s8 %v293
    %v1070 = vunpack.c.3.s8 %v294
    %v1071 = vunpack.c.3.s8 %v295
    %v1072 = vunpack.c.3.s8 %v296
    %v1073 = vunpack.c.3.s8 %v297
    %v1074 = vunpack.c.3.s8 %v298
    %v1075 = vunpack.c.3.s8 %v299
    %v1076 = vunpack.c.0.s8 %v300
    %v1077 = vunpack.c.0.s8 %v301
    %v1078 = vunpack.c.0.s8 %v302
    %v1079 = vunpack.c.0.s8 %v303
    %v1080 = vunpack.c.0.s8 %v304
    %v1081 = vunpack.c.0.s8 %v305
    %v1082 = vunpack.c.0.s8 %v306
    %v1083 = vunpack.c.0.s8 %v307
    %v1084 = vunpack.c.1.s8 %v300
    %v1085 = vunpack.c.1.s8 %v301
    %v1086 = vunpack.c.1.s8 %v302
    %v1087 = vunpack.c.1.s8 %v303
    %v1088 = vunpack.c.1.s8 %v304
    %v1089 = vunpack.c.1.s8 %v305
    %v1090 = vunpack.c.1.s8 %v306
    %v1091 = vunpack.c.1.s8 %v307
    %v1092 = vunpack.c.2.s8 %v300
    %v1093 = vunpack.c.2.s8 %v301
    %v1094 = vunpack.c.2.s8 %v302
    %v1095 = vunpack.c.2.s8 %v303
    %v1096 = vunpack.c.2.s8 %v304
    %v1097 = vunpack.c.2.s8 %v305
    %v1098 = vunpack.c.2.s8 %v306
    %v1099 = vunpack.c.2.s8 %v307
    %v1100 = vunpack.c.3.s8 %v300
    %v1101 = vunpack.c.3.s8 %v301
    %v1102 = vunpack.c.3.s8 %v302
    %v1103 = vunpack.c.3.s8 %v303
    %v1104 = vunpack.c.3.s8 %v304
    %v1105 = vunpack.c.3.s8 %v305
    %v1106 = vunpack.c.3.s8 %v306
    %v1107 = vunpack.c.3.s8 %v307
    %v1108 = vunpack.c.0.s8 %v308
    %v1109 = vunpack.c.0.s8 %v309
    %v1110 = vunpack.c.0.s8 %v310
    %v1111 = vunpack.c.0.s8 %v311
    %v1112 = vunpack.c.0.s8 %v312
    %v1113 = vunpack.c.0.s8 %v313
    %v1114 = vunpack.c.0.s8 %v314
    %v1115 = vunpack.c.0.s8 %v315
    %v1116 = vunpack.c.1.s8 %v308
    %v1117 = vunpack.c.1.s8 %v309
    %v1118 = vunpack.c.1.s8 %v310
    %v1119 = vunpack.c.1.s8 %v311
    %v1120 = vunpack.c.1.s8 %v312
    %v1121 = vunpack.c.1.s8 %v313
    %v1122 = vunpack.c.1.s8 %v314
    %v1123 = vunpack.c.1.s8 %v315
    %v1124 = vunpack.c.2.s8 %v308
    %v1125 = vunpack.c.2.s8 %v309
    %v1126 = vunpack.c.2.s8 %v310
    %v1127 = vunpack.c.2.s8 %v311
    %v1128 = vunpack.c.2.s8 %v312
    %v1129 = vunpack.c.2.s8 %v313
    %v1130 = vunpack.c.2.s8 %v314
    %v1131 = vunpack.c.2.s8 %v315
    %v1132 = vunpack.c.3.s8 %v308
    %v1133 = vunpack.c.3.s8 %v309
    %v1134 = vunpack.c.3.s8 %v310
    %v1135 = vunpack.c.3.s8 %v311
    %v1136 = vunpack.c.3.s8 %v312
    %v1137 = vunpack.c.3.s8 %v313
    %v1138 = vunpack.c.3.s8 %v314
    %v1139 = vunpack.c.3.s8 %v315
    %v1140 = vunpack.c.0.s8 %v316
    %v1141 = vunpack.c.0.s8 %v317
    %v1142 = vunpack.c.0.s8 %v318
    %v1143 = vunpack.c.0.s8 %v319
    %v1144 = vunpack.c.0.s8 %v320
    %v1145 = vunpack.c.0.s8 %v321
    %v1146 = vunpack.c.0.s8 %v322
    %v1147 = vunpack.c.0.s8 %v323
    %v1148 = vunpack.c.1.s8 %v316
    %v1149 = vunpack.c.1.s8 %v317
    %v1150 = vunpack.c.1.s8 %v318
    %v1151 = vunpack.c.1.s8 %v319
    %v1152 = vunpack.c.1.s8 %v320
    %v1153 = vunpack.c.1.s8 %v321
    %v1154 = vunpack.c.1.s8 %v322
    %v1155 = vunpack.c.1.s8 %v323
    %v1156 = vunpack.c.2.s8 %v316
    %v1157 = vunpack.c.2.s8 %v317
    %v1158 = vunpack.c.2.s8 %v318
    %v1159 = vunpack.c.2.s8 %v319
    %v1160 = vunpack.c.2.s8 %v320
    %v1161 = vunpack.c.2.s8 %v321
    %v1162 = vunpack.c.2.s8 %v322
    %v1163 = vunpack.c.2.s8 %v323
    %v1164 = vunpack.c.3.s8 %v316
    %v1165 = vunpack.c.3.s8 %v317
    %v1166 = vunpack.c.3.s8 %v318
    %v1167 = vunpack.c.3.s8 %v319
    %v1168 = vunpack.c.3.s8 %v320
    %v1169 = vunpack.c.3.s8 %v321
    %v1170 = vunpack.c.3.s8 %v322
    %v1171 = vunpack.c.3.s8 %v323
    %v1172 = vunpack.c.0.s8 %v324
    %v1173 = vunpack.c.0.s8 %v325
    %v1174 = vunpack.c.0.s8 %v326
    %v1175 = vunpack.c.0.s8 %v327
    %v1176 = vunpack.c.0.s8 %v328
    %v1177 = vunpack.c.0.s8 %v329
    %v1178 = vunpack.c.0.s8 %v330
    %v1179 = vunpack.c.0.s8 %v331
    %v1180 = vunpack.c.1.s8 %v324
    %v1181 = vunpack.c.1.s8 %v325
    %v1182 = vunpack.c.1.s8 %v326
    %v1183 = vunpack.c.1.s8 %v327
    %v1184 = vunpack.c.1.s8 %v328
    %v1185 = vunpack.c.1.s8 %v329
    %v1186 = vunpack.c.1.s8 %v330
    %v1187 = vunpack.c.1.s8 %v331
    %v1188 = vunpack.c.2.s8 %v324
    %v1189 = vunpack.c.2.s8 %v325
    %v1190 = vunpack.c.2.s8 %v326
    %v1191 = vunpack.c.2.s8 %v327
    %v1192 = vunpack.c.2.s8 %v328
    %v1193 = vunpack.c.2.s8 %v329
    %v1194 = vunpack.c.2.s8 %v330
    %v1195 = vunpack.c.2.s8 %v331
    %v1196 = vunpack.c.3.s8 %v324
    %v1197 = vunpack.c.3.s8 %v325
    %v1198 = vunpack.c.3.s8 %v326
    %v1199 = vunpack.c.3.s8 %v327
    %v1200 = vunpack.c.3.s8 %v328
    %v1201 = vunpack.c.3.s8 %v329
    %v1202 = vunpack.c.3.s8 %v330
    %v1203 = vunpack.c.3.s8 %v331
    %v1204 = vunpack.c.0.s8 %v332
    %v1205 = vunpack.c.0.s8 %v333
    %v1206 = vunpack.c.0.s8 %v334
    %v1207 = vunpack.c.0.s8 %v335
    %v1208 = vunpack.c.0.s8 %v336
    %v1209 = vunpack.c.0.s8 %v337
    %v1210 = vunpack.c.0.s8 %v338
    %v1211 = vunpack.c.0.s8 %v339
    %v1212 = vunpack.c.1.s8 %v332
    %v1213 = vunpack.c.1.s8 %v333
    %v1214 = vunpack.c.1.s8 %v334
    %v1215 = vunpack.c.1.s8 %v335
    %v1216 = vunpack.c.1.s8 %v336
    %v1217 = vunpack.c.1.s8 %v337
    %v1218 = vunpack.c.1.s8 %v338
    %v1219 = vunpack.c.1.s8 %v339
    %v1220 = vunpack.c.2.s8 %v332
    %v1221 = vunpack.c.2.s8 %v333
    %v1222 = vunpack.c.2.s8 %v334
    %v1223 = vunpack.c.2.s8 %v335
    %v1224 = vunpack.c.2.s8 %v336
    %v1225 = vunpack.c.2.s8 %v337
    %v1226 = vunpack.c.2.s8 %v338
    %v1227 = vunpack.c.2.s8 %v339
    %v1228 = vunpack.c.3.s8 %v332
    %v1229 = vunpack.c.3.s8 %v333
    %v1230 = vunpack.c.3.s8 %v334
    %v1231 = vunpack.c.3.s8 %v335
    %v1232 = vunpack.c.3.s8 %v336
    %v1233 = vunpack.c.3.s8 %v337
    %v1234 = vunpack.c.3.s8 %v338
    %v1235 = vunpack.c.3.s8 %v339
    %v1236 = vunpack.c.0.s8 %v340
    %v1237 = vunpack.c.0.s8 %v341
    %v1238 = vunpack.c.0.s8 %v342
    %v1239 = vunpack.c.0.s8 %v343
    %v1240 = vunpack.c.0.s8 %v344
    %v1241 = vunpack.c.0.s8 %v345
    %v1242 = vunpack.c.0.s8 %v346
    %v1243 = vunpack.c.0.s8 %v347
    %v1244 = vunpack.c.1.s8 %v340
    %v1245 = vunpack.c.1.s8 %v341
    %v1246 = vunpack.c.1.s8 %v342
    %v1247 = vunpack.c.1.s8 %v343
    %v1248 = vunpack.c.1.s8 %v344
    %v1249 = vunpack.c.1.s8 %v345
    %v1250 = vunpack.c.1.s8 %v346
    %v1251 = vunpack.c.1.s8 %v347
    %v1252 = vunpack.c.2.s8 %v340
    %v1253 = vunpack.c.2.s8 %v341
    %v1254 = vunpack.c.2.s8 %v342
    %v1255 = vunpack.c.2.s8 %v343
    %v1256 = vunpack.c.2.s8 %v344
    %v1257 = vunpack.c.2.s8 %v345
    %v1258 = vunpack.c.2.s8 %v346
    %v1259 = vunpack.c.2.s8 %v347
    %v1260 = vunpack.c.3.s8 %v340
    %v1261 = vunpack.c.3.s8 %v341
    %v1262 = vunpack.c.3.s8 %v342
    %v1263 = vunpack.c.3.s8 %v343
    %v1264 = vunpack.c.3.s8 %v344
    %v1265 = vunpack.c.3.s8 %v345
    %v1266 = vunpack.c.3.s8 %v346
    %v1267 = vunpack.c.3.s8 %v347
    %v1268 = vunpack.c.0.s8 %v348
    %v1269 = vunpack.c.0.s8 %v349
    %v1270 = vunpack.c.0.s8 %v350
    %v1271 = vunpack.c.0.s8 %v351
    %v1272 = vunpack.c.0.s8 %v352
    %v1273 = vunpack.c.0.s8 %v353
    %v1274 = vunpack.c.0.s8 %v354
    %v1275 = vunpack.c.0.s8 %v355
    %v1276 = vunpack.c.1.s8 %v348
    %v1277 = vunpack.c.1.s8 %v349
    %v1278 = vunpack.c.1.s8 %v350
    %v1279 = vunpack.c.1.s8 %v351
    %v1280 = vunpack.c.1.s8 %v352
    %v1281 = vunpack.c.1.s8 %v353
    %v1282 = vunpack.c.1.s8 %v354
    %v1283 = vunpack.c.1.s8 %v355
    %v1284 = vunpack.c.2.s8 %v348
    %v1285 = vunpack.c.2.s8 %v349
    %v1286 = vunpack.c.2.s8 %v350
    %v1287 = vunpack.c.2.s8 %v351
    %v1288 = vunpack.c.2.s8 %v352
    %v1289 = vunpack.c.2.s8 %v353
    %v1290 = vunpack.c.2.s8 %v354
    %v1291 = vunpack.c.2.s8 %v355
    %v1292 = vunpack.c.3.s8 %v348
    %v1293 = vunpack.c.3.s8 %v349
    %v1294 = vunpack.c.3.s8 %v350
    %v1295 = vunpack.c.3.s8 %v351
    %v1296 = vunpack.c.3.s8 %v352
    %v1297 = vunpack.c.3.s8 %v353
    %v1298 = vunpack.c.3.s8 %v354
    %v1299 = vunpack.c.3.s8 %v355
    %v1300 = vunpack.c.0.s8 %v356
    %v1301 = vunpack.c.0.s8 %v357
    %v1302 = vunpack.c.0.s8 %v358
    %v1303 = vunpack.c.0.s8 %v359
    %v1304 = vunpack.c.0.s8 %v360
    %v1305 = vunpack.c.0.s8 %v361
    %v1306 = vunpack.c.0.s8 %v362
    %v1307 = vunpack.c.0.s8 %v363
    %v1308 = vunpack.c.1.s8 %v356
    %v1309 = vunpack.c.1.s8 %v357
    %v1310 = vunpack.c.1.s8 %v358
    %v1311 = vunpack.c.1.s8 %v359
    %v1312 = vunpack.c.1.s8 %v360
    %v1313 = vunpack.c.1.s8 %v361
    %v1314 = vunpack.c.1.s8 %v362
    %v1315 = vunpack.c.1.s8 %v363
    %v1316 = vunpack.c.2.s8 %v356
    %v1317 = vunpack.c.2.s8 %v357
    %v1318 = vunpack.c.2.s8 %v358
    %v1319 = vunpack.c.2.s8 %v359
    %v1320 = vunpack.c.2.s8 %v360
    %v1321 = vunpack.c.2.s8 %v361
    %v1322 = vunpack.c.2.s8 %v362
    %v1323 = vunpack.c.2.s8 %v363
    %v1324 = vunpack.c.3.s8 %v356
    %v1325 = vunpack.c.3.s8 %v357
    %v1326 = vunpack.c.3.s8 %v358
    %v1327 = vunpack.c.3.s8 %v359
    %v1328 = vunpack.c.3.s8 %v360
    %v1329 = vunpack.c.3.s8 %v361
    %v1330 = vunpack.c.3.s8 %v362
    %v1331 = vunpack.c.3.s8 %v363
    %v1332 = vunpack.c.0.s8 %v364
    %v1333 = vunpack.c.0.s8 %v365
    %v1334 = vunpack.c.0.s8 %v366
    %v1335 = vunpack.c.0.s8 %v367
    %v1336 = vunpack.c.0.s8 %v368
    %v1337 = vunpack.c.0.s8 %v369
    %v1338 = vunpack.c.0.s8 %v370
    %v1339 = vunpack.c.0.s8 %v371
    %v1340 = vunpack.c.1.s8 %v364
    %v1341 = vunpack.c.1.s8 %v365
    %v1342 = vunpack.c.1.s8 %v366
    %v1343 = vunpack.c.1.s8 %v367
    %v1344 = vunpack.c.1.s8 %v368
    %v1345 = vunpack.c.1.s8 %v369
    %v1346 = vunpack.c.1.s8 %v370
    %v1347 = vunpack.c.1.s8 %v371
    %v1348 = vunpack.c.2.s8 %v364
    %v1349 = vunpack.c.2.s8 %v365
    %v1350 = vunpack.c.2.s8 %v366
    %v1351 = vunpack.c.2.s8 %v367
    %v1352 = vunpack.c.2.s8 %v368
    %v1353 = vunpack.c.2.s8 %v369
    %v1354 = vunpack.c.2.s8 %v370
    %v1355 = vunpack.c.2.s8 %v371
    %v1356 = vunpack.c.3.s8 %v364
    %v1357 = vunpack.c.3.s8 %v365
    %v1358 = vunpack.c.3.s8 %v366
    %v1359 = vunpack.c.3.s8 %v367
    %v1360 = vunpack.c.3.s8 %v368
    %v1361 = vunpack.c.3.s8 %v369
    %v1362 = vunpack.c.3.s8 %v370
    %v1363 = vunpack.c.3.s8 %v371
    %v1364 = vunpack.c.0.s8 %v372
    %v1365 = vunpack.c.0.s8 %v373
    %v1366 = vunpack.c.0.s8 %v374
    %v1367 = vunpack.c.0.s8 %v375
    %v1368 = vunpack.c.0.s8 %v376
    %v1369 = vunpack.c.0.s8 %v377
    %v1370 = vunpack.c.0.s8 %v378
    %v1371 = vunpack.c.0.s8 %v379
    %v1372 = vunpack.c.1.s8 %v372
    %v1373 = vunpack.c.1.s8 %v373
    %v1374 = vunpack.c.1.s8 %v374
    %v1375 = vunpack.c.1.s8 %v375
    %v1376 = vunpack.c.1.s8 %v376
    %v1377 = vunpack.c.1.s8 %v377
    %v1378 = vunpack.c.1.s8 %v378
    %v1379 = vunpack.c.1.s8 %v379
    %v1380 = vunpack.c.2.s8 %v372
    %v1381 = vunpack.c.2.s8 %v373
    %v1382 = vunpack.c.2.s8 %v374
    %v1383 = vunpack.c.2.s8 %v375
    %v1384 = vunpack.c.2.s8 %v376
    %v1385 = vunpack.c.2.s8 %v377
    %v1386 = vunpack.c.2.s8 %v378
    %v1387 = vunpack.c.2.s8 %v379
    %v1388 = vunpack.c.3.s8 %v372
    %v1389 = vunpack.c.3.s8 %v373
    %v1390 = vunpack.c.3.s8 %v374
    %v1391 = vunpack.c.3.s8 %v375
    %v1392 = vunpack.c.3.s8 %v376
    %v1393 = vunpack.c.3.s8 %v377
    %v1394 = vunpack.c.3.s8 %v378
    %v1395 = vunpack.c.3.s8 %v379
    %v1396 = vunpack.c.0.s8 %v380
    %v1397 = vunpack.c.0.s8 %v381
    %v1398 = vunpack.c.0.s8 %v382
    %v1399 = vunpack.c.0.s8 %v383
    %v1400 = vunpack.c.0.s8 %v384
    %v1401 = vunpack.c.0.s8 %v385
    %v1402 = vunpack.c.0.s8 %v386
    %v1403 = vunpack.c.0.s8 %v387
    %v1404 = vunpack.c.1.s8 %v380
    %v1405 = vunpack.c.1.s8 %v381
    %v1406 = vunpack.c.1.s8 %v382
    %v1407 = vunpack.c.1.s8 %v383
    %v1408 = vunpack.c.1.s8 %v384
    %v1409 = vunpack.c.1.s8 %v385
    %v1410 = vunpack.c.1.s8 %v386
    %v1411 = vunpack.c.1.s8 %v387
    %v1412 = vunpack.c.2.s8 %v380
    %v1413 = vunpack.c.2.s8 %v381
    %v1414 = vunpack.c.2.s8 %v382
    %v1415 = vunpack.c.2.s8 %v383
    %v1416 = vunpack.c.2.s8 %v384
    %v1417 = vunpack.c.2.s8 %v385
    %v1418 = vunpack.c.2.s8 %v386
    %v1419 = vunpack.c.2.s8 %v387
    %v1420 = vunpack.c.3.s8 %v380
    %v1421 = vunpack.c.3.s8 %v381
    %v1422 = vunpack.c.3.s8 %v382
    %v1423 = vunpack.c.3.s8 %v383
    %v1424 = vunpack.c.3.s8 %v384
    %v1425 = vunpack.c.3.s8 %v385
    %v1426 = vunpack.c.3.s8 %v386
    %v1427 = vunpack.c.3.s8 %v387
    %v1428 = vunpack.c.0.s8 %v388
    %v1429 = vunpack.c.0.s8 %v389
    %v1430 = vunpack.c.0.s8 %v390
    %v1431 = vunpack.c.0.s8 %v391
    %v1432 = vunpack.c.0.s8 %v392
    %v1433 = vunpack.c.0.s8 %v393
    %v1434 = vunpack.c.0.s8 %v394
    %v1435 = vunpack.c.0.s8 %v395
    %v1436 = vunpack.c.1.s8 %v388
    %v1437 = vunpack.c.1.s8 %v389
    %v1438 = vunpack.c.1.s8 %v390
    %v1439 = vunpack.c.1.s8 %v391
    %v1440 = vunpack.c.1.s8 %v392
    %v1441 = vunpack.c.1.s8 %v393
    %v1442 = vunpack.c.1.s8 %v394
    %v1443 = vunpack.c.1.s8 %v395
    %v1444 = vunpack.c.2.s8 %v388
    %v1445 = vunpack.c.2.s8 %v389
    %v1446 = vunpack.c.2.s8 %v390
    %v1447 = vunpack.c.2.s8 %v391
    %v1448 = vunpack.c.2.s8 %v392
    %v1449 = vunpack.c.2.s8 %v393
    %v1450 = vunpack.c.2.s8 %v394
    %v1451 = vunpack.c.2.s8 %v395
    %v1452 = vunpack.c.3.s8 %v388
    %v1453 = vunpack.c.3.s8 %v389
    %v1454 = vunpack.c.3.s8 %v390
    %v1455 = vunpack.c.3.s8 %v391
    %v1456 = vunpack.c.3.s8 %v392
    %v1457 = vunpack.c.3.s8 %v393
    %v1458 = vunpack.c.3.s8 %v394
    %v1459 = vunpack.c.3.s8 %v395
    %v1460 = vunpack.c.0.s8 %v396
    %v1461 = vunpack.c.0.s8 %v397
    %v1462 = vunpack.c.0.s8 %v398
    %v1463 = vunpack.c.0.s8 %v399
    %v1464 = vunpack.c.0.s8 %v400
    %v1465 = vunpack.c.0.s8 %v401
    %v1466 = vunpack.c.0.s8 %v402
    %v1467 = vunpack.c.0.s8 %v403
    %v1468 = vunpack.c.1.s8 %v396
    %v1469 = vunpack.c.1.s8 %v397
    %v1470 = vunpack.c.1.s8 %v398
    %v1471 = vunpack.c.1.s8 %v399
    %v1472 = vunpack.c.1.s8 %v400
    %v1473 = vunpack.c.1.s8 %v401
    %v1474 = vunpack.c.1.s8 %v402
    %v1475 = vunpack.c.1.s8 %v403
    %v1476 = vunpack.c.2.s8 %v396
    %v1477 = vunpack.c.2.s8 %v397
    %v1478 = vunpack.c.2.s8 %v398
    %v1479 = vunpack.c.2.s8 %v399
    %v1480 = vunpack.c.2.s8 %v400
    %v1481 = vunpack.c.2.s8 %v401
    %v1482 = vunpack.c.2.s8 %v402
    %v1483 = vunpack.c.2.s8 %v403
    %v1484 = vunpack.c.3.s8 %v396
    %v1485 = vunpack.c.3.s8 %v397
    %v1486 = vunpack.c.3.s8 %v398
    %v1487 = vunpack.c.3.s8 %v399
    %v1488 = vunpack.c.3.s8 %v400
    %v1489 = vunpack.c.3.s8 %v401
    %v1490 = vunpack.c.3.s8 %v402
    %v1491 = vunpack.c.3.s8 %v403
    %v1492 = vunpack.c.0.s8 %v404
    %v1493 = vunpack.c.0.s8 %v405
    %v1494 = vunpack.c.0.s8 %v406
    %v1495 = vunpack.c.0.s8 %v407
    %v1496 = vunpack.c.0.s8 %v408
    %v1497 = vunpack.c.0.s8 %v409
    %v1498 = vunpack.c.0.s8 %v410
    %v1499 = vunpack.c.0.s8 %v411
    %v1500 = vunpack.c.1.s8 %v404
    %v1501 = vunpack.c.1.s8 %v405
    %v1502 = vunpack.c.1.s8 %v406
    %v1503 = vunpack.c.1.s8 %v407
    %v1504 = vunpack.c.1.s8 %v408
    %v1505 = vunpack.c.1.s8 %v409
    %v1506 = vunpack.c.1.s8 %v410
    %v1507 = vunpack.c.1.s8 %v411
    %v1508 = vunpack.c.2.s8 %v404
    %v1509 = vunpack.c.2.s8 %v405
    %v1510 = vunpack.c.2.s8 %v406
    %v1511 = vunpack.c.2.s8 %v407
    %v1512 = vunpack.c.2.s8 %v408
    %v1513 = vunpack.c.2.s8 %v409
    %v1514 = vunpack.c.2.s8 %v410
    %v1515 = vunpack.c.2.s8 %v411
    %v1516 = vunpack.c.3.s8 %v404
    %v1517 = vunpack.c.3.s8 %v405
    %v1518 = vunpack.c.3.s8 %v406
    %v1519 = vunpack.c.3.s8 %v407
    %v1520 = vunpack.c.3.s8 %v408
    %v1521 = vunpack.c.3.s8 %v409
    %v1522 = vunpack.c.3.s8 %v410
    %v1523 = vunpack.c.3.s8 %v411
    %v1524 = vunpack.c.0.s8 %v412
    %v1525 = vunpack.c.0.s8 %v413
    %v1526 = vunpack.c.0.s8 %v414
    %v1527 = vunpack.c.0.s8 %v415
    %v1528 = vunpack.c.0.s8 %v416
    %v1529 = vunpack.c.0.s8 %v417
    %v1530 = vunpack.c.0.s8 %v418
    %v1531 = vunpack.c.0.s8 %v419
    %v1532 = vunpack.c.1.s8 %v412
    %v1533 = vunpack.c.1.s8 %v413
    %v1534 = vunpack.c.1.s8 %v414
    %v1535 = vunpack.c.1.s8 %v415
    %v1536 = vunpack.c.1.s8 %v416
    %v1537 = vunpack.c.1.s8 %v417
    %v1538 = vunpack.c.1.s8 %v418
    %v1539 = vunpack.c.1.s8 %v419
    %v1540 = vunpack.c.2.s8 %v412
    %v1541 = vunpack.c.2.s8 %v413
    %v1542 = vunpack.c.2.s8 %v414
    %v1543 = vunpack.c.2.s8 %v415
    %v1544 = vunpack.c.2.s8 %v416
    %v1545 = vunpack.c.2.s8 %v417
    %v1546 = vunpack.c.2.s8 %v418
    %v1547 = vunpack.c.2.s8 %v419
    %v1548 = vunpack.c.3.s8 %v412
    %v1549 = vunpack.c.3.s8 %v413
    %v1550 = vunpack.c.3.s8 %v414
    %v1551 = vunpack.c.3.s8 %v415
    %v1552 = vunpack.c.3.s8 %v416
    %v1553 = vunpack.c.3.s8 %v417
    %v1554 = vunpack.c.3.s8 %v418
    %v1555 = vunpack.c.3.s8 %v419
    %v1556 = vunpack.c.0.s8 %v420
    %v1557 = vunpack.c.0.s8 %v421
    %v1558 = vunpack.c.0.s8 %v422
    %v1559 = vunpack.c.0.s8 %v423
    %v1560 = vunpack.c.0.s8 %v424
    %v1561 = vunpack.c.0.s8 %v425
    %v1562 = vunpack.c.0.s8 %v426
    %v1563 = vunpack.c.0.s8 %v427
    %v1564 = vunpack.c.1.s8 %v420
    %v1565 = vunpack.c.1.s8 %v421
    %v1566 = vunpack.c.1.s8 %v422
    %v1567 = vunpack.c.1.s8 %v423
    %v1568 = vunpack.c.1.s8 %v424
    %v1569 = vunpack.c.1.s8 %v425
    %v1570 = vunpack.c.1.s8 %v426
    %v1571 = vunpack.c.1.s8 %v427
    %v1572 = vunpack.c.2.s8 %v420
    %v1573 = vunpack.c.2.s8 %v421
    %v1574 = vunpack.c.2.s8 %v422
    %v1575 = vunpack.c.2.s8 %v423
    %v1576 = vunpack.c.2.s8 %v424
    %v1577 = vunpack.c.2.s8 %v425
    %v1578 = vunpack.c.2.s8 %v426
    %v1579 = vunpack.c.2.s8 %v427
    %v1580 = vunpack.c.3.s8 %v420
    %v1581 = vunpack.c.3.s8 %v421
    %v1582 = vunpack.c.3.s8 %v422
    %v1583 = vunpack.c.3.s8 %v423
    %v1584 = vunpack.c.3.s8 %v424
    %v1585 = vunpack.c.3.s8 %v425
    %v1586 = vunpack.c.3.s8 %v426
    %v1587 = vunpack.c.3.s8 %v427
    %v1588 = vunpack.c.0.s8 %v428
    %v1589 = vunpack.c.0.s8 %v429
    %v1590 = vunpack.c.0.s8 %v430
    %v1591 = vunpack.c.0.s8 %v431
    %v1592 = vunpack.c.0.s8 %v432
    %v1593 = vunpack.c.0.s8 %v433
    %v1594 = vunpack.c.0.s8 %v434
    %v1595 = vunpack.c.0.s8 %v435
    %v1596 = vunpack.c.1.s8 %v428
    %v1597 = vunpack.c.1.s8 %v429
    %v1598 = vunpack.c.1.s8 %v430
    %v1599 = vunpack.c.1.s8 %v431
    %v1600 = vunpack.c.1.s8 %v432
    %v1601 = vunpack.c.1.s8 %v433
    %v1602 = vunpack.c.1.s8 %v434
    %v1603 = vunpack.c.1.s8 %v435
    %v1604 = vunpack.c.2.s8 %v428
    %v1605 = vunpack.c.2.s8 %v429
    %v1606 = vunpack.c.2.s8 %v430
    %v1607 = vunpack.c.2.s8 %v431
    %v1608 = vunpack.c.2.s8 %v432
    %v1609 = vunpack.c.2.s8 %v433
    %v1610 = vunpack.c.2.s8 %v434
    %v1611 = vunpack.c.2.s8 %v435
    %v1612 = vunpack.c.3.s8 %v428
    %v1613 = vunpack.c.3.s8 %v429
    %v1614 = vunpack.c.3.s8 %v430
    %v1615 = vunpack.c.3.s8 %v431
    %v1616 = vunpack.c.3.s8 %v432
    %v1617 = vunpack.c.3.s8 %v433
    %v1618 = vunpack.c.3.s8 %v434
    %v1619 = vunpack.c.3.s8 %v435
    %v1620 = vunpack.c.0.s8 %v436
    %v1621 = vunpack.c.0.s8 %v437
    %v1622 = vunpack.c.0.s8 %v438
    %v1623 = vunpack.c.0.s8 %v439
    %v1624 = vunpack.c.0.s8 %v440
    %v1625 = vunpack.c.0.s8 %v441
    %v1626 = vunpack.c.0.s8 %v442
    %v1627 = vunpack.c.0.s8 %v443
    %v1628 = vunpack.c.1.s8 %v436
    %v1629 = vunpack.c.1.s8 %v437
    %v1630 = vunpack.c.1.s8 %v438
    %v1631 = vunpack.c.1.s8 %v439
    %v1632 = vunpack.c.1.s8 %v440
    %v1633 = vunpack.c.1.s8 %v441
    %v1634 = vunpack.c.1.s8 %v442
    %v1635 = vunpack.c.1.s8 %v443
    %v1636 = vunpack.c.2.s8 %v436
    %v1637 = vunpack.c.2.s8 %v437
    %v1638 = vunpack.c.2.s8 %v438
    %v1639 = vunpack.c.2.s8 %v439
    %v1640 = vunpack.c.2.s8 %v440
    %v1641 = vunpack.c.2.s8 %v441
    %v1642 = vunpack.c.2.s8 %v442
    %v1643 = vunpack.c.2.s8 %v443
    %v1644 = vunpack.c.3.s8 %v436
    %v1645 = vunpack.c.3.s8 %v437
    %v1646 = vunpack.c.3.s8 %v438
    %v1647 = vunpack.c.3.s8 %v439
    %v1648 = vunpack.c.3.s8 %v440
    %v1649 = vunpack.c.3.s8 %v441
    %v1650 = vunpack.c.3.s8 %v442
    %v1651 = vunpack.c.3.s8 %v443
    %v1652 = vunpack.c.0.s8 %v444
    %v1653 = vunpack.c.0.s8 %v445
    %v1654 = vunpack.c.0.s8 %v446
    %v1655 = vunpack.c.0.s8 %v447
    %v1656 = vunpack.c.0.s8 %v448
    %v1657 = vunpack.c.0.s8 %v449
    %v1658 = vunpack.c.0.s8 %v450
    %v1659 = vunpack.c.0.s8 %v451
    %v1660 = vunpack.c.1.s8 %v444
    %v1661 = vunpack.c.1.s8 %v445
    %v1662 = vunpack.c.1.s8 %v446
    %v1663 = vunpack.c.1.s8 %v447
    %v1664 = vunpack.c.1.s8 %v448
    %v1665 = vunpack.c.1.s8 %v449
    %v1666 = vunpack.c.1.s8 %v450
    %v1667 = vunpack.c.1.s8 %v451
    %v1668 = vunpack.c.2.s8 %v444
    %v1669 = vunpack.c.2.s8 %v445
    %v1670 = vunpack.c.2.s8 %v446
    %v1671 = vunpack.c.2.s8 %v447
    %v1672 = vunpack.c.2.s8 %v448
    %v1673 = vunpack.c.2.s8 %v449
    %v1674 = vunpack.c.2.s8 %v450
    %v1675 = vunpack.c.2.s8 %v451
    %v1676 = vunpack.c.3.s8 %v444
    %v1677 = vunpack.c.3.s8 %v445
    %v1678 = vunpack.c.3.s8 %v446
    %v1679 = vunpack.c.3.s8 %v447
    %v1680 = vunpack.c.3.s8 %v448
    %v1681 = vunpack.c.3.s8 %v449
    %v1682 = vunpack.c.3.s8 %v450
    %v1683 = vunpack.c.3.s8 %v451
    %v1684 = vunpack.c.0.s8 %v452
    %v1685 = vunpack.c.0.s8 %v453
    %v1686 = vunpack.c.0.s8 %v454
    %v1687 = vunpack.c.0.s8 %v455
    %v1688 = vunpack.c.0.s8 %v456
    %v1689 = vunpack.c.0.s8 %v457
    %v1690 = vunpack.c.0.s8 %v458
    %v1691 = vunpack.c.0.s8 %v459
    %v1692 = vunpack.c.1.s8 %v452
    %v1693 = vunpack.c.1.s8 %v453
    %v1694 = vunpack.c.1.s8 %v454
    %v1695 = vunpack.c.1.s8 %v455
    %v1696 = vunpack.c.1.s8 %v456
    %v1697 = vunpack.c.1.s8 %v457
    %v1698 = vunpack.c.1.s8 %v458
    %v1699 = vunpack.c.1.s8 %v459
    %v1700 = vunpack.c.2.s8 %v452
    %v1701 = vunpack.c.2.s8 %v453
    %v1702 = vunpack.c.2.s8 %v454
    %v1703 = vunpack.c.2.s8 %v455
    %v1704 = vunpack.c.2.s8 %v456
    %v1705 = vunpack.c.2.s8 %v457
    %v1706 = vunpack.c.2.s8 %v458
    %v1707 = vunpack.c.2.s8 %v459
    %v1708 = vunpack.c.3.s8 %v452
    %v1709 = vunpack.c.3.s8 %v453
    %v1710 = vunpack.c.3.s8 %v454
    %v1711 = vunpack.c.3.s8 %v455
    %v1712 = vunpack.c.3.s8 %v456
    %v1713 = vunpack.c.3.s8 %v457
    %v1714 = vunpack.c.3.s8 %v458
    %v1715 = vunpack.c.3.s8 %v459
    %v1716 = vunpack.c.0.s8 %v460
    %v1717 = vunpack.c.0.s8 %v461
    %v1718 = vunpack.c.0.s8 %v462
    %v1719 = vunpack.c.0.s8 %v463
    %v1720 = vunpack.c.0.s8 %v464
    %v1721 = vunpack.c.0.s8 %v465
    %v1722 = vunpack.c.0.s8 %v466
    %v1723 = vunpack.c.0.s8 %v467
    %v1724 = vunpack.c.1.s8 %v460
    %v1725 = vunpack.c.1.s8 %v461
    %v1726 = vunpack.c.1.s8 %v462
    %v1727 = vunpack.c.1.s8 %v463
    %v1728 = vunpack.c.1.s8 %v464
    %v1729 = vunpack.c.1.s8 %v465
    %v1730 = vunpack.c.1.s8 %v466
    %v1731 = vunpack.c.1.s8 %v467
    %v1732 = vunpack.c.2.s8 %v460
    %v1733 = vunpack.c.2.s8 %v461
    %v1734 = vunpack.c.2.s8 %v462
    %v1735 = vunpack.c.2.s8 %v463
    %v1736 = vunpack.c.2.s8 %v464
    %v1737 = vunpack.c.2.s8 %v465
    %v1738 = vunpack.c.2.s8 %v466
    %v1739 = vunpack.c.2.s8 %v467
    %v1740 = vunpack.c.3.s8 %v460
    %v1741 = vunpack.c.3.s8 %v461
    %v1742 = vunpack.c.3.s8 %v462
    %v1743 = vunpack.c.3.s8 %v463
    %v1744 = vunpack.c.3.s8 %v464
    %v1745 = vunpack.c.3.s8 %v465
    %v1746 = vunpack.c.3.s8 %v466
    %v1747 = vunpack.c.3.s8 %v467
    %v1748 = vcvt.s32.f32 %v468
    %v1749 = vcvt.s32.f32 %v469
    %v1750 = vcvt.s32.f32 %v470
    %v1751 = vcvt.s32.f32 %v471
    %v1752 = vcvt.s32.f32 %v472
    %v1753 = vcvt.s32.f32 %v473
    %v1754 = vcvt.s32.f32 %v474
    %v1755 = vcvt.s32.f32 %v475
    %v1756 = vcvt.s32.f32 %v476
    %v1757 = vcvt.s32.f32 %v477
    %v1758 = vcvt.s32.f32 %v478
    %v1759 = vcvt.s32.f32 %v479
    %v1760 = vcvt.s32.f32 %v480
    %v1761 = vcvt.s32.f32 %v481
    %v1762 = vcvt.s32.f32 %v482
    %v1763 = vcvt.s32.f32 %v483
    %v1764 = vcvt.s32.f32 %v484
    %v1765 = vcvt.s32.f32 %v485
    %v1766 = vcvt.s32.f32 %v486
    %v1767 = vcvt.s32.f32 %v487
    %v1768 = vcvt.s32.f32 %v488
    %v1769 = vcvt.s32.f32 %v489
    %v1770 = vcvt.s32.f32 %v490
    %v1771 = vcvt.s32.f32 %v491
    %v1772 = vcvt.s32.f32 %v492
    %v1773 = vcvt.s32.f32 %v493
    %v1774 = vcvt.s32.f32 %v494
    %v1775 = vcvt.s32.f32 %v495
    %v1776 = vcvt.s32.f32 %v496
    %v1777 = vcvt.s32.f32 %v497
    %v1778 = vcvt.s32.f32 %v498
    %v1779 = vcvt.s32.f32 %v499
    %v1780 = vcvt.s32.f32 %v500
    %v1781 = vcvt.s32.f32 %v501
    %v1782 = vcvt.s32.f32 %v502
    %v1783 = vcvt.s32.f32 %v503
    %v1784 = vcvt.s32.f32 %v504
    %v1785 = vcvt.s32.f32 %v505
    %v1786 = vcvt.s32.f32 %v506
    %v1787 = vcvt.s32.f32 %v507
    %v1788 = vcvt.s32.f32 %v508
    %v1789 = vcvt.s32.f32 %v509
    %v1790 = vcvt.s32.f32 %v510
    %v1791 = vcvt.s32.f32 %v511
    %v1792 = vcvt.s32.f32 %v512
    %v1793 = vcvt.s32.f32 %v513
    %v1794 = vcvt.s32.f32 %v514
    %v1795 = vcvt.s32.f32 %v515
    %v1796 = vcvt.s32.f32 %v516
    %v1797 = vcvt.s32.f32 %v517
    %v1798 = vcvt.s32.f32 %v518
    %v1799 = vcvt.s32.f32 %v519
    %v1800 = vcvt.s32.f32 %v520
    %v1801 = vcvt.s32.f32 %v521
    %v1802 = vcvt.s32.f32 %v522
    %v1803 = vcvt.s32.f32 %v523
    %v1804 = vcvt.s32.f32 %v524
    %v1805 = vcvt.s32.f32 %v525
    %v1806 = vcvt.s32.f32 %v526
    %v1807 = vcvt.s32.f32 %v527
    %v1808 = vcvt.s32.f32 %v528
    %v1809 = vcvt.s32.f32 %v529
    %v1810 = vcvt.s32.f32 %v530
    %v1811 = vcvt.s32.f32 %v531
    %v1812 = vcvt.s32.f32 %v532
    %v1813 = vcvt.s32.f32 %v533
    %v1814 = vcvt.s32.f32 %v534
    %v1815 = vcvt.s32.f32 %v535
    %v1816 = vcvt.s32.f32 %v536
    %v1817 = vcvt.s32.f32 %v537
    %v1818 = vcvt.s32.f32 %v538
    %v1819 = vcvt.s32.f32 %v539
    %v1820 = vcvt.s32.f32 %v540
    %v1821 = vcvt.s32.f32 %v541
    %v1822 = vcvt.s32.f32 %v542
    %v1823 = vcvt.s32.f32 %v543
    %v1824 = vcvt.s32.f32 %v544
    %v1825 = vcvt.s32.f32 %v545
    %v1826 = vcvt.s32.f32 %v546
    %v1827 = vcvt.s32.f32 %v547
    %v1828 = vcvt.s32.f32 %v548
    %v1829 = vcvt.s32.f32 %v549
    %v1830 = vcvt.s32.f32 %v550
    %v1831 = vcvt.s32.f32 %v551
    %v1832 = vcvt.s32.f32 %v552
    %v1833 = vcvt.s32.f32 %v553
    %v1834 = vcvt.s32.f32 %v554
    %v1835 = vcvt.s32.f32 %v555
    %v1836 = vcvt.s32.f32 %v556
    %v1837 = vcvt.s32.f32 %v557
    %v1838 = vcvt.s32.f32 %v558
    %v1839 = vcvt.s32.f32 %v559
    %v1840 = vcvt.s32.f32 %v560
    %v1841 = vcvt.s32.f32 %v561
    %v1842 = vcvt.s32.f32 %v562
    %v1843 = vcvt.s32.f32 %v563
    %v1844 = vcvt.s32.f32 %v564
    %v1845 = vcvt.s32.f32 %v565
    %v1846 = vcvt.s32.f32 %v566
    %v1847 = vcvt.s32.f32 %v567
    %v1848 = vcvt.s32.f32 %v568
    %v1849 = vcvt.s32.f32 %v569
    %v1850 = vcvt.s32.f32 %v570
    %v1851 = vcvt.s32.f32 %v571
    %v1852 = vcvt.s32.f32 %v572
    %v1853 = vcvt.s32.f32 %v573
    %v1854 = vcvt.s32.f32 %v574
    %v1855 = vcvt.s32.f32 %v575
    %v1856 = vcvt.s32.f32 %v576
    %v1857 = vcvt.s32.f32 %v577
    %v1858 = vcvt.s32.f32 %v578
    %v1859 = vcvt.s32.f32 %v579
    %v1860 = vcvt.s32.f32 %v580
    %v1861 = vcvt.s32.f32 %v581
    %v1862 = vcvt.s32.f32 %v582
    %v1863 = vcvt.s32.f32 %v583
    %v1864 = vcvt.s32.f32 %v584
    %v1865 = vcvt.s32.f32 %v585
    %v1866 = vcvt.s32.f32 %v586
    %v1867 = vcvt.s32.f32 %v587
    %v1868 = vcvt.s32.f32 %v588
    %v1869 = vcvt.s32.f32 %v589
    %v1870 = vcvt.s32.f32 %v590
    %v1871 = vcvt.s32.f32 %v591
    %v1872 = vcvt.s32.f32 %v592
    %v1873 = vcvt.s32.f32 %v593
    %v1874 = vcvt.s32.f32 %v594
    %v1875 = vcvt.s32.f32 %v595
    %v1876 = vcvt.s32.f32 %v596
    %v1877 = vcvt.s32.f32 %v597
    %v1878 = vcvt.s32.f32 %v598
    %v1879 = vcvt.s32.f32 %v599
    %v1880 = vcvt.s32.f32 %v600
    %v1881 = vcvt.s32.f32 %v601
    %v1882 = vcvt.s32.f32 %v602
    %v1883 = vcvt.s32.f32 %v603
    %v1884 = vcvt.s32.f32 %v604
    %v1885 = vcvt.s32.f32 %v605
    %v1886 = vcvt.s32.f32 %v606
    %v1887 = vcvt.s32.f32 %v607
    %v1888 = vcvt.s32.f32 %v608
    %v1889 = vcvt.s32.f32 %v609
    %v1890 = vcvt.s32.f32 %v610
    %v1891 = vcvt.s32.f32 %v611
    %v1892 = vcvt.s32.f32 %v612
    %v1893 = vcvt.s32.f32 %v613
    %v1894 = vcvt.s32.f32 %v614
    %v1895 = vcvt.s32.f32 %v615
    %v1896 = vcvt.s32.f32 %v616
    %v1897 = vcvt.s32.f32 %v617
    %v1898 = vcvt.s32.f32 %v618
    %v1899 = vcvt.s32.f32 %v619
    %v1900 = vcvt.s32.f32 %v620
    %v1901 = vcvt.s32.f32 %v621
    %v1902 = vcvt.s32.f32 %v622
    %v1903 = vcvt.s32.f32 %v623
    %v1904 = vcvt.s32.f32 %v624
    %v1905 = vcvt.s32.f32 %v625
    %v1906 = vcvt.s32.f32 %v626
    %v1907 = vcvt.s32.f32 %v627
    %v1908 = vcvt.s32.f32 %v628
    %v1909 = vcvt.s32.f32 %v629
    %v1910 = vcvt.s32.f32 %v630
    %v1911 = vcvt.s32.f32 %v631
    %v1912 = vcvt.s32.f32 %v632
    %v1913 = vcvt.s32.f32 %v633
    %v1914 = vcvt.s32.f32 %v634
    %v1915 = vcvt.s32.f32 %v635
    %v1916 = vcvt.s32.f32 %v636
    %v1917 = vcvt.s32.f32 %v637
    %v1918 = vcvt.s32.f32 %v638
    %v1919 = vcvt.s32.f32 %v639
    %v1920 = vcvt.s32.f32 %v640
    %v1921 = vcvt.s32.f32 %v641
    %v1922 = vcvt.s32.f32 %v642
    %v1923 = vcvt.s32.f32 %v643
    %v1924 = vcvt.s32.f32 %v644
    %v1925 = vcvt.s32.f32 %v645
    %v1926 = vcvt.s32.f32 %v646
    %v1927 = vcvt.s32.f32 %v647
    %v1928 = vcvt.s32.f32 %v648
    %v1929 = vcvt.s32.f32 %v649
    %v1930 = vcvt.s32.f32 %v650
    %v1931 = vcvt.s32.f32 %v651
    %v1932 = vcvt.s32.f32 %v652
    %v1933 = vcvt.s32.f32 %v653
    %v1934 = vcvt.s32.f32 %v654
    %v1935 = vcvt.s32.f32 %v655
    %v1936 = vcvt.s32.f32 %v656
    %v1937 = vcvt.s32.f32 %v657
    %v1938 = vcvt.s32.f32 %v658
    %v1939 = vcvt.s32.f32 %v659
    %v1940 = vcvt.s32.f32 %v660
    %v1941 = vcvt.s32.f32 %v661
    %v1942 = vcvt.s32.f32 %v662
    %v1943 = vcvt.s32.f32 %v663
    %v1944 = vcvt.s32.f32 %v664
    %v1945 = vcvt.s32.f32 %v665
    %v1946 = vcvt.s32.f32 %v666
    %v1947 = vcvt.s32.f32 %v667
    %v1948 = vcvt.s32.f32 %v668
    %v1949 = vcvt.s32.f32 %v669
    %v1950 = vcvt.s32.f32 %v670
    %v1951 = vcvt.s32.f32 %v671
    %v1952 = vcvt.s32.f32 %v672
    %v1953 = vcvt.s32.f32 %v673
    %v1954 = vcvt.s32.f32 %v674
    %v1955 = vcvt.s32.f32 %v675
    %v1956 = vcvt.s32.f32 %v676
    %v1957 = vcvt.s32.f32 %v677
    %v1958 = vcvt.s32.f32 %v678
    %v1959 = vcvt.s32.f32 %v679
    %v1960 = vcvt.s32.f32 %v680
    %v1961 = vcvt.s32.f32 %v681
    %v1962 = vcvt.s32.f32 %v682
    %v1963 = vcvt.s32.f32 %v683
    %v1964 = vcvt.s32.f32 %v684
    %v1965 = vcvt.s32.f32 %v685
    %v1966 = vcvt.s32.f32 %v686
    %v1967 = vcvt.s32.f32 %v687
    %v1968 = vcvt.s32.f32 %v688
    %v1969 = vcvt.s32.f32 %v689
    %v1970 = vcvt.s32.f32 %v690
    %v1971 = vcvt.s32.f32 %v691
    %v1972 = vcvt.s32.f32 %v692
    %v1973 = vcvt.s32.f32 %v693
    %v1974 = vcvt.s32.f32 %v694
    %v1975 = vcvt.s32.f32 %v695
    %v1976 = vcvt.s32.f32 %v696
    %v1977 = vcvt.s32.f32 %v697
    %v1978 = vcvt.s32.f32 %v698
    %v1979 = vcvt.s32.f32 %v699
    %v1980 = vcvt.s32.f32 %v700
    %v1981 = vcvt.s32.f32 %v701
    %v1982 = vcvt.s32.f32 %v702
    %v1983 = vcvt.s32.f32 %v703
    %v1984 = vcvt.s32.f32 %v704
    %v1985 = vcvt.s32.f32 %v705
    %v1986 = vcvt.s32.f32 %v706
    %v1987 = vcvt.s32.f32 %v707
    %v1988 = vcvt.s32.f32 %v708
    %v1989 = vcvt.s32.f32 %v709
    %v1990 = vcvt.s32.f32 %v710
    %v1991 = vcvt.s32.f32 %v711
    %v1992 = vcvt.s32.f32 %v712
    %v1993 = vcvt.s32.f32 %v713
    %v1994 = vcvt.s32.f32 %v714
    %v1995 = vcvt.s32.f32 %v715
    %v1996 = vcvt.s32.f32 %v716
    %v1997 = vcvt.s32.f32 %v717
    %v1998 = vcvt.s32.f32 %v718
    %v1999 = vcvt.s32.f32 %v719
    %v2000 = vcvt.s32.f32 %v720
    %v2001 = vcvt.s32.f32 %v721
    %v2002 = vcvt.s32.f32 %v722
    %v2003 = vcvt.s32.f32 %v723
    %v2004 = vcvt.s32.f32 %v724
    %v2005 = vcvt.s32.f32 %v725
    %v2006 = vcvt.s32.f32 %v726
    %v2007 = vcvt.s32.f32 %v727
    %v2008 = vcvt.s32.f32 %v728
    %v2009 = vcvt.s32.f32 %v729
    %v2010 = vcvt.s32.f32 %v730
    %v2011 = vcvt.s32.f32 %v731
    %v2012 = vcvt.s32.f32 %v732
    %v2013 = vcvt.s32.f32 %v733
    %v2014 = vcvt.s32.f32 %v734
    %v2015 = vcvt.s32.f32 %v735
    %v2016 = vcvt.s32.f32 %v736
    %v2017 = vcvt.s32.f32 %v737
    %v2018 = vcvt.s32.f32 %v738
    %v2019 = vcvt.s32.f32 %v739
    %v2020 = vcvt.s32.f32 %v740
    %v2021 = vcvt.s32.f32 %v741
    %v2022 = vcvt.s32.f32 %v742
    %v2023 = vcvt.s32.f32 %v743
    %v2024 = vcvt.s32.f32 %v744
    %v2025 = vcvt.s32.f32 %v745
    %v2026 = vcvt.s32.f32 %v746
    %v2027 = vcvt.s32.f32 %v747
    %v2028 = vcvt.s32.f32 %v748
    %v2029 = vcvt.s32.f32 %v749
    %v2030 = vcvt.s32.f32 %v750
    %v2031 = vcvt.s32.f32 %v751
    %v2032 = vcvt.s32.f32 %v752
    %v2033 = vcvt.s32.f32 %v753
    %v2034 = vcvt.s32.f32 %v754
    %v2035 = vcvt.s32.f32 %v755
    %v2036 = vcvt.s32.f32 %v756
    %v2037 = vcvt.s32.f32 %v757
    %v2038 = vcvt.s32.f32 %v758
    %v2039 = vcvt.s32.f32 %v759
    %v2040 = vcvt.s32.f32 %v760
    %v2041 = vcvt.s32.f32 %v761
    %v2042 = vcvt.s32.f32 %v762
    %v2043 = vcvt.s32.f32 %v763
    %v2044 = vcvt.s32.f32 %v764
    %v2045 = vcvt.s32.f32 %v765
    %v2046 = vcvt.s32.f32 %v766
    %v2047 = vcvt.s32.f32 %v767
    %v2048 = vcvt.s32.f32 %v768
    %v2049 = vcvt.s32.f32 %v769
    %v2050 = vcvt.s32.f32 %v770
    %v2051 = vcvt.s32.f32 %v771
    %v2052 = vcvt.s32.f32 %v772
    %v2053 = vcvt.s32.f32 %v773
    %v2054 = vcvt.s32.f32 %v774
    %v2055 = vcvt.s32.f32 %v775
    %v2056 = vcvt.s32.f32 %v776
    %v2057 = vcvt.s32.f32 %v777
    %v2058 = vcvt.s32.f32 %v778
    %v2059 = vcvt.s32.f32 %v779
    %v2060 = vcvt.s32.f32 %v780
    %v2061 = vcvt.s32.f32 %v781
    %v2062 = vcvt.s32.f32 %v782
    %v2063 = vcvt.s32.f32 %v783
    %v2064 = vcvt.s32.f32 %v784
    %v2065 = vcvt.s32.f32 %v785
    %v2066 = vcvt.s32.f32 %v786
    %v2067 = vcvt.s32.f32 %v787
    %v2068 = vcvt.s32.f32 %v788
    %v2069 = vcvt.s32.f32 %v789
    %v2070 = vcvt.s32.f32 %v790
    %v2071 = vcvt.s32.f32 %v791
    %v2072 = vcvt.s32.f32 %v792
    %v2073 = vcvt.s32.f32 %v793
    %v2074 = vcvt.s32.f32 %v794
    %v2075 = vcvt.s32.f32 %v795
    %v2076 = vcvt.s32.f32 %v796
    %v2077 = vcvt.s32.f32 %v797
    %v2078 = vcvt.s32.f32 %v798
    %v2079 = vcvt.s32.f32 %v799
    %v2080 = vcvt.s32.f32 %v800
    %v2081 = vcvt.s32.f32 %v801
    %v2082 = vcvt.s32.f32 %v802
    %v2083 = vcvt.s32.f32 %v803
    %v2084 = vcvt.s32.f32 %v804
    %v2085 = vcvt.s32.f32 %v805
    %v2086 = vcvt.s32.f32 %v806
    %v2087 = vcvt.s32.f32 %v807
    %v2088 = vcvt.s32.f32 %v808
    %v2089 = vcvt.s32.f32 %v809
    %v2090 = vcvt.s32.f32 %v810
    %v2091 = vcvt.s32.f32 %v811
    %v2092 = vcvt.s32.f32 %v812
    %v2093 = vcvt.s32.f32 %v813
    %v2094 = vcvt.s32.f32 %v814
    %v2095 = vcvt.s32.f32 %v815
    %v2096 = vcvt.s32.f32 %v816
    %v2097 = vcvt.s32.f32 %v817
    %v2098 = vcvt.s32.f32 %v818
    %v2099 = vcvt.s32.f32 %v819
    %v2100 = vcvt.s32.f32 %v820
    %v2101 = vcvt.s32.f32 %v821
    %v2102 = vcvt.s32.f32 %v822
    %v2103 = vcvt.s32.f32 %v823
    %v2104 = vcvt.s32.f32 %v824
    %v2105 = vcvt.s32.f32 %v825
    %v2106 = vcvt.s32.f32 %v826
    %v2107 = vcvt.s32.f32 %v827
    %v2108 = vcvt.s32.f32 %v828
    %v2109 = vcvt.s32.f32 %v829
    %v2110 = vcvt.s32.f32 %v830
    %v2111 = vcvt.s32.f32 %v831
    %v2112 = vcvt.s32.f32 %v832
    %v2113 = vcvt.s32.f32 %v833
    %v2114 = vcvt.s32.f32 %v834
    %v2115 = vcvt.s32.f32 %v835
    %v2116 = vcvt.s32.f32 %v836
    %v2117 = vcvt.s32.f32 %v837
    %v2118 = vcvt.s32.f32 %v838
    %v2119 = vcvt.s32.f32 %v839
    %v2120 = vcvt.s32.f32 %v840
    %v2121 = vcvt.s32.f32 %v841
    %v2122 = vcvt.s32.f32 %v842
    %v2123 = vcvt.s32.f32 %v843
    %v2124 = vcvt.s32.f32 %v844
    %v2125 = vcvt.s32.f32 %v845
    %v2126 = vcvt.s32.f32 %v846
    %v2127 = vcvt.s32.f32 %v847
    %v2128 = vcvt.s32.f32 %v848
    %v2129 = vcvt.s32.f32 %v849
    %v2130 = vcvt.s32.f32 %v850
    %v2131 = vcvt.s32.f32 %v851
    %v2132 = vcvt.s32.f32 %v852
    %v2133 = vcvt.s32.f32 %v853
    %v2134 = vcvt.s32.f32 %v854
    %v2135 = vcvt.s32.f32 %v855
    %v2136 = vcvt.s32.f32 %v856
    %v2137 = vcvt.s32.f32 %v857
    %v2138 = vcvt.s32.f32 %v858
    %v2139 = vcvt.s32.f32 %v859
    %v2140 = vcvt.s32.f32 %v860
    %v2141 = vcvt.s32.f32 %v861
    %v2142 = vcvt.s32.f32 %v862
    %v2143 = vcvt.s32.f32 %v863
    %v2144 = vcvt.s32.f32 %v864
    %v2145 = vcvt.s32.f32 %v865
    %v2146 = vcvt.s32.f32 %v866
    %v2147 = vcvt.s32.f32 %v867
    %v2148 = vcvt.s32.f32 %v868
    %v2149 = vcvt.s32.f32 %v869
    %v2150 = vcvt.s32.f32 %v870
    %v2151 = vcvt.s32.f32 %v871
    %v2152 = vcvt.s32.f32 %v872
    %v2153 = vcvt.s32.f32 %v873
    %v2154 = vcvt.s32.f32 %v874
    %v2155 = vcvt.s32.f32 %v875
    %v2156 = vcvt.s32.f32 %v876
    %v2157 = vcvt.s32.f32 %v877
    %v2158 = vcvt.s32.f32 %v878
    %v2159 = vcvt.s32.f32 %v879
    %v2160 = vcvt.s32.f32 %v880
    %v2161 = vcvt.s32.f32 %v881
    %v2162 = vcvt.s32.f32 %v882
    %v2163 = vcvt.s32.f32 %v883
    %v2164 = vcvt.s32.f32 %v884
    %v2165 = vcvt.s32.f32 %v885
    %v2166 = vcvt.s32.f32 %v886
    %v2167 = vcvt.s32.f32 %v887
    %v2168 = vcvt.s32.f32 %v888
    %v2169 = vcvt.s32.f32 %v889
    %v2170 = vcvt.s32.f32 %v890
    %v2171 = vcvt.s32.f32 %v891
    %v2172 = vcvt.s32.f32 %v892
    %v2173 = vcvt.s32.f32 %v893
    %v2174 = vcvt.s32.f32 %v894
    %v2175 = vcvt.s32.f32 %v895
    %v2176 = vcvt.s32.f32 %v896
    %v2177 = vcvt.s32.f32 %v897
    %v2178 = vcvt.s32.f32 %v898
    %v2179 = vcvt.s32.f32 %v899
    %v2180 = vcvt.s32.f32 %v900
    %v2181 = vcvt.s32.f32 %v901
    %v2182 = vcvt.s32.f32 %v902
    %v2183 = vcvt.s32.f32 %v903
    %v2184 = vcvt.s32.f32 %v904
    %v2185 = vcvt.s32.f32 %v905
    %v2186 = vcvt.s32.f32 %v906
    %v2187 = vcvt.s32.f32 %v907
    %v2188 = vcvt.s32.f32 %v908
    %v2189 = vcvt.s32.f32 %v909
    %v2190 = vcvt.s32.f32 %v910
    %v2191 = vcvt.s32.f32 %v911
    %v2192 = vcvt.s32.f32 %v912
    %v2193 = vcvt.s32.f32 %v913
    %v2194 = vcvt.s32.f32 %v914
    %v2195 = vcvt.s32.f32 %v915
    %v2196 = vcvt.s32.f32 %v916
    %v2197 = vcvt.s32.f32 %v917
    %v2198 = vcvt.s32.f32 %v918
    %v2199 = vcvt.s32.f32 %v919
    %v2200 = vcvt.s32.f32 %v920
    %v2201 = vcvt.s32.f32 %v921
    %v2202 = vcvt.s32.f32 %v922
    %v2203 = vcvt.s32.f32 %v923
    %v2204 = vcvt.s32.f32 %v924
    %v2205 = vcvt.s32.f32 %v925
    %v2206 = vcvt.s32.f32 %v926
    %v2207 = vcvt.s32.f32 %v927
    %v2208 = vcvt.s32.f32 %v928
    %v2209 = vcvt.s32.f32 %v929
    %v2210 = vcvt.s32.f32 %v930
    %v2211 = vcvt.s32.f32 %v931
    %v2212 = vcvt.s32.f32 %v932
    %v2213 = vcvt.s32.f32 %v933
    %v2214 = vcvt.s32.f32 %v934
    %v2215 = vcvt.s32.f32 %v935
    %v2216 = vcvt.s32.f32 %v936
    %v2217 = vcvt.s32.f32 %v937
    %v2218 = vcvt.s32.f32 %v938
    %v2219 = vcvt.s32.f32 %v939
    %v2220 = vcvt.s32.f32 %v940
    %v2221 = vcvt.s32.f32 %v941
    %v2222 = vcvt.s32.f32 %v942
    %v2223 = vcvt.s32.f32 %v943
    %v2224 = vcvt.s32.f32 %v944
    %v2225 = vcvt.s32.f32 %v945
    %v2226 = vcvt.s32.f32 %v946
    %v2227 = vcvt.s32.f32 %v947
    %v2228 = vcvt.s32.f32 %v948
    %v2229 = vcvt.s32.f32 %v949
    %v2230 = vcvt.s32.f32 %v950
    %v2231 = vcvt.s32.f32 %v951
    %v2232 = vcvt.s32.f32 %v952
    %v2233 = vcvt.s32.f32 %v953
    %v2234 = vcvt.s32.f32 %v954
    %v2235 = vcvt.s32.f32 %v955
    %v2236 = vcvt.s32.f32 %v956
    %v2237 = vcvt.s32.f32 %v957
    %v2238 = vcvt.s32.f32 %v958
    %v2239 = vcvt.s32.f32 %v959
    %v2240 = vcvt.s32.f32 %v960
    %v2241 = vcvt.s32.f32 %v961
    %v2242 = vcvt.s32.f32 %v962
    %v2243 = vcvt.s32.f32 %v963
    %v2244 = vcvt.s32.f32 %v964
    %v2245 = vcvt.s32.f32 %v965
    %v2246 = vcvt.s32.f32 %v966
    %v2247 = vcvt.s32.f32 %v967
    %v2248 = vcvt.s32.f32 %v968
    %v2249 = vcvt.s32.f32 %v969
    %v2250 = vcvt.s32.f32 %v970
    %v2251 = vcvt.s32.f32 %v971
    %v2252 = vcvt.s32.f32 %v972
    %v2253 = vcvt.s32.f32 %v973
    %v2254 = vcvt.s32.f32 %v974
    %v2255 = vcvt.s32.f32 %v975
    %v2256 = vcvt.s32.f32 %v976
    %v2257 = vcvt.s32.f32 %v977
    %v2258 = vcvt.s32.f32 %v978
    %v2259 = vcvt.s32.f32 %v979
    %v2260 = vcvt.s32.f32 %v980
    %v2261 = vcvt.s32.f32 %v981
    %v2262 = vcvt.s32.f32 %v982
    %v2263 = vcvt.s32.f32 %v983
    %v2264 = vcvt.s32.f32 %v984
    %v2265 = vcvt.s32.f32 %v985
    %v2266 = vcvt.s32.f32 %v986
    %v2267 = vcvt.s32.f32 %v987
    %v2268 = vcvt.s32.f32 %v988
    %v2269 = vcvt.s32.f32 %v989
    %v2270 = vcvt.s32.f32 %v990
    %v2271 = vcvt.s32.f32 %v991
    %v2272 = vcvt.s32.f32 %v992
    %v2273 = vcvt.s32.f32 %v993
    %v2274 = vcvt.s32.f32 %v994
    %v2275 = vcvt.s32.f32 %v995
    %v2276 = vcvt.s32.f32 %v996
    %v2277 = vcvt.s32.f32 %v997
    %v2278 = vcvt.s32.f32 %v998
    %v2279 = vcvt.s32.f32 %v999
    %v2280 = vcvt.s32.f32 %v1000
    %v2281 = vcvt.s32.f32 %v1001
    %v2282 = vcvt.s32.f32 %v1002
    %v2283 = vcvt.s32.f32 %v1003
    %v2284 = vcvt.s32.f32 %v1004
    %v2285 = vcvt.s32.f32 %v1005
    %v2286 = vcvt.s32.f32 %v1006
    %v2287 = vcvt.s32.f32 %v1007
    %v2288 = vcvt.s32.f32 %v1008
    %v2289 = vcvt.s32.f32 %v1009
    %v2290 = vcvt.s32.f32 %v1010
    %v2291 = vcvt.s32.f32 %v1011
    %v2292 = vcvt.s32.f32 %v1012
    %v2293 = vcvt.s32.f32 %v1013
    %v2294 = vcvt.s32.f32 %v1014
    %v2295 = vcvt.s32.f32 %v1015
    %v2296 = vcvt.s32.f32 %v1016
    %v2297 = vcvt.s32.f32 %v1017
    %v2298 = vcvt.s32.f32 %v1018
    %v2299 = vcvt.s32.f32 %v1019
    %v2300 = vcvt.s32.f32 %v1020
    %v2301 = vcvt.s32.f32 %v1021
    %v2302 = vcvt.s32.f32 %v1022
    %v2303 = vcvt.s32.f32 %v1023
    %v2304 = vcvt.s32.f32 %v1024
    %v2305 = vcvt.s32.f32 %v1025
    %v2306 = vcvt.s32.f32 %v1026
    %v2307 = vcvt.s32.f32 %v1027
    %v2308 = vcvt.s32.f32 %v1028
    %v2309 = vcvt.s32.f32 %v1029
    %v2310 = vcvt.s32.f32 %v1030
    %v2311 = vcvt.s32.f32 %v1031
    %v2312 = vcvt.s32.f32 %v1032
    %v2313 = vcvt.s32.f32 %v1033
    %v2314 = vcvt.s32.f32 %v1034
    %v2315 = vcvt.s32.f32 %v1035
    %v2316 = vcvt.s32.f32 %v1036
    %v2317 = vcvt.s32.f32 %v1037
    %v2318 = vcvt.s32.f32 %v1038
    %v2319 = vcvt.s32.f32 %v1039
    %v2320 = vcvt.s32.f32 %v1040
    %v2321 = vcvt.s32.f32 %v1041
    %v2322 = vcvt.s32.f32 %v1042
    %v2323 = vcvt.s32.f32 %v1043
    %v2324 = vcvt.s32.f32 %v1044
    %v2325 = vcvt.s32.f32 %v1045
    %v2326 = vcvt.s32.f32 %v1046
    %v2327 = vcvt.s32.f32 %v1047
    %v2328 = vcvt.s32.f32 %v1048
    %v2329 = vcvt.s32.f32 %v1049
    %v2330 = vcvt.s32.f32 %v1050
    %v2331 = vcvt.s32.f32 %v1051
    %v2332 = vcvt.s32.f32 %v1052
    %v2333 = vcvt.s32.f32 %v1053
    %v2334 = vcvt.s32.f32 %v1054
    %v2335 = vcvt.s32.f32 %v1055
    %v2336 = vcvt.s32.f32 %v1056
    %v2337 = vcvt.s32.f32 %v1057
    %v2338 = vcvt.s32.f32 %v1058
    %v2339 = vcvt.s32.f32 %v1059
    %v2340 = vcvt.s32.f32 %v1060
    %v2341 = vcvt.s32.f32 %v1061
    %v2342 = vcvt.s32.f32 %v1062
    %v2343 = vcvt.s32.f32 %v1063
    %v2344 = vcvt.s32.f32 %v1064
    %v2345 = vcvt.s32.f32 %v1065
    %v2346 = vcvt.s32.f32 %v1066
    %v2347 = vcvt.s32.f32 %v1067
    %v2348 = vcvt.s32.f32 %v1068
    %v2349 = vcvt.s32.f32 %v1069
    %v2350 = vcvt.s32.f32 %v1070
    %v2351 = vcvt.s32.f32 %v1071
    %v2352 = vcvt.s32.f32 %v1072
    %v2353 = vcvt.s32.f32 %v1073
    %v2354 = vcvt.s32.f32 %v1074
    %v2355 = vcvt.s32.f32 %v1075
    %v2356 = vcvt.s32.f32 %v1076
    %v2357 = vcvt.s32.f32 %v1077
    %v2358 = vcvt.s32.f32 %v1078
    %v2359 = vcvt.s32.f32 %v1079
    %v2360 = vcvt.s32.f32 %v1080
    %v2361 = vcvt.s32.f32 %v1081
    %v2362 = vcvt.s32.f32 %v1082
    %v2363 = vcvt.s32.f32 %v1083
    %v2364 = vcvt.s32.f32 %v1084
    %v2365 = vcvt.s32.f32 %v1085
    %v2366 = vcvt.s32.f32 %v1086
    %v2367 = vcvt.s32.f32 %v1087
    %v2368 = vcvt.s32.f32 %v1088
    %v2369 = vcvt.s32.f32 %v1089
    %v2370 = vcvt.s32.f32 %v1090
    %v2371 = vcvt.s32.f32 %v1091
    %v2372 = vcvt.s32.f32 %v1092
    %v2373 = vcvt.s32.f32 %v1093
    %v2374 = vcvt.s32.f32 %v1094
    %v2375 = vcvt.s32.f32 %v1095
    %v2376 = vcvt.s32.f32 %v1096
    %v2377 = vcvt.s32.f32 %v1097
    %v2378 = vcvt.s32.f32 %v1098
    %v2379 = vcvt.s32.f32 %v1099
    %v2380 = vcvt.s32.f32 %v1100
    %v2381 = vcvt.s32.f32 %v1101
    %v2382 = vcvt.s32.f32 %v1102
    %v2383 = vcvt.s32.f32 %v1103
    %v2384 = vcvt.s32.f32 %v1104
    %v2385 = vcvt.s32.f32 %v1105
    %v2386 = vcvt.s32.f32 %v1106
    %v2387 = vcvt.s32.f32 %v1107
    %v2388 = vcvt.s32.f32 %v1108
    %v2389 = vcvt.s32.f32 %v1109
    %v2390 = vcvt.s32.f32 %v1110
    %v2391 = vcvt.s32.f32 %v1111
    %v2392 = vcvt.s32.f32 %v1112
    %v2393 = vcvt.s32.f32 %v1113
    %v2394 = vcvt.s32.f32 %v1114
    %v2395 = vcvt.s32.f32 %v1115
    %v2396 = vcvt.s32.f32 %v1116
    %v2397 = vcvt.s32.f32 %v1117
    %v2398 = vcvt.s32.f32 %v1118
    %v2399 = vcvt.s32.f32 %v1119
    %v2400 = vcvt.s32.f32 %v1120
    %v2401 = vcvt.s32.f32 %v1121
    %v2402 = vcvt.s32.f32 %v1122
    %v2403 = vcvt.s32.f32 %v1123
    %v2404 = vcvt.s32.f32 %v1124
    %v2405 = vcvt.s32.f32 %v1125
    %v2406 = vcvt.s32.f32 %v1126
    %v2407 = vcvt.s32.f32 %v1127
    %v2408 = vcvt.s32.f32 %v1128
    %v2409 = vcvt.s32.f32 %v1129
    %v2410 = vcvt.s32.f32 %v1130
    %v2411 = vcvt.s32.f32 %v1131
    %v2412 = vcvt.s32.f32 %v1132
    %v2413 = vcvt.s32.f32 %v1133
    %v2414 = vcvt.s32.f32 %v1134
    %v2415 = vcvt.s32.f32 %v1135
    %v2416 = vcvt.s32.f32 %v1136
    %v2417 = vcvt.s32.f32 %v1137
    %v2418 = vcvt.s32.f32 %v1138
    %v2419 = vcvt.s32.f32 %v1139
    %v2420 = vcvt.s32.f32 %v1140
    %v2421 = vcvt.s32.f32 %v1141
    %v2422 = vcvt.s32.f32 %v1142
    %v2423 = vcvt.s32.f32 %v1143
    %v2424 = vcvt.s32.f32 %v1144
    %v2425 = vcvt.s32.f32 %v1145
    %v2426 = vcvt.s32.f32 %v1146
    %v2427 = vcvt.s32.f32 %v1147
    %v2428 = vcvt.s32.f32 %v1148
    %v2429 = vcvt.s32.f32 %v1149
    %v2430 = vcvt.s32.f32 %v1150
    %v2431 = vcvt.s32.f32 %v1151
    %v2432 = vcvt.s32.f32 %v1152
    %v2433 = vcvt.s32.f32 %v1153
    %v2434 = vcvt.s32.f32 %v1154
    %v2435 = vcvt.s32.f32 %v1155
    %v2436 = vcvt.s32.f32 %v1156
    %v2437 = vcvt.s32.f32 %v1157
    %v2438 = vcvt.s32.f32 %v1158
    %v2439 = vcvt.s32.f32 %v1159
    %v2440 = vcvt.s32.f32 %v1160
    %v2441 = vcvt.s32.f32 %v1161
    %v2442 = vcvt.s32.f32 %v1162
    %v2443 = vcvt.s32.f32 %v1163
    %v2444 = vcvt.s32.f32 %v1164
    %v2445 = vcvt.s32.f32 %v1165
    %v2446 = vcvt.s32.f32 %v1166
    %v2447 = vcvt.s32.f32 %v1167
    %v2448 = vcvt.s32.f32 %v1168
    %v2449 = vcvt.s32.f32 %v1169
    %v2450 = vcvt.s32.f32 %v1170
    %v2451 = vcvt.s32.f32 %v1171
    %v2452 = vcvt.s32.f32 %v1172
    %v2453 = vcvt.s32.f32 %v1173
    %v2454 = vcvt.s32.f32 %v1174
    %v2455 = vcvt.s32.f32 %v1175
    %v2456 = vcvt.s32.f32 %v1176
    %v2457 = vcvt.s32.f32 %v1177
    %v2458 = vcvt.s32.f32 %v1178
    %v2459 = vcvt.s32.f32 %v1179
    %v2460 = vcvt.s32.f32 %v1180
    %v2461 = vcvt.s32.f32 %v1181
    %v2462 = vcvt.s32.f32 %v1182
    %v2463 = vcvt.s32.f32 %v1183
    %v2464 = vcvt.s32.f32 %v1184
    %v2465 = vcvt.s32.f32 %v1185
    %v2466 = vcvt.s32.f32 %v1186
    %v2467 = vcvt.s32.f32 %v1187
    %v2468 = vcvt.s32.f32 %v1188
    %v2469 = vcvt.s32.f32 %v1189
    %v2470 = vcvt.s32.f32 %v1190
    %v2471 = vcvt.s32.f32 %v1191
    %v2472 = vcvt.s32.f32 %v1192
    %v2473 = vcvt.s32.f32 %v1193
    %v2474 = vcvt.s32.f32 %v1194
    %v2475 = vcvt.s32.f32 %v1195
    %v2476 = vcvt.s32.f32 %v1196
    %v2477 = vcvt.s32.f32 %v1197
    %v2478 = vcvt.s32.f32 %v1198
    %v2479 = vcvt.s32.f32 %v1199
    %v2480 = vcvt.s32.f32 %v1200
    %v2481 = vcvt.s32.f32 %v1201
    %v2482 = vcvt.s32.f32 %v1202
    %v2483 = vcvt.s32.f32 %v1203
    %v2484 = vcvt.s32.f32 %v1204
    %v2485 = vcvt.s32.f32 %v1205
    %v2486 = vcvt.s32.f32 %v1206
    %v2487 = vcvt.s32.f32 %v1207
    %v2488 = vcvt.s32.f32 %v1208
    %v2489 = vcvt.s32.f32 %v1209
    %v2490 = vcvt.s32.f32 %v1210
    %v2491 = vcvt.s32.f32 %v1211
    %v2492 = vcvt.s32.f32 %v1212
    %v2493 = vcvt.s32.f32 %v1213
    %v2494 = vcvt.s32.f32 %v1214
    %v2495 = vcvt.s32.f32 %v1215
    %v2496 = vcvt.s32.f32 %v1216
    %v2497 = vcvt.s32.f32 %v1217
    %v2498 = vcvt.s32.f32 %v1218
    %v2499 = vcvt.s32.f32 %v1219
    %v2500 = vcvt.s32.f32 %v1220
    %v2501 = vcvt.s32.f32 %v1221
    %v2502 = vcvt.s32.f32 %v1222
    %v2503 = vcvt.s32.f32 %v1223
    %v2504 = vcvt.s32.f32 %v1224
    %v2505 = vcvt.s32.f32 %v1225
    %v2506 = vcvt.s32.f32 %v1226
    %v2507 = vcvt.s32.f32 %v1227
    %v2508 = vcvt.s32.f32 %v1228
    %v2509 = vcvt.s32.f32 %v1229
    %v2510 = vcvt.s32.f32 %v1230
    %v2511 = vcvt.s32.f32 %v1231
    %v2512 = vcvt.s32.f32 %v1232
    %v2513 = vcvt.s32.f32 %v1233
    %v2514 = vcvt.s32.f32 %v1234
    %v2515 = vcvt.s32.f32 %v1235
    %v2516 = vcvt.s32.f32 %v1236
    %v2517 = vcvt.s32.f32 %v1237
    %v2518 = vcvt.s32.f32 %v1238
    %v2519 = vcvt.s32.f32 %v1239
    %v2520 = vcvt.s32.f32 %v1240
    %v2521 = vcvt.s32.f32 %v1241
    %v2522 = vcvt.s32.f32 %v1242
    %v2523 = vcvt.s32.f32 %v1243
    %v2524 = vcvt.s32.f32 %v1244
    %v2525 = vcvt.s32.f32 %v1245
    %v2526 = vcvt.s32.f32 %v1246
    %v2527 = vcvt.s32.f32 %v1247
    %v2528 = vcvt.s32.f32 %v1248
    %v2529 = vcvt.s32.f32 %v1249
    %v2530 = vcvt.s32.f32 %v1250
    %v2531 = vcvt.s32.f32 %v1251
    %v2532 = vcvt.s32.f32 %v1252
    %v2533 = vcvt.s32.f32 %v1253
    %v2534 = vcvt.s32.f32 %v1254
    %v2535 = vcvt.s32.f32 %v1255
    %v2536 = vcvt.s32.f32 %v1256
    %v2537 = vcvt.s32.f32 %v1257
    %v2538 = vcvt.s32.f32 %v1258
    %v2539 = vcvt.s32.f32 %v1259
    %v2540 = vcvt.s32.f32 %v1260
    %v2541 = vcvt.s32.f32 %v1261
    %v2542 = vcvt.s32.f32 %v1262
    %v2543 = vcvt.s32.f32 %v1263
    %v2544 = vcvt.s32.f32 %v1264
    %v2545 = vcvt.s32.f32 %v1265
    %v2546 = vcvt.s32.f32 %v1266
    %v2547 = vcvt.s32.f32 %v1267
    %v2548 = vcvt.s32.f32 %v1268
    %v2549 = vcvt.s32.f32 %v1269
    %v2550 = vcvt.s32.f32 %v1270
    %v2551 = vcvt.s32.f32 %v1271
    %v2552 = vcvt.s32.f32 %v1272
    %v2553 = vcvt.s32.f32 %v1273
    %v2554 = vcvt.s32.f32 %v1274
    %v2555 = vcvt.s32.f32 %v1275
    %v2556 = vcvt.s32.f32 %v1276
    %v2557 = vcvt.s32.f32 %v1277
    %v2558 = vcvt.s32.f32 %v1278
    %v2559 = vcvt.s32.f32 %v1279
    %v2560 = vcvt.s32.f32 %v1280
    %v2561 = vcvt.s32.f32 %v1281
    %v2562 = vcvt.s32.f32 %v1282
    %v2563 = vcvt.s32.f32 %v1283
    %v2564 = vcvt.s32.f32 %v1284
    %v2565 = vcvt.s32.f32 %v1285
    %v2566 = vcvt.s32.f32 %v1286
    %v2567 = vcvt.s32.f32 %v1287
    %v2568 = vcvt.s32.f32 %v1288
    %v2569 = vcvt.s32.f32 %v1289
    %v2570 = vcvt.s32.f32 %v1290
    %v2571 = vcvt.s32.f32 %v1291
    %v2572 = vcvt.s32.f32 %v1292
    %v2573 = vcvt.s32.f32 %v1293
    %v2574 = vcvt.s32.f32 %v1294
    %v2575 = vcvt.s32.f32 %v1295
    %v2576 = vcvt.s32.f32 %v1296
    %v2577 = vcvt.s32.f32 %v1297
    %v2578 = vcvt.s32.f32 %v1298
    %v2579 = vcvt.s32.f32 %v1299
    %v2580 = vcvt.s32.f32 %v1300
    %v2581 = vcvt.s32.f32 %v1301
    %v2582 = vcvt.s32.f32 %v1302
    %v2583 = vcvt.s32.f32 %v1303
    %v2584 = vcvt.s32.f32 %v1304
    %v2585 = vcvt.s32.f32 %v1305
    %v2586 = vcvt.s32.f32 %v1306
    %v2587 = vcvt.s32.f32 %v1307
    %v2588 = vcvt.s32.f32 %v1308
    %v2589 = vcvt.s32.f32 %v1309
    %v2590 = vcvt.s32.f32 %v1310
    %v2591 = vcvt.s32.f32 %v1311
    %v2592 = vcvt.s32.f32 %v1312
    %v2593 = vcvt.s32.f32 %v1313
    %v2594 = vcvt.s32.f32 %v1314
    %v2595 = vcvt.s32.f32 %v1315
    %v2596 = vcvt.s32.f32 %v1316
    %v2597 = vcvt.s32.f32 %v1317
    %v2598 = vcvt.s32.f32 %v1318
    %v2599 = vcvt.s32.f32 %v1319
    %v2600 = vcvt.s32.f32 %v1320
    %v2601 = vcvt.s32.f32 %v1321
    %v2602 = vcvt.s32.f32 %v1322
    %v2603 = vcvt.s32.f32 %v1323
    %v2604 = vcvt.s32.f32 %v1324
    %v2605 = vcvt.s32.f32 %v1325
    %v2606 = vcvt.s32.f32 %v1326
    %v2607 = vcvt.s32.f32 %v1327
    %v2608 = vcvt.s32.f32 %v1328
    %v2609 = vcvt.s32.f32 %v1329
    %v2610 = vcvt.s32.f32 %v1330
    %v2611 = vcvt.s32.f32 %v1331
    %v2612 = vcvt.s32.f32 %v1332
    %v2613 = vcvt.s32.f32 %v1333
    %v2614 = vcvt.s32.f32 %v1334
    %v2615 = vcvt.s32.f32 %v1335
    %v2616 = vcvt.s32.f32 %v1336
    %v2617 = vcvt.s32.f32 %v1337
    %v2618 = vcvt.s32.f32 %v1338
    %v2619 = vcvt.s32.f32 %v1339
    %v2620 = vcvt.s32.f32 %v1340
    %v2621 = vcvt.s32.f32 %v1341
    %v2622 = vcvt.s32.f32 %v1342
    %v2623 = vcvt.s32.f32 %v1343
    %v2624 = vcvt.s32.f32 %v1344
    %v2625 = vcvt.s32.f32 %v1345
    %v2626 = vcvt.s32.f32 %v1346
    %v2627 = vcvt.s32.f32 %v1347
    %v2628 = vcvt.s32.f32 %v1348
    %v2629 = vcvt.s32.f32 %v1349
    %v2630 = vcvt.s32.f32 %v1350
    %v2631 = vcvt.s32.f32 %v1351
    %v2632 = vcvt.s32.f32 %v1352
    %v2633 = vcvt.s32.f32 %v1353
    %v2634 = vcvt.s32.f32 %v1354
    %v2635 = vcvt.s32.f32 %v1355
    %v2636 = vcvt.s32.f32 %v1356
    %v2637 = vcvt.s32.f32 %v1357
    %v2638 = vcvt.s32.f32 %v1358
    %v2639 = vcvt.s32.f32 %v1359
    %v2640 = vcvt.s32.f32 %v1360
    %v2641 = vcvt.s32.f32 %v1361
    %v2642 = vcvt.s32.f32 %v1362
    %v2643 = vcvt.s32.f32 %v1363
    %v2644 = vcvt.s32.f32 %v1364
    %v2645 = vcvt.s32.f32 %v1365
    %v2646 = vcvt.s32.f32 %v1366
    %v2647 = vcvt.s32.f32 %v1367
    %v2648 = vcvt.s32.f32 %v1368
    %v2649 = vcvt.s32.f32 %v1369
    %v2650 = vcvt.s32.f32 %v1370
    %v2651 = vcvt.s32.f32 %v1371
    %v2652 = vcvt.s32.f32 %v1372
    %v2653 = vcvt.s32.f32 %v1373
    %v2654 = vcvt.s32.f32 %v1374
    %v2655 = vcvt.s32.f32 %v1375
    %v2656 = vcvt.s32.f32 %v1376
    %v2657 = vcvt.s32.f32 %v1377
    %v2658 = vcvt.s32.f32 %v1378
    %v2659 = vcvt.s32.f32 %v1379
    %v2660 = vcvt.s32.f32 %v1380
    %v2661 = vcvt.s32.f32 %v1381
    %v2662 = vcvt.s32.f32 %v1382
    %v2663 = vcvt.s32.f32 %v1383
    %v2664 = vcvt.s32.f32 %v1384
    %v2665 = vcvt.s32.f32 %v1385
    %v2666 = vcvt.s32.f32 %v1386
    %v2667 = vcvt.s32.f32 %v1387
    %v2668 = vcvt.s32.f32 %v1388
    %v2669 = vcvt.s32.f32 %v1389
    %v2670 = vcvt.s32.f32 %v1390
    %v2671 = vcvt.s32.f32 %v1391
    %v2672 = vcvt.s32.f32 %v1392
    %v2673 = vcvt.s32.f32 %v1393
    %v2674 = vcvt.s32.f32 %v1394
    %v2675 = vcvt.s32.f32 %v1395
    %v2676 = vcvt.s32.f32 %v1396
    %v2677 = vcvt.s32.f32 %v1397
    %v2678 = vcvt.s32.f32 %v1398
    %v2679 = vcvt.s32.f32 %v1399
    %v2680 = vcvt.s32.f32 %v1400
    %v2681 = vcvt.s32.f32 %v1401
    %v2682 = vcvt.s32.f32 %v1402
    %v2683 = vcvt.s32.f32 %v1403
    %v2684 = vcvt.s32.f32 %v1404
    %v2685 = vcvt.s32.f32 %v1405
    %v2686 = vcvt.s32.f32 %v1406
    %v2687 = vcvt.s32.f32 %v1407
    %v2688 = vcvt.s32.f32 %v1408
    %v2689 = vcvt.s32.f32 %v1409
    %v2690 = vcvt.s32.f32 %v1410
    %v2691 = vcvt.s32.f32 %v1411
    %v2692 = vcvt.s32.f32 %v1412
    %v2693 = vcvt.s32.f32 %v1413
    %v2694 = vcvt.s32.f32 %v1414
    %v2695 = vcvt.s32.f32 %v1415
    %v2696 = vcvt.s32.f32 %v1416
    %v2697 = vcvt.s32.f32 %v1417
    %v2698 = vcvt.s32.f32 %v1418
    %v2699 = vcvt.s32.f32 %v1419
    %v2700 = vcvt.s32.f32 %v1420
    %v2701 = vcvt.s32.f32 %v1421
    %v2702 = vcvt.s32.f32 %v1422
    %v2703 = vcvt.s32.f32 %v1423
    %v2704 = vcvt.s32.f32 %v1424
    %v2705 = vcvt.s32.f32 %v1425
    %v2706 = vcvt.s32.f32 %v1426
    %v2707 = vcvt.s32.f32 %v1427
    %v2708 = vcvt.s32.f32 %v1428
    %v2709 = vcvt.s32.f32 %v1429
    %v2710 = vcvt.s32.f32 %v1430
    %v2711 = vcvt.s32.f32 %v1431
    %v2712 = vcvt.s32.f32 %v1432
    %v2713 = vcvt.s32.f32 %v1433
    %v2714 = vcvt.s32.f32 %v1434
    %v2715 = vcvt.s32.f32 %v1435
    %v2716 = vcvt.s32.f32 %v1436
    %v2717 = vcvt.s32.f32 %v1437
    %v2718 = vcvt.s32.f32 %v1438
    %v2719 = vcvt.s32.f32 %v1439
    %v2720 = vcvt.s32.f32 %v1440
    %v2721 = vcvt.s32.f32 %v1441
    %v2722 = vcvt.s32.f32 %v1442
    %v2723 = vcvt.s32.f32 %v1443
    %v2724 = vcvt.s32.f32 %v1444
    %v2725 = vcvt.s32.f32 %v1445
    %v2726 = vcvt.s32.f32 %v1446
    %v2727 = vcvt.s32.f32 %v1447
    %v2728 = vcvt.s32.f32 %v1448
    %v2729 = vcvt.s32.f32 %v1449
    %v2730 = vcvt.s32.f32 %v1450
    %v2731 = vcvt.s32.f32 %v1451
    %v2732 = vcvt.s32.f32 %v1452
    %v2733 = vcvt.s32.f32 %v1453
    %v2734 = vcvt.s32.f32 %v1454
    %v2735 = vcvt.s32.f32 %v1455
    %v2736 = vcvt.s32.f32 %v1456
    %v2737 = vcvt.s32.f32 %v1457
    %v2738 = vcvt.s32.f32 %v1458
    %v2739 = vcvt.s32.f32 %v1459
    %v2740 = vcvt.s32.f32 %v1460
    %v2741 = vcvt.s32.f32 %v1461
    %v2742 = vcvt.s32.f32 %v1462
    %v2743 = vcvt.s32.f32 %v1463
    %v2744 = vcvt.s32.f32 %v1464
    %v2745 = vcvt.s32.f32 %v1465
    %v2746 = vcvt.s32.f32 %v1466
    %v2747 = vcvt.s32.f32 %v1467
    %v2748 = vcvt.s32.f32 %v1468
    %v2749 = vcvt.s32.f32 %v1469
    %v2750 = vcvt.s32.f32 %v1470
    %v2751 = vcvt.s32.f32 %v1471
    %v2752 = vcvt.s32.f32 %v1472
    %v2753 = vcvt.s32.f32 %v1473
    %v2754 = vcvt.s32.f32 %v1474
    %v2755 = vcvt.s32.f32 %v1475
    %v2756 = vcvt.s32.f32 %v1476
    %v2757 = vcvt.s32.f32 %v1477
    %v2758 = vcvt.s32.f32 %v1478
    %v2759 = vcvt.s32.f32 %v1479
    %v2760 = vcvt.s32.f32 %v1480
    %v2761 = vcvt.s32.f32 %v1481
    %v2762 = vcvt.s32.f32 %v1482
    %v2763 = vcvt.s32.f32 %v1483
    %v2764 = vcvt.s32.f32 %v1484
    %v2765 = vcvt.s32.f32 %v1485
    %v2766 = vcvt.s32.f32 %v1486
    %v2767 = vcvt.s32.f32 %v1487
    %v2768 = vcvt.s32.f32 %v1488
    %v2769 = vcvt.s32.f32 %v1489
    %v2770 = vcvt.s32.f32 %v1490
    %v2771 = vcvt.s32.f32 %v1491
    %v2772 = vcvt.s32.f32 %v1492
    %v2773 = vcvt.s32.f32 %v1493
    %v2774 = vcvt.s32.f32 %v1494
    %v2775 = vcvt.s32.f32 %v1495
    %v2776 = vcvt.s32.f32 %v1496
    %v2777 = vcvt.s32.f32 %v1497
    %v2778 = vcvt.s32.f32 %v1498
    %v2779 = vcvt.s32.f32 %v1499
    %v2780 = vcvt.s32.f32 %v1500
    %v2781 = vcvt.s32.f32 %v1501
    %v2782 = vcvt.s32.f32 %v1502
    %v2783 = vcvt.s32.f32 %v1503
    %v2784 = vcvt.s32.f32 %v1504
    %v2785 = vcvt.s32.f32 %v1505
    %v2786 = vcvt.s32.f32 %v1506
    %v2787 = vcvt.s32.f32 %v1507
    %v2788 = vcvt.s32.f32 %v1508
    %v2789 = vcvt.s32.f32 %v1509
    %v2790 = vcvt.s32.f32 %v1510
    %v2791 = vcvt.s32.f32 %v1511
    %v2792 = vcvt.s32.f32 %v1512
    %v2793 = vcvt.s32.f32 %v1513
    %v2794 = vcvt.s32.f32 %v1514
    %v2795 = vcvt.s32.f32 %v1515
    %v2796 = vcvt.s32.f32 %v1516
    %v2797 = vcvt.s32.f32 %v1517
    %v2798 = vcvt.s32.f32 %v1518
    %v2799 = vcvt.s32.f32 %v1519
    %v2800 = vcvt.s32.f32 %v1520
    %v2801 = vcvt.s32.f32 %v1521
    %v2802 = vcvt.s32.f32 %v1522
    %v2803 = vcvt.s32.f32 %v1523
    %v2804 = vcvt.s32.f32 %v1524
    %v2805 = vcvt.s32.f32 %v1525
    %v2806 = vcvt.s32.f32 %v1526
    %v2807 = vcvt.s32.f32 %v1527
    %v2808 = vcvt.s32.f32 %v1528
    %v2809 = vcvt.s32.f32 %v1529
    %v2810 = vcvt.s32.f32 %v1530
    %v2811 = vcvt.s32.f32 %v1531
    %v2812 = vcvt.s32.f32 %v1532
    %v2813 = vcvt.s32.f32 %v1533
    %v2814 = vcvt.s32.f32 %v1534
    %v2815 = vcvt.s32.f32 %v1535
    %v2816 = vcvt.s32.f32 %v1536
    %v2817 = vcvt.s32.f32 %v1537
    %v2818 = vcvt.s32.f32 %v1538
    %v2819 = vcvt.s32.f32 %v1539
    %v2820 = vcvt.s32.f32 %v1540
    %v2821 = vcvt.s32.f32 %v1541
    %v2822 = vcvt.s32.f32 %v1542
    %v2823 = vcvt.s32.f32 %v1543
    %v2824 = vcvt.s32.f32 %v1544
    %v2825 = vcvt.s32.f32 %v1545
    %v2826 = vcvt.s32.f32 %v1546
    %v2827 = vcvt.s32.f32 %v1547
    %v2828 = vcvt.s32.f32 %v1548
    %v2829 = vcvt.s32.f32 %v1549
    %v2830 = vcvt.s32.f32 %v1550
    %v2831 = vcvt.s32.f32 %v1551
    %v2832 = vcvt.s32.f32 %v1552
    %v2833 = vcvt.s32.f32 %v1553
    %v2834 = vcvt.s32.f32 %v1554
    %v2835 = vcvt.s32.f32 %v1555
    %v2836 = vcvt.s32.f32 %v1556
    %v2837 = vcvt.s32.f32 %v1557
    %v2838 = vcvt.s32.f32 %v1558
    %v2839 = vcvt.s32.f32 %v1559
    %v2840 = vcvt.s32.f32 %v1560
    %v2841 = vcvt.s32.f32 %v1561
    %v2842 = vcvt.s32.f32 %v1562
    %v2843 = vcvt.s32.f32 %v1563
    %v2844 = vcvt.s32.f32 %v1564
    %v2845 = vcvt.s32.f32 %v1565
    %v2846 = vcvt.s32.f32 %v1566
    %v2847 = vcvt.s32.f32 %v1567
    %v2848 = vcvt.s32.f32 %v1568
    %v2849 = vcvt.s32.f32 %v1569
    %v2850 = vcvt.s32.f32 %v1570
    %v2851 = vcvt.s32.f32 %v1571
    %v2852 = vcvt.s32.f32 %v1572
    %v2853 = vcvt.s32.f32 %v1573
    %v2854 = vcvt.s32.f32 %v1574
    %v2855 = vcvt.s32.f32 %v1575
    %v2856 = vcvt.s32.f32 %v1576
    %v2857 = vcvt.s32.f32 %v1577
    %v2858 = vcvt.s32.f32 %v1578
    %v2859 = vcvt.s32.f32 %v1579
    %v2860 = vcvt.s32.f32 %v1580
    %v2861 = vcvt.s32.f32 %v1581
    %v2862 = vcvt.s32.f32 %v1582
    %v2863 = vcvt.s32.f32 %v1583
    %v2864 = vcvt.s32.f32 %v1584
    %v2865 = vcvt.s32.f32 %v1585
    %v2866 = vcvt.s32.f32 %v1586
    %v2867 = vcvt.s32.f32 %v1587
    %v2868 = vcvt.s32.f32 %v1588
    %v2869 = vcvt.s32.f32 %v1589
    %v2870 = vcvt.s32.f32 %v1590
    %v2871 = vcvt.s32.f32 %v1591
    %v2872 = vcvt.s32.f32 %v1592
    %v2873 = vcvt.s32.f32 %v1593
    %v2874 = vcvt.s32.f32 %v1594
    %v2875 = vcvt.s32.f32 %v1595
    %v2876 = vcvt.s32.f32 %v1596
    %v2877 = vcvt.s32.f32 %v1597
    %v2878 = vcvt.s32.f32 %v1598
    %v2879 = vcvt.s32.f32 %v1599
    %v2880 = vcvt.s32.f32 %v1600
    %v2881 = vcvt.s32.f32 %v1601
    %v2882 = vcvt.s32.f32 %v1602
    %v2883 = vcvt.s32.f32 %v1603
    %v2884 = vcvt.s32.f32 %v1604
    %v2885 = vcvt.s32.f32 %v1605
    %v2886 = vcvt.s32.f32 %v1606
    %v2887 = vcvt.s32.f32 %v1607
    %v2888 = vcvt.s32.f32 %v1608
    %v2889 = vcvt.s32.f32 %v1609
    %v2890 = vcvt.s32.f32 %v1610
    %v2891 = vcvt.s32.f32 %v1611
    %v2892 = vcvt.s32.f32 %v1612
    %v2893 = vcvt.s32.f32 %v1613
    %v2894 = vcvt.s32.f32 %v1614
    %v2895 = vcvt.s32.f32 %v1615
    %v2896 = vcvt.s32.f32 %v1616
    %v2897 = vcvt.s32.f32 %v1617
    %v2898 = vcvt.s32.f32 %v1618
    %v2899 = vcvt.s32.f32 %v1619
    %v2900 = vcvt.s32.f32 %v1620
    %v2901 = vcvt.s32.f32 %v1621
    %v2902 = vcvt.s32.f32 %v1622
    %v2903 = vcvt.s32.f32 %v1623
    %v2904 = vcvt.s32.f32 %v1624
    %v2905 = vcvt.s32.f32 %v1625
    %v2906 = vcvt.s32.f32 %v1626
    %v2907 = vcvt.s32.f32 %v1627
    %v2908 = vcvt.s32.f32 %v1628
    %v2909 = vcvt.s32.f32 %v1629
    %v2910 = vcvt.s32.f32 %v1630
    %v2911 = vcvt.s32.f32 %v1631
    %v2912 = vcvt.s32.f32 %v1632
    %v2913 = vcvt.s32.f32 %v1633
    %v2914 = vcvt.s32.f32 %v1634
    %v2915 = vcvt.s32.f32 %v1635
    %v2916 = vcvt.s32.f32 %v1636
    %v2917 = vcvt.s32.f32 %v1637
    %v2918 = vcvt.s32.f32 %v1638
    %v2919 = vcvt.s32.f32 %v1639
    %v2920 = vcvt.s32.f32 %v1640
    %v2921 = vcvt.s32.f32 %v1641
    %v2922 = vcvt.s32.f32 %v1642
    %v2923 = vcvt.s32.f32 %v1643
    %v2924 = vcvt.s32.f32 %v1644
    %v2925 = vcvt.s32.f32 %v1645
    %v2926 = vcvt.s32.f32 %v1646
    %v2927 = vcvt.s32.f32 %v1647
    %v2928 = vcvt.s32.f32 %v1648
    %v2929 = vcvt.s32.f32 %v1649
    %v2930 = vcvt.s32.f32 %v1650
    %v2931 = vcvt.s32.f32 %v1651
    %v2932 = vcvt.s32.f32 %v1652
    %v2933 = vcvt.s32.f32 %v1653
    %v2934 = vcvt.s32.f32 %v1654
    %v2935 = vcvt.s32.f32 %v1655
    %v2936 = vcvt.s32.f32 %v1656
    %v2937 = vcvt.s32.f32 %v1657
    %v2938 = vcvt.s32.f32 %v1658
    %v2939 = vcvt.s32.f32 %v1659
    %v2940 = vcvt.s32.f32 %v1660
    %v2941 = vcvt.s32.f32 %v1661
    %v2942 = vcvt.s32.f32 %v1662
    %v2943 = vcvt.s32.f32 %v1663
    %v2944 = vcvt.s32.f32 %v1664
    %v2945 = vcvt.s32.f32 %v1665
    %v2946 = vcvt.s32.f32 %v1666
    %v2947 = vcvt.s32.f32 %v1667
    %v2948 = vcvt.s32.f32 %v1668
    %v2949 = vcvt.s32.f32 %v1669
    %v2950 = vcvt.s32.f32 %v1670
    %v2951 = vcvt.s32.f32 %v1671
    %v2952 = vcvt.s32.f32 %v1672
    %v2953 = vcvt.s32.f32 %v1673
    %v2954 = vcvt.s32.f32 %v1674
    %v2955 = vcvt.s32.f32 %v1675
    %v2956 = vcvt.s32.f32 %v1676
    %v2957 = vcvt.s32.f32 %v1677
    %v2958 = vcvt.s32.f32 %v1678
    %v2959 = vcvt.s32.f32 %v1679
    %v2960 = vcvt.s32.f32 %v1680
    %v2961 = vcvt.s32.f32 %v1681
    %v2962 = vcvt.s32.f32 %v1682
    %v2963 = vcvt.s32.f32 %v1683
    %v2964 = vcvt.s32.f32 %v1684
    %v2965 = vcvt.s32.f32 %v1685
    %v2966 = vcvt.s32.f32 %v1686
    %v2967 = vcvt.s32.f32 %v1687
    %v2968 = vcvt.s32.f32 %v1688
    %v2969 = vcvt.s32.f32 %v1689
    %v2970 = vcvt.s32.f32 %v1690
    %v2971 = vcvt.s32.f32 %v1691
    %v2972 = vcvt.s32.f32 %v1692
    %v2973 = vcvt.s32.f32 %v1693
    %v2974 = vcvt.s32.f32 %v1694
    %v2975 = vcvt.s32.f32 %v1695
    %v2976 = vcvt.s32.f32 %v1696
    %v2977 = vcvt.s32.f32 %v1697
    %v2978 = vcvt.s32.f32 %v1698
    %v2979 = vcvt.s32.f32 %v1699
    %v2980 = vcvt.s32.f32 %v1700
    %v2981 = vcvt.s32.f32 %v1701
    %v2982 = vcvt.s32.f32 %v1702
    %v2983 = vcvt.s32.f32 %v1703
    %v2984 = vcvt.s32.f32 %v1704
    %v2985 = vcvt.s32.f32 %v1705
    %v2986 = vcvt.s32.f32 %v1706
    %v2987 = vcvt.s32.f32 %v1707
    %v2988 = vcvt.s32.f32 %v1708
    %v2989 = vcvt.s32.f32 %v1709
    %v2990 = vcvt.s32.f32 %v1710
    %v2991 = vcvt.s32.f32 %v1711
    %v2992 = vcvt.s32.f32 %v1712
    %v2993 = vcvt.s32.f32 %v1713
    %v2994 = vcvt.s32.f32 %v1714
    %v2995 = vcvt.s32.f32 %v1715
    %v2996 = vcvt.s32.f32 %v1716
    %v2997 = vcvt.s32.f32 %v1717
    %v2998 = vcvt.s32.f32 %v1718
    %v2999 = vcvt.s32.f32 %v1719
    %v3000 = vcvt.s32.f32 %v1720
    %v3001 = vcvt.s32.f32 %v1721
    %v3002 = vcvt.s32.f32 %v1722
    %v3003 = vcvt.s32.f32 %v1723
    %v3004 = vcvt.s32.f32 %v1724
    %v3005 = vcvt.s32.f32 %v1725
    %v3006 = vcvt.s32.f32 %v1726
    %v3007 = vcvt.s32.f32 %v1727
    %v3008 = vcvt.s32.f32 %v1728
    %v3009 = vcvt.s32.f32 %v1729
    %v3010 = vcvt.s32.f32 %v1730
    %v3011 = vcvt.s32.f32 %v1731
    %v3012 = vcvt.s32.f32 %v1732
    %v3013 = vcvt.s32.f32 %v1733
    %v3014 = vcvt.s32.f32 %v1734
    %v3015 = vcvt.s32.f32 %v1735
    %v3016 = vcvt.s32.f32 %v1736
    %v3017 = vcvt.s32.f32 %v1737
    %v3018 = vcvt.s32.f32 %v1738
    %v3019 = vcvt.s32.f32 %v1739
    %v3020 = vcvt.s32.f32 %v1740
    %v3021 = vcvt.s32.f32 %v1741
    %v3022 = vcvt.s32.f32 %v1742
    %v3023 = vcvt.s32.f32 %v1743
    %v3024 = vcvt.s32.f32 %v1744
    %v3025 = vcvt.s32.f32 %v1745
    %v3026 = vcvt.s32.f32 %v1746
    %v3027 = vcvt.s32.f32 %v1747
    %v3028 = vpack.c.bf16 %v1756, %v1748
    %v3029 = vpack.c.bf16 %v1757, %v1749
    %v3030 = vpack.c.bf16 %v1758, %v1750
    %v3031 = vpack.c.bf16 %v1759, %v1751
    %v3032 = vpack.c.bf16 %v1760, %v1752
    %v3033 = vpack.c.bf16 %v1761, %v1753
    %v3034 = vpack.c.bf16 %v1762, %v1754
    %v3035 = vpack.c.bf16 %v1763, %v1755
    %v3036 = vpack.c.bf16 %v1772, %v1764
    %v3037 = vpack.c.bf16 %v1773, %v1765
    %v3038 = vpack.c.bf16 %v1774, %v1766
    %v3039 = vpack.c.bf16 %v1775, %v1767
    %v3040 = vpack.c.bf16 %v1776, %v1768
    %v3041 = vpack.c.bf16 %v1777, %v1769
    %v3042 = vpack.c.bf16 %v1778, %v1770
    %v3043 = vpack.c.bf16 %v1779, %v1771
    %v3044 = vpack.c.bf16 %v1788, %v1780
    %v3045 = vpack.c.bf16 %v1789, %v1781
    %v3046 = vpack.c.bf16 %v1790, %v1782
    %v3047 = vpack.c.bf16 %v1791, %v1783
    %v3048 = vpack.c.bf16 %v1792, %v1784
    %v3049 = vpack.c.bf16 %v1793, %v1785
    %v3050 = vpack.c.bf16 %v1794, %v1786
    %v3051 = vpack.c.bf16 %v1795, %v1787
    %v3052 = vpack.c.bf16 %v1804, %v1796
    %v3053 = vpack.c.bf16 %v1805, %v1797
    %v3054 = vpack.c.bf16 %v1806, %v1798
    %v3055 = vpack.c.bf16 %v1807, %v1799
    %v3056 = vpack.c.bf16 %v1808, %v1800
    %v3057 = vpack.c.bf16 %v1809, %v1801
    %v3058 = vpack.c.bf16 %v1810, %v1802
    %v3059 = vpack.c.bf16 %v1811, %v1803
    %v3060 = vpack.c.bf16 %v1820, %v1812
    %v3061 = vpack.c.bf16 %v1821, %v1813
    %v3062 = vpack.c.bf16 %v1822, %v1814
    %v3063 = vpack.c.bf16 %v1823, %v1815
    %v3064 = vpack.c.bf16 %v1824, %v1816
    %v3065 = vpack.c.bf16 %v1825, %v1817
    %v3066 = vpack.c.bf16 %v1826, %v1818
    %v3067 = vpack.c.bf16 %v1827, %v1819
    %v3068 = vpack.c.bf16 %v1836, %v1828
    %v3069 = vpack.c.bf16 %v1837, %v1829
    %v3070 = vpack.c.bf16 %v1838, %v1830
    %v3071 = vpack.c.bf16 %v1839, %v1831
    %v3072 = vpack.c.bf16 %v1840, %v1832
    %v3073 = vpack.c.bf16 %v1841, %v1833
    %v3074 = vpack.c.bf16 %v1842, %v1834
    %v3075 = vpack.c.bf16 %v1843, %v1835
    %v3076 = vpack.c.bf16 %v1852, %v1844
    %v3077 = vpack.c.bf16 %v1853, %v1845
    %v3078 = vpack.c.bf16 %v1854, %v1846
    %v3079 = vpack.c.bf16 %v1855, %v1847
    %v3080 = vpack.c.bf16 %v1856, %v1848
    %v3081 = vpack.c.bf16 %v1857, %v1849
    %v3082 = vpack.c.bf16 %v1858, %v1850
    %v3083 = vpack.c.bf16 %v1859, %v1851
    %v3084 = vpack.c.bf16 %v1868, %v1860
    %v3085 = vpack.c.bf16 %v1869, %v1861
    %v3086 = vpack.c.bf16 %v1870, %v1862
    %v3087 = vpack.c.bf16 %v1871, %v1863
    %v3088 = vpack.c.bf16 %v1872, %v1864
    %v3089 = vpack.c.bf16 %v1873, %v1865
    %v3090 = vpack.c.bf16 %v1874, %v1866
    %v3091 = vpack.c.bf16 %v1875, %v1867
    %v3092 = vpack.c.bf16 %v1884, %v1876
    %v3093 = vpack.c.bf16 %v1885, %v1877
    %v3094 = vpack.c.bf16 %v1886, %v1878
    %v3095 = vpack.c.bf16 %v1887, %v1879
    %v3096 = vpack.c.bf16 %v1888, %v1880
    %v3097 = vpack.c.bf16 %v1889, %v1881
    %v3098 = vpack.c.bf16 %v1890, %v1882
    %v3099 = vpack.c.bf16 %v1891, %v1883
    %v3100 = vpack.c.bf16 %v1900, %v1892
    %v3101 = vpack.c.bf16 %v1901, %v1893
    %v3102 = vpack.c.bf16 %v1902, %v1894
    %v3103 = vpack.c.bf16 %v1903, %v1895
    %v3104 = vpack.c.bf16 %v1904, %v1896
    %v3105 = vpack.c.bf16 %v1905, %v1897
    %v3106 = vpack.c.bf16 %v1906, %v1898
    %v3107 = vpack.c.bf16 %v1907, %v1899
    %v3108 = vpack.c.bf16 %v1916, %v1908
    %v3109 = vpack.c.bf16 %v1917, %v1909
    %v3110 = vpack.c.bf16 %v1918, %v1910
    %v3111 = vpack.c.bf16 %v1919, %v1911
    %v3112 = vpack.c.bf16 %v1920, %v1912
    %v3113 = vpack.c.bf16 %v1921, %v1913
    %v3114 = vpack.c.bf16 %v1922, %v1914
    %v3115 = vpack.c.bf16 %v1923, %v1915
    %v3116 = vpack.c.bf16 %v1932, %v1924
    %v3117 = vpack.c.bf16 %v1933, %v1925
    %v3118 = vpack.c.bf16 %v1934, %v1926
    %v3119 = vpack.c.bf16 %v1935, %v1927
    %v3120 = vpack.c.bf16 %v1936, %v1928
    %v3121 = vpack.c.bf16 %v1937, %v1929
    %v3122 = vpack.c.bf16 %v1938, %v1930
    %v3123 = vpack.c.bf16 %v1939, %v1931
    %v3124 = vpack.c.bf16 %v1948, %v1940
    %v3125 = vpack.c.bf16 %v1949, %v1941
    %v3126 = vpack.c.bf16 %v1950, %v1942
    %v3127 = vpack.c.bf16 %v1951, %v1943
    %v3128 = vpack.c.bf16 %v1952, %v1944
    %v3129 = vpack.c.bf16 %v1953, %v1945
    %v3130 = vpack.c.bf16 %v1954, %v1946
    %v3131 = vpack.c.bf16 %v1955, %v1947
    %v3132 = vpack.c.bf16 %v1964, %v1956
    %v3133 = vpack.c.bf16 %v1965, %v1957
    %v3134 = vpack.c.bf16 %v1966, %v1958
    %v3135 = vpack.c.bf16 %v1967, %v1959
    %v3136 = vpack.c.bf16 %v1968, %v1960
    %v3137 = vpack.c.bf16 %v1969, %v1961
    %v3138 = vpack.c.bf16 %v1970, %v1962
    %v3139 = vpack.c.bf16 %v1971, %v1963
    %v3140 = vpack.c.bf16 %v1980, %v1972
    %v3141 = vpack.c.bf16 %v1981, %v1973
    %v3142 = vpack.c.bf16 %v1982, %v1974
    %v3143 = vpack.c.bf16 %v1983, %v1975
    %v3144 = vpack.c.bf16 %v1984, %v1976
    %v3145 = vpack.c.bf16 %v1985, %v1977
    %v3146 = vpack.c.bf16 %v1986, %v1978
    %v3147 = vpack.c.bf16 %v1987, %v1979
    %v3148 = vpack.c.bf16 %v1996, %v1988
    %v3149 = vpack.c.bf16 %v1997, %v1989
    %v3150 = vpack.c.bf16 %v1998, %v1990
    %v3151 = vpack.c.bf16 %v1999, %v1991
    %v3152 = vpack.c.bf16 %v2000, %v1992
    %v3153 = vpack.c.bf16 %v2001, %v1993
    %v3154 = vpack.c.bf16 %v2002, %v1994
    %v3155 = vpack.c.bf16 %v2003, %v1995
    %v3156 = vpack.c.bf16 %v2012, %v2004
    %v3157 = vpack.c.bf16 %v2013, %v2005
    %v3158 = vpack.c.bf16 %v2014, %v2006
    %v3159 = vpack.c.bf16 %v2015, %v2007
    %v3160 = vpack.c.bf16 %v2016, %v2008
    %v3161 = vpack.c.bf16 %v2017, %v2009
    %v3162 = vpack.c.bf16 %v2018, %v2010
    %v3163 = vpack.c.bf16 %v2019, %v2011
    %v3164 = vpack.c.bf16 %v2028, %v2020
    %v3165 = vpack.c.bf16 %v2029, %v2021
    %v3166 = vpack.c.bf16 %v2030, %v2022
    %v3167 = vpack.c.bf16 %v2031, %v2023
    %v3168 = vpack.c.bf16 %v2032, %v2024
    %v3169 = vpack.c.bf16 %v2033, %v2025
    %v3170 = vpack.c.bf16 %v2034, %v2026
    %v3171 = vpack.c.bf16 %v2035, %v2027
    %v3172 = vpack.c.bf16 %v2044, %v2036
    %v3173 = vpack.c.bf16 %v2045, %v2037
    %v3174 = vpack.c.bf16 %v2046, %v2038
    %v3175 = vpack.c.bf16 %v2047, %v2039
    %v3176 = vpack.c.bf16 %v2048, %v2040
    %v3177 = vpack.c.bf16 %v2049, %v2041
    %v3178 = vpack.c.bf16 %v2050, %v2042
    %v3179 = vpack.c.bf16 %v2051, %v2043
    %v3180 = vpack.c.bf16 %v2060, %v2052
    %v3181 = vpack.c.bf16 %v2061, %v2053
    %v3182 = vpack.c.bf16 %v2062, %v2054
    %v3183 = vpack.c.bf16 %v2063, %v2055
    %v3184 = vpack.c.bf16 %v2064, %v2056
    %v3185 = vpack.c.bf16 %v2065, %v2057
    %v3186 = vpack.c.bf16 %v2066, %v2058
    %v3187 = vpack.c.bf16 %v2067, %v2059
    %v3188 = vpack.c.bf16 %v2076, %v2068
    %v3189 = vpack.c.bf16 %v2077, %v2069
    %v3190 = vpack.c.bf16 %v2078, %v2070
    %v3191 = vpack.c.bf16 %v2079, %v2071
    %v3192 = vpack.c.bf16 %v2080, %v2072
    %v3193 = vpack.c.bf16 %v2081, %v2073
    %v3194 = vpack.c.bf16 %v2082, %v2074
    %v3195 = vpack.c.bf16 %v2083, %v2075
    %v3196 = vpack.c.bf16 %v2092, %v2084
    %v3197 = vpack.c.bf16 %v2093, %v2085
    %v3198 = vpack.c.bf16 %v2094, %v2086
    %v3199 = vpack.c.bf16 %v2095, %v2087
    %v3200 = vpack.c.bf16 %v2096, %v2088
    %v3201 = vpack.c.bf16 %v2097, %v2089
    %v3202 = vpack.c.bf16 %v2098, %v2090
    %v3203 = vpack.c.bf16 %v2099, %v2091
    %v3204 = vpack.c.bf16 %v2108, %v2100
    %v3205 = vpack.c.bf16 %v2109, %v2101
    %v3206 = vpack.c.bf16 %v2110, %v2102
    %v3207 = vpack.c.bf16 %v2111, %v2103
    %v3208 = vpack.c.bf16 %v2112, %v2104
    %v3209 = vpack.c.bf16 %v2113, %v2105
    %v3210 = vpack.c.bf16 %v2114, %v2106
    %v3211 = vpack.c.bf16 %v2115, %v2107
    %v3212 = vpack.c.bf16 %v2124, %v2116
    %v3213 = vpack.c.bf16 %v2125, %v2117
    %v3214 = vpack.c.bf16 %v2126, %v2118
    %v3215 = vpack.c.bf16 %v2127, %v2119
    %v3216 = vpack.c.bf16 %v2128, %v2120
    %v3217 = vpack.c.bf16 %v2129, %v2121
    %v3218 = vpack.c.bf16 %v2130, %v2122
    %v3219 = vpack.c.bf16 %v2131, %v2123
    %v3220 = vpack.c.bf16 %v2140, %v2132
    %v3221 = vpack.c.bf16 %v2141, %v2133
    %v3222 = vpack.c.bf16 %v2142, %v2134
    %v3223 = vpack.c.bf16 %v2143, %v2135
    %v3224 = vpack.c.bf16 %v2144, %v2136
    %v3225 = vpack.c.bf16 %v2145, %v2137
    %v3226 = vpack.c.bf16 %v2146, %v2138
    %v3227 = vpack.c.bf16 %v2147, %v2139
    %v3228 = vpack.c.bf16 %v2156, %v2148
    %v3229 = vpack.c.bf16 %v2157, %v2149
    %v3230 = vpack.c.bf16 %v2158, %v2150
    %v3231 = vpack.c.bf16 %v2159, %v2151
    %v3232 = vpack.c.bf16 %v2160, %v2152
    %v3233 = vpack.c.bf16 %v2161, %v2153
    %v3234 = vpack.c.bf16 %v2162, %v2154
    %v3235 = vpack.c.bf16 %v2163, %v2155
    %v3236 = vpack.c.bf16 %v2172, %v2164
    %v3237 = vpack.c.bf16 %v2173, %v2165
    %v3238 = vpack.c.bf16 %v2174, %v2166
    %v3239 = vpack.c.bf16 %v2175, %v2167
    %v3240 = vpack.c.bf16 %v2176, %v2168
    %v3241 = vpack.c.bf16 %v2177, %v2169
    %v3242 = vpack.c.bf16 %v2178, %v2170
    %v3243 = vpack.c.bf16 %v2179, %v2171
    %v3244 = vpack.c.bf16 %v2188, %v2180
    %v3245 = vpack.c.bf16 %v2189, %v2181
    %v3246 = vpack.c.bf16 %v2190, %v2182
    %v3247 = vpack.c.bf16 %v2191, %v2183
    %v3248 = vpack.c.bf16 %v2192, %v2184
    %v3249 = vpack.c.bf16 %v2193, %v2185
    %v3250 = vpack.c.bf16 %v2194, %v2186
    %v3251 = vpack.c.bf16 %v2195, %v2187
    %v3252 = vpack.c.bf16 %v2204, %v2196
    %v3253 = vpack.c.bf16 %v2205, %v2197
    %v3254 = vpack.c.bf16 %v2206, %v2198
    %v3255 = vpack.c.bf16 %v2207, %v2199
    %v3256 = vpack.c.bf16 %v2208, %v2200
    %v3257 = vpack.c.bf16 %v2209, %v2201
    %v3258 = vpack.c.bf16 %v2210, %v2202
    %v3259 = vpack.c.bf16 %v2211, %v2203
    %v3260 = vpack.c.bf16 %v2220, %v2212
    %v3261 = vpack.c.bf16 %v2221, %v2213
    %v3262 = vpack.c.bf16 %v2222, %v2214
    %v3263 = vpack.c.bf16 %v2223, %v2215
    %v3264 = vpack.c.bf16 %v2224, %v2216
    %v3265 = vpack.c.bf16 %v2225, %v2217
    %v3266 = vpack.c.bf16 %v2226, %v2218
    %v3267 = vpack.c.bf16 %v2227, %v2219
    %v3268 = vpack.c.bf16 %v2236, %v2228
    %v3269 = vpack.c.bf16 %v2237, %v2229
    %v3270 = vpack.c.bf16 %v2238, %v2230
    %v3271 = vpack.c.bf16 %v2239, %v2231
    %v3272 = vpack.c.bf16 %v2240, %v2232
    %v3273 = vpack.c.bf16 %v2241, %v2233
    %v3274 = vpack.c.bf16 %v2242, %v2234
    %v3275 = vpack.c.bf16 %v2243, %v2235
    %v3276 = vpack.c.bf16 %v2252, %v2244
    %v3277 = vpack.c.bf16 %v2253, %v2245
    %v3278 = vpack.c.bf16 %v2254, %v2246
    %v3279 = vpack.c.bf16 %v2255, %v2247
    %v3280 = vpack.c.bf16 %v2256, %v2248
    %v3281 = vpack.c.bf16 %v2257, %v2249
    %v3282 = vpack.c.bf16 %v2258, %v2250
    %v3283 = vpack.c.bf16 %v2259, %v2251
    %v3284 = vpack.c.bf16 %v2268, %v2260
    %v3285 = vpack.c.bf16 %v2269, %v2261
    %v3286 = vpack.c.bf16 %v2270, %v2262
    %v3287 = vpack.c.bf16 %v2271, %v2263
    %v3288 = vpack.c.bf16 %v2272, %v2264
    %v3289 = vpack.c.bf16 %v2273, %v2265
    %v3290 = vpack.c.bf16 %v2274, %v2266
    %v3291 = vpack.c.bf16 %v2275, %v2267
    %v3292 = vpack.c.bf16 %v2284, %v2276
    %v3293 = vpack.c.bf16 %v2285, %v2277
    %v3294 = vpack.c.bf16 %v2286, %v2278
    %v3295 = vpack.c.bf16 %v2287, %v2279
    %v3296 = vpack.c.bf16 %v2288, %v2280
    %v3297 = vpack.c.bf16 %v2289, %v2281
    %v3298 = vpack.c.bf16 %v2290, %v2282
    %v3299 = vpack.c.bf16 %v2291, %v2283
    %v3300 = vpack.c.bf16 %v2300, %v2292
    %v3301 = vpack.c.bf16 %v2301, %v2293
    %v3302 = vpack.c.bf16 %v2302, %v2294
    %v3303 = vpack.c.bf16 %v2303, %v2295
    %v3304 = vpack.c.bf16 %v2304, %v2296
    %v3305 = vpack.c.bf16 %v2305, %v2297
    %v3306 = vpack.c.bf16 %v2306, %v2298
    %v3307 = vpack.c.bf16 %v2307, %v2299
    %v3308 = vpack.c.bf16 %v2316, %v2308
    %v3309 = vpack.c.bf16 %v2317, %v2309
    %v3310 = vpack.c.bf16 %v2318, %v2310
    %v3311 = vpack.c.bf16 %v2319, %v2311
    %v3312 = vpack.c.bf16 %v2320, %v2312
    %v3313 = vpack.c.bf16 %v2321, %v2313
    %v3314 = vpack.c.bf16 %v2322, %v2314
    %v3315 = vpack.c.bf16 %v2323, %v2315
    %v3316 = vpack.c.bf16 %v2332, %v2324
    %v3317 = vpack.c.bf16 %v2333, %v2325
    %v3318 = vpack.c.bf16 %v2334, %v2326
    %v3319 = vpack.c.bf16 %v2335, %v2327
    %v3320 = vpack.c.bf16 %v2336, %v2328
    %v3321 = vpack.c.bf16 %v2337, %v2329
    %v3322 = vpack.c.bf16 %v2338, %v2330
    %v3323 = vpack.c.bf16 %v2339, %v2331
    %v3324 = vpack.c.bf16 %v2348, %v2340
    %v3325 = vpack.c.bf16 %v2349, %v2341
    %v3326 = vpack.c.bf16 %v2350, %v2342
    %v3327 = vpack.c.bf16 %v2351, %v2343
    %v3328 = vpack.c.bf16 %v2352, %v2344
    %v3329 = vpack.c.bf16 %v2353, %v2345
    %v3330 = vpack.c.bf16 %v2354, %v2346
    %v3331 = vpack.c.bf16 %v2355, %v2347
    %v3332 = vpack.c.bf16 %v2364, %v2356
    %v3333 = vpack.c.bf16 %v2365, %v2357
    %v3334 = vpack.c.bf16 %v2366, %v2358
    %v3335 = vpack.c.bf16 %v2367, %v2359
    %v3336 = vpack.c.bf16 %v2368, %v2360
    %v3337 = vpack.c.bf16 %v2369, %v2361
    %v3338 = vpack.c.bf16 %v2370, %v2362
    %v3339 = vpack.c.bf16 %v2371, %v2363
    %v3340 = vpack.c.bf16 %v2380, %v2372
    %v3341 = vpack.c.bf16 %v2381, %v2373
    %v3342 = vpack.c.bf16 %v2382, %v2374
    %v3343 = vpack.c.bf16 %v2383, %v2375
    %v3344 = vpack.c.bf16 %v2384, %v2376
    %v3345 = vpack.c.bf16 %v2385, %v2377
    %v3346 = vpack.c.bf16 %v2386, %v2378
    %v3347 = vpack.c.bf16 %v2387, %v2379
    %v3348 = vpack.c.bf16 %v2396, %v2388
    %v3349 = vpack.c.bf16 %v2397, %v2389
    %v3350 = vpack.c.bf16 %v2398, %v2390
    %v3351 = vpack.c.bf16 %v2399, %v2391
    %v3352 = vpack.c.bf16 %v2400, %v2392
    %v3353 = vpack.c.bf16 %v2401, %v2393
    %v3354 = vpack.c.bf16 %v2402, %v2394
    %v3355 = vpack.c.bf16 %v2403, %v2395
    %v3356 = vpack.c.bf16 %v2412, %v2404
    %v3357 = vpack.c.bf16 %v2413, %v2405
    %v3358 = vpack.c.bf16 %v2414, %v2406
    %v3359 = vpack.c.bf16 %v2415, %v2407
    %v3360 = vpack.c.bf16 %v2416, %v2408
    %v3361 = vpack.c.bf16 %v2417, %v2409
    %v3362 = vpack.c.bf16 %v2418, %v2410
    %v3363 = vpack.c.bf16 %v2419, %v2411
    %v3364 = vpack.c.bf16 %v2428, %v2420
    %v3365 = vpack.c.bf16 %v2429, %v2421
    %v3366 = vpack.c.bf16 %v2430, %v2422
    %v3367 = vpack.c.bf16 %v2431, %v2423
    %v3368 = vpack.c.bf16 %v2432, %v2424
    %v3369 = vpack.c.bf16 %v2433, %v2425
    %v3370 = vpack.c.bf16 %v2434, %v2426
    %v3371 = vpack.c.bf16 %v2435, %v2427
    %v3372 = vpack.c.bf16 %v2444, %v2436
    %v3373 = vpack.c.bf16 %v2445, %v2437
    %v3374 = vpack.c.bf16 %v2446, %v2438
    %v3375 = vpack.c.bf16 %v2447, %v2439
    %v3376 = vpack.c.bf16 %v2448, %v2440
    %v3377 = vpack.c.bf16 %v2449, %v2441
    %v3378 = vpack.c.bf16 %v2450, %v2442
    %v3379 = vpack.c.bf16 %v2451, %v2443
    %v3380 = vpack.c.bf16 %v2460, %v2452
    %v3381 = vpack.c.bf16 %v2461, %v2453
    %v3382 = vpack.c.bf16 %v2462, %v2454
    %v3383 = vpack.c.bf16 %v2463, %v2455
    %v3384 = vpack.c.bf16 %v2464, %v2456
    %v3385 = vpack.c.bf16 %v2465, %v2457
    %v3386 = vpack.c.bf16 %v2466, %v2458
    %v3387 = vpack.c.bf16 %v2467, %v2459
    %v3388 = vpack.c.bf16 %v2476, %v2468
    %v3389 = vpack.c.bf16 %v2477, %v2469
    %v3390 = vpack.c.bf16 %v2478, %v2470
    %v3391 = vpack.c.bf16 %v2479, %v2471
    %v3392 = vpack.c.bf16 %v2480, %v2472
    %v3393 = vpack.c.bf16 %v2481, %v2473
    %v3394 = vpack.c.bf16 %v2482, %v2474
    %v3395 = vpack.c.bf16 %v2483, %v2475
    %v3396 = vpack.c.bf16 %v2492, %v2484
    %v3397 = vpack.c.bf16 %v2493, %v2485
    %v3398 = vpack.c.bf16 %v2494, %v2486
    %v3399 = vpack.c.bf16 %v2495, %v2487
    %v3400 = vpack.c.bf16 %v2496, %v2488
    %v3401 = vpack.c.bf16 %v2497, %v2489
    %v3402 = vpack.c.bf16 %v2498, %v2490
    %v3403 = vpack.c.bf16 %v2499, %v2491
    %v3404 = vpack.c.bf16 %v2508, %v2500
    %v3405 = vpack.c.bf16 %v2509, %v2501
    %v3406 = vpack.c.bf16 %v2510, %v2502
    %v3407 = vpack.c.bf16 %v2511, %v2503
    %v3408 = vpack.c.bf16 %v2512, %v2504
    %v3409 = vpack.c.bf16 %v2513, %v2505
    %v3410 = vpack.c.bf16 %v2514, %v2506
    %v3411 = vpack.c.bf16 %v2515, %v2507
    %v3412 = vpack.c.bf16 %v2524, %v2516
    %v3413 = vpack.c.bf16 %v2525, %v2517
    %v3414 = vpack.c.bf16 %v2526, %v2518
    %v3415 = vpack.c.bf16 %v2527, %v2519
    %v3416 = vpack.c.bf16 %v2528, %v2520
    %v3417 = vpack.c.bf16 %v2529, %v2521
    %v3418 = vpack.c.bf16 %v2530, %v2522
    %v3419 = vpack.c.bf16 %v2531, %v2523
    %v3420 = vpack.c.bf16 %v2540, %v2532
    %v3421 = vpack.c.bf16 %v2541, %v2533
    %v3422 = vpack.c.bf16 %v2542, %v2534
    %v3423 = vpack.c.bf16 %v2543, %v2535
    %v3424 = vpack.c.bf16 %v2544, %v2536
    %v3425 = vpack.c.bf16 %v2545, %v2537
    %v3426 = vpack.c.bf16 %v2546, %v2538
    %v3427 = vpack.c.bf16 %v2547, %v2539
    %v3428 = vpack.c.bf16 %v2556, %v2548
    %v3429 = vpack.c.bf16 %v2557, %v2549
    %v3430 = vpack.c.bf16 %v2558, %v2550
    %v3431 = vpack.c.bf16 %v2559, %v2551
    %v3432 = vpack.c.bf16 %v2560, %v2552
    %v3433 = vpack.c.bf16 %v2561, %v2553
    %v3434 = vpack.c.bf16 %v2562, %v2554
    %v3435 = vpack.c.bf16 %v2563, %v2555
    %v3436 = vpack.c.bf16 %v2572, %v2564
    %v3437 = vpack.c.bf16 %v2573, %v2565
    %v3438 = vpack.c.bf16 %v2574, %v2566
    %v3439 = vpack.c.bf16 %v2575, %v2567
    %v3440 = vpack.c.bf16 %v2576, %v2568
    %v3441 = vpack.c.bf16 %v2577, %v2569
    %v3442 = vpack.c.bf16 %v2578, %v2570
    %v3443 = vpack.c.bf16 %v2579, %v2571
    %v3444 = vpack.c.bf16 %v2588, %v2580
    %v3445 = vpack.c.bf16 %v2589, %v2581
    %v3446 = vpack.c.bf16 %v2590, %v2582
    %v3447 = vpack.c.bf16 %v2591, %v2583
    %v3448 = vpack.c.bf16 %v2592, %v2584
    %v3449 = vpack.c.bf16 %v2593, %v2585
    %v3450 = vpack.c.bf16 %v2594, %v2586
    %v3451 = vpack.c.bf16 %v2595, %v2587
    %v3452 = vpack.c.bf16 %v2604, %v2596
    %v3453 = vpack.c.bf16 %v2605, %v2597
    %v3454 = vpack.c.bf16 %v2606, %v2598
    %v3455 = vpack.c.bf16 %v2607, %v2599
    %v3456 = vpack.c.bf16 %v2608, %v2600
    %v3457 = vpack.c.bf16 %v2609, %v2601
    %v3458 = vpack.c.bf16 %v2610, %v2602
    %v3459 = vpack.c.bf16 %v2611, %v2603
    %v3460 = vpack.c.bf16 %v2620, %v2612
    %v3461 = vpack.c.bf16 %v2621, %v2613
    %v3462 = vpack.c.bf16 %v2622, %v2614
    %v3463 = vpack.c.bf16 %v2623, %v2615
    %v3464 = vpack.c.bf16 %v2624, %v2616
    %v3465 = vpack.c.bf16 %v2625, %v2617
    %v3466 = vpack.c.bf16 %v2626, %v2618
    %v3467 = vpack.c.bf16 %v2627, %v2619
    %v3468 = vpack.c.bf16 %v2636, %v2628
    %v3469 = vpack.c.bf16 %v2637, %v2629
    %v3470 = vpack.c.bf16 %v2638, %v2630
    %v3471 = vpack.c.bf16 %v2639, %v2631
    %v3472 = vpack.c.bf16 %v2640, %v2632
    %v3473 = vpack.c.bf16 %v2641, %v2633
    %v3474 = vpack.c.bf16 %v2642, %v2634
    %v3475 = vpack.c.bf16 %v2643, %v2635
    %v3476 = vpack.c.bf16 %v2652, %v2644
    %v3477 = vpack.c.bf16 %v2653, %v2645
    %v3478 = vpack.c.bf16 %v2654, %v2646
    %v3479 = vpack.c.bf16 %v2655, %v2647
    %v3480 = vpack.c.bf16 %v2656, %v2648
    %v3481 = vpack.c.bf16 %v2657, %v2649
    %v3482 = vpack.c.bf16 %v2658, %v2650
    %v3483 = vpack.c.bf16 %v2659, %v2651
    %v3484 = vpack.c.bf16 %v2668, %v2660
    %v3485 = vpack.c.bf16 %v2669, %v2661
    %v3486 = vpack.c.bf16 %v2670, %v2662
    %v3487 = vpack.c.bf16 %v2671, %v2663
    %v3488 = vpack.c.bf16 %v2672, %v2664
    %v3489 = vpack.c.bf16 %v2673, %v2665
    %v3490 = vpack.c.bf16 %v2674, %v2666
    %v3491 = vpack.c.bf16 %v2675, %v2667
    %v3492 = vpack.c.bf16 %v2684, %v2676
    %v3493 = vpack.c.bf16 %v2685, %v2677
    %v3494 = vpack.c.bf16 %v2686, %v2678
    %v3495 = vpack.c.bf16 %v2687, %v2679
    %v3496 = vpack.c.bf16 %v2688, %v2680
    %v3497 = vpack.c.bf16 %v2689, %v2681
    %v3498 = vpack.c.bf16 %v2690, %v2682
    %v3499 = vpack.c.bf16 %v2691, %v2683
    %v3500 = vpack.c.bf16 %v2700, %v2692
    %v3501 = vpack.c.bf16 %v2701, %v2693
    %v3502 = vpack.c.bf16 %v2702, %v2694
    %v3503 = vpack.c.bf16 %v2703, %v2695
    %v3504 = vpack.c.bf16 %v2704, %v2696
    %v3505 = vpack.c.bf16 %v2705, %v2697
    %v3506 = vpack.c.bf16 %v2706, %v2698
    %v3507 = vpack.c.bf16 %v2707, %v2699
    %v3508 = vpack.c.bf16 %v2716, %v2708
    %v3509 = vpack.c.bf16 %v2717, %v2709
    %v3510 = vpack.c.bf16 %v2718, %v2710
    %v3511 = vpack.c.bf16 %v2719, %v2711
    %v3512 = vpack.c.bf16 %v2720, %v2712
    %v3513 = vpack.c.bf16 %v2721, %v2713
    %v3514 = vpack.c.bf16 %v2722, %v2714
    %v3515 = vpack.c.bf16 %v2723, %v2715
    %v3516 = vpack.c.bf16 %v2732, %v2724
    %v3517 = vpack.c.bf16 %v2733, %v2725
    %v3518 = vpack.c.bf16 %v2734, %v2726
    %v3519 = vpack.c.bf16 %v2735, %v2727
    %v3520 = vpack.c.bf16 %v2736, %v2728
    %v3521 = vpack.c.bf16 %v2737, %v2729
    %v3522 = vpack.c.bf16 %v2738, %v2730
    %v3523 = vpack.c.bf16 %v2739, %v2731
    %v3524 = vpack.c.bf16 %v2748, %v2740
    %v3525 = vpack.c.bf16 %v2749, %v2741
    %v3526 = vpack.c.bf16 %v2750, %v2742
    %v3527 = vpack.c.bf16 %v2751, %v2743
    %v3528 = vpack.c.bf16 %v2752, %v2744
    %v3529 = vpack.c.bf16 %v2753, %v2745
    %v3530 = vpack.c.bf16 %v2754, %v2746
    %v3531 = vpack.c.bf16 %v2755, %v2747
    %v3532 = vpack.c.bf16 %v2764, %v2756
    %v3533 = vpack.c.bf16 %v2765, %v2757
    %v3534 = vpack.c.bf16 %v2766, %v2758
    %v3535 = vpack.c.bf16 %v2767, %v2759
    %v3536 = vpack.c.bf16 %v2768, %v2760
    %v3537 = vpack.c.bf16 %v2769, %v2761
    %v3538 = vpack.c.bf16 %v2770, %v2762
    %v3539 = vpack.c.bf16 %v2771, %v2763
    %v3540 = vpack.c.bf16 %v2780, %v2772
    %v3541 = vpack.c.bf16 %v2781, %v2773
    %v3542 = vpack.c.bf16 %v2782, %v2774
    %v3543 = vpack.c.bf16 %v2783, %v2775
    %v3544 = vpack.c.bf16 %v2784, %v2776
    %v3545 = vpack.c.bf16 %v2785, %v2777
    %v3546 = vpack.c.bf16 %v2786, %v2778
    %v3547 = vpack.c.bf16 %v2787, %v2779
    %v3548 = vpack.c.bf16 %v2796, %v2788
    %v3549 = vpack.c.bf16 %v2797, %v2789
    %v3550 = vpack.c.bf16 %v2798, %v2790
    %v3551 = vpack.c.bf16 %v2799, %v2791
    %v3552 = vpack.c.bf16 %v2800, %v2792
    %v3553 = vpack.c.bf16 %v2801, %v2793
    %v3554 = vpack.c.bf16 %v2802, %v2794
    %v3555 = vpack.c.bf16 %v2803, %v2795
    %v3556 = vpack.c.bf16 %v2812, %v2804
    %v3557 = vpack.c.bf16 %v2813, %v2805
    %v3558 = vpack.c.bf16 %v2814, %v2806
    %v3559 = vpack.c.bf16 %v2815, %v2807
    %v3560 = vpack.c.bf16 %v2816, %v2808
    %v3561 = vpack.c.bf16 %v2817, %v2809
    %v3562 = vpack.c.bf16 %v2818, %v2810
    %v3563 = vpack.c.bf16 %v2819, %v2811
    %v3564 = vpack.c.bf16 %v2828, %v2820
    %v3565 = vpack.c.bf16 %v2829, %v2821
    %v3566 = vpack.c.bf16 %v2830, %v2822
    %v3567 = vpack.c.bf16 %v2831, %v2823
    %v3568 = vpack.c.bf16 %v2832, %v2824
    %v3569 = vpack.c.bf16 %v2833, %v2825
    %v3570 = vpack.c.bf16 %v2834, %v2826
    %v3571 = vpack.c.bf16 %v2835, %v2827
    %v3572 = vpack.c.bf16 %v2844, %v2836
    %v3573 = vpack.c.bf16 %v2845, %v2837
    %v3574 = vpack.c.bf16 %v2846, %v2838
    %v3575 = vpack.c.bf16 %v2847, %v2839
    %v3576 = vpack.c.bf16 %v2848, %v2840
    %v3577 = vpack.c.bf16 %v2849, %v2841
    %v3578 = vpack.c.bf16 %v2850, %v2842
    %v3579 = vpack.c.bf16 %v2851, %v2843
    %v3580 = vpack.c.bf16 %v2860, %v2852
    %v3581 = vpack.c.bf16 %v2861, %v2853
    %v3582 = vpack.c.bf16 %v2862, %v2854
    %v3583 = vpack.c.bf16 %v2863, %v2855
    %v3584 = vpack.c.bf16 %v2864, %v2856
    %v3585 = vpack.c.bf16 %v2865, %v2857
    %v3586 = vpack.c.bf16 %v2866, %v2858
    %v3587 = vpack.c.bf16 %v2867, %v2859
    %v3588 = vpack.c.bf16 %v2876, %v2868
    %v3589 = vpack.c.bf16 %v2877, %v2869
    %v3590 = vpack.c.bf16 %v2878, %v2870
    %v3591 = vpack.c.bf16 %v2879, %v2871
    %v3592 = vpack.c.bf16 %v2880, %v2872
    %v3593 = vpack.c.bf16 %v2881, %v2873
    %v3594 = vpack.c.bf16 %v2882, %v2874
    %v3595 = vpack.c.bf16 %v2883, %v2875
    %v3596 = vpack.c.bf16 %v2892, %v2884
    %v3597 = vpack.c.bf16 %v2893, %v2885
    %v3598 = vpack.c.bf16 %v2894, %v2886
    %v3599 = vpack.c.bf16 %v2895, %v2887
    %v3600 = vpack.c.bf16 %v2896, %v2888
    %v3601 = vpack.c.bf16 %v2897, %v2889
    %v3602 = vpack.c.bf16 %v2898, %v2890
    %v3603 = vpack.c.bf16 %v2899, %v2891
    %v3604 = vpack.c.bf16 %v2908, %v2900
    %v3605 = vpack.c.bf16 %v2909, %v2901
    %v3606 = vpack.c.bf16 %v2910, %v2902
    %v3607 = vpack.c.bf16 %v2911, %v2903
    %v3608 = vpack.c.bf16 %v2912, %v2904
    %v3609 = vpack.c.bf16 %v2913, %v2905
    %v3610 = vpack.c.bf16 %v2914, %v2906
    %v3611 = vpack.c.bf16 %v2915, %v2907
    %v3612 = vpack.c.bf16 %v2924, %v2916
    %v3613 = vpack.c.bf16 %v2925, %v2917
    %v3614 = vpack.c.bf16 %v2926, %v2918
    %v3615 = vpack.c.bf16 %v2927, %v2919
    %v3616 = vpack.c.bf16 %v2928, %v2920
    %v3617 = vpack.c.bf16 %v2929, %v2921
    %v3618 = vpack.c.bf16 %v2930, %v2922
    %v3619 = vpack.c.bf16 %v2931, %v2923
    %v3620 = vpack.c.bf16 %v2940, %v2932
    %v3621 = vpack.c.bf16 %v2941, %v2933
    %v3622 = vpack.c.bf16 %v2942, %v2934
    %v3623 = vpack.c.bf16 %v2943, %v2935
    %v3624 = vpack.c.bf16 %v2944, %v2936
    %v3625 = vpack.c.bf16 %v2945, %v2937
    %v3626 = vpack.c.bf16 %v2946, %v2938
    %v3627 = vpack.c.bf16 %v2947, %v2939
    %v3628 = vpack.c.bf16 %v2956, %v2948
    %v3629 = vpack.c.bf16 %v2957, %v2949
    %v3630 = vpack.c.bf16 %v2958, %v2950
    %v3631 = vpack.c.bf16 %v2959, %v2951
    %v3632 = vpack.c.bf16 %v2960, %v2952
    %v3633 = vpack.c.bf16 %v2961, %v2953
    %v3634 = vpack.c.bf16 %v2962, %v2954
    %v3635 = vpack.c.bf16 %v2963, %v2955
    %v3636 = vpack.c.bf16 %v2972, %v2964
    %v3637 = vpack.c.bf16 %v2973, %v2965
    %v3638 = vpack.c.bf16 %v2974, %v2966
    %v3639 = vpack.c.bf16 %v2975, %v2967
    %v3640 = vpack.c.bf16 %v2976, %v2968
    %v3641 = vpack.c.bf16 %v2977, %v2969
    %v3642 = vpack.c.bf16 %v2978, %v2970
    %v3643 = vpack.c.bf16 %v2979, %v2971
    %v3644 = vpack.c.bf16 %v2988, %v2980
    %v3645 = vpack.c.bf16 %v2989, %v2981
    %v3646 = vpack.c.bf16 %v2990, %v2982
    %v3647 = vpack.c.bf16 %v2991, %v2983
    %v3648 = vpack.c.bf16 %v2992, %v2984
    %v3649 = vpack.c.bf16 %v2993, %v2985
    %v3650 = vpack.c.bf16 %v2994, %v2986
    %v3651 = vpack.c.bf16 %v2995, %v2987
    %v3652 = vpack.c.bf16 %v3004, %v2996
    %v3653 = vpack.c.bf16 %v3005, %v2997
    %v3654 = vpack.c.bf16 %v3006, %v2998
    %v3655 = vpack.c.bf16 %v3007, %v2999
    %v3656 = vpack.c.bf16 %v3008, %v3000
    %v3657 = vpack.c.bf16 %v3009, %v3001
    %v3658 = vpack.c.bf16 %v3010, %v3002
    %v3659 = vpack.c.bf16 %v3011, %v3003
    %v3660 = vpack.c.bf16 %v3020, %v3012
    %v3661 = vpack.c.bf16 %v3021, %v3013
    %v3662 = vpack.c.bf16 %v3022, %v3014
    %v3663 = vpack.c.bf16 %v3023, %v3015
    %v3664 = vpack.c.bf16 %v3024, %v3016
    %v3665 = vpack.c.bf16 %v3025, %v3017
    %v3666 = vpack.c.bf16 %v3026, %v3018
    %v3667 = vpack.c.bf16 %v3027, %v3019
    %v3668 = vld [vmem:[%s0] sm:$0xff]
    %v3669 = vld [vmem:[%s0 + $0x8] sm:$0x3]
    %3671 = vst [vmem:[#allocation1] ss:$9 sm:$0xff] %v3668
    %v3672 = vld [vmem:[#allocation1] sm:$0xff]
    %v3673 = vld [vmem:[#allocation1 + $0x9] sm:$0xff]
    %v3674 = vld [vmem:[#allocation1 + $0x12] sm:$0xff]
    %v3675 = vld [vmem:[#allocation1 + $0x1b] sm:$0xff]
    %v3676 = vld [vmem:[#allocation1 + $0x24] sm:$0xff]
    %v3677 = vld [vmem:[#allocation1 + $0x2d] sm:$0xff]
    %v3678 = vld [vmem:[#allocation1 + $0x36] sm:$0xff]
    %v3679 = vld [vmem:[#allocation1 + $0x3f] sm:$0xff]
    %3681 = vst [vmem:[#allocation1] ss:$9 sm:$0xff] %v3669
    %v3682 = vld [vmem:[#allocation1] sm:$0xff]
    %v3683 = vld [vmem:[#allocation1 + $0x9] sm:$0xff]
    %3694 = vmatpush.bf16.msra.mxu0 %v3084
    %3695 = vmatpush.bf16.msra.mxu0 %v3076
    %3696 = vmatpush.bf16.msra.mxu0 %v3068
    %3697 = vmatpush.bf16.msra.mxu0 %v3060
    %3698 = vmatpush.bf16.msra.mxu0 %v3052
    %3699 = vmatpush.bf16.msra.mxu0 %v3044
    %3700 = vmatpush.bf16.msra.mxu0 %v3036
    %3701 = vmatpush.bf16.msra.mxu0 %v3028
    %3702 = vmatmul.bf16.gmra.mxu0 %v3672
    %v3703 = vpop.f32.mrf.mxu0
    %v3704 = vadd.f32 0.0, %v3703
    %v3705 = vpop.f32.mrf.mxu0
    %3706 = vdwg.mxu0
    %3707 = vmatpush.bf16.msra.mxu0 %v3148
    %3708 = vmatpush.bf16.msra.mxu0 %v3140
    %3709 = vmatpush.bf16.msra.mxu0 %v3132
    %3710 = vmatpush.bf16.msra.mxu0 %v3124
    %3711 = vmatpush.bf16.msra.mxu0 %v3116
    %3712 = vmatpush.bf16.msra.mxu0 %v3108
    %3713 = vmatpush.bf16.msra.mxu0 %v3100
    %3714 = vmatpush.bf16.msra.mxu0 %v3092
    %3715 = vmatmul.bf16.gmra.mxu0 %v3673
    %v3716 = vpop.f32.mrf.mxu0
    %v3717 = vadd.f32 %v3704, %v3716
    %v3718 = vpop.f32.mrf.mxu0
    %3719 = vdwg.mxu0
    %3720 = vmatpush.bf16.msra.mxu0 %v3212
    %3721 = vmatpush.bf16.msra.mxu0 %v3204
    %3722 = vmatpush.bf16.msra.mxu0 %v3196
    %3723 = vmatpush.bf16.msra.mxu0 %v3188
    %3724 = vmatpush.bf16.msra.mxu0 %v3180
    %3725 = vmatpush.bf16.msra.mxu0 %v3172
    %3726 = vmatpush.bf16.msra.mxu0 %v3164
    %3727 = vmatpush.bf16.msra.mxu0 %v3156
    %3728 = vmatmul.bf16.gmra.mxu0 %v3674
    %v3729 = vpop.f32.mrf.mxu0
    %v3730 = vadd.f32 %v3717, %v3729
    %v3731 = vpop.f32.mrf.mxu0
    %3732 = vdwg.mxu0
    %3733 = vmatpush.bf16.msra.mxu0 %v3276
    %3734 = vmatpush.bf16.msra.mxu0 %v3268
    %3735 = vmatpush.bf16.msra.mxu0 %v3260
    %3736 = vmatpush.bf16.msra.mxu0 %v3252
    %3737 = vmatpush.bf16.msra.mxu0 %v3244
    %3738 = vmatpush.bf16.msra.mxu0 %v3236
    %3739 = vmatpush.bf16.msra.mxu0 %v3228
    %3740 = vmatpush.bf16.msra.mxu0 %v3220
    %3741 = vmatmul.bf16.gmra.mxu0 %v3675
    %v3742 = vpop.f32.mrf.mxu0
    %v3743 = vadd.f32 %v3730, %v3742
    %v3744 = vpop.f32.mrf.mxu0
    %3745 = vdwg.mxu0
    %3746 = vmatpush.bf16.msra.mxu0 %v3340
    %3747 = vmatpush.bf16.msra.mxu0 %v3332
    %3748 = vmatpush.bf16.msra.mxu0 %v3324
    %3749 = vmatpush.bf16.msra.mxu0 %v3316
    %3750 = vmatpush.bf16.msra.mxu0 %v3308
    %3751 = vmatpush.bf16.msra.mxu0 %v3300
    %3752 = vmatpush.bf16.msra.mxu0 %v3292
    %3753 = vmatpush.bf16.msra.mxu0 %v3284
    %3754 = vmatmul.bf16.gmra.mxu0 %v3676
    %v3755 = vpop.f32.mrf.mxu0
    %v3756 = vadd.f32 %v3743, %v3755
    %v3757 = vpop.f32.mrf.mxu0
    %3758 = vdwg.mxu0
    %3759 = vmatpush.bf16.msra.mxu0 %v3404
    %3760 = vmatpush.bf16.msra.mxu0 %v3396
    %3761 = vmatpush.bf16.msra.mxu0 %v3388
    %3762 = vmatpush.bf16.msra.mxu0 %v3380
    %3763 = vmatpush.bf16.msra.mxu0 %v3372
    %3764 = vmatpush.bf16.msra.mxu0 %v3364
    %3765 = vmatpush.bf16.msra.mxu0 %v3356
    %3766 = vmatpush.bf16.msra.mxu0 %v3348
    %3767 = vmatmul.bf16.gmra.mxu0 %v3677
    %v3768 = vpop.f32.mrf.mxu0
    %v3769 = vadd.f32 %v3756, %v3768
    %v3770 = vpop.f32.mrf.mxu0
    %3771 = vdwg.mxu0
    %3772 = vmatpush.bf16.msra.mxu0 %v3468
    %3773 = vmatpush.bf16.msra.mxu0 %v3460
    %3774 = vmatpush.bf16.msra.mxu0 %v3452
    %3775 = vmatpush.bf16.msra.mxu0 %v3444
    %3776 = vmatpush.bf16.msra.mxu0 %v3436
    %3777 = vmatpush.bf16.msra.mxu0 %v3428
    %3778 = vmatpush.bf16.msra.mxu0 %v3420
    %3779 = vmatpush.bf16.msra.mxu0 %v3412
    %3780 = vmatmul.bf16.gmra.mxu0 %v3678
    %v3781 = vpop.f32.mrf.mxu0
    %v3782 = vadd.f32 %v3769, %v3781
    %v3783 = vpop.f32.mrf.mxu0
    %3784 = vdwg.mxu0
    %3785 = vmatpush.bf16.msra.mxu0 %v3532
    %3786 = vmatpush.bf16.msra.mxu0 %v3524
    %3787 = vmatpush.bf16.msra.mxu0 %v3516
    %3788 = vmatpush.bf16.msra.mxu0 %v3508
    %3789 = vmatpush.bf16.msra.mxu0 %v3500
    %3790 = vmatpush.bf16.msra.mxu0 %v3492
    %3791 = vmatpush.bf16.msra.mxu0 %v3484
    %3792 = vmatpush.bf16.msra.mxu0 %v3476
    %3793 = vmatmul.bf16.gmra.mxu0 %v3679
    %v3794 = vpop.f32.mrf.mxu0
    %v3795 = vadd.f32 %v3782, %v3794
    %v3796 = vpop.f32.mrf.mxu0
    %3797 = vdwg.mxu0
    %3798 = vmatpush.bf16.msra.mxu0 %v3596
    %3799 = vmatpush.bf16.msra.mxu0 %v3588
    %3800 = vmatpush.bf16.msra.mxu0 %v3580
    %3801 = vmatpush.bf16.msra.mxu0 %v3572
    %3802 = vmatpush.bf16.msra.mxu0 %v3564
    %3803 = vmatpush.bf16.msra.mxu0 %v3556
    %3804 = vmatpush.bf16.msra.mxu0 %v3548
    %3805 = vmatpush.bf16.msra.mxu0 %v3540
    %3806 = vmatmul.bf16.gmra.mxu0 %v3682
    %v3807 = vpop.f32.mrf.mxu0
    %v3808 = vadd.f32 %v3795, %v3807
    %v3809 = vpop.f32.mrf.mxu0
    %3810 = vdwg.mxu0
    %3811 = vmatpush.bf16.msra.mxu0 %v3660
    %3812 = vmatpush.bf16.msra.mxu0 %v3652
    %3813 = vmatpush.bf16.msra.mxu0 %v3644
    %3814 = vmatpush.bf16.msra.mxu0 %v3636
    %3815 = vmatpush.bf16.msra.mxu0 %v3628
    %3816 = vmatpush.bf16.msra.mxu0 %v3620
    %3817 = vmatpush.bf16.msra.mxu0 %v3612
    %3818 = vmatpush.bf16.msra.mxu0 %v3604
    %3819 = vmatmul.bf16.gmra.mxu0 %v3683
    %v3820 = vpop.f32.mrf.mxu0
    %v3821 = vadd.f32 %v3808, %v3820
    %v3822 = vpop.f32.mrf.mxu0
    %3823 = vdwg.mxu0
    %3824 = vmatpush.bf16.msra.mxu0 %v3085
    %3825 = vmatpush.bf16.msra.mxu0 %v3077
    %3826 = vmatpush.bf16.msra.mxu0 %v3069
    %3827 = vmatpush.bf16.msra.mxu0 %v3061
    %3828 = vmatpush.bf16.msra.mxu0 %v3053
    %3829 = vmatpush.bf16.msra.mxu0 %v3045
    %3830 = vmatpush.bf16.msra.mxu0 %v3037
    %3831 = vmatpush.bf16.msra.mxu0 %v3029
    %3832 = vmatmul.bf16.gmra.mxu0 %v3672
    %v3833 = vpop.f32.mrf.mxu0
    %v3834 = vadd.f32 0.0, %v3833
    %v3835 = vpop.f32.mrf.mxu0
    %3836 = vdwg.mxu0
    %3837 = vmatpush.bf16.msra.mxu0 %v3149
    %3838 = vmatpush.bf16.msra.mxu0 %v3141
    %3839 = vmatpush.bf16.msra.mxu0 %v3133
    %3840 = vmatpush.bf16.msra.mxu0 %v3125
    %3841 = vmatpush.bf16.msra.mxu0 %v3117
    %3842 = vmatpush.bf16.msra.mxu0 %v3109
    %3843 = vmatpush.bf16.msra.mxu0 %v3101
    %3844 = vmatpush.bf16.msra.mxu0 %v3093
    %3845 = vmatmul.bf16.gmra.mxu0 %v3673
    %v3846 = vpop.f32.mrf.mxu0
    %v3847 = vadd.f32 %v3834, %v3846
    %v3848 = vpop.f32.mrf.mxu0
    %3849 = vdwg.mxu0
    %3850 = vmatpush.bf16.msra.mxu0 %v3213
    %3851 = vmatpush.bf16.msra.mxu0 %v3205
    %3852 = vmatpush.bf16.msra.mxu0 %v3197
    %3853 = vmatpush.bf16.msra.mxu0 %v3189
    %3854 = vmatpush.bf16.msra.mxu0 %v3181
    %3855 = vmatpush.bf16.msra.mxu0 %v3173
    %3856 = vmatpush.bf16.msra.mxu0 %v3165
    %3857 = vmatpush.bf16.msra.mxu0 %v3157
    %3858 = vmatmul.bf16.gmra.mxu0 %v3674
    %v3859 = vpop.f32.mrf.mxu0
    %v3860 = vadd.f32 %v3847, %v3859
    %v3861 = vpop.f32.mrf.mxu0
    %3862 = vdwg.mxu0
    %3863 = vmatpush.bf16.msra.mxu0 %v3277
    %3864 = vmatpush.bf16.msra.mxu0 %v3269
    %3865 = vmatpush.bf16.msra.mxu0 %v3261
    %3866 = vmatpush.bf16.msra.mxu0 %v3253
    %3867 = vmatpush.bf16.msra.mxu0 %v3245
    %3868 = vmatpush.bf16.msra.mxu0 %v3237
    %3869 = vmatpush.bf16.msra.mxu0 %v3229
    %3870 = vmatpush.bf16.msra.mxu0 %v3221
    %3871 = vmatmul.bf16.gmra.mxu0 %v3675
    %v3872 = vpop.f32.mrf.mxu0
    %v3873 = vadd.f32 %v3860, %v3872
    %v3874 = vpop.f32.mrf.mxu0
    %3875 = vdwg.mxu0
    %3876 = vmatpush.bf16.msra.mxu0 %v3341
    %3877 = vmatpush.bf16.msra.mxu0 %v3333
    %3878 = vmatpush.bf16.msra.mxu0 %v3325
    %3879 = vmatpush.bf16.msra.mxu0 %v3317
    %3880 = vmatpush.bf16.msra.mxu0 %v3309
    %3881 = vmatpush.bf16.msra.mxu0 %v3301
    %3882 = vmatpush.bf16.msra.mxu0 %v3293
    %3883 = vmatpush.bf16.msra.mxu0 %v3285
    %3884 = vmatmul.bf16.gmra.mxu0 %v3676
    %v3885 = vpop.f32.mrf.mxu0
    %v3886 = vadd.f32 %v3873, %v3885
    %v3887 = vpop.f32.mrf.mxu0
    %3888 = vdwg.mxu0
    %3889 = vmatpush.bf16.msra.mxu0 %v3405
    %3890 = vmatpush.bf16.msra.mxu0 %v3397
    %3891 = vmatpush.bf16.msra.mxu0 %v3389
    %3892 = vmatpush.bf16.msra.mxu0 %v3381
    %3893 = vmatpush.bf16.msra.mxu0 %v3373
    %3894 = vmatpush.bf16.msra.mxu0 %v3365
    %3895 = vmatpush.bf16.msra.mxu0 %v3357
    %3896 = vmatpush.bf16.msra.mxu0 %v3349
    %3897 = vmatmul.bf16.gmra.mxu0 %v3677
    %v3898 = vpop.f32.mrf.mxu0
    %v3899 = vadd.f32 %v3886, %v3898
    %v3900 = vpop.f32.mrf.mxu0
    %3901 = vdwg.mxu0
    %3902 = vmatpush.bf16.msra.mxu0 %v3469
    %3903 = vmatpush.bf16.msra.mxu0 %v3461
    %3904 = vmatpush.bf16.msra.mxu0 %v3453
    %3905 = vmatpush.bf16.msra.mxu0 %v3445
    %3906 = vmatpush.bf16.msra.mxu0 %v3437
    %3907 = vmatpush.bf16.msra.mxu0 %v3429
    %3908 = vmatpush.bf16.msra.mxu0 %v3421
    %3909 = vmatpush.bf16.msra.mxu0 %v3413
    %3910 = vmatmul.bf16.gmra.mxu0 %v3678
    %v3911 = vpop.f32.mrf.mxu0
    %v3912 = vadd.f32 %v3899, %v3911
    %v3913 = vpop.f32.mrf.mxu0
    %3914 = vdwg.mxu0
    %3915 = vmatpush.bf16.msra.mxu0 %v3533
    %3916 = vmatpush.bf16.msra.mxu0 %v3525
    %3917 = vmatpush.bf16.msra.mxu0 %v3517
    %3918 = vmatpush.bf16.msra.mxu0 %v3509
    %3919 = vmatpush.bf16.msra.mxu0 %v3501
    %3920 = vmatpush.bf16.msra.mxu0 %v3493
    %3921 = vmatpush.bf16.msra.mxu0 %v3485
    %3922 = vmatpush.bf16.msra.mxu0 %v3477
    %3923 = vmatmul.bf16.gmra.mxu0 %v3679
    %v3924 = vpop.f32.mrf.mxu0
    %v3925 = vadd.f32 %v3912, %v3924
    %v3926 = vpop.f32.mrf.mxu0
    %3927 = vdwg.mxu0
    %3928 = vmatpush.bf16.msra.mxu0 %v3597
    %3929 = vmatpush.bf16.msra.mxu0 %v3589
    %3930 = vmatpush.bf16.msra.mxu0 %v3581
    %3931 = vmatpush.bf16.msra.mxu0 %v3573
    %3932 = vmatpush.bf16.msra.mxu0 %v3565
    %3933 = vmatpush.bf16.msra.mxu0 %v3557
    %3934 = vmatpush.bf16.msra.mxu0 %v3549
    %3935 = vmatpush.bf16.msra.mxu0 %v3541
    %3936 = vmatmul.bf16.gmra.mxu0 %v3682
    %v3937 = vpop.f32.mrf.mxu0
    %v3938 = vadd.f32 %v3925, %v3937
    %v3939 = vpop.f32.mrf.mxu0
    %3940 = vdwg.mxu0
    %3941 = vmatpush.bf16.msra.mxu0 %v3661
    %3942 = vmatpush.bf16.msra.mxu0 %v3653
    %3943 = vmatpush.bf16.msra.mxu0 %v3645
    %3944 = vmatpush.bf16.msra.mxu0 %v3637
    %3945 = vmatpush.bf16.msra.mxu0 %v3629
    %3946 = vmatpush.bf16.msra.mxu0 %v3621
    %3947 = vmatpush.bf16.msra.mxu0 %v3613
    %3948 = vmatpush.bf16.msra.mxu0 %v3605
    %3949 = vmatmul.bf16.gmra.mxu0 %v3683
    %v3950 = vpop.f32.mrf.mxu0
    %v3951 = vadd.f32 %v3938, %v3950
    %v3952 = vpop.f32.mrf.mxu0
    %3953 = vdwg.mxu0
    %3954 = vmatpush.bf16.msra.mxu0 %v3086
    %3955 = vmatpush.bf16.msra.mxu0 %v3078
    %3956 = vmatpush.bf16.msra.mxu0 %v3070
    %3957 = vmatpush.bf16.msra.mxu0 %v3062
    %3958 = vmatpush.bf16.msra.mxu0 %v3054
    %3959 = vmatpush.bf16.msra.mxu0 %v3046
    %3960 = vmatpush.bf16.msra.mxu0 %v3038
    %3961 = vmatpush.bf16.msra.mxu0 %v3030
    %3962 = vmatmul.bf16.gmra.mxu0 %v3672
    %v3963 = vpop.f32.mrf.mxu0
    %v3964 = vadd.f32 0.0, %v3963
    %v3965 = vpop.f32.mrf.mxu0
    %3966 = vdwg.mxu0
    %3967 = vmatpush.bf16.msra.mxu0 %v3150
    %3968 = vmatpush.bf16.msra.mxu0 %v3142
    %3969 = vmatpush.bf16.msra.mxu0 %v3134
    %3970 = vmatpush.bf16.msra.mxu0 %v3126
    %3971 = vmatpush.bf16.msra.mxu0 %v3118
    %3972 = vmatpush.bf16.msra.mxu0 %v3110
    %3973 = vmatpush.bf16.msra.mxu0 %v3102
    %3974 = vmatpush.bf16.msra.mxu0 %v3094
    %3975 = vmatmul.bf16.gmra.mxu0 %v3673
    %v3976 = vpop.f32.mrf.mxu0
    %v3977 = vadd.f32 %v3964, %v3976
    %v3978 = vpop.f32.mrf.mxu0
    %3979 = vdwg.mxu0
    %3980 = vmatpush.bf16.msra.mxu0 %v3214
    %3981 = vmatpush.bf16.msra.mxu0 %v3206
    %3982 = vmatpush.bf16.msra.mxu0 %v3198
    %3983 = vmatpush.bf16.msra.mxu0 %v3190
    %3984 = vmatpush.bf16.msra.mxu0 %v3182
    %3985 = vmatpush.bf16.msra.mxu0 %v3174
    %3986 = vmatpush.bf16.msra.mxu0 %v3166
    %3987 = vmatpush.bf16.msra.mxu0 %v3158
    %3988 = vmatmul.bf16.gmra.mxu0 %v3674
    %v3989 = vpop.f32.mrf.mxu0
    %v3990 = vadd.f32 %v3977, %v3989
    %v3991 = vpop.f32.mrf.mxu0
    %3992 = vdwg.mxu0
    %3993 = vmatpush.bf16.msra.mxu0 %v3278
    %3994 = vmatpush.bf16.msra.mxu0 %v3270
    %3995 = vmatpush.bf16.msra.mxu0 %v3262
    %3996 = vmatpush.bf16.msra.mxu0 %v3254
    %3997 = vmatpush.bf16.msra.mxu0 %v3246
    %3998 = vmatpush.bf16.msra.mxu0 %v3238
    %3999 = vmatpush.bf16.msra.mxu0 %v3230
    %4000 = vmatpush.bf16.msra.mxu0 %v3222
    %4001 = vmatmul.bf16.gmra.mxu0 %v3675
    %v4002 = vpop.f32.mrf.mxu0
    %v4003 = vadd.f32 %v3990, %v4002
    %v4004 = vpop.f32.mrf.mxu0
    %4005 = vdwg.mxu0
    %4006 = vmatpush.bf16.msra.mxu0 %v3342
    %4007 = vmatpush.bf16.msra.mxu0 %v3334
    %4008 = vmatpush.bf16.msra.mxu0 %v3326
    %4009 = vmatpush.bf16.msra.mxu0 %v3318
    %4010 = vmatpush.bf16.msra.mxu0 %v3310
    %4011 = vmatpush.bf16.msra.mxu0 %v3302
    %4012 = vmatpush.bf16.msra.mxu0 %v3294
    %4013 = vmatpush.bf16.msra.mxu0 %v3286
    %4014 = vmatmul.bf16.gmra.mxu0 %v3676
    %v4015 = vpop.f32.mrf.mxu0
    %v4016 = vadd.f32 %v4003, %v4015
    %v4017 = vpop.f32.mrf.mxu0
    %4018 = vdwg.mxu0
    %4019 = vmatpush.bf16.msra.mxu0 %v3406
    %4020 = vmatpush.bf16.msra.mxu0 %v3398
    %4021 = vmatpush.bf16.msra.mxu0 %v3390
    %4022 = vmatpush.bf16.msra.mxu0 %v3382
    %4023 = vmatpush.bf16.msra.mxu0 %v3374
    %4024 = vmatpush.bf16.msra.mxu0 %v3366
    %4025 = vmatpush.bf16.msra.mxu0 %v3358
    %4026 = vmatpush.bf16.msra.mxu0 %v3350
    %4027 = vmatmul.bf16.gmra.mxu0 %v3677
    %v4028 = vpop.f32.mrf.mxu0
    %v4029 = vadd.f32 %v4016, %v4028
    %v4030 = vpop.f32.mrf.mxu0
    %4031 = vdwg.mxu0
    %4032 = vmatpush.bf16.msra.mxu0 %v3470
    %4033 = vmatpush.bf16.msra.mxu0 %v3462
    %4034 = vmatpush.bf16.msra.mxu0 %v3454
    %4035 = vmatpush.bf16.msra.mxu0 %v3446
    %4036 = vmatpush.bf16.msra.mxu0 %v3438
    %4037 = vmatpush.bf16.msra.mxu0 %v3430
    %4038 = vmatpush.bf16.msra.mxu0 %v3422
    %4039 = vmatpush.bf16.msra.mxu0 %v3414
    %4040 = vmatmul.bf16.gmra.mxu0 %v3678
    %v4041 = vpop.f32.mrf.mxu0
    %v4042 = vadd.f32 %v4029, %v4041
    %v4043 = vpop.f32.mrf.mxu0
    %4044 = vdwg.mxu0
    %4045 = vmatpush.bf16.msra.mxu0 %v3534
    %4046 = vmatpush.bf16.msra.mxu0 %v3526
    %4047 = vmatpush.bf16.msra.mxu0 %v3518
    %4048 = vmatpush.bf16.msra.mxu0 %v3510
    %4049 = vmatpush.bf16.msra.mxu0 %v3502
    %4050 = vmatpush.bf16.msra.mxu0 %v3494
    %4051 = vmatpush.bf16.msra.mxu0 %v3486
    %4052 = vmatpush.bf16.msra.mxu0 %v3478
    %4053 = vmatmul.bf16.gmra.mxu0 %v3679
    %v4054 = vpop.f32.mrf.mxu0
    %v4055 = vadd.f32 %v4042, %v4054
    %v4056 = vpop.f32.mrf.mxu0
    %4057 = vdwg.mxu0
    %4058 = vmatpush.bf16.msra.mxu0 %v3598
    %4059 = vmatpush.bf16.msra.mxu0 %v3590
    %4060 = vmatpush.bf16.msra.mxu0 %v3582
    %4061 = vmatpush.bf16.msra.mxu0 %v3574
    %4062 = vmatpush.bf16.msra.mxu0 %v3566
    %4063 = vmatpush.bf16.msra.mxu0 %v3558
    %4064 = vmatpush.bf16.msra.mxu0 %v3550
    %4065 = vmatpush.bf16.msra.mxu0 %v3542
    %4066 = vmatmul.bf16.gmra.mxu0 %v3682
    %v4067 = vpop.f32.mrf.mxu0
    %v4068 = vadd.f32 %v4055, %v4067
    %v4069 = vpop.f32.mrf.mxu0
    %4070 = vdwg.mxu0
    %4071 = vmatpush.bf16.msra.mxu0 %v3662
    %4072 = vmatpush.bf16.msra.mxu0 %v3654
    %4073 = vmatpush.bf16.msra.mxu0 %v3646
    %4074 = vmatpush.bf16.msra.mxu0 %v3638
    %4075 = vmatpush.bf16.msra.mxu0 %v3630
    %4076 = vmatpush.bf16.msra.mxu0 %v3622
    %4077 = vmatpush.bf16.msra.mxu0 %v3614
    %4078 = vmatpush.bf16.msra.mxu0 %v3606
    %4079 = vmatmul.bf16.gmra.mxu0 %v3683
    %v4080 = vpop.f32.mrf.mxu0
    %v4081 = vadd.f32 %v4068, %v4080
    %v4082 = vpop.f32.mrf.mxu0
    %4083 = vdwg.mxu0
    %4084 = vmatpush.bf16.msra.mxu0 %v3087
    %4085 = vmatpush.bf16.msra.mxu0 %v3079
    %4086 = vmatpush.bf16.msra.mxu0 %v3071
    %4087 = vmatpush.bf16.msra.mxu0 %v3063
    %4088 = vmatpush.bf16.msra.mxu0 %v3055
    %4089 = vmatpush.bf16.msra.mxu0 %v3047
    %4090 = vmatpush.bf16.msra.mxu0 %v3039
    %4091 = vmatpush.bf16.msra.mxu0 %v3031
    %4092 = vmatmul.bf16.gmra.mxu0 %v3672
    %v4093 = vpop.f32.mrf.mxu0
    %v4094 = vadd.f32 0.0, %v4093
    %v4095 = vpop.f32.mrf.mxu0
    %4096 = vdwg.mxu0
    %4097 = vmatpush.bf16.msra.mxu0 %v3151
    %4098 = vmatpush.bf16.msra.mxu0 %v3143
    %4099 = vmatpush.bf16.msra.mxu0 %v3135
    %4100 = vmatpush.bf16.msra.mxu0 %v3127
    %4101 = vmatpush.bf16.msra.mxu0 %v3119
    %4102 = vmatpush.bf16.msra.mxu0 %v3111
    %4103 = vmatpush.bf16.msra.mxu0 %v3103
    %4104 = vmatpush.bf16.msra.mxu0 %v3095
    %4105 = vmatmul.bf16.gmra.mxu0 %v3673
    %v4106 = vpop.f32.mrf.mxu0
    %v4107 = vadd.f32 %v4094, %v4106
    %v4108 = vpop.f32.mrf.mxu0
    %4109 = vdwg.mxu0
    %4110 = vmatpush.bf16.msra.mxu0 %v3215
    %4111 = vmatpush.bf16.msra.mxu0 %v3207
    %4112 = vmatpush.bf16.msra.mxu0 %v3199
    %4113 = vmatpush.bf16.msra.mxu0 %v3191
    %4114 = vmatpush.bf16.msra.mxu0 %v3183
    %4115 = vmatpush.bf16.msra.mxu0 %v3175
    %4116 = vmatpush.bf16.msra.mxu0 %v3167
    %4117 = vmatpush.bf16.msra.mxu0 %v3159
    %4118 = vmatmul.bf16.gmra.mxu0 %v3674
    %v4119 = vpop.f32.mrf.mxu0
    %v4120 = vadd.f32 %v4107, %v4119
    %v4121 = vpop.f32.mrf.mxu0
    %4122 = vdwg.mxu0
    %4123 = vmatpush.bf16.msra.mxu0 %v3279
    %4124 = vmatpush.bf16.msra.mxu0 %v3271
    %4125 = vmatpush.bf16.msra.mxu0 %v3263
    %4126 = vmatpush.bf16.msra.mxu0 %v3255
    %4127 = vmatpush.bf16.msra.mxu0 %v3247
    %4128 = vmatpush.bf16.msra.mxu0 %v3239
    %4129 = vmatpush.bf16.msra.mxu0 %v3231
    %4130 = vmatpush.bf16.msra.mxu0 %v3223
    %4131 = vmatmul.bf16.gmra.mxu0 %v3675
    %v4132 = vpop.f32.mrf.mxu0
    %v4133 = vadd.f32 %v4120, %v4132
    %v4134 = vpop.f32.mrf.mxu0
    %4135 = vdwg.mxu0
    %4136 = vmatpush.bf16.msra.mxu0 %v3343
    %4137 = vmatpush.bf16.msra.mxu0 %v3335
    %4138 = vmatpush.bf16.msra.mxu0 %v3327
    %4139 = vmatpush.bf16.msra.mxu0 %v3319
    %4140 = vmatpush.bf16.msra.mxu0 %v3311
    %4141 = vmatpush.bf16.msra.mxu0 %v3303
    %4142 = vmatpush.bf16.msra.mxu0 %v3295
    %4143 = vmatpush.bf16.msra.mxu0 %v3287
    %4144 = vmatmul.bf16.gmra.mxu0 %v3676
    %v4145 = vpop.f32.mrf.mxu0
    %v4146 = vadd.f32 %v4133, %v4145
    %v4147 = vpop.f32.mrf.mxu0
    %4148 = vdwg.mxu0
    %4149 = vmatpush.bf16.msra.mxu0 %v3407
    %4150 = vmatpush.bf16.msra.mxu0 %v3399
    %4151 = vmatpush.bf16.msra.mxu0 %v3391
    %4152 = vmatpush.bf16.msra.mxu0 %v3383
    %4153 = vmatpush.bf16.msra.mxu0 %v3375
    %4154 = vmatpush.bf16.msra.mxu0 %v3367
    %4155 = vmatpush.bf16.msra.mxu0 %v3359
    %4156 = vmatpush.bf16.msra.mxu0 %v3351
    %4157 = vmatmul.bf16.gmra.mxu0 %v3677
    %v4158 = vpop.f32.mrf.mxu0
    %v4159 = vadd.f32 %v4146, %v4158
    %v4160 = vpop.f32.mrf.mxu0
    %4161 = vdwg.mxu0
    %4162 = vmatpush.bf16.msra.mxu0 %v3471
    %4163 = vmatpush.bf16.msra.mxu0 %v3463
    %4164 = vmatpush.bf16.msra.mxu0 %v3455
    %4165 = vmatpush.bf16.msra.mxu0 %v3447
    %4166 = vmatpush.bf16.msra.mxu0 %v3439
    %4167 = vmatpush.bf16.msra.mxu0 %v3431
    %4168 = vmatpush.bf16.msra.mxu0 %v3423
    %4169 = vmatpush.bf16.msra.mxu0 %v3415
    %4170 = vmatmul.bf16.gmra.mxu0 %v3678
    %v4171 = vpop.f32.mrf.mxu0
    %v4172 = vadd.f32 %v4159, %v4171
    %v4173 = vpop.f32.mrf.mxu0
    %4174 = vdwg.mxu0
    %4175 = vmatpush.bf16.msra.mxu0 %v3535
    %4176 = vmatpush.bf16.msra.mxu0 %v3527
    %4177 = vmatpush.bf16.msra.mxu0 %v3519
    %4178 = vmatpush.bf16.msra.mxu0 %v3511
    %4179 = vmatpush.bf16.msra.mxu0 %v3503
    %4180 = vmatpush.bf16.msra.mxu0 %v3495
    %4181 = vmatpush.bf16.msra.mxu0 %v3487
    %4182 = vmatpush.bf16.msra.mxu0 %v3479
    %4183 = vmatmul.bf16.gmra.mxu0 %v3679
    %v4184 = vpop.f32.mrf.mxu0
    %v4185 = vadd.f32 %v4172, %v4184
    %v4186 = vpop.f32.mrf.mxu0
    %4187 = vdwg.mxu0
    %4188 = vmatpush.bf16.msra.mxu0 %v3599
    %4189 = vmatpush.bf16.msra.mxu0 %v3591
    %4190 = vmatpush.bf16.msra.mxu0 %v3583
    %4191 = vmatpush.bf16.msra.mxu0 %v3575
    %4192 = vmatpush.bf16.msra.mxu0 %v3567
    %4193 = vmatpush.bf16.msra.mxu0 %v3559
    %4194 = vmatpush.bf16.msra.mxu0 %v3551
    %4195 = vmatpush.bf16.msra.mxu0 %v3543
    %4196 = vmatmul.bf16.gmra.mxu0 %v3682
    %v4197 = vpop.f32.mrf.mxu0
    %v4198 = vadd.f32 %v4185, %v4197
    %v4199 = vpop.f32.mrf.mxu0
    %4200 = vdwg.mxu0
    %4201 = vmatpush.bf16.msra.mxu0 %v3663
    %4202 = vmatpush.bf16.msra.mxu0 %v3655
    %4203 = vmatpush.bf16.msra.mxu0 %v3647
    %4204 = vmatpush.bf16.msra.mxu0 %v3639
    %4205 = vmatpush.bf16.msra.mxu0 %v3631
    %4206 = vmatpush.bf16.msra.mxu0 %v3623
    %4207 = vmatpush.bf16.msra.mxu0 %v3615
    %4208 = vmatpush.bf16.msra.mxu0 %v3607
    %4209 = vmatmul.bf16.gmra.mxu0 %v3683
    %v4210 = vpop.f32.mrf.mxu0
    %v4211 = vadd.f32 %v4198, %v4210
    %v4212 = vpop.f32.mrf.mxu0
    %4213 = vdwg.mxu0
    %4214 = vmatpush.bf16.msra.mxu0 %v3088
    %4215 = vmatpush.bf16.msra.mxu0 %v3080
    %4216 = vmatpush.bf16.msra.mxu0 %v3072
    %4217 = vmatpush.bf16.msra.mxu0 %v3064
    %4218 = vmatpush.bf16.msra.mxu0 %v3056
    %4219 = vmatpush.bf16.msra.mxu0 %v3048
    %4220 = vmatpush.bf16.msra.mxu0 %v3040
    %4221 = vmatpush.bf16.msra.mxu0 %v3032
    %4222 = vmatmul.bf16.gmra.mxu0 %v3672
    %v4223 = vpop.f32.mrf.mxu0
    %v4224 = vadd.f32 0.0, %v4223
    %v4225 = vpop.f32.mrf.mxu0
    %4226 = vdwg.mxu0
    %4227 = vmatpush.bf16.msra.mxu0 %v3152
    %4228 = vmatpush.bf16.msra.mxu0 %v3144
    %4229 = vmatpush.bf16.msra.mxu0 %v3136
    %4230 = vmatpush.bf16.msra.mxu0 %v3128
    %4231 = vmatpush.bf16.msra.mxu0 %v3120
    %4232 = vmatpush.bf16.msra.mxu0 %v3112
    %4233 = vmatpush.bf16.msra.mxu0 %v3104
    %4234 = vmatpush.bf16.msra.mxu0 %v3096
    %4235 = vmatmul.bf16.gmra.mxu0 %v3673
    %v4236 = vpop.f32.mrf.mxu0
    %v4237 = vadd.f32 %v4224, %v4236
    %v4238 = vpop.f32.mrf.mxu0
    %4239 = vdwg.mxu0
    %4240 = vmatpush.bf16.msra.mxu0 %v3216
    %4241 = vmatpush.bf16.msra.mxu0 %v3208
    %4242 = vmatpush.bf16.msra.mxu0 %v3200
    %4243 = vmatpush.bf16.msra.mxu0 %v3192
    %4244 = vmatpush.bf16.msra.mxu0 %v3184
    %4245 = vmatpush.bf16.msra.mxu0 %v3176
    %4246 = vmatpush.bf16.msra.mxu0 %v3168
    %4247 = vmatpush.bf16.msra.mxu0 %v3160
    %4248 = vmatmul.bf16.gmra.mxu0 %v3674
    %v4249 = vpop.f32.mrf.mxu0
    %v4250 = vadd.f32 %v4237, %v4249
    %v4251 = vpop.f32.mrf.mxu0
    %4252 = vdwg.mxu0
    %4253 = vmatpush.bf16.msra.mxu0 %v3280
    %4254 = vmatpush.bf16.msra.mxu0 %v3272
    %4255 = vmatpush.bf16.msra.mxu0 %v3264
    %4256 = vmatpush.bf16.msra.mxu0 %v3256
    %4257 = vmatpush.bf16.msra.mxu0 %v3248
    %4258 = vmatpush.bf16.msra.mxu0 %v3240
    %4259 = vmatpush.bf16.msra.mxu0 %v3232
    %4260 = vmatpush.bf16.msra.mxu0 %v3224
    %4261 = vmatmul.bf16.gmra.mxu0 %v3675
    %v4262 = vpop.f32.mrf.mxu0
    %v4263 = vadd.f32 %v4250, %v4262
    %v4264 = vpop.f32.mrf.mxu0
    %4265 = vdwg.mxu0
    %4266 = vmatpush.bf16.msra.mxu0 %v3344
    %4267 = vmatpush.bf16.msra.mxu0 %v3336
    %4268 = vmatpush.bf16.msra.mxu0 %v3328
    %4269 = vmatpush.bf16.msra.mxu0 %v3320
    %4270 = vmatpush.bf16.msra.mxu0 %v3312
    %4271 = vmatpush.bf16.msra.mxu0 %v3304
    %4272 = vmatpush.bf16.msra.mxu0 %v3296
    %4273 = vmatpush.bf16.msra.mxu0 %v3288
    %4274 = vmatmul.bf16.gmra.mxu0 %v3676
    %v4275 = vpop.f32.mrf.mxu0
    %v4276 = vadd.f32 %v4263, %v4275
    %v4277 = vpop.f32.mrf.mxu0
    %4278 = vdwg.mxu0
    %4279 = vmatpush.bf16.msra.mxu0 %v3408
    %4280 = vmatpush.bf16.msra.mxu0 %v3400
    %4281 = vmatpush.bf16.msra.mxu0 %v3392
    %4282 = vmatpush.bf16.msra.mxu0 %v3384
    %4283 = vmatpush.bf16.msra.mxu0 %v3376
    %4284 = vmatpush.bf16.msra.mxu0 %v3368
    %4285 = vmatpush.bf16.msra.mxu0 %v3360
    %4286 = vmatpush.bf16.msra.mxu0 %v3352
    %4287 = vmatmul.bf16.gmra.mxu0 %v3677
    %v4288 = vpop.f32.mrf.mxu0
    %v4289 = vadd.f32 %v4276, %v4288
    %v4290 = vpop.f32.mrf.mxu0
    %4291 = vdwg.mxu0
    %4292 = vmatpush.bf16.msra.mxu0 %v3472
    %4293 = vmatpush.bf16.msra.mxu0 %v3464
    %4294 = vmatpush.bf16.msra.mxu0 %v3456
    %4295 = vmatpush.bf16.msra.mxu0 %v3448
    %4296 = vmatpush.bf16.msra.mxu0 %v3440
    %4297 = vmatpush.bf16.msra.mxu0 %v3432
    %4298 = vmatpush.bf16.msra.mxu0 %v3424
    %4299 = vmatpush.bf16.msra.mxu0 %v3416
    %4300 = vmatmul.bf16.gmra.mxu0 %v3678
    %v4301 = vpop.f32.mrf.mxu0
    %v4302 = vadd.f32 %v4289, %v4301
    %v4303 = vpop.f32.mrf.mxu0
    %4304 = vdwg.mxu0
    %4305 = vmatpush.bf16.msra.mxu0 %v3536
    %4306 = vmatpush.bf16.msra.mxu0 %v3528
    %4307 = vmatpush.bf16.msra.mxu0 %v3520
    %4308 = vmatpush.bf16.msra.mxu0 %v3512
    %4309 = vmatpush.bf16.msra.mxu0 %v3504
    %4310 = vmatpush.bf16.msra.mxu0 %v3496
    %4311 = vmatpush.bf16.msra.mxu0 %v3488
    %4312 = vmatpush.bf16.msra.mxu0 %v3480
    %4313 = vmatmul.bf16.gmra.mxu0 %v3679
    %v4314 = vpop.f32.mrf.mxu0
    %v4315 = vadd.f32 %v4302, %v4314
    %v4316 = vpop.f32.mrf.mxu0
    %4317 = vdwg.mxu0
    %4318 = vmatpush.bf16.msra.mxu0 %v3600
    %4319 = vmatpush.bf16.msra.mxu0 %v3592
    %4320 = vmatpush.bf16.msra.mxu0 %v3584
    %4321 = vmatpush.bf16.msra.mxu0 %v3576
    %4322 = vmatpush.bf16.msra.mxu0 %v3568
    %4323 = vmatpush.bf16.msra.mxu0 %v3560
    %4324 = vmatpush.bf16.msra.mxu0 %v3552
    %4325 = vmatpush.bf16.msra.mxu0 %v3544
    %4326 = vmatmul.bf16.gmra.mxu0 %v3682
    %v4327 = vpop.f32.mrf.mxu0
    %v4328 = vadd.f32 %v4315, %v4327
    %v4329 = vpop.f32.mrf.mxu0
    %4330 = vdwg.mxu0
    %4331 = vmatpush.bf16.msra.mxu0 %v3664
    %4332 = vmatpush.bf16.msra.mxu0 %v3656
    %4333 = vmatpush.bf16.msra.mxu0 %v3648
    %4334 = vmatpush.bf16.msra.mxu0 %v3640
    %4335 = vmatpush.bf16.msra.mxu0 %v3632
    %4336 = vmatpush.bf16.msra.mxu0 %v3624
    %4337 = vmatpush.bf16.msra.mxu0 %v3616
    %4338 = vmatpush.bf16.msra.mxu0 %v3608
    %4339 = vmatmul.bf16.gmra.mxu0 %v3683
    %v4340 = vpop.f32.mrf.mxu0
    %v4341 = vadd.f32 %v4328, %v4340
    %v4342 = vpop.f32.mrf.mxu0
    %4343 = vdwg.mxu0
    %4344 = vmatpush.bf16.msra.mxu0 %v3089
    %4345 = vmatpush.bf16.msra.mxu0 %v3081
    %4346 = vmatpush.bf16.msra.mxu0 %v3073
    %4347 = vmatpush.bf16.msra.mxu0 %v3065
    %4348 = vmatpush.bf16.msra.mxu0 %v3057
    %4349 = vmatpush.bf16.msra.mxu0 %v3049
    %4350 = vmatpush.bf16.msra.mxu0 %v3041
    %4351 = vmatpush.bf16.msra.mxu0 %v3033
    %4352 = vmatmul.bf16.gmra.mxu0 %v3672
    %v4353 = vpop.f32.mrf.mxu0
    %v4354 = vadd.f32 0.0, %v4353
    %v4355 = vpop.f32.mrf.mxu0
    %4356 = vdwg.mxu0
    %4357 = vmatpush.bf16.msra.mxu0 %v3153
    %4358 = vmatpush.bf16.msra.mxu0 %v3145
    %4359 = vmatpush.bf16.msra.mxu0 %v3137
    %4360 = vmatpush.bf16.msra.mxu0 %v3129
    %4361 = vmatpush.bf16.msra.mxu0 %v3121
    %4362 = vmatpush.bf16.msra.mxu0 %v3113
    %4363 = vmatpush.bf16.msra.mxu0 %v3105
    %4364 = vmatpush.bf16.msra.mxu0 %v3097
    %4365 = vmatmul.bf16.gmra.mxu0 %v3673
    %v4366 = vpop.f32.mrf.mxu0
    %v4367 = vadd.f32 %v4354, %v4366
    %v4368 = vpop.f32.mrf.mxu0
    %4369 = vdwg.mxu0
    %4370 = vmatpush.bf16.msra.mxu0 %v3217
    %4371 = vmatpush.bf16.msra.mxu0 %v3209
    %4372 = vmatpush.bf16.msra.mxu0 %v3201
    %4373 = vmatpush.bf16.msra.mxu0 %v3193
    %4374 = vmatpush.bf16.msra.mxu0 %v3185
    %4375 = vmatpush.bf16.msra.mxu0 %v3177
    %4376 = vmatpush.bf16.msra.mxu0 %v3169
    %4377 = vmatpush.bf16.msra.mxu0 %v3161
    %4378 = vmatmul.bf16.gmra.mxu0 %v3674
    %v4379 = vpop.f32.mrf.mxu0
    %v4380 = vadd.f32 %v4367, %v4379
    %v4381 = vpop.f32.mrf.mxu0
    %4382 = vdwg.mxu0
    %4383 = vmatpush.bf16.msra.mxu0 %v3281
    %4384 = vmatpush.bf16.msra.mxu0 %v3273
    %4385 = vmatpush.bf16.msra.mxu0 %v3265
    %4386 = vmatpush.bf16.msra.mxu0 %v3257
    %4387 = vmatpush.bf16.msra.mxu0 %v3249
    %4388 = vmatpush.bf16.msra.mxu0 %v3241
    %4389 = vmatpush.bf16.msra.mxu0 %v3233
    %4390 = vmatpush.bf16.msra.mxu0 %v3225
    %4391 = vmatmul.bf16.gmra.mxu0 %v3675
    %v4392 = vpop.f32.mrf.mxu0
    %v4393 = vadd.f32 %v4380, %v4392
    %v4394 = vpop.f32.mrf.mxu0
    %4395 = vdwg.mxu0
    %4396 = vmatpush.bf16.msra.mxu0 %v3345
    %4397 = vmatpush.bf16.msra.mxu0 %v3337
    %4398 = vmatpush.bf16.msra.mxu0 %v3329
    %4399 = vmatpush.bf16.msra.mxu0 %v3321
    %4400 = vmatpush.bf16.msra.mxu0 %v3313
    %4401 = vmatpush.bf16.msra.mxu0 %v3305
    %4402 = vmatpush.bf16.msra.mxu0 %v3297
    %4403 = vmatpush.bf16.msra.mxu0 %v3289
    %4404 = vmatmul.bf16.gmra.mxu0 %v3676
    %v4405 = vpop.f32.mrf.mxu0
    %v4406 = vadd.f32 %v4393, %v4405
    %v4407 = vpop.f32.mrf.mxu0
    %4408 = vdwg.mxu0
    %4409 = vmatpush.bf16.msra.mxu0 %v3409
    %4410 = vmatpush.bf16.msra.mxu0 %v3401
    %4411 = vmatpush.bf16.msra.mxu0 %v3393
    %4412 = vmatpush.bf16.msra.mxu0 %v3385
    %4413 = vmatpush.bf16.msra.mxu0 %v3377
    %4414 = vmatpush.bf16.msra.mxu0 %v3369
    %4415 = vmatpush.bf16.msra.mxu0 %v3361
    %4416 = vmatpush.bf16.msra.mxu0 %v3353
    %4417 = vmatmul.bf16.gmra.mxu0 %v3677
    %v4418 = vpop.f32.mrf.mxu0
    %v4419 = vadd.f32 %v4406, %v4418
    %v4420 = vpop.f32.mrf.mxu0
    %4421 = vdwg.mxu0
    %4422 = vmatpush.bf16.msra.mxu0 %v3473
    %4423 = vmatpush.bf16.msra.mxu0 %v3465
    %4424 = vmatpush.bf16.msra.mxu0 %v3457
    %4425 = vmatpush.bf16.msra.mxu0 %v3449
    %4426 = vmatpush.bf16.msra.mxu0 %v3441
    %4427 = vmatpush.bf16.msra.mxu0 %v3433
    %4428 = vmatpush.bf16.msra.mxu0 %v3425
    %4429 = vmatpush.bf16.msra.mxu0 %v3417
    %4430 = vmatmul.bf16.gmra.mxu0 %v3678
    %v4431 = vpop.f32.mrf.mxu0
    %v4432 = vadd.f32 %v4419, %v4431
    %v4433 = vpop.f32.mrf.mxu0
    %4434 = vdwg.mxu0
    %4435 = vmatpush.bf16.msra.mxu0 %v3537
    %4436 = vmatpush.bf16.msra.mxu0 %v3529
    %4437 = vmatpush.bf16.msra.mxu0 %v3521
    %4438 = vmatpush.bf16.msra.mxu0 %v3513
    %4439 = vmatpush.bf16.msra.mxu0 %v3505
    %4440 = vmatpush.bf16.msra.mxu0 %v3497
    %4441 = vmatpush.bf16.msra.mxu0 %v3489
    %4442 = vmatpush.bf16.msra.mxu0 %v3481
    %4443 = vmatmul.bf16.gmra.mxu0 %v3679
    %v4444 = vpop.f32.mrf.mxu0
    %v4445 = vadd.f32 %v4432, %v4444
    %v4446 = vpop.f32.mrf.mxu0
    %4447 = vdwg.mxu0
    %4448 = vmatpush.bf16.msra.mxu0 %v3601
    %4449 = vmatpush.bf16.msra.mxu0 %v3593
    %4450 = vmatpush.bf16.msra.mxu0 %v3585
    %4451 = vmatpush.bf16.msra.mxu0 %v3577
    %4452 = vmatpush.bf16.msra.mxu0 %v3569
    %4453 = vmatpush.bf16.msra.mxu0 %v3561
    %4454 = vmatpush.bf16.msra.mxu0 %v3553
    %4455 = vmatpush.bf16.msra.mxu0 %v3545
    %4456 = vmatmul.bf16.gmra.mxu0 %v3682
    %v4457 = vpop.f32.mrf.mxu0
    %v4458 = vadd.f32 %v4445, %v4457
    %v4459 = vpop.f32.mrf.mxu0
    %4460 = vdwg.mxu0
    %4461 = vmatpush.bf16.msra.mxu0 %v3665
    %4462 = vmatpush.bf16.msra.mxu0 %v3657
    %4463 = vmatpush.bf16.msra.mxu0 %v3649
    %4464 = vmatpush.bf16.msra.mxu0 %v3641
    %4465 = vmatpush.bf16.msra.mxu0 %v3633
    %4466 = vmatpush.bf16.msra.mxu0 %v3625
    %4467 = vmatpush.bf16.msra.mxu0 %v3617
    %4468 = vmatpush.bf16.msra.mxu0 %v3609
    %4469 = vmatmul.bf16.gmra.mxu0 %v3683
    %v4470 = vpop.f32.mrf.mxu0
    %v4471 = vadd.f32 %v4458, %v4470
    %v4472 = vpop.f32.mrf.mxu0
    %4473 = vdwg.mxu0
    %4474 = vmatpush.bf16.msra.mxu0 %v3090
    %4475 = vmatpush.bf16.msra.mxu0 %v3082
    %4476 = vmatpush.bf16.msra.mxu0 %v3074
    %4477 = vmatpush.bf16.msra.mxu0 %v3066
    %4478 = vmatpush.bf16.msra.mxu0 %v3058
    %4479 = vmatpush.bf16.msra.mxu0 %v3050
    %4480 = vmatpush.bf16.msra.mxu0 %v3042
    %4481 = vmatpush.bf16.msra.mxu0 %v3034
    %4482 = vmatmul.bf16.gmra.mxu0 %v3672
    %v4483 = vpop.f32.mrf.mxu0
    %v4484 = vadd.f32 0.0, %v4483
    %v4485 = vpop.f32.mrf.mxu0
    %4486 = vdwg.mxu0
    %4487 = vmatpush.bf16.msra.mxu0 %v3154
    %4488 = vmatpush.bf16.msra.mxu0 %v3146
    %4489 = vmatpush.bf16.msra.mxu0 %v3138
    %4490 = vmatpush.bf16.msra.mxu0 %v3130
    %4491 = vmatpush.bf16.msra.mxu0 %v3122
    %4492 = vmatpush.bf16.msra.mxu0 %v3114
    %4493 = vmatpush.bf16.msra.mxu0 %v3106
    %4494 = vmatpush.bf16.msra.mxu0 %v3098
    %4495 = vmatmul.bf16.gmra.mxu0 %v3673
    %v4496 = vpop.f32.mrf.mxu0
    %v4497 = vadd.f32 %v4484, %v4496
    %v4498 = vpop.f32.mrf.mxu0
    %4499 = vdwg.mxu0
    %4500 = vmatpush.bf16.msra.mxu0 %v3218
    %4501 = vmatpush.bf16.msra.mxu0 %v3210
    %4502 = vmatpush.bf16.msra.mxu0 %v3202
    %4503 = vmatpush.bf16.msra.mxu0 %v3194
    %4504 = vmatpush.bf16.msra.mxu0 %v3186
    %4505 = vmatpush.bf16.msra.mxu0 %v3178
    %4506 = vmatpush.bf16.msra.mxu0 %v3170
    %4507 = vmatpush.bf16.msra.mxu0 %v3162
    %4508 = vmatmul.bf16.gmra.mxu0 %v3674
    %v4509 = vpop.f32.mrf.mxu0
    %v4510 = vadd.f32 %v4497, %v4509
    %v4511 = vpop.f32.mrf.mxu0
    %4512 = vdwg.mxu0
    %4513 = vmatpush.bf16.msra.mxu0 %v3282
    %4514 = vmatpush.bf16.msra.mxu0 %v3274
    %4515 = vmatpush.bf16.msra.mxu0 %v3266
    %4516 = vmatpush.bf16.msra.mxu0 %v3258
    %4517 = vmatpush.bf16.msra.mxu0 %v3250
    %4518 = vmatpush.bf16.msra.mxu0 %v3242
    %4519 = vmatpush.bf16.msra.mxu0 %v3234
    %4520 = vmatpush.bf16.msra.mxu0 %v3226
    %4521 = vmatmul.bf16.gmra.mxu0 %v3675
    %v4522 = vpop.f32.mrf.mxu0
    %v4523 = vadd.f32 %v4510, %v4522
    %v4524 = vpop.f32.mrf.mxu0
    %4525 = vdwg.mxu0
    %4526 = vmatpush.bf16.msra.mxu0 %v3346
    %4527 = vmatpush.bf16.msra.mxu0 %v3338
    %4528 = vmatpush.bf16.msra.mxu0 %v3330
    %4529 = vmatpush.bf16.msra.mxu0 %v3322
    %4530 = vmatpush.bf16.msra.mxu0 %v3314
    %4531 = vmatpush.bf16.msra.mxu0 %v3306
    %4532 = vmatpush.bf16.msra.mxu0 %v3298
    %4533 = vmatpush.bf16.msra.mxu0 %v3290
    %4534 = vmatmul.bf16.gmra.mxu0 %v3676
    %v4535 = vpop.f32.mrf.mxu0
    %v4536 = vadd.f32 %v4523, %v4535
    %v4537 = vpop.f32.mrf.mxu0
    %4538 = vdwg.mxu0
    %4539 = vmatpush.bf16.msra.mxu0 %v3410
    %4540 = vmatpush.bf16.msra.mxu0 %v3402
    %4541 = vmatpush.bf16.msra.mxu0 %v3394
    %4542 = vmatpush.bf16.msra.mxu0 %v3386
    %4543 = vmatpush.bf16.msra.mxu0 %v3378
    %4544 = vmatpush.bf16.msra.mxu0 %v3370
    %4545 = vmatpush.bf16.msra.mxu0 %v3362
    %4546 = vmatpush.bf16.msra.mxu0 %v3354
    %4547 = vmatmul.bf16.gmra.mxu0 %v3677
    %v4548 = vpop.f32.mrf.mxu0
    %v4549 = vadd.f32 %v4536, %v4548
    %v4550 = vpop.f32.mrf.mxu0
    %4551 = vdwg.mxu0
    %4552 = vmatpush.bf16.msra.mxu0 %v3474
    %4553 = vmatpush.bf16.msra.mxu0 %v3466
    %4554 = vmatpush.bf16.msra.mxu0 %v3458
    %4555 = vmatpush.bf16.msra.mxu0 %v3450
    %4556 = vmatpush.bf16.msra.mxu0 %v3442
    %4557 = vmatpush.bf16.msra.mxu0 %v3434
    %4558 = vmatpush.bf16.msra.mxu0 %v3426
    %4559 = vmatpush.bf16.msra.mxu0 %v3418
    %4560 = vmatmul.bf16.gmra.mxu0 %v3678
    %v4561 = vpop.f32.mrf.mxu0
    %v4562 = vadd.f32 %v4549, %v4561
    %v4563 = vpop.f32.mrf.mxu0
    %4564 = vdwg.mxu0
    %4565 = vmatpush.bf16.msra.mxu0 %v3538
    %4566 = vmatpush.bf16.msra.mxu0 %v3530
    %4567 = vmatpush.bf16.msra.mxu0 %v3522
    %4568 = vmatpush.bf16.msra.mxu0 %v3514
    %4569 = vmatpush.bf16.msra.mxu0 %v3506
    %4570 = vmatpush.bf16.msra.mxu0 %v3498
    %4571 = vmatpush.bf16.msra.mxu0 %v3490
    %4572 = vmatpush.bf16.msra.mxu0 %v3482
    %4573 = vmatmul.bf16.gmra.mxu0 %v3679
    %v4574 = vpop.f32.mrf.mxu0
    %v4575 = vadd.f32 %v4562, %v4574
    %v4576 = vpop.f32.mrf.mxu0
    %4577 = vdwg.mxu0
    %4578 = vmatpush.bf16.msra.mxu0 %v3602
    %4579 = vmatpush.bf16.msra.mxu0 %v3594
    %4580 = vmatpush.bf16.msra.mxu0 %v3586
    %4581 = vmatpush.bf16.msra.mxu0 %v3578
    %4582 = vmatpush.bf16.msra.mxu0 %v3570
    %4583 = vmatpush.bf16.msra.mxu0 %v3562
    %4584 = vmatpush.bf16.msra.mxu0 %v3554
    %4585 = vmatpush.bf16.msra.mxu0 %v3546
    %4586 = vmatmul.bf16.gmra.mxu0 %v3682
    %v4587 = vpop.f32.mrf.mxu0
    %v4588 = vadd.f32 %v4575, %v4587
    %v4589 = vpop.f32.mrf.mxu0
    %4590 = vdwg.mxu0
    %4591 = vmatpush.bf16.msra.mxu0 %v3666
    %4592 = vmatpush.bf16.msra.mxu0 %v3658
    %4593 = vmatpush.bf16.msra.mxu0 %v3650
    %4594 = vmatpush.bf16.msra.mxu0 %v3642
    %4595 = vmatpush.bf16.msra.mxu0 %v3634
    %4596 = vmatpush.bf16.msra.mxu0 %v3626
    %4597 = vmatpush.bf16.msra.mxu0 %v3618
    %4598 = vmatpush.bf16.msra.mxu0 %v3610
    %4599 = vmatmul.bf16.gmra.mxu0 %v3683
    %v4600 = vpop.f32.mrf.mxu0
    %v4601 = vadd.f32 %v4588, %v4600
    %v4602 = vpop.f32.mrf.mxu0
    %4603 = vdwg.mxu0
    %4604 = vmatpush.bf16.msra.mxu0 %v3091
    %4605 = vmatpush.bf16.msra.mxu0 %v3083
    %4606 = vmatpush.bf16.msra.mxu0 %v3075
    %4607 = vmatpush.bf16.msra.mxu0 %v3067
    %4608 = vmatpush.bf16.msra.mxu0 %v3059
    %4609 = vmatpush.bf16.msra.mxu0 %v3051
    %4610 = vmatpush.bf16.msra.mxu0 %v3043
    %4611 = vmatpush.bf16.msra.mxu0 %v3035
    %4612 = vmatmul.bf16.gmra.mxu0 %v3672
    %v4613 = vpop.f32.mrf.mxu0
    %v4614 = vadd.f32 0.0, %v4613
    %v4615 = vpop.f32.mrf.mxu0
    %4616 = vdwg.mxu0
    %4617 = vmatpush.bf16.msra.mxu0 %v3155
    %4618 = vmatpush.bf16.msra.mxu0 %v3147
    %4619 = vmatpush.bf16.msra.mxu0 %v3139
    %4620 = vmatpush.bf16.msra.mxu0 %v3131
    %4621 = vmatpush.bf16.msra.mxu0 %v3123
    %4622 = vmatpush.bf16.msra.mxu0 %v3115
    %4623 = vmatpush.bf16.msra.mxu0 %v3107
    %4624 = vmatpush.bf16.msra.mxu0 %v3099
    %4625 = vmatmul.bf16.gmra.mxu0 %v3673
    %v4626 = vpop.f32.mrf.mxu0
    %v4627 = vadd.f32 %v4614, %v4626
    %v4628 = vpop.f32.mrf.mxu0
    %4629 = vdwg.mxu0
    %4630 = vmatpush.bf16.msra.mxu0 %v3219
    %4631 = vmatpush.bf16.msra.mxu0 %v3211
    %4632 = vmatpush.bf16.msra.mxu0 %v3203
    %4633 = vmatpush.bf16.msra.mxu0 %v3195
    %4634 = vmatpush.bf16.msra.mxu0 %v3187
    %4635 = vmatpush.bf16.msra.mxu0 %v3179
    %4636 = vmatpush.bf16.msra.mxu0 %v3171
    %4637 = vmatpush.bf16.msra.mxu0 %v3163
    %4638 = vmatmul.bf16.gmra.mxu0 %v3674
    %v4639 = vpop.f32.mrf.mxu0
    %v4640 = vadd.f32 %v4627, %v4639
    %v4641 = vpop.f32.mrf.mxu0
    %4642 = vdwg.mxu0
    %4643 = vmatpush.bf16.msra.mxu0 %v3283
    %4644 = vmatpush.bf16.msra.mxu0 %v3275
    %4645 = vmatpush.bf16.msra.mxu0 %v3267
    %4646 = vmatpush.bf16.msra.mxu0 %v3259
    %4647 = vmatpush.bf16.msra.mxu0 %v3251
    %4648 = vmatpush.bf16.msra.mxu0 %v3243
    %4649 = vmatpush.bf16.msra.mxu0 %v3235
    %4650 = vmatpush.bf16.msra.mxu0 %v3227
    %4651 = vmatmul.bf16.gmra.mxu0 %v3675
    %v4652 = vpop.f32.mrf.mxu0
    %v4653 = vadd.f32 %v4640, %v4652
    %v4654 = vpop.f32.mrf.mxu0
    %4655 = vdwg.mxu0
    %4656 = vmatpush.bf16.msra.mxu0 %v3347
    %4657 = vmatpush.bf16.msra.mxu0 %v3339
    %4658 = vmatpush.bf16.msra.mxu0 %v3331
    %4659 = vmatpush.bf16.msra.mxu0 %v3323
    %4660 = vmatpush.bf16.msra.mxu0 %v3315
    %4661 = vmatpush.bf16.msra.mxu0 %v3307
    %4662 = vmatpush.bf16.msra.mxu0 %v3299
    %4663 = vmatpush.bf16.msra.mxu0 %v3291
    %4664 = vmatmul.bf16.gmra.mxu0 %v3676
    %v4665 = vpop.f32.mrf.mxu0
    %v4666 = vadd.f32 %v4653, %v4665
    %v4667 = vpop.f32.mrf.mxu0
    %4668 = vdwg.mxu0
    %4669 = vmatpush.bf16.msra.mxu0 %v3411
    %4670 = vmatpush.bf16.msra.mxu0 %v3403
    %4671 = vmatpush.bf16.msra.mxu0 %v3395
    %4672 = vmatpush.bf16.msra.mxu0 %v3387
    %4673 = vmatpush.bf16.msra.mxu0 %v3379
    %4674 = vmatpush.bf16.msra.mxu0 %v3371
    %4675 = vmatpush.bf16.msra.mxu0 %v3363
    %4676 = vmatpush.bf16.msra.mxu0 %v3355
    %4677 = vmatmul.bf16.gmra.mxu0 %v3677
    %v4678 = vpop.f32.mrf.mxu0
    %v4679 = vadd.f32 %v4666, %v4678
    %v4680 = vpop.f32.mrf.mxu0
    %4681 = vdwg.mxu0
    %4682 = vmatpush.bf16.msra.mxu0 %v3475
    %4683 = vmatpush.bf16.msra.mxu0 %v3467
    %4684 = vmatpush.bf16.msra.mxu0 %v3459
    %4685 = vmatpush.bf16.msra.mxu0 %v3451
    %4686 = vmatpush.bf16.msra.mxu0 %v3443
    %4687 = vmatpush.bf16.msra.mxu0 %v3435
    %4688 = vmatpush.bf16.msra.mxu0 %v3427
    %4689 = vmatpush.bf16.msra.mxu0 %v3419
    %4690 = vmatmul.bf16.gmra.mxu0 %v3678
    %v4691 = vpop.f32.mrf.mxu0
    %v4692 = vadd.f32 %v4679, %v4691
    %v4693 = vpop.f32.mrf.mxu0
    %4694 = vdwg.mxu0
    %4695 = vmatpush.bf16.msra.mxu0 %v3539
    %4696 = vmatpush.bf16.msra.mxu0 %v3531
    %4697 = vmatpush.bf16.msra.mxu0 %v3523
    %4698 = vmatpush.bf16.msra.mxu0 %v3515
    %4699 = vmatpush.bf16.msra.mxu0 %v3507
    %4700 = vmatpush.bf16.msra.mxu0 %v3499
    %4701 = vmatpush.bf16.msra.mxu0 %v3491
    %4702 = vmatpush.bf16.msra.mxu0 %v3483
    %4703 = vmatmul.bf16.gmra.mxu0 %v3679
    %v4704 = vpop.f32.mrf.mxu0
    %v4705 = vadd.f32 %v4692, %v4704
    %v4706 = vpop.f32.mrf.mxu0
    %4707 = vdwg.mxu0
    %4708 = vmatpush.bf16.msra.mxu0 %v3603
    %4709 = vmatpush.bf16.msra.mxu0 %v3595
    %4710 = vmatpush.bf16.msra.mxu0 %v3587
    %4711 = vmatpush.bf16.msra.mxu0 %v3579
    %4712 = vmatpush.bf16.msra.mxu0 %v3571
    %4713 = vmatpush.bf16.msra.mxu0 %v3563
    %4714 = vmatpush.bf16.msra.mxu0 %v3555
    %4715 = vmatpush.bf16.msra.mxu0 %v3547
    %4716 = vmatmul.bf16.gmra.mxu0 %v3682
    %v4717 = vpop.f32.mrf.mxu0
    %v4718 = vadd.f32 %v4705, %v4717
    %v4719 = vpop.f32.mrf.mxu0
    %4720 = vdwg.mxu0
    %4721 = vmatpush.bf16.msra.mxu0 %v3667
    %4722 = vmatpush.bf16.msra.mxu0 %v3659
    %4723 = vmatpush.bf16.msra.mxu0 %v3651
    %4724 = vmatpush.bf16.msra.mxu0 %v3643
    %4725 = vmatpush.bf16.msra.mxu0 %v3635
    %4726 = vmatpush.bf16.msra.mxu0 %v3627
    %4727 = vmatpush.bf16.msra.mxu0 %v3619
    %4728 = vmatpush.bf16.msra.mxu0 %v3611
    %4729 = vmatmul.bf16.gmra.mxu0 %v3683
    %v4730 = vpop.f32.mrf.mxu0
    %v4731 = vadd.f32 %v4718, %v4730
    %v4732 = vpop.f32.mrf.mxu0
    %4733 = vdwg.mxu0
    %v4734 = vld [vmem:[#allocation5] sm:$0xff]
    %v4736 = vperm.slane %v4734, 0
    %v4737 = vperm.slane %v4734, 1
    %v4738 = vperm.slane %v4734, 2
    %v4739 = vperm.slane %v4734, 3
    %v4740 = vperm.slane %v4734, 4
    %v4741 = vperm.slane %v4734, 5
    %v4742 = vperm.slane %v4734, 6
    %v4743 = vperm.slane %v4734, 7
    %v4752 = vmul.f32 %v3821, %v4736
    %v4753 = vmul.f32 %v3951, %v4737
    %v4754 = vmul.f32 %v4081, %v4738
    %v4755 = vmul.f32 %v4211, %v4739
    %v4756 = vmul.f32 %v4341, %v4740
    %v4757 = vmul.f32 %v4471, %v4741
    %v4758 = vmul.f32 %v4601, %v4742
    %v4759 = vmul.f32 %v4731, %v4743
    %v4760 = vld [vmem:[#allocation7] sm:$0xff]
    %v4762 = vperm.slane %v4760, 0
    %v4763 = vperm.slane %v4760, 1
    %v4764 = vperm.slane %v4760, 2
    %v4765 = vperm.slane %v4760, 3
    %v4766 = vperm.slane %v4760, 4
    %v4767 = vperm.slane %v4760, 5
    %v4768 = vperm.slane %v4760, 6
    %v4769 = vperm.slane %v4760, 7
    %v4778 = vadd.f32 %v4752, %v4762
    %v4779 = vadd.f32 %v4753, %v4763
    %v4780 = vadd.f32 %v4754, %v4764
    %v4781 = vadd.f32 %v4755, %v4765
    %v4782 = vadd.f32 %v4756, %v4766
    %v4783 = vadd.f32 %v4757, %v4767
    %v4784 = vadd.f32 %v4758, %v4768
    %v4785 = vadd.f32 %v4759, %v4769
    %v4786 = vmax.f32 %v4778, 0.0
    %v4787 = vmax.f32 %v4779, 0.0
    %v4788 = vmax.f32 %v4780, 0.0
    %v4789 = vmax.f32 %v4781, 0.0
    %v4790 = vmax.f32 %v4782, 0.0
    %v4791 = vmax.f32 %v4783, 0.0
    %v4792 = vmax.f32 %v4784, 0.0
    %v4793 = vmax.f32 %v4785, 0.0
    %v4794 = vld [vmem:[#allocation8] sm:$0xff]
    %v4795 = vld [vmem:[#allocation8 + $0x8] sm:$0xff]
    %v4796 = vld [vmem:[#allocation8 + $0x10] sm:$0xff]
    %v4797 = vld [vmem:[#allocation8 + $0x18] sm:$0xff]
    %v4798 = vld [vmem:[#allocation8 + $0x20] sm:$0xff]
    %v4799 = vld [vmem:[#allocation8 + $0x28] sm:$0xff]
    %v4800 = vld [vmem:[#allocation8 + $0x30] sm:$0xff]
    %v4801 = vld [vmem:[#allocation8 + $0x38] sm:$0xff]
    %v4802 = vld [vmem:[#allocation8 + $0x40] sm:$0xff]
    %v4803 = vld [vmem:[#allocation8 + $0x48] sm:$0xff]
    %v4804 = vld [vmem:[#allocation8 + $0x50] sm:$0xff]
    %v4805 = vld [vmem:[#allocation8 + $0x58] sm:$0xff]
    %v4806 = vld [vmem:[#allocation8 + $0x60] sm:$0xff]
    %v4807 = vld [vmem:[#allocation8 + $0x68] sm:$0xff]
    %v4808 = vld [vmem:[#allocation8 + $0x70] sm:$0xff]
    %v4809 = vld [vmem:[#allocation8 + $0x78] sm:$0xff]
    %v4810 = vld [vmem:[#allocation8 + $0x80] sm:$0xff]
    %v4811 = vld [vmem:[#allocation8 + $0x88] sm:$0xff]
    %v4812 = vld [vmem:[#allocation8 + $0x90] sm:$0xff]
    %v4813 = vld [vmem:[#allocation8 + $0x98] sm:$0xff]
    %v4814 = vld [vmem:[#allocation8 + $0xa0] sm:$0xff]
    %v4815 = vld [vmem:[#allocation8 + $0xa8] sm:$0xff]
    %v4816 = vld [vmem:[#allocation8 + $0xb0] sm:$0xff]
    %v4817 = vld [vmem:[#allocation8 + $0xb8] sm:$0xff]
    %v4818 = vld [vmem:[#allocation8 + $0xc0] sm:$0xff]
    %v4819 = vld [vmem:[#allocation8 + $0xc8] sm:$0xff]
    %v4820 = vld [vmem:[#allocation8 + $0xd0] sm:$0xff]
    %v4821 = vld [vmem:[#allocation8 + $0xd8] sm:$0xff]
    %v4822 = vld [vmem:[#allocation8 + $0xe0] sm:$0xff]
    %v4823 = vld [vmem:[#allocation8 + $0xe8] sm:$0xff]
    %v4824 = vld [vmem:[#allocation8 + $0xf0] sm:$0xff]
    %v4825 = vld [vmem:[#allocation8 + $0xf8] sm:$0xff]
    %v4826 = vld [vmem:[#allocation8 + $0x100] sm:$0xff]
    %v4827 = vld [vmem:[#allocation8 + $0x108] sm:$0xff]
    %v4828 = vld [vmem:[#allocation8 + $0x110] sm:$0xff]
    %v4829 = vld [vmem:[#allocation8 + $0x118] sm:$0xff]
    %v4830 = vld [vmem:[#allocation8 + $0x120] sm:$0xff]
    %v4831 = vld [vmem:[#allocation8 + $0x128] sm:$0xff]
    %v4832 = vld [vmem:[#allocation8 + $0x130] sm:$0xff]
    %v4833 = vld [vmem:[#allocation8 + $0x138] sm:$0xff]
    %v4834 = vld [vmem:[#allocation8 + $0x140] sm:$0xff]
    %v4835 = vld [vmem:[#allocation8 + $0x148] sm:$0xff]
    %v4836 = vld [vmem:[#allocation8 + $0x150] sm:$0xff]
    %v4837 = vld [vmem:[#allocation8 + $0x158] sm:$0xff]
    %v4838 = vld [vmem:[#allocation8 + $0x160] sm:$0xff]
    %v4839 = vld [vmem:[#allocation8 + $0x168] sm:$0xff]
    %v4840 = vld [vmem:[#allocation8 + $0x170] sm:$0xff]
    %v4841 = vld [vmem:[#allocation8 + $0x178] sm:$0xff]
    %v4842 = vld [vmem:[#allocation8 + $0x180] sm:$0xff]
    %v4843 = vld [vmem:[#allocation8 + $0x188] sm:$0xff]
    %v4844 = vld [vmem:[#allocation8 + $0x190] sm:$0xff]
    %v4845 = vld [vmem:[#allocation8 + $0x198] sm:$0xff]
    %v4846 = vld [vmem:[#allocation8 + $0x1a0] sm:$0xff]
    %v4847 = vld [vmem:[#allocation8 + $0x1a8] sm:$0xff]
    %v4848 = vld [vmem:[#allocation8 + $0x1b0] sm:$0xff]
    %v4849 = vld [vmem:[#allocation8 + $0x1b8] sm:$0xff]
    %v4850 = vld [vmem:[#allocation8 + $0x1c0] sm:$0xff]
    %v4851 = vld [vmem:[#allocation8 + $0x1c8] sm:$0xff]
    %v4852 = vld [vmem:[#allocation8 + $0x1d0] sm:$0xff]
    %v4853 = vld [vmem:[#allocation8 + $0x1d8] sm:$0xff]
    %v4854 = vld [vmem:[#allocation8 + $0x1e0] sm:$0xff]
    %v4855 = vld [vmem:[#allocation8 + $0x1e8] sm:$0xff]
    %v4856 = vld [vmem:[#allocation8 + $0x1f0] sm:$0xff]
    %v4857 = vld [vmem:[#allocation8 + $0x1f8] sm:$0xff]
    %v4858 = vld [vmem:[#allocation8 + $0x200] sm:$0xff]
    %v4859 = vld [vmem:[#allocation8 + $0x208] sm:$0xff]
    %v4860 = vld [vmem:[#allocation8 + $0x210] sm:$0xff]
    %v4861 = vld [vmem:[#allocation8 + $0x218] sm:$0xff]
    %v4862 = vld [vmem:[#allocation8 + $0x220] sm:$0xff]
    %v4863 = vld [vmem:[#allocation8 + $0x228] sm:$0xff]
    %v4864 = vld [vmem:[#allocation8 + $0x230] sm:$0xff]
    %v4865 = vld [vmem:[#allocation8 + $0x238] sm:$0xff]
    %v4866 = vld [vmem:[#allocation8 + $0x240] sm:$0xff]
    %v4867 = vld [vmem:[#allocation8 + $0x248] sm:$0xff]
    %v4868 = vld [vmem:[#allocation8 + $0x250] sm:$0xff]
    %v4869 = vld [vmem:[#allocation8 + $0x258] sm:$0xff]
    %v4870 = vld [vmem:[#allocation8 + $0x260] sm:$0xff]
    %v4871 = vld [vmem:[#allocation8 + $0x268] sm:$0xff]
    %v4872 = vld [vmem:[#allocation8 + $0x270] sm:$0xff]
    %v4873 = vld [vmem:[#allocation8 + $0x278] sm:$0xff]
    %v4874 = vld [vmem:[#allocation8 + $0x280] sm:$0xff]
    %v4875 = vld [vmem:[#allocation8 + $0x288] sm:$0xff]
    %v4876 = vld [vmem:[#allocation8 + $0x290] sm:$0xff]
    %v4877 = vld [vmem:[#allocation8 + $0x298] sm:$0xff]
    %v4878 = vld [vmem:[#allocation8 + $0x2a0] sm:$0xff]
    %v4879 = vld [vmem:[#allocation8 + $0x2a8] sm:$0xff]
    %v4880 = vld [vmem:[#allocation8 + $0x2b0] sm:$0xff]
    %v4881 = vld [vmem:[#allocation8 + $0x2b8] sm:$0xff]
    %v4882 = vld [vmem:[#allocation8 + $0x2c0] sm:$0xff]
    %v4883 = vld [vmem:[#allocation8 + $0x2c8] sm:$0xff]
    %v4884 = vld [vmem:[#allocation8 + $0x2d0] sm:$0xff]
    %v4885 = vld [vmem:[#allocation8 + $0x2d8] sm:$0xff]
    %v4886 = vld [vmem:[#allocation8 + $0x2e0] sm:$0xff]
    %v4887 = vld [vmem:[#allocation8 + $0x2e8] sm:$0xff]
    %v4888 = vld [vmem:[#allocation8 + $0x2f0] sm:$0xff]
    %v4889 = vld [vmem:[#allocation8 + $0x2f8] sm:$0xff]
    %v4890 = vld [vmem:[#allocation8 + $0x300] sm:$0xff]
    %v4891 = vld [vmem:[#allocation8 + $0x308] sm:$0xff]
    %v4892 = vld [vmem:[#allocation8 + $0x310] sm:$0xff]
    %v4893 = vld [vmem:[#allocation8 + $0x318] sm:$0xff]
    %v4894 = vld [vmem:[#allocation8 + $0x320] sm:$0xff]
    %v4895 = vld [vmem:[#allocation8 + $0x328] sm:$0xff]
    %v4896 = vld [vmem:[#allocation8 + $0x330] sm:$0xff]
    %v4897 = vld [vmem:[#allocation8 + $0x338] sm:$0xff]
    %v4898 = vld [vmem:[#allocation8 + $0x340] sm:$0xff]
    %v4899 = vld [vmem:[#allocation8 + $0x348] sm:$0xff]
    %v4900 = vld [vmem:[#allocation8 + $0x350] sm:$0xff]
    %v4901 = vld [vmem:[#allocation8 + $0x358] sm:$0xff]
    %v4902 = vld [vmem:[#allocation8 + $0x360] sm:$0xff]
    %v4903 = vld [vmem:[#allocation8 + $0x368] sm:$0xff]
    %v4904 = vld [vmem:[#allocation8 + $0x370] sm:$0xff]
    %v4905 = vld [vmem:[#allocation8 + $0x378] sm:$0xff]
    %v4906 = vld [vmem:[#allocation8 + $0x380] sm:$0xff]
    %v4907 = vld [vmem:[#allocation8 + $0x388] sm:$0xff]
    %v4908 = vld [vmem:[#allocation8 + $0x390] sm:$0xff]
    %v4909 = vld [vmem:[#allocation8 + $0x398] sm:$0xff]
    %v4910 = vld [vmem:[#allocation8 + $0x3a0] sm:$0xff]
    %v4911 = vld [vmem:[#allocation8 + $0x3a8] sm:$0xff]
    %v4912 = vld [vmem:[#allocation8 + $0x3b0] sm:$0xff]
    %v4913 = vld [vmem:[#allocation8 + $0x3b8] sm:$0xff]
    %v4914 = vld [vmem:[#allocation8 + $0x3c0] sm:$0xff]
    %v4915 = vld [vmem:[#allocation8 + $0x3c8] sm:$0xff]
    %v4916 = vld [vmem:[#allocation8 + $0x3d0] sm:$0xff]
    %v4917 = vld [vmem:[#allocation8 + $0x3d8] sm:$0xff]
    %v4918 = vld [vmem:[#allocation8 + $0x3e0] sm:$0xff]
    %v4919 = vld [vmem:[#allocation8 + $0x3e8] sm:$0xff]
    %v4920 = vld [vmem:[#allocation8 + $0x3f0] sm:$0xff]
    %v4921 = vld [vmem:[#allocation8 + $0x3f8] sm:$0xff]
    %v4922 = vunpack.c.0.s8 %v4794
    %v4923 = vunpack.c.0.s8 %v4795
    %v4924 = vunpack.c.0.s8 %v4796
    %v4925 = vunpack.c.0.s8 %v4797
    %v4926 = vunpack.c.1.s8 %v4794
    %v4927 = vunpack.c.1.s8 %v4795
    %v4928 = vunpack.c.1.s8 %v4796
    %v4929 = vunpack.c.1.s8 %v4797
    %v4930 = vunpack.c.2.s8 %v4794
    %v4931 = vunpack.c.2.s8 %v4795
    %v4932 = vunpack.c.2.s8 %v4796
    %v4933 = vunpack.c.2.s8 %v4797
    %v4934 = vunpack.c.3.s8 %v4794
    %v4935 = vunpack.c.3.s8 %v4795
    %v4936 = vunpack.c.3.s8 %v4796
    %v4937 = vunpack.c.3.s8 %v4797
    %v4938 = vunpack.c.0.s8 %v4798
    %v4939 = vunpack.c.0.s8 %v4799
    %v4940 = vunpack.c.0.s8 %v4800
    %v4941 = vunpack.c.0.s8 %v4801
    %v4942 = vunpack.c.1.s8 %v4798
    %v4943 = vunpack.c.1.s8 %v4799
    %v4944 = vunpack.c.1.s8 %v4800
    %v4945 = vunpack.c.1.s8 %v4801
    %v4946 = vunpack.c.2.s8 %v4798
    %v4947 = vunpack.c.2.s8 %v4799
    %v4948 = vunpack.c.2.s8 %v4800
    %v4949 = vunpack.c.2.s8 %v4801
    %v4950 = vunpack.c.3.s8 %v4798
    %v4951 = vunpack.c.3.s8 %v4799
    %v4952 = vunpack.c.3.s8 %v4800
    %v4953 = vunpack.c.3.s8 %v4801
    %v4954 = vunpack.c.0.s8 %v4802
    %v4955 = vunpack.c.0.s8 %v4803
    %v4956 = vunpack.c.0.s8 %v4804
    %v4957 = vunpack.c.0.s8 %v4805
    %v4958 = vunpack.c.1.s8 %v4802
    %v4959 = vunpack.c.1.s8 %v4803
    %v4960 = vunpack.c.1.s8 %v4804
    %v4961 = vunpack.c.1.s8 %v4805
    %v4962 = vunpack.c.2.s8 %v4802
    %v4963 = vunpack.c.2.s8 %v4803
    %v4964 = vunpack.c.2.s8 %v4804
    %v4965 = vunpack.c.2.s8 %v4805
    %v4966 = vunpack.c.3.s8 %v4802
    %v4967 = vunpack.c.3.s8 %v4803
    %v4968 = vunpack.c.3.s8 %v4804
    %v4969 = vunpack.c.3.s8 %v4805
    %v4970 = vunpack.c.0.s8 %v4806
    %v4971 = vunpack.c.0.s8 %v4807
    %v4972 = vunpack.c.0.s8 %v4808
    %v4973 = vunpack.c.0.s8 %v4809
    %v4974 = vunpack.c.1.s8 %v4806
    %v4975 = vunpack.c.1.s8 %v4807
    %v4976 = vunpack.c.1.s8 %v4808
    %v4977 = vunpack.c.1.s8 %v4809
    %v4978 = vunpack.c.2.s8 %v4806
    %v4979 = vunpack.c.2.s8 %v4807
    %v4980 = vunpack.c.2.s8 %v4808
    %v4981 = vunpack.c.2.s8 %v4809
    %v4982 = vunpack.c.3.s8 %v4806
    %v4983 = vunpack.c.3.s8 %v4807
    %v4984 = vunpack.c.3.s8 %v4808
    %v4985 = vunpack.c.3.s8 %v4809
    %v4986 = vunpack.c.0.s8 %v4810
    %v4987 = vunpack.c.0.s8 %v4811
    %v4988 = vunpack.c.0.s8 %v4812
    %v4989 = vunpack.c.0.s8 %v4813
    %v4990 = vunpack.c.1.s8 %v4810
    %v4991 = vunpack.c.1.s8 %v4811
    %v4992 = vunpack.c.1.s8 %v4812
    %v4993 = vunpack.c.1.s8 %v4813
    %v4994 = vunpack.c.2.s8 %v4810
    %v4995 = vunpack.c.2.s8 %v4811
    %v4996 = vunpack.c.2.s8 %v4812
    %v4997 = vunpack.c.2.s8 %v4813
    %v4998 = vunpack.c.3.s8 %v4810
    %v4999 = vunpack.c.3.s8 %v4811
    %v5000 = vunpack.c.3.s8 %v4812
    %v5001 = vunpack.c.3.s8 %v4813
    %v5002 = vunpack.c.0.s8 %v4814
    %v5003 = vunpack.c.0.s8 %v4815
    %v5004 = vunpack.c.0.s8 %v4816
    %v5005 = vunpack.c.0.s8 %v4817
    %v5006 = vunpack.c.1.s8 %v4814
    %v5007 = vunpack.c.1.s8 %v4815
    %v5008 = vunpack.c.1.s8 %v4816
    %v5009 = vunpack.c.1.s8 %v4817
    %v5010 = vunpack.c.2.s8 %v4814
    %v5011 = vunpack.c.2.s8 %v4815
    %v5012 = vunpack.c.2.s8 %v4816
    %v5013 = vunpack.c.2.s8 %v4817
    %v5014 = vunpack.c.3.s8 %v4814
    %v5015 = vunpack.c.3.s8 %v4815
    %v5016 = vunpack.c.3.s8 %v4816
    %v5017 = vunpack.c.3.s8 %v4817
    %v5018 = vunpack.c.0.s8 %v4818
    %v5019 = vunpack.c.0.s8 %v4819
    %v5020 = vunpack.c.0.s8 %v4820
    %v5021 = vunpack.c.0.s8 %v4821
    %v5022 = vunpack.c.1.s8 %v4818
    %v5023 = vunpack.c.1.s8 %v4819
    %v5024 = vunpack.c.1.s8 %v4820
    %v5025 = vunpack.c.1.s8 %v4821
    %v5026 = vunpack.c.2.s8 %v4818
    %v5027 = vunpack.c.2.s8 %v4819
    %v5028 = vunpack.c.2.s8 %v4820
    %v5029 = vunpack.c.2.s8 %v4821
    %v5030 = vunpack.c.3.s8 %v4818
    %v5031 = vunpack.c.3.s8 %v4819
    %v5032 = vunpack.c.3.s8 %v4820
    %v5033 = vunpack.c.3.s8 %v4821
    %v5034 = vunpack.c.0.s8 %v4822
    %v5035 = vunpack.c.0.s8 %v4823
    %v5036 = vunpack.c.0.s8 %v4824
    %v5037 = vunpack.c.0.s8 %v4825
    %v5038 = vunpack.c.1.s8 %v4822
    %v5039 = vunpack.c.1.s8 %v4823
    %v5040 = vunpack.c.1.s8 %v4824
    %v5041 = vunpack.c.1.s8 %v4825
    %v5042 = vunpack.c.2.s8 %v4822
    %v5043 = vunpack.c.2.s8 %v4823
    %v5044 = vunpack.c.2.s8 %v4824
    %v5045 = vunpack.c.2.s8 %v4825
    %v5046 = vunpack.c.3.s8 %v4822
    %v5047 = vunpack.c.3.s8 %v4823
    %v5048 = vunpack.c.3.s8 %v4824
    %v5049 = vunpack.c.3.s8 %v4825
    %v5050 = vunpack.c.0.s8 %v4826
    %v5051 = vunpack.c.0.s8 %v4827
    %v5052 = vunpack.c.0.s8 %v4828
    %v5053 = vunpack.c.0.s8 %v4829
    %v5054 = vunpack.c.1.s8 %v4826
    %v5055 = vunpack.c.1.s8 %v4827
    %v5056 = vunpack.c.1.s8 %v4828
    %v5057 = vunpack.c.1.s8 %v4829
    %v5058 = vunpack.c.2.s8 %v4826
    %v5059 = vunpack.c.2.s8 %v4827
    %v5060 = vunpack.c.2.s8 %v4828
    %v5061 = vunpack.c.2.s8 %v4829
    %v5062 = vunpack.c.3.s8 %v4826
    %v5063 = vunpack.c.3.s8 %v4827
    %v5064 = vunpack.c.3.s8 %v4828
    %v5065 = vunpack.c.3.s8 %v4829
    %v5066 = vunpack.c.0.s8 %v4830
    %v5067 = vunpack.c.0.s8 %v4831
    %v5068 = vunpack.c.0.s8 %v4832
    %v5069 = vunpack.c.0.s8 %v4833
    %v5070 = vunpack.c.1.s8 %v4830
    %v5071 = vunpack.c.1.s8 %v4831
    %v5072 = vunpack.c.1.s8 %v4832
    %v5073 = vunpack.c.1.s8 %v4833
    %v5074 = vunpack.c.2.s8 %v4830
    %v5075 = vunpack.c.2.s8 %v4831
    %v5076 = vunpack.c.2.s8 %v4832
    %v5077 = vunpack.c.2.s8 %v4833
    %v5078 = vunpack.c.3.s8 %v4830
    %v5079 = vunpack.c.3.s8 %v4831
    %v5080 = vunpack.c.3.s8 %v4832
    %v5081 = vunpack.c.3.s8 %v4833
    %v5082 = vunpack.c.0.s8 %v4834
    %v5083 = vunpack.c.0.s8 %v4835
    %v5084 = vunpack.c.0.s8 %v4836
    %v5085 = vunpack.c.0.s8 %v4837
    %v5086 = vunpack.c.1.s8 %v4834
    %v5087 = vunpack.c.1.s8 %v4835
    %v5088 = vunpack.c.1.s8 %v4836
    %v5089 = vunpack.c.1.s8 %v4837
    %v5090 = vunpack.c.2.s8 %v4834
    %v5091 = vunpack.c.2.s8 %v4835
    %v5092 = vunpack.c.2.s8 %v4836
    %v5093 = vunpack.c.2.s8 %v4837
    %v5094 = vunpack.c.3.s8 %v4834
    %v5095 = vunpack.c.3.s8 %v4835
    %v5096 = vunpack.c.3.s8 %v4836
    %v5097 = vunpack.c.3.s8 %v4837
    %v5098 = vunpack.c.0.s8 %v4838
    %v5099 = vunpack.c.0.s8 %v4839
    %v5100 = vunpack.c.0.s8 %v4840
    %v5101 = vunpack.c.0.s8 %v4841
    %v5102 = vunpack.c.1.s8 %v4838
    %v5103 = vunpack.c.1.s8 %v4839
    %v5104 = vunpack.c.1.s8 %v4840
    %v5105 = vunpack.c.1.s8 %v4841
    %v5106 = vunpack.c.2.s8 %v4838
    %v5107 = vunpack.c.2.s8 %v4839
    %v5108 = vunpack.c.2.s8 %v4840
    %v5109 = vunpack.c.2.s8 %v4841
    %v5110 = vunpack.c.3.s8 %v4838
    %v5111 = vunpack.c.3.s8 %v4839
    %v5112 = vunpack.c.3.s8 %v4840
    %v5113 = vunpack.c.3.s8 %v4841
    %v5114 = vunpack.c.0.s8 %v4842
    %v5115 = vunpack.c.0.s8 %v4843
    %v5116 = vunpack.c.0.s8 %v4844
    %v5117 = vunpack.c.0.s8 %v4845
    %v5118 = vunpack.c.1.s8 %v4842
    %v5119 = vunpack.c.1.s8 %v4843
    %v5120 = vunpack.c.1.s8 %v4844
    %v5121 = vunpack.c.1.s8 %v4845
    %v5122 = vunpack.c.2.s8 %v4842
    %v5123 = vunpack.c.2.s8 %v4843
    %v5124 = vunpack.c.2.s8 %v4844
    %v5125 = vunpack.c.2.s8 %v4845
    %v5126 = vunpack.c.3.s8 %v4842
    %v5127 = vunpack.c.3.s8 %v4843
    %v5128 = vunpack.c.3.s8 %v4844
    %v5129 = vunpack.c.3.s8 %v4845
    %v5130 = vunpack.c.0.s8 %v4846
    %v5131 = vunpack.c.0.s8 %v4847
    %v5132 = vunpack.c.0.s8 %v4848
    %v5133 = vunpack.c.0.s8 %v4849
    %v5134 = vunpack.c.1.s8 %v4846
    %v5135 = vunpack.c.1.s8 %v4847
    %v5136 = vunpack.c.1.s8 %v4848
    %v5137 = vunpack.c.1.s8 %v4849
    %v5138 = vunpack.c.2.s8 %v4846
    %v5139 = vunpack.c.2.s8 %v4847
    %v5140 = vunpack.c.2.s8 %v4848
    %v5141 = vunpack.c.2.s8 %v4849
    %v5142 = vunpack.c.3.s8 %v4846
    %v5143 = vunpack.c.3.s8 %v4847
    %v5144 = vunpack.c.3.s8 %v4848
    %v5145 = vunpack.c.3.s8 %v4849
    %v5146 = vunpack.c.0.s8 %v4850
    %v5147 = vunpack.c.0.s8 %v4851
    %v5148 = vunpack.c.0.s8 %v4852
    %v5149 = vunpack.c.0.s8 %v4853
    %v5150 = vunpack.c.1.s8 %v4850
    %v5151 = vunpack.c.1.s8 %v4851
    %v5152 = vunpack.c.1.s8 %v4852
    %v5153 = vunpack.c.1.s8 %v4853
    %v5154 = vunpack.c.2.s8 %v4850
    %v5155 = vunpack.c.2.s8 %v4851
    %v5156 = vunpack.c.2.s8 %v4852
    %v5157 = vunpack.c.2.s8 %v4853
    %v5158 = vunpack.c.3.s8 %v4850
    %v5159 = vunpack.c.3.s8 %v4851
    %v5160 = vunpack.c.3.s8 %v4852
    %v5161 = vunpack.c.3.s8 %v4853
    %v5162 = vunpack.c.0.s8 %v4854
    %v5163 = vunpack.c.0.s8 %v4855
    %v5164 = vunpack.c.0.s8 %v4856
    %v5165 = vunpack.c.0.s8 %v4857
    %v5166 = vunpack.c.1.s8 %v4854
    %v5167 = vunpack.c.1.s8 %v4855
    %v5168 = vunpack.c.1.s8 %v4856
    %v5169 = vunpack.c.1.s8 %v4857
    %v5170 = vunpack.c.2.s8 %v4854
    %v5171 = vunpack.c.2.s8 %v4855
    %v5172 = vunpack.c.2.s8 %v4856
    %v5173 = vunpack.c.2.s8 %v4857
    %v5174 = vunpack.c.3.s8 %v4854
    %v5175 = vunpack.c.3.s8 %v4855
    %v5176 = vunpack.c.3.s8 %v4856
    %v5177 = vunpack.c.3.s8 %v4857
    %v5178 = vunpack.c.0.s8 %v4858
    %v5179 = vunpack.c.0.s8 %v4859
    %v5180 = vunpack.c.0.s8 %v4860
    %v5181 = vunpack.c.0.s8 %v4861
    %v5182 = vunpack.c.1.s8 %v4858
    %v5183 = vunpack.c.1.s8 %v4859
    %v5184 = vunpack.c.1.s8 %v4860
    %v5185 = vunpack.c.1.s8 %v4861
    %v5186 = vunpack.c.2.s8 %v4858
    %v5187 = vunpack.c.2.s8 %v4859
    %v5188 = vunpack.c.2.s8 %v4860
    %v5189 = vunpack.c.2.s8 %v4861
    %v5190 = vunpack.c.3.s8 %v4858
    %v5191 = vunpack.c.3.s8 %v4859
    %v5192 = vunpack.c.3.s8 %v4860
    %v5193 = vunpack.c.3.s8 %v4861
    %v5194 = vunpack.c.0.s8 %v4862
    %v5195 = vunpack.c.0.s8 %v4863
    %v5196 = vunpack.c.0.s8 %v4864
    %v5197 = vunpack.c.0.s8 %v4865
    %v5198 = vunpack.c.1.s8 %v4862
    %v5199 = vunpack.c.1.s8 %v4863
    %v5200 = vunpack.c.1.s8 %v4864
    %v5201 = vunpack.c.1.s8 %v4865
    %v5202 = vunpack.c.2.s8 %v4862
    %v5203 = vunpack.c.2.s8 %v4863
    %v5204 = vunpack.c.2.s8 %v4864
    %v5205 = vunpack.c.2.s8 %v4865
    %v5206 = vunpack.c.3.s8 %v4862
    %v5207 = vunpack.c.3.s8 %v4863
    %v5208 = vunpack.c.3.s8 %v4864
    %v5209 = vunpack.c.3.s8 %v4865
    %v5210 = vunpack.c.0.s8 %v4866
    %v5211 = vunpack.c.0.s8 %v4867
    %v5212 = vunpack.c.0.s8 %v4868
    %v5213 = vunpack.c.0.s8 %v4869
    %v5214 = vunpack.c.1.s8 %v4866
    %v5215 = vunpack.c.1.s8 %v4867
    %v5216 = vunpack.c.1.s8 %v4868
    %v5217 = vunpack.c.1.s8 %v4869
    %v5218 = vunpack.c.2.s8 %v4866
    %v5219 = vunpack.c.2.s8 %v4867
    %v5220 = vunpack.c.2.s8 %v4868
    %v5221 = vunpack.c.2.s8 %v4869
    %v5222 = vunpack.c.3.s8 %v4866
    %v5223 = vunpack.c.3.s8 %v4867
    %v5224 = vunpack.c.3.s8 %v4868
    %v5225 = vunpack.c.3.s8 %v4869
    %v5226 = vunpack.c.0.s8 %v4870
    %v5227 = vunpack.c.0.s8 %v4871
    %v5228 = vunpack.c.0.s8 %v4872
    %v5229 = vunpack.c.0.s8 %v4873
    %v5230 = vunpack.c.1.s8 %v4870
    %v5231 = vunpack.c.1.s8 %v4871
    %v5232 = vunpack.c.1.s8 %v4872
    %v5233 = vunpack.c.1.s8 %v4873
    %v5234 = vunpack.c.2.s8 %v4870
    %v5235 = vunpack.c.2.s8 %v4871
    %v5236 = vunpack.c.2.s8 %v4872
    %v5237 = vunpack.c.2.s8 %v4873
    %v5238 = vunpack.c.3.s8 %v4870
    %v5239 = vunpack.c.3.s8 %v4871
    %v5240 = vunpack.c.3.s8 %v4872
    %v5241 = vunpack.c.3.s8 %v4873
    %v5242 = vunpack.c.0.s8 %v4874
    %v5243 = vunpack.c.0.s8 %v4875
    %v5244 = vunpack.c.0.s8 %v4876
    %v5245 = vunpack.c.0.s8 %v4877
    %v5246 = vunpack.c.1.s8 %v4874
    %v5247 = vunpack.c.1.s8 %v4875
    %v5248 = vunpack.c.1.s8 %v4876
    %v5249 = vunpack.c.1.s8 %v4877
    %v5250 = vunpack.c.2.s8 %v4874
    %v5251 = vunpack.c.2.s8 %v4875
    %v5252 = vunpack.c.2.s8 %v4876
    %v5253 = vunpack.c.2.s8 %v4877
    %v5254 = vunpack.c.3.s8 %v4874
    %v5255 = vunpack.c.3.s8 %v4875
    %v5256 = vunpack.c.3.s8 %v4876
    %v5257 = vunpack.c.3.s8 %v4877
    %v5258 = vunpack.c.0.s8 %v4878
    %v5259 = vunpack.c.0.s8 %v4879
    %v5260 = vunpack.c.0.s8 %v4880
    %v5261 = vunpack.c.0.s8 %v4881
    %v5262 = vunpack.c.1.s8 %v4878
    %v5263 = vunpack.c.1.s8 %v4879
    %v5264 = vunpack.c.1.s8 %v4880
    %v5265 = vunpack.c.1.s8 %v4881
    %v5266 = vunpack.c.2.s8 %v4878
    %v5267 = vunpack.c.2.s8 %v4879
    %v5268 = vunpack.c.2.s8 %v4880
    %v5269 = vunpack.c.2.s8 %v4881
    %v5270 = vunpack.c.3.s8 %v4878
    %v5271 = vunpack.c.3.s8 %v4879
    %v5272 = vunpack.c.3.s8 %v4880
    %v5273 = vunpack.c.3.s8 %v4881
    %v5274 = vunpack.c.0.s8 %v4882
    %v5275 = vunpack.c.0.s8 %v4883
    %v5276 = vunpack.c.0.s8 %v4884
    %v5277 = vunpack.c.0.s8 %v4885
    %v5278 = vunpack.c.1.s8 %v4882
    %v5279 = vunpack.c.1.s8 %v4883
    %v5280 = vunpack.c.1.s8 %v4884
    %v5281 = vunpack.c.1.s8 %v4885
    %v5282 = vunpack.c.2.s8 %v4882
    %v5283 = vunpack.c.2.s8 %v4883
    %v5284 = vunpack.c.2.s8 %v4884
    %v5285 = vunpack.c.2.s8 %v4885
    %v5286 = vunpack.c.3.s8 %v4882
    %v5287 = vunpack.c.3.s8 %v4883
    %v5288 = vunpack.c.3.s8 %v4884
    %v5289 = vunpack.c.3.s8 %v4885
    %v5290 = vunpack.c.0.s8 %v4886
    %v5291 = vunpack.c.0.s8 %v4887
    %v5292 = vunpack.c.0.s8 %v4888
    %v5293 = vunpack.c.0.s8 %v4889
    %v5294 = vunpack.c.1.s8 %v4886
    %v5295 = vunpack.c.1.s8 %v4887
    %v5296 = vunpack.c.1.s8 %v4888
    %v5297 = vunpack.c.1.s8 %v4889
    %v5298 = vunpack.c.2.s8 %v4886
    %v5299 = vunpack.c.2.s8 %v4887
    %v5300 = vunpack.c.2.s8 %v4888
    %v5301 = vunpack.c.2.s8 %v4889
    %v5302 = vunpack.c.3.s8 %v4886
    %v5303 = vunpack.c.3.s8 %v4887
    %v5304 = vunpack.c.3.s8 %v4888
    %v5305 = vunpack.c.3.s8 %v4889
    %v5306 = vunpack.c.0.s8 %v4890
    %v5307 = vunpack.c.0.s8 %v4891
    %v5308 = vunpack.c.0.s8 %v4892
    %v5309 = vunpack.c.0.s8 %v4893
    %v5310 = vunpack.c.1.s8 %v4890
    %v5311 = vunpack.c.1.s8 %v4891
    %v5312 = vunpack.c.1.s8 %v4892
    %v5313 = vunpack.c.1.s8 %v4893
    %v5314 = vunpack.c.2.s8 %v4890
    %v5315 = vunpack.c.2.s8 %v4891
    %v5316 = vunpack.c.2.s8 %v4892
    %v5317 = vunpack.c.2.s8 %v4893
    %v5318 = vunpack.c.3.s8 %v4890
    %v5319 = vunpack.c.3.s8 %v4891
    %v5320 = vunpack.c.3.s8 %v4892
    %v5321 = vunpack.c.3.s8 %v4893
    %v5322 = vunpack.c.0.s8 %v4894
    %v5323 = vunpack.c.0.s8 %v4895
    %v5324 = vunpack.c.0.s8 %v4896
    %v5325 = vunpack.c.0.s8 %v4897
    %v5326 = vunpack.c.1.s8 %v4894
    %v5327 = vunpack.c.1.s8 %v4895
    %v5328 = vunpack.c.1.s8 %v4896
    %v5329 = vunpack.c.1.s8 %v4897
    %v5330 = vunpack.c.2.s8 %v4894
    %v5331 = vunpack.c.2.s8 %v4895
    %v5332 = vunpack.c.2.s8 %v4896
    %v5333 = vunpack.c.2.s8 %v4897
    %v5334 = vunpack.c.3.s8 %v4894
    %v5335 = vunpack.c.3.s8 %v4895
    %v5336 = vunpack.c.3.s8 %v4896
    %v5337 = vunpack.c.3.s8 %v4897
    %v5338 = vunpack.c.0.s8 %v4898
    %v5339 = vunpack.c.0.s8 %v4899
    %v5340 = vunpack.c.0.s8 %v4900
    %v5341 = vunpack.c.0.s8 %v4901
    %v5342 = vunpack.c.1.s8 %v4898
    %v5343 = vunpack.c.1.s8 %v4899
    %v5344 = vunpack.c.1.s8 %v4900
    %v5345 = vunpack.c.1.s8 %v4901
    %v5346 = vunpack.c.2.s8 %v4898
    %v5347 = vunpack.c.2.s8 %v4899
    %v5348 = vunpack.c.2.s8 %v4900
    %v5349 = vunpack.c.2.s8 %v4901
    %v5350 = vunpack.c.3.s8 %v4898
    %v5351 = vunpack.c.3.s8 %v4899
    %v5352 = vunpack.c.3.s8 %v4900
    %v5353 = vunpack.c.3.s8 %v4901
    %v5354 = vunpack.c.0.s8 %v4902
    %v5355 = vunpack.c.0.s8 %v4903
    %v5356 = vunpack.c.0.s8 %v4904
    %v5357 = vunpack.c.0.s8 %v4905
    %v5358 = vunpack.c.1.s8 %v4902
    %v5359 = vunpack.c.1.s8 %v4903
    %v5360 = vunpack.c.1.s8 %v4904
    %v5361 = vunpack.c.1.s8 %v4905
    %v5362 = vunpack.c.2.s8 %v4902
    %v5363 = vunpack.c.2.s8 %v4903
    %v5364 = vunpack.c.2.s8 %v4904
    %v5365 = vunpack.c.2.s8 %v4905
    %v5366 = vunpack.c.3.s8 %v4902
    %v5367 = vunpack.c.3.s8 %v4903
    %v5368 = vunpack.c.3.s8 %v4904
    %v5369 = vunpack.c.3.s8 %v4905
    %v5370 = vunpack.c.0.s8 %v4906
    %v5371 = vunpack.c.0.s8 %v4907
    %v5372 = vunpack.c.0.s8 %v4908
    %v5373 = vunpack.c.0.s8 %v4909
    %v5374 = vunpack.c.1.s8 %v4906
    %v5375 = vunpack.c.1.s8 %v4907
    %v5376 = vunpack.c.1.s8 %v4908
    %v5377 = vunpack.c.1.s8 %v4909
    %v5378 = vunpack.c.2.s8 %v4906
    %v5379 = vunpack.c.2.s8 %v4907
    %v5380 = vunpack.c.2.s8 %v4908
    %v5381 = vunpack.c.2.s8 %v4909
    %v5382 = vunpack.c.3.s8 %v4906
    %v5383 = vunpack.c.3.s8 %v4907
    %v5384 = vunpack.c.3.s8 %v4908
    %v5385 = vunpack.c.3.s8 %v4909
    %v5386 = vunpack.c.0.s8 %v4910
    %v5387 = vunpack.c.0.s8 %v4911
    %v5388 = vunpack.c.0.s8 %v4912
    %v5389 = vunpack.c.0.s8 %v4913
    %v5390 = vunpack.c.1.s8 %v4910
    %v5391 = vunpack.c.1.s8 %v4911
    %v5392 = vunpack.c.1.s8 %v4912
    %v5393 = vunpack.c.1.s8 %v4913
    %v5394 = vunpack.c.2.s8 %v4910
    %v5395 = vunpack.c.2.s8 %v4911
    %v5396 = vunpack.c.2.s8 %v4912
    %v5397 = vunpack.c.2.s8 %v4913
    %v5398 = vunpack.c.3.s8 %v4910
    %v5399 = vunpack.c.3.s8 %v4911
    %v5400 = vunpack.c.3.s8 %v4912
    %v5401 = vunpack.c.3.s8 %v4913
    %v5402 = vunpack.c.0.s8 %v4914
    %v5403 = vunpack.c.0.s8 %v4915
    %v5404 = vunpack.c.0.s8 %v4916
    %v5405 = vunpack.c.0.s8 %v4917
    %v5406 = vunpack.c.1.s8 %v4914
    %v5407 = vunpack.c.1.s8 %v4915
    %v5408 = vunpack.c.1.s8 %v4916
    %v5409 = vunpack.c.1.s8 %v4917
    %v5410 = vunpack.c.2.s8 %v4914
    %v5411 = vunpack.c.2.s8 %v4915
    %v5412 = vunpack.c.2.s8 %v4916
    %v5413 = vunpack.c.2.s8 %v4917
    %v5414 = vunpack.c.3.s8 %v4914
    %v5415 = vunpack.c.3.s8 %v4915
    %v5416 = vunpack.c.3.s8 %v4916
    %v5417 = vunpack.c.3.s8 %v4917
    %v5418 = vunpack.c.0.s8 %v4918
    %v5419 = vunpack.c.0.s8 %v4919
    %v5420 = vunpack.c.0.s8 %v4920
    %v5421 = vunpack.c.0.s8 %v4921
    %v5422 = vunpack.c.1.s8 %v4918
    %v5423 = vunpack.c.1.s8 %v4919
    %v5424 = vunpack.c.1.s8 %v4920
    %v5425 = vunpack.c.1.s8 %v4921
    %v5426 = vunpack.c.2.s8 %v4918
    %v5427 = vunpack.c.2.s8 %v4919
    %v5428 = vunpack.c.2.s8 %v4920
    %v5429 = vunpack.c.2.s8 %v4921
    %v5430 = vunpack.c.3.s8 %v4918
    %v5431 = vunpack.c.3.s8 %v4919
    %v5432 = vunpack.c.3.s8 %v4920
    %v5433 = vunpack.c.3.s8 %v4921
    %v5434 = vcvt.s32.f32 %v4922
    %v5435 = vcvt.s32.f32 %v4923
    %v5436 = vcvt.s32.f32 %v4924
    %v5437 = vcvt.s32.f32 %v4925
    %v5438 = vcvt.s32.f32 %v4926
    %v5439 = vcvt.s32.f32 %v4927
    %v5440 = vcvt.s32.f32 %v4928
    %v5441 = vcvt.s32.f32 %v4929
    %v5442 = vcvt.s32.f32 %v4930
    %v5443 = vcvt.s32.f32 %v4931
    %v5444 = vcvt.s32.f32 %v4932
    %v5445 = vcvt.s32.f32 %v4933
    %v5446 = vcvt.s32.f32 %v4934
    %v5447 = vcvt.s32.f32 %v4935
    %v5448 = vcvt.s32.f32 %v4936
    %v5449 = vcvt.s32.f32 %v4937
    %v5450 = vcvt.s32.f32 %v4938
    %v5451 = vcvt.s32.f32 %v4939
    %v5452 = vcvt.s32.f32 %v4940
    %v5453 = vcvt.s32.f32 %v4941
    %v5454 = vcvt.s32.f32 %v4942
    %v5455 = vcvt.s32.f32 %v4943
    %v5456 = vcvt.s32.f32 %v4944
    %v5457 = vcvt.s32.f32 %v4945
    %v5458 = vcvt.s32.f32 %v4946
    %v5459 = vcvt.s32.f32 %v4947
    %v5460 = vcvt.s32.f32 %v4948
    %v5461 = vcvt.s32.f32 %v4949
    %v5462 = vcvt.s32.f32 %v4950
    %v5463 = vcvt.s32.f32 %v4951
    %v5464 = vcvt.s32.f32 %v4952
    %v5465 = vcvt.s32.f32 %v4953
    %v5466 = vcvt.s32.f32 %v4954
    %v5467 = vcvt.s32.f32 %v4955
    %v5468 = vcvt.s32.f32 %v4956
    %v5469 = vcvt.s32.f32 %v4957
    %v5470 = vcvt.s32.f32 %v4958
    %v5471 = vcvt.s32.f32 %v4959
    %v5472 = vcvt.s32.f32 %v4960
    %v5473 = vcvt.s32.f32 %v4961
    %v5474 = vcvt.s32.f32 %v4962
    %v5475 = vcvt.s32.f32 %v4963
    %v5476 = vcvt.s32.f32 %v4964
    %v5477 = vcvt.s32.f32 %v4965
    %v5478 = vcvt.s32.f32 %v4966
    %v5479 = vcvt.s32.f32 %v4967
    %v5480 = vcvt.s32.f32 %v4968
    %v5481 = vcvt.s32.f32 %v4969
    %v5482 = vcvt.s32.f32 %v4970
    %v5483 = vcvt.s32.f32 %v4971
    %v5484 = vcvt.s32.f32 %v4972
    %v5485 = vcvt.s32.f32 %v4973
    %v5486 = vcvt.s32.f32 %v4974
    %v5487 = vcvt.s32.f32 %v4975
    %v5488 = vcvt.s32.f32 %v4976
    %v5489 = vcvt.s32.f32 %v4977
    %v5490 = vcvt.s32.f32 %v4978
    %v5491 = vcvt.s32.f32 %v4979
    %v5492 = vcvt.s32.f32 %v4980
    %v5493 = vcvt.s32.f32 %v4981
    %v5494 = vcvt.s32.f32 %v4982
    %v5495 = vcvt.s32.f32 %v4983
    %v5496 = vcvt.s32.f32 %v4984
    %v5497 = vcvt.s32.f32 %v4985
    %v5498 = vcvt.s32.f32 %v4986
    %v5499 = vcvt.s32.f32 %v4987
    %v5500 = vcvt.s32.f32 %v4988
    %v5501 = vcvt.s32.f32 %v4989
    %v5502 = vcvt.s32.f32 %v4990
    %v5503 = vcvt.s32.f32 %v4991
    %v5504 = vcvt.s32.f32 %v4992
    %v5505 = vcvt.s32.f32 %v4993
    %v5506 = vcvt.s32.f32 %v4994
    %v5507 = vcvt.s32.f32 %v4995
    %v5508 = vcvt.s32.f32 %v4996
    %v5509 = vcvt.s32.f32 %v4997
    %v5510 = vcvt.s32.f32 %v4998
    %v5511 = vcvt.s32.f32 %v4999
    %v5512 = vcvt.s32.f32 %v5000
    %v5513 = vcvt.s32.f32 %v5001
    %v5514 = vcvt.s32.f32 %v5002
    %v5515 = vcvt.s32.f32 %v5003
    %v5516 = vcvt.s32.f32 %v5004
    %v5517 = vcvt.s32.f32 %v5005
    %v5518 = vcvt.s32.f32 %v5006
    %v5519 = vcvt.s32.f32 %v5007
    %v5520 = vcvt.s32.f32 %v5008
    %v5521 = vcvt.s32.f32 %v5009
    %v5522 = vcvt.s32.f32 %v5010
    %v5523 = vcvt.s32.f32 %v5011
    %v5524 = vcvt.s32.f32 %v5012
    %v5525 = vcvt.s32.f32 %v5013
    %v5526 = vcvt.s32.f32 %v5014
    %v5527 = vcvt.s32.f32 %v5015
    %v5528 = vcvt.s32.f32 %v5016
    %v5529 = vcvt.s32.f32 %v5017
    %v5530 = vcvt.s32.f32 %v5018
    %v5531 = vcvt.s32.f32 %v5019
    %v5532 = vcvt.s32.f32 %v5020
    %v5533 = vcvt.s32.f32 %v5021
    %v5534 = vcvt.s32.f32 %v5022
    %v5535 = vcvt.s32.f32 %v5023
    %v5536 = vcvt.s32.f32 %v5024
    %v5537 = vcvt.s32.f32 %v5025
    %v5538 = vcvt.s32.f32 %v5026
    %v5539 = vcvt.s32.f32 %v5027
    %v5540 = vcvt.s32.f32 %v5028
    %v5541 = vcvt.s32.f32 %v5029
    %v5542 = vcvt.s32.f32 %v5030
    %v5543 = vcvt.s32.f32 %v5031
    %v5544 = vcvt.s32.f32 %v5032
    %v5545 = vcvt.s32.f32 %v5033
    %v5546 = vcvt.s32.f32 %v5034
    %v5547 = vcvt.s32.f32 %v5035
    %v5548 = vcvt.s32.f32 %v5036
    %v5549 = vcvt.s32.f32 %v5037
    %v5550 = vcvt.s32.f32 %v5038
    %v5551 = vcvt.s32.f32 %v5039
    %v5552 = vcvt.s32.f32 %v5040
    %v5553 = vcvt.s32.f32 %v5041
    %v5554 = vcvt.s32.f32 %v5042
    %v5555 = vcvt.s32.f32 %v5043
    %v5556 = vcvt.s32.f32 %v5044
    %v5557 = vcvt.s32.f32 %v5045
    %v5558 = vcvt.s32.f32 %v5046
    %v5559 = vcvt.s32.f32 %v5047
    %v5560 = vcvt.s32.f32 %v5048
    %v5561 = vcvt.s32.f32 %v5049
    %v5562 = vcvt.s32.f32 %v5050
    %v5563 = vcvt.s32.f32 %v5051
    %v5564 = vcvt.s32.f32 %v5052
    %v5565 = vcvt.s32.f32 %v5053
    %v5566 = vcvt.s32.f32 %v5054
    %v5567 = vcvt.s32.f32 %v5055
    %v5568 = vcvt.s32.f32 %v5056
    %v5569 = vcvt.s32.f32 %v5057
    %v5570 = vcvt.s32.f32 %v5058
    %v5571 = vcvt.s32.f32 %v5059
    %v5572 = vcvt.s32.f32 %v5060
    %v5573 = vcvt.s32.f32 %v5061
    %v5574 = vcvt.s32.f32 %v5062
    %v5575 = vcvt.s32.f32 %v5063
    %v5576 = vcvt.s32.f32 %v5064
    %v5577 = vcvt.s32.f32 %v5065
    %v5578 = vcvt.s32.f32 %v5066
    %v5579 = vcvt.s32.f32 %v5067
    %v5580 = vcvt.s32.f32 %v5068
    %v5581 = vcvt.s32.f32 %v5069
    %v5582 = vcvt.s32.f32 %v5070
    %v5583 = vcvt.s32.f32 %v5071
    %v5584 = vcvt.s32.f32 %v5072
    %v5585 = vcvt.s32.f32 %v5073
    %v5586 = vcvt.s32.f32 %v5074
    %v5587 = vcvt.s32.f32 %v5075
    %v5588 = vcvt.s32.f32 %v5076
    %v5589 = vcvt.s32.f32 %v5077
    %v5590 = vcvt.s32.f32 %v5078
    %v5591 = vcvt.s32.f32 %v5079
    %v5592 = vcvt.s32.f32 %v5080
    %v5593 = vcvt.s32.f32 %v5081
    %v5594 = vcvt.s32.f32 %v5082
    %v5595 = vcvt.s32.f32 %v5083
    %v5596 = vcvt.s32.f32 %v5084
    %v5597 = vcvt.s32.f32 %v5085
    %v5598 = vcvt.s32.f32 %v5086
    %v5599 = vcvt.s32.f32 %v5087
    %v5600 = vcvt.s32.f32 %v5088
    %v5601 = vcvt.s32.f32 %v5089
    %v5602 = vcvt.s32.f32 %v5090
    %v5603 = vcvt.s32.f32 %v5091
    %v5604 = vcvt.s32.f32 %v5092
    %v5605 = vcvt.s32.f32 %v5093
    %v5606 = vcvt.s32.f32 %v5094
    %v5607 = vcvt.s32.f32 %v5095
    %v5608 = vcvt.s32.f32 %v5096
    %v5609 = vcvt.s32.f32 %v5097
    %v5610 = vcvt.s32.f32 %v5098
    %v5611 = vcvt.s32.f32 %v5099
    %v5612 = vcvt.s32.f32 %v5100
    %v5613 = vcvt.s32.f32 %v5101
    %v5614 = vcvt.s32.f32 %v5102
    %v5615 = vcvt.s32.f32 %v5103
    %v5616 = vcvt.s32.f32 %v5104
    %v5617 = vcvt.s32.f32 %v5105
    %v5618 = vcvt.s32.f32 %v5106
    %v5619 = vcvt.s32.f32 %v5107
    %v5620 = vcvt.s32.f32 %v5108
    %v5621 = vcvt.s32.f32 %v5109
    %v5622 = vcvt.s32.f32 %v5110
    %v5623 = vcvt.s32.f32 %v5111
    %v5624 = vcvt.s32.f32 %v5112
    %v5625 = vcvt.s32.f32 %v5113
    %v5626 = vcvt.s32.f32 %v5114
    %v5627 = vcvt.s32.f32 %v5115
    %v5628 = vcvt.s32.f32 %v5116
    %v5629 = vcvt.s32.f32 %v5117
    %v5630 = vcvt.s32.f32 %v5118
    %v5631 = vcvt.s32.f32 %v5119
    %v5632 = vcvt.s32.f32 %v5120
    %v5633 = vcvt.s32.f32 %v5121
    %v5634 = vcvt.s32.f32 %v5122
    %v5635 = vcvt.s32.f32 %v5123
    %v5636 = vcvt.s32.f32 %v5124
    %v5637 = vcvt.s32.f32 %v5125
    %v5638 = vcvt.s32.f32 %v5126
    %v5639 = vcvt.s32.f32 %v5127
    %v5640 = vcvt.s32.f32 %v5128
    %v5641 = vcvt.s32.f32 %v5129
    %v5642 = vcvt.s32.f32 %v5130
    %v5643 = vcvt.s32.f32 %v5131
    %v5644 = vcvt.s32.f32 %v5132
    %v5645 = vcvt.s32.f32 %v5133
    %v5646 = vcvt.s32.f32 %v5134
    %v5647 = vcvt.s32.f32 %v5135
    %v5648 = vcvt.s32.f32 %v5136
    %v5649 = vcvt.s32.f32 %v5137
    %v5650 = vcvt.s32.f32 %v5138
    %v5651 = vcvt.s32.f32 %v5139
    %v5652 = vcvt.s32.f32 %v5140
    %v5653 = vcvt.s32.f32 %v5141
    %v5654 = vcvt.s32.f32 %v5142
    %v5655 = vcvt.s32.f32 %v5143
    %v5656 = vcvt.s32.f32 %v5144
    %v5657 = vcvt.s32.f32 %v5145
    %v5658 = vcvt.s32.f32 %v5146
    %v5659 = vcvt.s32.f32 %v5147
    %v5660 = vcvt.s32.f32 %v5148
    %v5661 = vcvt.s32.f32 %v5149
    %v5662 = vcvt.s32.f32 %v5150
    %v5663 = vcvt.s32.f32 %v5151
    %v5664 = vcvt.s32.f32 %v5152
    %v5665 = vcvt.s32.f32 %v5153
    %v5666 = vcvt.s32.f32 %v5154
    %v5667 = vcvt.s32.f32 %v5155
    %v5668 = vcvt.s32.f32 %v5156
    %v5669 = vcvt.s32.f32 %v5157
    %v5670 = vcvt.s32.f32 %v5158
    %v5671 = vcvt.s32.f32 %v5159
    %v5672 = vcvt.s32.f32 %v5160
    %v5673 = vcvt.s32.f32 %v5161
    %v5674 = vcvt.s32.f32 %v5162
    %v5675 = vcvt.s32.f32 %v5163
    %v5676 = vcvt.s32.f32 %v5164
    %v5677 = vcvt.s32.f32 %v5165
    %v5678 = vcvt.s32.f32 %v5166
    %v5679 = vcvt.s32.f32 %v5167
    %v5680 = vcvt.s32.f32 %v5168
    %v5681 = vcvt.s32.f32 %v5169
    %v5682 = vcvt.s32.f32 %v5170
    %v5683 = vcvt.s32.f32 %v5171
    %v5684 = vcvt.s32.f32 %v5172
    %v5685 = vcvt.s32.f32 %v5173
    %v5686 = vcvt.s32.f32 %v5174
    %v5687 = vcvt.s32.f32 %v5175
    %v5688 = vcvt.s32.f32 %v5176
    %v5689 = vcvt.s32.f32 %v5177
    %v5690 = vcvt.s32.f32 %v5178
    %v5691 = vcvt.s32.f32 %v5179
    %v5692 = vcvt.s32.f32 %v5180
    %v5693 = vcvt.s32.f32 %v5181
    %v5694 = vcvt.s32.f32 %v5182
    %v5695 = vcvt.s32.f32 %v5183
    %v5696 = vcvt.s32.f32 %v5184
    %v5697 = vcvt.s32.f32 %v5185
    %v5698 = vcvt.s32.f32 %v5186
    %v5699 = vcvt.s32.f32 %v5187
    %v5700 = vcvt.s32.f32 %v5188
    %v5701 = vcvt.s32.f32 %v5189
    %v5702 = vcvt.s32.f32 %v5190
    %v5703 = vcvt.s32.f32 %v5191
    %v5704 = vcvt.s32.f32 %v5192
    %v5705 = vcvt.s32.f32 %v5193
    %v5706 = vcvt.s32.f32 %v5194
    %v5707 = vcvt.s32.f32 %v5195
    %v5708 = vcvt.s32.f32 %v5196
    %v5709 = vcvt.s32.f32 %v5197
    %v5710 = vcvt.s32.f32 %v5198
    %v5711 = vcvt.s32.f32 %v5199
    %v5712 = vcvt.s32.f32 %v5200
    %v5713 = vcvt.s32.f32 %v5201
    %v5714 = vcvt.s32.f32 %v5202
    %v5715 = vcvt.s32.f32 %v5203
    %v5716 = vcvt.s32.f32 %v5204
    %v5717 = vcvt.s32.f32 %v5205
    %v5718 = vcvt.s32.f32 %v5206
    %v5719 = vcvt.s32.f32 %v5207
    %v5720 = vcvt.s32.f32 %v5208
    %v5721 = vcvt.s32.f32 %v5209
    %v5722 = vcvt.s32.f32 %v5210
    %v5723 = vcvt.s32.f32 %v5211
    %v5724 = vcvt.s32.f32 %v5212
    %v5725 = vcvt.s32.f32 %v5213
    %v5726 = vcvt.s32.f32 %v5214
    %v5727 = vcvt.s32.f32 %v5215
    %v5728 = vcvt.s32.f32 %v5216
    %v5729 = vcvt.s32.f32 %v5217
    %v5730 = vcvt.s32.f32 %v5218
    %v5731 = vcvt.s32.f32 %v5219
    %v5732 = vcvt.s32.f32 %v5220
    %v5733 = vcvt.s32.f32 %v5221
    %v5734 = vcvt.s32.f32 %v5222
    %v5735 = vcvt.s32.f32 %v5223
    %v5736 = vcvt.s32.f32 %v5224
    %v5737 = vcvt.s32.f32 %v5225
    %v5738 = vcvt.s32.f32 %v5226
    %v5739 = vcvt.s32.f32 %v5227
    %v5740 = vcvt.s32.f32 %v5228
    %v5741 = vcvt.s32.f32 %v5229
    %v5742 = vcvt.s32.f32 %v5230
    %v5743 = vcvt.s32.f32 %v5231
    %v5744 = vcvt.s32.f32 %v5232
    %v5745 = vcvt.s32.f32 %v5233
    %v5746 = vcvt.s32.f32 %v5234
    %v5747 = vcvt.s32.f32 %v5235
    %v5748 = vcvt.s32.f32 %v5236
    %v5749 = vcvt.s32.f32 %v5237
    %v5750 = vcvt.s32.f32 %v5238
    %v5751 = vcvt.s32.f32 %v5239
    %v5752 = vcvt.s32.f32 %v5240
    %v5753 = vcvt.s32.f32 %v5241
    %v5754 = vcvt.s32.f32 %v5242
    %v5755 = vcvt.s32.f32 %v5243
    %v5756 = vcvt.s32.f32 %v5244
    %v5757 = vcvt.s32.f32 %v5245
    %v5758 = vcvt.s32.f32 %v5246
    %v5759 = vcvt.s32.f32 %v5247
    %v5760 = vcvt.s32.f32 %v5248
    %v5761 = vcvt.s32.f32 %v5249
    %v5762 = vcvt.s32.f32 %v5250
    %v5763 = vcvt.s32.f32 %v5251
    %v5764 = vcvt.s32.f32 %v5252
    %v5765 = vcvt.s32.f32 %v5253
    %v5766 = vcvt.s32.f32 %v5254
    %v5767 = vcvt.s32.f32 %v5255
    %v5768 = vcvt.s32.f32 %v5256
    %v5769 = vcvt.s32.f32 %v5257
    %v5770 = vcvt.s32.f32 %v5258
    %v5771 = vcvt.s32.f32 %v5259
    %v5772 = vcvt.s32.f32 %v5260
    %v5773 = vcvt.s32.f32 %v5261
    %v5774 = vcvt.s32.f32 %v5262
    %v5775 = vcvt.s32.f32 %v5263
    %v5776 = vcvt.s32.f32 %v5264
    %v5777 = vcvt.s32.f32 %v5265
    %v5778 = vcvt.s32.f32 %v5266
    %v5779 = vcvt.s32.f32 %v5267
    %v5780 = vcvt.s32.f32 %v5268
    %v5781 = vcvt.s32.f32 %v5269
    %v5782 = vcvt.s32.f32 %v5270
    %v5783 = vcvt.s32.f32 %v5271
    %v5784 = vcvt.s32.f32 %v5272
    %v5785 = vcvt.s32.f32 %v5273
    %v5786 = vcvt.s32.f32 %v5274
    %v5787 = vcvt.s32.f32 %v5275
    %v5788 = vcvt.s32.f32 %v5276
    %v5789 = vcvt.s32.f32 %v5277
    %v5790 = vcvt.s32.f32 %v5278
    %v5791 = vcvt.s32.f32 %v5279
    %v5792 = vcvt.s32.f32 %v5280
    %v5793 = vcvt.s32.f32 %v5281
    %v5794 = vcvt.s32.f32 %v5282
    %v5795 = vcvt.s32.f32 %v5283
    %v5796 = vcvt.s32.f32 %v5284
    %v5797 = vcvt.s32.f32 %v5285
    %v5798 = vcvt.s32.f32 %v5286
    %v5799 = vcvt.s32.f32 %v5287
    %v5800 = vcvt.s32.f32 %v5288
    %v5801 = vcvt.s32.f32 %v5289
    %v5802 = vcvt.s32.f32 %v5290
    %v5803 = vcvt.s32.f32 %v5291
    %v5804 = vcvt.s32.f32 %v5292
    %v5805 = vcvt.s32.f32 %v5293
    %v5806 = vcvt.s32.f32 %v5294
    %v5807 = vcvt.s32.f32 %v5295
    %v5808 = vcvt.s32.f32 %v5296
    %v5809 = vcvt.s32.f32 %v5297
    %v5810 = vcvt.s32.f32 %v5298
    %v5811 = vcvt.s32.f32 %v5299
    %v5812 = vcvt.s32.f32 %v5300
    %v5813 = vcvt.s32.f32 %v5301
    %v5814 = vcvt.s32.f32 %v5302
    %v5815 = vcvt.s32.f32 %v5303
    %v5816 = vcvt.s32.f32 %v5304
    %v5817 = vcvt.s32.f32 %v5305
    %v5818 = vcvt.s32.f32 %v5306
    %v5819 = vcvt.s32.f32 %v5307
    %v5820 = vcvt.s32.f32 %v5308
    %v5821 = vcvt.s32.f32 %v5309
    %v5822 = vcvt.s32.f32 %v5310
    %v5823 = vcvt.s32.f32 %v5311
    %v5824 = vcvt.s32.f32 %v5312
    %v5825 = vcvt.s32.f32 %v5313
    %v5826 = vcvt.s32.f32 %v5314
    %v5827 = vcvt.s32.f32 %v5315
    %v5828 = vcvt.s32.f32 %v5316
    %v5829 = vcvt.s32.f32 %v5317
    %v5830 = vcvt.s32.f32 %v5318
    %v5831 = vcvt.s32.f32 %v5319
    %v5832 = vcvt.s32.f32 %v5320
    %v5833 = vcvt.s32.f32 %v5321
    %v5834 = vcvt.s32.f32 %v5322
    %v5835 = vcvt.s32.f32 %v5323
    %v5836 = vcvt.s32.f32 %v5324
    %v5837 = vcvt.s32.f32 %v5325
    %v5838 = vcvt.s32.f32 %v5326
    %v5839 = vcvt.s32.f32 %v5327
    %v5840 = vcvt.s32.f32 %v5328
    %v5841 = vcvt.s32.f32 %v5329
    %v5842 = vcvt.s32.f32 %v5330
    %v5843 = vcvt.s32.f32 %v5331
    %v5844 = vcvt.s32.f32 %v5332
    %v5845 = vcvt.s32.f32 %v5333
    %v5846 = vcvt.s32.f32 %v5334
    %v5847 = vcvt.s32.f32 %v5335
    %v5848 = vcvt.s32.f32 %v5336
    %v5849 = vcvt.s32.f32 %v5337
    %v5850 = vcvt.s32.f32 %v5338
    %v5851 = vcvt.s32.f32 %v5339
    %v5852 = vcvt.s32.f32 %v5340
    %v5853 = vcvt.s32.f32 %v5341
    %v5854 = vcvt.s32.f32 %v5342
    %v5855 = vcvt.s32.f32 %v5343
    %v5856 = vcvt.s32.f32 %v5344
    %v5857 = vcvt.s32.f32 %v5345
    %v5858 = vcvt.s32.f32 %v5346
    %v5859 = vcvt.s32.f32 %v5347
    %v5860 = vcvt.s32.f32 %v5348
    %v5861 = vcvt.s32.f32 %v5349
    %v5862 = vcvt.s32.f32 %v5350
    %v5863 = vcvt.s32.f32 %v5351
    %v5864 = vcvt.s32.f32 %v5352
    %v5865 = vcvt.s32.f32 %v5353
    %v5866 = vcvt.s32.f32 %v5354
    %v5867 = vcvt.s32.f32 %v5355
    %v5868 = vcvt.s32.f32 %v5356
    %v5869 = vcvt.s32.f32 %v5357
    %v5870 = vcvt.s32.f32 %v5358
    %v5871 = vcvt.s32.f32 %v5359
    %v5872 = vcvt.s32.f32 %v5360
    %v5873 = vcvt.s32.f32 %v5361
    %v5874 = vcvt.s32.f32 %v5362
    %v5875 = vcvt.s32.f32 %v5363
    %v5876 = vcvt.s32.f32 %v5364
    %v5877 = vcvt.s32.f32 %v5365
    %v5878 = vcvt.s32.f32 %v5366
    %v5879 = vcvt.s32.f32 %v5367
    %v5880 = vcvt.s32.f32 %v5368
    %v5881 = vcvt.s32.f32 %v5369
    %v5882 = vcvt.s32.f32 %v5370
    %v5883 = vcvt.s32.f32 %v5371
    %v5884 = vcvt.s32.f32 %v5372
    %v5885 = vcvt.s32.f32 %v5373
    %v5886 = vcvt.s32.f32 %v5374
    %v5887 = vcvt.s32.f32 %v5375
    %v5888 = vcvt.s32.f32 %v5376
    %v5889 = vcvt.s32.f32 %v5377
    %v5890 = vcvt.s32.f32 %v5378
    %v5891 = vcvt.s32.f32 %v5379
    %v5892 = vcvt.s32.f32 %v5380
    %v5893 = vcvt.s32.f32 %v5381
    %v5894 = vcvt.s32.f32 %v5382
    %v5895 = vcvt.s32.f32 %v5383
    %v5896 = vcvt.s32.f32 %v5384
    %v5897 = vcvt.s32.f32 %v5385
    %v5898 = vcvt.s32.f32 %v5386
    %v5899 = vcvt.s32.f32 %v5387
    %v5900 = vcvt.s32.f32 %v5388
    %v5901 = vcvt.s32.f32 %v5389
    %v5902 = vcvt.s32.f32 %v5390
    %v5903 = vcvt.s32.f32 %v5391
    %v5904 = vcvt.s32.f32 %v5392
    %v5905 = vcvt.s32.f32 %v5393
    %v5906 = vcvt.s32.f32 %v5394
    %v5907 = vcvt.s32.f32 %v5395
    %v5908 = vcvt.s32.f32 %v5396
    %v5909 = vcvt.s32.f32 %v5397
    %v5910 = vcvt.s32.f32 %v5398
    %v5911 = vcvt.s32.f32 %v5399
    %v5912 = vcvt.s32.f32 %v5400
    %v5913 = vcvt.s32.f32 %v5401
    %v5914 = vcvt.s32.f32 %v5402
    %v5915 = vcvt.s32.f32 %v5403
    %v5916 = vcvt.s32.f32 %v5404
    %v5917 = vcvt.s32.f32 %v5405
    %v5918 = vcvt.s32.f32 %v5406
    %v5919 = vcvt.s32.f32 %v5407
    %v5920 = vcvt.s32.f32 %v5408
    %v5921 = vcvt.s32.f32 %v5409
    %v5922 = vcvt.s32.f32 %v5410
    %v5923 = vcvt.s32.f32 %v5411
    %v5924 = vcvt.s32.f32 %v5412
    %v5925 = vcvt.s32.f32 %v5413
    %v5926 = vcvt.s32.f32 %v5414
    %v5927 = vcvt.s32.f32 %v5415
    %v5928 = vcvt.s32.f32 %v5416
    %v5929 = vcvt.s32.f32 %v5417
    %v5930 = vcvt.s32.f32 %v5418
    %v5931 = vcvt.s32.f32 %v5419
    %v5932 = vcvt.s32.f32 %v5420
    %v5933 = vcvt.s32.f32 %v5421
    %v5934 = vcvt.s32.f32 %v5422
    %v5935 = vcvt.s32.f32 %v5423
    %v5936 = vcvt.s32.f32 %v5424
    %v5937 = vcvt.s32.f32 %v5425
    %v5938 = vcvt.s32.f32 %v5426
    %v5939 = vcvt.s32.f32 %v5427
    %v5940 = vcvt.s32.f32 %v5428
    %v5941 = vcvt.s32.f32 %v5429
    %v5942 = vcvt.s32.f32 %v5430
    %v5943 = vcvt.s32.f32 %v5431
    %v5944 = vcvt.s32.f32 %v5432
    %v5945 = vcvt.s32.f32 %v5433
    %v5946 = vpack.c.bf16 %v5438, %v5434
    %v5947 = vpack.c.bf16 %v5439, %v5435
    %v5948 = vpack.c.bf16 %v5440, %v5436
    %v5949 = vpack.c.bf16 %v5441, %v5437
    %v5950 = vpack.c.bf16 %v5446, %v5442
    %v5951 = vpack.c.bf16 %v5447, %v5443
    %v5952 = vpack.c.bf16 %v5448, %v5444
    %v5953 = vpack.c.bf16 %v5449, %v5445
    %v5954 = vpack.c.bf16 %v5454, %v5450
    %v5955 = vpack.c.bf16 %v5455, %v5451
    %v5956 = vpack.c.bf16 %v5456, %v5452
    %v5957 = vpack.c.bf16 %v5457, %v5453
    %v5958 = vpack.c.bf16 %v5462, %v5458
    %v5959 = vpack.c.bf16 %v5463, %v5459
    %v5960 = vpack.c.bf16 %v5464, %v5460
    %v5961 = vpack.c.bf16 %v5465, %v5461
    %v5962 = vpack.c.bf16 %v5470, %v5466
    %v5963 = vpack.c.bf16 %v5471, %v5467
    %v5964 = vpack.c.bf16 %v5472, %v5468
    %v5965 = vpack.c.bf16 %v5473, %v5469
    %v5966 = vpack.c.bf16 %v5478, %v5474
    %v5967 = vpack.c.bf16 %v5479, %v5475
    %v5968 = vpack.c.bf16 %v5480, %v5476
    %v5969 = vpack.c.bf16 %v5481, %v5477
    %v5970 = vpack.c.bf16 %v5486, %v5482
    %v5971 = vpack.c.bf16 %v5487, %v5483
    %v5972 = vpack.c.bf16 %v5488, %v5484
    %v5973 = vpack.c.bf16 %v5489, %v5485
    %v5974 = vpack.c.bf16 %v5494, %v5490
    %v5975 = vpack.c.bf16 %v5495, %v5491
    %v5976 = vpack.c.bf16 %v5496, %v5492
    %v5977 = vpack.c.bf16 %v5497, %v5493
    %v5978 = vpack.c.bf16 %v5502, %v5498
    %v5979 = vpack.c.bf16 %v5503, %v5499
    %v5980 = vpack.c.bf16 %v5504, %v5500
    %v5981 = vpack.c.bf16 %v5505, %v5501
    %v5982 = vpack.c.bf16 %v5510, %v5506
    %v5983 = vpack.c.bf16 %v5511, %v5507
    %v5984 = vpack.c.bf16 %v5512, %v5508
    %v5985 = vpack.c.bf16 %v5513, %v5509
    %v5986 = vpack.c.bf16 %v5518, %v5514
    %v5987 = vpack.c.bf16 %v5519, %v5515
    %v5988 = vpack.c.bf16 %v5520, %v5516
    %v5989 = vpack.c.bf16 %v5521, %v5517
    %v5990 = vpack.c.bf16 %v5526, %v5522
    %v5991 = vpack.c.bf16 %v5527, %v5523
    %v5992 = vpack.c.bf16 %v5528, %v5524
    %v5993 = vpack.c.bf16 %v5529, %v5525
    %v5994 = vpack.c.bf16 %v5534, %v5530
    %v5995 = vpack.c.bf16 %v5535, %v5531
    %v5996 = vpack.c.bf16 %v5536, %v5532
    %v5997 = vpack.c.bf16 %v5537, %v5533
    %v5998 = vpack.c.bf16 %v5542, %v5538
    %v5999 = vpack.c.bf16 %v5543, %v5539
    %v6000 = vpack.c.bf16 %v5544, %v5540
    %v6001 = vpack.c.bf16 %v5545, %v5541
    %v6002 = vpack.c.bf16 %v5550, %v5546
    %v6003 = vpack.c.bf16 %v5551, %v5547
    %v6004 = vpack.c.bf16 %v5552, %v5548
    %v6005 = vpack.c.bf16 %v5553, %v5549
    %v6006 = vpack.c.bf16 %v5558, %v5554
    %v6007 = vpack.c.bf16 %v5559, %v5555
    %v6008 = vpack.c.bf16 %v5560, %v5556
    %v6009 = vpack.c.bf16 %v5561, %v5557
    %v6010 = vpack.c.bf16 %v5566, %v5562
    %v6011 = vpack.c.bf16 %v5567, %v5563
    %v6012 = vpack.c.bf16 %v5568, %v5564
    %v6013 = vpack.c.bf16 %v5569, %v5565
    %v6014 = vpack.c.bf16 %v5574, %v5570
    %v6015 = vpack.c.bf16 %v5575, %v5571
    %v6016 = vpack.c.bf16 %v5576, %v5572
    %v6017 = vpack.c.bf16 %v5577, %v5573
    %v6018 = vpack.c.bf16 %v5582, %v5578
    %v6019 = vpack.c.bf16 %v5583, %v5579
    %v6020 = vpack.c.bf16 %v5584, %v5580
    %v6021 = vpack.c.bf16 %v5585, %v5581
    %v6022 = vpack.c.bf16 %v5590, %v5586
    %v6023 = vpack.c.bf16 %v5591, %v5587
    %v6024 = vpack.c.bf16 %v5592, %v5588
    %v6025 = vpack.c.bf16 %v5593, %v5589
    %v6026 = vpack.c.bf16 %v5598, %v5594
    %v6027 = vpack.c.bf16 %v5599, %v5595
    %v6028 = vpack.c.bf16 %v5600, %v5596
    %v6029 = vpack.c.bf16 %v5601, %v5597
    %v6030 = vpack.c.bf16 %v5606, %v5602
    %v6031 = vpack.c.bf16 %v5607, %v5603
    %v6032 = vpack.c.bf16 %v5608, %v5604
    %v6033 = vpack.c.bf16 %v5609, %v5605
    %v6034 = vpack.c.bf16 %v5614, %v5610
    %v6035 = vpack.c.bf16 %v5615, %v5611
    %v6036 = vpack.c.bf16 %v5616, %v5612
    %v6037 = vpack.c.bf16 %v5617, %v5613
    %v6038 = vpack.c.bf16 %v5622, %v5618
    %v6039 = vpack.c.bf16 %v5623, %v5619
    %v6040 = vpack.c.bf16 %v5624, %v5620
    %v6041 = vpack.c.bf16 %v5625, %v5621
    %v6042 = vpack.c.bf16 %v5630, %v5626
    %v6043 = vpack.c.bf16 %v5631, %v5627
    %v6044 = vpack.c.bf16 %v5632, %v5628
    %v6045 = vpack.c.bf16 %v5633, %v5629
    %v6046 = vpack.c.bf16 %v5638, %v5634
    %v6047 = vpack.c.bf16 %v5639, %v5635
    %v6048 = vpack.c.bf16 %v5640, %v5636
    %v6049 = vpack.c.bf16 %v5641, %v5637
    %v6050 = vpack.c.bf16 %v5646, %v5642
    %v6051 = vpack.c.bf16 %v5647, %v5643
    %v6052 = vpack.c.bf16 %v5648, %v5644
    %v6053 = vpack.c.bf16 %v5649, %v5645
    %v6054 = vpack.c.bf16 %v5654, %v5650
    %v6055 = vpack.c.bf16 %v5655, %v5651
    %v6056 = vpack.c.bf16 %v5656, %v5652
    %v6057 = vpack.c.bf16 %v5657, %v5653
    %v6058 = vpack.c.bf16 %v5662, %v5658
    %v6059 = vpack.c.bf16 %v5663, %v5659
    %v6060 = vpack.c.bf16 %v5664, %v5660
    %v6061 = vpack.c.bf16 %v5665, %v5661
    %v6062 = vpack.c.bf16 %v5670, %v5666
    %v6063 = vpack.c.bf16 %v5671, %v5667
    %v6064 = vpack.c.bf16 %v5672, %v5668
    %v6065 = vpack.c.bf16 %v5673, %v5669
    %v6066 = vpack.c.bf16 %v5678, %v5674
    %v6067 = vpack.c.bf16 %v5679, %v5675
    %v6068 = vpack.c.bf16 %v5680, %v5676
    %v6069 = vpack.c.bf16 %v5681, %v5677
    %v6070 = vpack.c.bf16 %v5686, %v5682
    %v6071 = vpack.c.bf16 %v5687, %v5683
    %v6072 = vpack.c.bf16 %v5688, %v5684
    %v6073 = vpack.c.bf16 %v5689, %v5685
    %v6074 = vpack.c.bf16 %v5694, %v5690
    %v6075 = vpack.c.bf16 %v5695, %v5691
    %v6076 = vpack.c.bf16 %v5696, %v5692
    %v6077 = vpack.c.bf16 %v5697, %v5693
    %v6078 = vpack.c.bf16 %v5702, %v5698
    %v6079 = vpack.c.bf16 %v5703, %v5699
    %v6080 = vpack.c.bf16 %v5704, %v5700
    %v6081 = vpack.c.bf16 %v5705, %v5701
    %v6082 = vpack.c.bf16 %v5710, %v5706
    %v6083 = vpack.c.bf16 %v5711, %v5707
    %v6084 = vpack.c.bf16 %v5712, %v5708
    %v6085 = vpack.c.bf16 %v5713, %v5709
    %v6086 = vpack.c.bf16 %v5718, %v5714
    %v6087 = vpack.c.bf16 %v5719, %v5715
    %v6088 = vpack.c.bf16 %v5720, %v5716
    %v6089 = vpack.c.bf16 %v5721, %v5717
    %v6090 = vpack.c.bf16 %v5726, %v5722
    %v6091 = vpack.c.bf16 %v5727, %v5723
    %v6092 = vpack.c.bf16 %v5728, %v5724
    %v6093 = vpack.c.bf16 %v5729, %v5725
    %v6094 = vpack.c.bf16 %v5734, %v5730
    %v6095 = vpack.c.bf16 %v5735, %v5731
    %v6096 = vpack.c.bf16 %v5736, %v5732
    %v6097 = vpack.c.bf16 %v5737, %v5733
    %v6098 = vpack.c.bf16 %v5742, %v5738
    %v6099 = vpack.c.bf16 %v5743, %v5739
    %v6100 = vpack.c.bf16 %v5744, %v5740
    %v6101 = vpack.c.bf16 %v5745, %v5741
    %v6102 = vpack.c.bf16 %v5750, %v5746
    %v6103 = vpack.c.bf16 %v5751, %v5747
    %v6104 = vpack.c.bf16 %v5752, %v5748
    %v6105 = vpack.c.bf16 %v5753, %v5749
    %v6106 = vpack.c.bf16 %v5758, %v5754
    %v6107 = vpack.c.bf16 %v5759, %v5755
    %v6108 = vpack.c.bf16 %v5760, %v5756
    %v6109 = vpack.c.bf16 %v5761, %v5757
    %v6110 = vpack.c.bf16 %v5766, %v5762
    %v6111 = vpack.c.bf16 %v5767, %v5763
    %v6112 = vpack.c.bf16 %v5768, %v5764
    %v6113 = vpack.c.bf16 %v5769, %v5765
    %v6114 = vpack.c.bf16 %v5774, %v5770
    %v6115 = vpack.c.bf16 %v5775, %v5771
    %v6116 = vpack.c.bf16 %v5776, %v5772
    %v6117 = vpack.c.bf16 %v5777, %v5773
    %v6118 = vpack.c.bf16 %v5782, %v5778
    %v6119 = vpack.c.bf16 %v5783, %v5779
    %v6120 = vpack.c.bf16 %v5784, %v5780
    %v6121 = vpack.c.bf16 %v5785, %v5781
    %v6122 = vpack.c.bf16 %v5790, %v5786
    %v6123 = vpack.c.bf16 %v5791, %v5787
    %v6124 = vpack.c.bf16 %v5792, %v5788
    %v6125 = vpack.c.bf16 %v5793, %v5789
    %v6126 = vpack.c.bf16 %v5798, %v5794
    %v6127 = vpack.c.bf16 %v5799, %v5795
    %v6128 = vpack.c.bf16 %v5800, %v5796
    %v6129 = vpack.c.bf16 %v5801, %v5797
    %v6130 = vpack.c.bf16 %v5806, %v5802
    %v6131 = vpack.c.bf16 %v5807, %v5803
    %v6132 = vpack.c.bf16 %v5808, %v5804
    %v6133 = vpack.c.bf16 %v5809, %v5805
    %v6134 = vpack.c.bf16 %v5814, %v5810
    %v6135 = vpack.c.bf16 %v5815, %v5811
    %v6136 = vpack.c.bf16 %v5816, %v5812
    %v6137 = vpack.c.bf16 %v5817, %v5813
    %v6138 = vpack.c.bf16 %v5822, %v5818
    %v6139 = vpack.c.bf16 %v5823, %v5819
    %v6140 = vpack.c.bf16 %v5824, %v5820
    %v6141 = vpack.c.bf16 %v5825, %v5821
    %v6142 = vpack.c.bf16 %v5830, %v5826
    %v6143 = vpack.c.bf16 %v5831, %v5827
    %v6144 = vpack.c.bf16 %v5832, %v5828
    %v6145 = vpack.c.bf16 %v5833, %v5829
    %v6146 = vpack.c.bf16 %v5838, %v5834
    %v6147 = vpack.c.bf16 %v5839, %v5835
    %v6148 = vpack.c.bf16 %v5840, %v5836
    %v6149 = vpack.c.bf16 %v5841, %v5837
    %v6150 = vpack.c.bf16 %v5846, %v5842
    %v6151 = vpack.c.bf16 %v5847, %v5843
    %v6152 = vpack.c.bf16 %v5848, %v5844
    %v6153 = vpack.c.bf16 %v5849, %v5845
    %v6154 = vpack.c.bf16 %v5854, %v5850
    %v6155 = vpack.c.bf16 %v5855, %v5851
    %v6156 = vpack.c.bf16 %v5856, %v5852
    %v6157 = vpack.c.bf16 %v5857, %v5853
    %v6158 = vpack.c.bf16 %v5862, %v5858
    %v6159 = vpack.c.bf16 %v5863, %v5859
    %v6160 = vpack.c.bf16 %v5864, %v5860
    %v6161 = vpack.c.bf16 %v5865, %v5861
    %v6162 = vpack.c.bf16 %v5870, %v5866
    %v6163 = vpack.c.bf16 %v5871, %v5867
    %v6164 = vpack.c.bf16 %v5872, %v5868
    %v6165 = vpack.c.bf16 %v5873, %v5869
    %v6166 = vpack.c.bf16 %v5878, %v5874
    %v6167 = vpack.c.bf16 %v5879, %v5875
    %v6168 = vpack.c.bf16 %v5880, %v5876
    %v6169 = vpack.c.bf16 %v5881, %v5877
    %v6170 = vpack.c.bf16 %v5886, %v5882
    %v6171 = vpack.c.bf16 %v5887, %v5883
    %v6172 = vpack.c.bf16 %v5888, %v5884
    %v6173 = vpack.c.bf16 %v5889, %v5885
    %v6174 = vpack.c.bf16 %v5894, %v5890
    %v6175 = vpack.c.bf16 %v5895, %v5891
    %v6176 = vpack.c.bf16 %v5896, %v5892
    %v6177 = vpack.c.bf16 %v5897, %v5893
    %v6178 = vpack.c.bf16 %v5902, %v5898
    %v6179 = vpack.c.bf16 %v5903, %v5899
    %v6180 = vpack.c.bf16 %v5904, %v5900
    %v6181 = vpack.c.bf16 %v5905, %v5901
    %v6182 = vpack.c.bf16 %v5910, %v5906
    %v6183 = vpack.c.bf16 %v5911, %v5907
    %v6184 = vpack.c.bf16 %v5912, %v5908
    %v6185 = vpack.c.bf16 %v5913, %v5909
    %v6186 = vpack.c.bf16 %v5918, %v5914
    %v6187 = vpack.c.bf16 %v5919, %v5915
    %v6188 = vpack.c.bf16 %v5920, %v5916
    %v6189 = vpack.c.bf16 %v5921, %v5917
    %v6190 = vpack.c.bf16 %v5926, %v5922
    %v6191 = vpack.c.bf16 %v5927, %v5923
    %v6192 = vpack.c.bf16 %v5928, %v5924
    %v6193 = vpack.c.bf16 %v5929, %v5925
    %v6194 = vpack.c.bf16 %v5934, %v5930
    %v6195 = vpack.c.bf16 %v5935, %v5931
    %v6196 = vpack.c.bf16 %v5936, %v5932
    %v6197 = vpack.c.bf16 %v5937, %v5933
    %v6198 = vpack.c.bf16 %v5942, %v5938
    %v6199 = vpack.c.bf16 %v5943, %v5939
    %v6200 = vpack.c.bf16 %v5944, %v5940
    %v6201 = vpack.c.bf16 %v5945, %v5941
    %v6202 = vpack.c.bf16 %v4786, %v4786
    %v6203 = vpack.c.bf16 %v4787, %v4787
    %v6204 = vpack.c.bf16 %v4788, %v4788
    %v6205 = vpack.c.bf16 %v4789, %v4789
    %v6206 = vpack.c.bf16 %v4790, %v4790
    %v6207 = vpack.c.bf16 %v4791, %v4791
    %v6208 = vpack.c.bf16 %v4792, %v4792
    %v6209 = vpack.c.bf16 %v4793, %v4793
    %6210 = vmatpush.bf16.msra.mxu0 %v5974
    %6211 = vmatpush.bf16.msra.mxu0 %v5970
    %6212 = vmatpush.bf16.msra.mxu0 %v5966
    %6213 = vmatpush.bf16.msra.mxu0 %v5962
    %6214 = vmatpush.bf16.msra.mxu0 %v5958
    %6215 = vmatpush.bf16.msra.mxu0 %v5954
    %6216 = vmatpush.bf16.msra.mxu0 %v5950
    %6217 = vmatpush.bf16.msra.mxu0 %v5946
    %6218 = vmatmul.bf16.gmra.mxu0 %v6202
    %v6219 = vpop.f32.mrf.mxu0
    %v6220 = vadd.f32 0.0, %v6219
    %v6221 = vpop.f32.mrf.mxu0
    %6222 = vdwg.mxu0
    %6223 = vmatpush.bf16.msra.mxu0 %v6006
    %6224 = vmatpush.bf16.msra.mxu0 %v6002
    %6225 = vmatpush.bf16.msra.mxu0 %v5998
    %6226 = vmatpush.bf16.msra.mxu0 %v5994
    %6227 = vmatpush.bf16.msra.mxu0 %v5990
    %6228 = vmatpush.bf16.msra.mxu0 %v5986
    %6229 = vmatpush.bf16.msra.mxu0 %v5982
    %6230 = vmatpush.bf16.msra.mxu0 %v5978
    %6231 = vmatmul.bf16.gmra.mxu0 %v6203
    %v6232 = vpop.f32.mrf.mxu0
    %v6233 = vadd.f32 %v6220, %v6232
    %v6234 = vpop.f32.mrf.mxu0
    %6235 = vdwg.mxu0
    %6236 = vmatpush.bf16.msra.mxu0 %v6038
    %6237 = vmatpush.bf16.msra.mxu0 %v6034
    %6238 = vmatpush.bf16.msra.mxu0 %v6030
    %6239 = vmatpush.bf16.msra.mxu0 %v6026
    %6240 = vmatpush.bf16.msra.mxu0 %v6022
    %6241 = vmatpush.bf16.msra.mxu0 %v6018
    %6242 = vmatpush.bf16.msra.mxu0 %v6014
    %6243 = vmatpush.bf16.msra.mxu0 %v6010
    %6244 = vmatmul.bf16.gmra.mxu0 %v6204
    %v6245 = vpop.f32.mrf.mxu0
    %v6246 = vadd.f32 %v6233, %v6245
    %v6247 = vpop.f32.mrf.mxu0
    %6248 = vdwg.mxu0
    %6249 = vmatpush.bf16.msra.mxu0 %v6070
    %6250 = vmatpush.bf16.msra.mxu0 %v6066
    %6251 = vmatpush.bf16.msra.mxu0 %v6062
    %6252 = vmatpush.bf16.msra.mxu0 %v6058
    %6253 = vmatpush.bf16.msra.mxu0 %v6054
    %6254 = vmatpush.bf16.msra.mxu0 %v6050
    %6255 = vmatpush.bf16.msra.mxu0 %v6046
    %6256 = vmatpush.bf16.msra.mxu0 %v6042
    %6257 = vmatmul.bf16.gmra.mxu0 %v6205
    %v6258 = vpop.f32.mrf.mxu0
    %v6259 = vadd.f32 %v6246, %v6258
    %v6260 = vpop.f32.mrf.mxu0
    %6261 = vdwg.mxu0
    %6262 = vmatpush.bf16.msra.mxu0 %v6102
    %6263 = vmatpush.bf16.msra.mxu0 %v6098
    %6264 = vmatpush.bf16.msra.mxu0 %v6094
    %6265 = vmatpush.bf16.msra.mxu0 %v6090
    %6266 = vmatpush.bf16.msra.mxu0 %v6086
    %6267 = vmatpush.bf16.msra.mxu0 %v6082
    %6268 = vmatpush.bf16.msra.mxu0 %v6078
    %6269 = vmatpush.bf16.msra.mxu0 %v6074
    %6270 = vmatmul.bf16.gmra.mxu0 %v6206
    %v6271 = vpop.f32.mrf.mxu0
    %v6272 = vadd.f32 %v6259, %v6271
    %v6273 = vpop.f32.mrf.mxu0
    %6274 = vdwg.mxu0
    %6275 = vmatpush.bf16.msra.mxu0 %v6134
    %6276 = vmatpush.bf16.msra.mxu0 %v6130
    %6277 = vmatpush.bf16.msra.mxu0 %v6126
    %6278 = vmatpush.bf16.msra.mxu0 %v6122
    %6279 = vmatpush.bf16.msra.mxu0 %v6118
    %6280 = vmatpush.bf16.msra.mxu0 %v6114
    %6281 = vmatpush.bf16.msra.mxu0 %v6110
    %6282 = vmatpush.bf16.msra.mxu0 %v6106
    %6283 = vmatmul.bf16.gmra.mxu0 %v6207
    %v6284 = vpop.f32.mrf.mxu0
    %v6285 = vadd.f32 %v6272, %v6284
    %v6286 = vpop.f32.mrf.mxu0
    %6287 = vdwg.mxu0
    %6288 = vmatpush.bf16.msra.mxu0 %v6166
    %6289 = vmatpush.bf16.msra.mxu0 %v6162
    %6290 = vmatpush.bf16.msra.mxu0 %v6158
    %6291 = vmatpush.bf16.msra.mxu0 %v6154
    %6292 = vmatpush.bf16.msra.mxu0 %v6150
    %6293 = vmatpush.bf16.msra.mxu0 %v6146
    %6294 = vmatpush.bf16.msra.mxu0 %v6142
    %6295 = vmatpush.bf16.msra.mxu0 %v6138
    %6296 = vmatmul.bf16.gmra.mxu0 %v6208
    %v6297 = vpop.f32.mrf.mxu0
    %v6298 = vadd.f32 %v6285, %v6297
    %v6299 = vpop.f32.mrf.mxu0
    %6300 = vdwg.mxu0
    %6301 = vmatpush.bf16.msra.mxu0 %v6198
    %6302 = vmatpush.bf16.msra.mxu0 %v6194
    %6303 = vmatpush.bf16.msra.mxu0 %v6190
    %6304 = vmatpush.bf16.msra.mxu0 %v6186
    %6305 = vmatpush.bf16.msra.mxu0 %v6182
    %6306 = vmatpush.bf16.msra.mxu0 %v6178
    %6307 = vmatpush.bf16.msra.mxu0 %v6174
    %6308 = vmatpush.bf16.msra.mxu0 %v6170
    %6309 = vmatmul.bf16.gmra.mxu0 %v6209
    %v6310 = vpop.f32.mrf.mxu0
    %v6311 = vadd.f32 %v6298, %v6310
    %v6312 = vpop.f32.mrf.mxu0
    %6313 = vdwg.mxu0
    %6314 = vmatpush.bf16.msra.mxu0 %v5975
    %6315 = vmatpush.bf16.msra.mxu0 %v5971
    %6316 = vmatpush.bf16.msra.mxu0 %v5967
    %6317 = vmatpush.bf16.msra.mxu0 %v5963
    %6318 = vmatpush.bf16.msra.mxu0 %v5959
    %6319 = vmatpush.bf16.msra.mxu0 %v5955
    %6320 = vmatpush.bf16.msra.mxu0 %v5951
    %6321 = vmatpush.bf16.msra.mxu0 %v5947
    %6322 = vmatmul.bf16.gmra.mxu0 %v6202
    %v6323 = vpop.f32.mrf.mxu0
    %v6324 = vadd.f32 0.0, %v6323
    %v6325 = vpop.f32.mrf.mxu0
    %6326 = vdwg.mxu0
    %6327 = vmatpush.bf16.msra.mxu0 %v6007
    %6328 = vmatpush.bf16.msra.mxu0 %v6003
    %6329 = vmatpush.bf16.msra.mxu0 %v5999
    %6330 = vmatpush.bf16.msra.mxu0 %v5995
    %6331 = vmatpush.bf16.msra.mxu0 %v5991
    %6332 = vmatpush.bf16.msra.mxu0 %v5987
    %6333 = vmatpush.bf16.msra.mxu0 %v5983
    %6334 = vmatpush.bf16.msra.mxu0 %v5979
    %6335 = vmatmul.bf16.gmra.mxu0 %v6203
    %v6336 = vpop.f32.mrf.mxu0
    %v6337 = vadd.f32 %v6324, %v6336
    %v6338 = vpop.f32.mrf.mxu0
    %6339 = vdwg.mxu0
    %6340 = vmatpush.bf16.msra.mxu0 %v6039
    %6341 = vmatpush.bf16.msra.mxu0 %v6035
    %6342 = vmatpush.bf16.msra.mxu0 %v6031
    %6343 = vmatpush.bf16.msra.mxu0 %v6027
    %6344 = vmatpush.bf16.msra.mxu0 %v6023
    %6345 = vmatpush.bf16.msra.mxu0 %v6019
    %6346 = vmatpush.bf16.msra.mxu0 %v6015
    %6347 = vmatpush.bf16.msra.mxu0 %v6011
    %6348 = vmatmul.bf16.gmra.mxu0 %v6204
    %v6349 = vpop.f32.mrf.mxu0
    %v6350 = vadd.f32 %v6337, %v6349
    %v6351 = vpop.f32.mrf.mxu0
    %6352 = vdwg.mxu0
    %6353 = vmatpush.bf16.msra.mxu0 %v6071
    %6354 = vmatpush.bf16.msra.mxu0 %v6067
    %6355 = vmatpush.bf16.msra.mxu0 %v6063
    %6356 = vmatpush.bf16.msra.mxu0 %v6059
    %6357 = vmatpush.bf16.msra.mxu0 %v6055
    %6358 = vmatpush.bf16.msra.mxu0 %v6051
    %6359 = vmatpush.bf16.msra.mxu0 %v6047
    %6360 = vmatpush.bf16.msra.mxu0 %v6043
    %6361 = vmatmul.bf16.gmra.mxu0 %v6205
    %v6362 = vpop.f32.mrf.mxu0
    %v6363 = vadd.f32 %v6350, %v6362
    %v6364 = vpop.f32.mrf.mxu0
    %6365 = vdwg.mxu0
    %6366 = vmatpush.bf16.msra.mxu0 %v6103
    %6367 = vmatpush.bf16.msra.mxu0 %v6099
    %6368 = vmatpush.bf16.msra.mxu0 %v6095
    %6369 = vmatpush.bf16.msra.mxu0 %v6091
    %6370 = vmatpush.bf16.msra.mxu0 %v6087
    %6371 = vmatpush.bf16.msra.mxu0 %v6083
    %6372 = vmatpush.bf16.msra.mxu0 %v6079
    %6373 = vmatpush.bf16.msra.mxu0 %v6075
    %6374 = vmatmul.bf16.gmra.mxu0 %v6206
    %v6375 = vpop.f32.mrf.mxu0
    %v6376 = vadd.f32 %v6363, %v6375
    %v6377 = vpop.f32.mrf.mxu0
    %6378 = vdwg.mxu0
    %6379 = vmatpush.bf16.msra.mxu0 %v6135
    %6380 = vmatpush.bf16.msra.mxu0 %v6131
    %6381 = vmatpush.bf16.msra.mxu0 %v6127
    %6382 = vmatpush.bf16.msra.mxu0 %v6123
    %6383 = vmatpush.bf16.msra.mxu0 %v6119
    %6384 = vmatpush.bf16.msra.mxu0 %v6115
    %6385 = vmatpush.bf16.msra.mxu0 %v6111
    %6386 = vmatpush.bf16.msra.mxu0 %v6107
    %6387 = vmatmul.bf16.gmra.mxu0 %v6207
    %v6388 = vpop.f32.mrf.mxu0
    %v6389 = vadd.f32 %v6376, %v6388
    %v6390 = vpop.f32.mrf.mxu0
    %6391 = vdwg.mxu0
    %6392 = vmatpush.bf16.msra.mxu0 %v6167
    %6393 = vmatpush.bf16.msra.mxu0 %v6163
    %6394 = vmatpush.bf16.msra.mxu0 %v6159
    %6395 = vmatpush.bf16.msra.mxu0 %v6155
    %6396 = vmatpush.bf16.msra.mxu0 %v6151
    %6397 = vmatpush.bf16.msra.mxu0 %v6147
    %6398 = vmatpush.bf16.msra.mxu0 %v6143
    %6399 = vmatpush.bf16.msra.mxu0 %v6139
    %6400 = vmatmul.bf16.gmra.mxu0 %v6208
    %v6401 = vpop.f32.mrf.mxu0
    %v6402 = vadd.f32 %v6389, %v6401
    %v6403 = vpop.f32.mrf.mxu0
    %6404 = vdwg.mxu0
    %6405 = vmatpush.bf16.msra.mxu0 %v6199
    %6406 = vmatpush.bf16.msra.mxu0 %v6195
    %6407 = vmatpush.bf16.msra.mxu0 %v6191
    %6408 = vmatpush.bf16.msra.mxu0 %v6187
    %6409 = vmatpush.bf16.msra.mxu0 %v6183
    %6410 = vmatpush.bf16.msra.mxu0 %v6179
    %6411 = vmatpush.bf16.msra.mxu0 %v6175
    %6412 = vmatpush.bf16.msra.mxu0 %v6171
    %6413 = vmatmul.bf16.gmra.mxu0 %v6209
    %v6414 = vpop.f32.mrf.mxu0
    %v6415 = vadd.f32 %v6402, %v6414
    %v6416 = vpop.f32.mrf.mxu0
    %6417 = vdwg.mxu0
    %6418 = vmatpush.bf16.msra.mxu0 %v5976
    %6419 = vmatpush.bf16.msra.mxu0 %v5972
    %6420 = vmatpush.bf16.msra.mxu0 %v5968
    %6421 = vmatpush.bf16.msra.mxu0 %v5964
    %6422 = vmatpush.bf16.msra.mxu0 %v5960
    %6423 = vmatpush.bf16.msra.mxu0 %v5956
    %6424 = vmatpush.bf16.msra.mxu0 %v5952
    %6425 = vmatpush.bf16.msra.mxu0 %v5948
    %6426 = vmatmul.bf16.gmra.mxu0 %v6202
    %v6427 = vpop.f32.mrf.mxu0
    %v6428 = vadd.f32 0.0, %v6427
    %v6429 = vpop.f32.mrf.mxu0
    %6430 = vdwg.mxu0
    %6431 = vmatpush.bf16.msra.mxu0 %v6008
    %6432 = vmatpush.bf16.msra.mxu0 %v6004
    %6433 = vmatpush.bf16.msra.mxu0 %v6000
    %6434 = vmatpush.bf16.msra.mxu0 %v5996
    %6435 = vmatpush.bf16.msra.mxu0 %v5992
    %6436 = vmatpush.bf16.msra.mxu0 %v5988
    %6437 = vmatpush.bf16.msra.mxu0 %v5984
    %6438 = vmatpush.bf16.msra.mxu0 %v5980
    %6439 = vmatmul.bf16.gmra.mxu0 %v6203
    %v6440 = vpop.f32.mrf.mxu0
    %v6441 = vadd.f32 %v6428, %v6440
    %v6442 = vpop.f32.mrf.mxu0
    %6443 = vdwg.mxu0
    %6444 = vmatpush.bf16.msra.mxu0 %v6040
    %6445 = vmatpush.bf16.msra.mxu0 %v6036
    %6446 = vmatpush.bf16.msra.mxu0 %v6032
    %6447 = vmatpush.bf16.msra.mxu0 %v6028
    %6448 = vmatpush.bf16.msra.mxu0 %v6024
    %6449 = vmatpush.bf16.msra.mxu0 %v6020
    %6450 = vmatpush.bf16.msra.mxu0 %v6016
    %6451 = vmatpush.bf16.msra.mxu0 %v6012
    %6452 = vmatmul.bf16.gmra.mxu0 %v6204
    %v6453 = vpop.f32.mrf.mxu0
    %v6454 = vadd.f32 %v6441, %v6453
    %v6455 = vpop.f32.mrf.mxu0
    %6456 = vdwg.mxu0
    %6457 = vmatpush.bf16.msra.mxu0 %v6072
    %6458 = vmatpush.bf16.msra.mxu0 %v6068
    %6459 = vmatpush.bf16.msra.mxu0 %v6064
    %6460 = vmatpush.bf16.msra.mxu0 %v6060
    %6461 = vmatpush.bf16.msra.mxu0 %v6056
    %6462 = vmatpush.bf16.msra.mxu0 %v6052
    %6463 = vmatpush.bf16.msra.mxu0 %v6048
    %6464 = vmatpush.bf16.msra.mxu0 %v6044
    %6465 = vmatmul.bf16.gmra.mxu0 %v6205
    %v6466 = vpop.f32.mrf.mxu0
    %v6467 = vadd.f32 %v6454, %v6466
    %v6468 = vpop.f32.mrf.mxu0
    %6469 = vdwg.mxu0
    %6470 = vmatpush.bf16.msra.mxu0 %v6104
    %6471 = vmatpush.bf16.msra.mxu0 %v6100
    %6472 = vmatpush.bf16.msra.mxu0 %v6096
    %6473 = vmatpush.bf16.msra.mxu0 %v6092
    %6474 = vmatpush.bf16.msra.mxu0 %v6088
    %6475 = vmatpush.bf16.msra.mxu0 %v6084
    %6476 = vmatpush.bf16.msra.mxu0 %v6080
    %6477 = vmatpush.bf16.msra.mxu0 %v6076
    %6478 = vmatmul.bf16.gmra.mxu0 %v6206
    %v6479 = vpop.f32.mrf.mxu0
    %v6480 = vadd.f32 %v6467, %v6479
    %v6481 = vpop.f32.mrf.mxu0
    %6482 = vdwg.mxu0
    %6483 = vmatpush.bf16.msra.mxu0 %v6136
    %6484 = vmatpush.bf16.msra.mxu0 %v6132
    %6485 = vmatpush.bf16.msra.mxu0 %v6128
    %6486 = vmatpush.bf16.msra.mxu0 %v6124
    %6487 = vmatpush.bf16.msra.mxu0 %v6120
    %6488 = vmatpush.bf16.msra.mxu0 %v6116
    %6489 = vmatpush.bf16.msra.mxu0 %v6112
    %6490 = vmatpush.bf16.msra.mxu0 %v6108
    %6491 = vmatmul.bf16.gmra.mxu0 %v6207
    %v6492 = vpop.f32.mrf.mxu0
    %v6493 = vadd.f32 %v6480, %v6492
    %v6494 = vpop.f32.mrf.mxu0
    %6495 = vdwg.mxu0
    %6496 = vmatpush.bf16.msra.mxu0 %v6168
    %6497 = vmatpush.bf16.msra.mxu0 %v6164
    %6498 = vmatpush.bf16.msra.mxu0 %v6160
    %6499 = vmatpush.bf16.msra.mxu0 %v6156
    %6500 = vmatpush.bf16.msra.mxu0 %v6152
    %6501 = vmatpush.bf16.msra.mxu0 %v6148
    %6502 = vmatpush.bf16.msra.mxu0 %v6144
    %6503 = vmatpush.bf16.msra.mxu0 %v6140
    %6504 = vmatmul.bf16.gmra.mxu0 %v6208
    %v6505 = vpop.f32.mrf.mxu0
    %v6506 = vadd.f32 %v6493, %v6505
    %v6507 = vpop.f32.mrf.mxu0
    %6508 = vdwg.mxu0
    %6509 = vmatpush.bf16.msra.mxu0 %v6200
    %6510 = vmatpush.bf16.msra.mxu0 %v6196
    %6511 = vmatpush.bf16.msra.mxu0 %v6192
    %6512 = vmatpush.bf16.msra.mxu0 %v6188
    %6513 = vmatpush.bf16.msra.mxu0 %v6184
    %6514 = vmatpush.bf16.msra.mxu0 %v6180
    %6515 = vmatpush.bf16.msra.mxu0 %v6176
    %6516 = vmatpush.bf16.msra.mxu0 %v6172
    %6517 = vmatmul.bf16.gmra.mxu0 %v6209
    %v6518 = vpop.f32.mrf.mxu0
    %v6519 = vadd.f32 %v6506, %v6518
    %v6520 = vpop.f32.mrf.mxu0
    %6521 = vdwg.mxu0
    %6522 = vmatpush.bf16.msra.mxu0 %v5977
    %6523 = vmatpush.bf16.msra.mxu0 %v5973
    %6524 = vmatpush.bf16.msra.mxu0 %v5969
    %6525 = vmatpush.bf16.msra.mxu0 %v5965
    %6526 = vmatpush.bf16.msra.mxu0 %v5961
    %6527 = vmatpush.bf16.msra.mxu0 %v5957
    %6528 = vmatpush.bf16.msra.mxu0 %v5953
    %6529 = vmatpush.bf16.msra.mxu0 %v5949
    %6530 = vmatmul.bf16.gmra.mxu0 %v6202
    %v6531 = vpop.f32.mrf.mxu0
    %v6532 = vadd.f32 0.0, %v6531
    %v6533 = vpop.f32.mrf.mxu0
    %6534 = vdwg.mxu0
    %6535 = vmatpush.bf16.msra.mxu0 %v6009
    %6536 = vmatpush.bf16.msra.mxu0 %v6005
    %6537 = vmatpush.bf16.msra.mxu0 %v6001
    %6538 = vmatpush.bf16.msra.mxu0 %v5997
    %6539 = vmatpush.bf16.msra.mxu0 %v5993
    %6540 = vmatpush.bf16.msra.mxu0 %v5989
    %6541 = vmatpush.bf16.msra.mxu0 %v5985
    %6542 = vmatpush.bf16.msra.mxu0 %v5981
    %6543 = vmatmul.bf16.gmra.mxu0 %v6203
    %v6544 = vpop.f32.mrf.mxu0
    %v6545 = vadd.f32 %v6532, %v6544
    %v6546 = vpop.f32.mrf.mxu0
    %6547 = vdwg.mxu0
    %6548 = vmatpush.bf16.msra.mxu0 %v6041
    %6549 = vmatpush.bf16.msra.mxu0 %v6037
    %6550 = vmatpush.bf16.msra.mxu0 %v6033
    %6551 = vmatpush.bf16.msra.mxu0 %v6029
    %6552 = vmatpush.bf16.msra.mxu0 %v6025
    %6553 = vmatpush.bf16.msra.mxu0 %v6021
    %6554 = vmatpush.bf16.msra.mxu0 %v6017
    %6555 = vmatpush.bf16.msra.mxu0 %v6013
    %6556 = vmatmul.bf16.gmra.mxu0 %v6204
    %v6557 = vpop.f32.mrf.mxu0
    %v6558 = vadd.f32 %v6545, %v6557
    %v6559 = vpop.f32.mrf.mxu0
    %6560 = vdwg.mxu0
    %6561 = vmatpush.bf16.msra.mxu0 %v6073
    %6562 = vmatpush.bf16.msra.mxu0 %v6069
    %6563 = vmatpush.bf16.msra.mxu0 %v6065
    %6564 = vmatpush.bf16.msra.mxu0 %v6061
    %6565 = vmatpush.bf16.msra.mxu0 %v6057
    %6566 = vmatpush.bf16.msra.mxu0 %v6053
    %6567 = vmatpush.bf16.msra.mxu0 %v6049
    %6568 = vmatpush.bf16.msra.mxu0 %v6045
    %6569 = vmatmul.bf16.gmra.mxu0 %v6205
    %v6570 = vpop.f32.mrf.mxu0
    %v6571 = vadd.f32 %v6558, %v6570
    %v6572 = vpop.f32.mrf.mxu0
    %6573 = vdwg.mxu0
    %6574 = vmatpush.bf16.msra.mxu0 %v6105
    %6575 = vmatpush.bf16.msra.mxu0 %v6101
    %6576 = vmatpush.bf16.msra.mxu0 %v6097
    %6577 = vmatpush.bf16.msra.mxu0 %v6093
    %6578 = vmatpush.bf16.msra.mxu0 %v6089
    %6579 = vmatpush.bf16.msra.mxu0 %v6085
    %6580 = vmatpush.bf16.msra.mxu0 %v6081
    %6581 = vmatpush.bf16.msra.mxu0 %v6077
    %6582 = vmatmul.bf16.gmra.mxu0 %v6206
    %v6583 = vpop.f32.mrf.mxu0
    %v6584 = vadd.f32 %v6571, %v6583
    %v6585 = vpop.f32.mrf.mxu0
    %6586 = vdwg.mxu0
    %6587 = vmatpush.bf16.msra.mxu0 %v6137
    %6588 = vmatpush.bf16.msra.mxu0 %v6133
    %6589 = vmatpush.bf16.msra.mxu0 %v6129
    %6590 = vmatpush.bf16.msra.mxu0 %v6125
    %6591 = vmatpush.bf16.msra.mxu0 %v6121
    %6592 = vmatpush.bf16.msra.mxu0 %v6117
    %6593 = vmatpush.bf16.msra.mxu0 %v6113
    %6594 = vmatpush.bf16.msra.mxu0 %v6109
    %6595 = vmatmul.bf16.gmra.mxu0 %v6207
    %v6596 = vpop.f32.mrf.mxu0
    %v6597 = vadd.f32 %v6584, %v6596
    %v6598 = vpop.f32.mrf.mxu0
    %6599 = vdwg.mxu0
    %6600 = vmatpush.bf16.msra.mxu0 %v6169
    %6601 = vmatpush.bf16.msra.mxu0 %v6165
    %6602 = vmatpush.bf16.msra.mxu0 %v6161
    %6603 = vmatpush.bf16.msra.mxu0 %v6157
    %6604 = vmatpush.bf16.msra.mxu0 %v6153
    %6605 = vmatpush.bf16.msra.mxu0 %v6149
    %6606 = vmatpush.bf16.msra.mxu0 %v6145
    %6607 = vmatpush.bf16.msra.mxu0 %v6141
    %6608 = vmatmul.bf16.gmra.mxu0 %v6208
    %v6609 = vpop.f32.mrf.mxu0
    %v6610 = vadd.f32 %v6597, %v6609
    %v6611 = vpop.f32.mrf.mxu0
    %6612 = vdwg.mxu0
    %6613 = vmatpush.bf16.msra.mxu0 %v6201
    %6614 = vmatpush.bf16.msra.mxu0 %v6197
    %6615 = vmatpush.bf16.msra.mxu0 %v6193
    %6616 = vmatpush.bf16.msra.mxu0 %v6189
    %6617 = vmatpush.bf16.msra.mxu0 %v6185
    %6618 = vmatpush.bf16.msra.mxu0 %v6181
    %6619 = vmatpush.bf16.msra.mxu0 %v6177
    %6620 = vmatpush.bf16.msra.mxu0 %v6173
    %6621 = vmatmul.bf16.gmra.mxu0 %v6209
    %v6622 = vpop.f32.mrf.mxu0
    %v6623 = vadd.f32 %v6610, %v6622
    %v6624 = vpop.f32.mrf.mxu0
    %6625 = vdwg.mxu0
    %v6626 = vld [vmem:[#allocation10] sm:$0xf]
    %v6628 = vperm.slane %v6626, 0
    %v6629 = vperm.slane %v6626, 1
    %v6630 = vperm.slane %v6626, 2
    %v6631 = vperm.slane %v6626, 3
    %v6636 = vmul.f32 %v6311, %v6628
    %v6637 = vmul.f32 %v6415, %v6629
    %v6638 = vmul.f32 %v6519, %v6630
    %v6639 = vmul.f32 %v6623, %v6631
    %v6640 = vld [vmem:[#allocation11] sm:$0xf]
    %v6642 = vperm.slane %v6640, 0
    %v6643 = vperm.slane %v6640, 1
    %v6644 = vperm.slane %v6640, 2
    %v6645 = vperm.slane %v6640, 3
    %v6650 = vadd.f32 %v6636, %v6642
    %v6651 = vadd.f32 %v6637, %v6643
    %v6652 = vadd.f32 %v6638, %v6644
    %v6653 = vadd.f32 %v6639, %v6645
    %v6654 = vmax.f32 %v6650, 0.0
    %v6655 = vmax.f32 %v6651, 0.0
    %v6656 = vmax.f32 %v6652, 0.0
    %v6657 = vmax.f32 %v6653, 0.0
    %v6658 = vld [vmem:[#allocation13] sm:$0xff]
    %v6659 = vld [vmem:[#allocation13 + $0x8] sm:$0xff]
    %v6660 = vld [vmem:[#allocation13 + $0x10] sm:$0xff]
    %v6661 = vld [vmem:[#allocation13 + $0x18] sm:$0xff]
    %v6662 = vld [vmem:[#allocation13 + $0x20] sm:$0xff]
    %v6663 = vld [vmem:[#allocation13 + $0x28] sm:$0xff]
    %v6664 = vld [vmem:[#allocation13 + $0x30] sm:$0xff]
    %v6665 = vld [vmem:[#allocation13 + $0x38] sm:$0xff]
    %v6666 = vld [vmem:[#allocation13 + $0x40] sm:$0xff]
    %v6667 = vld [vmem:[#allocation13 + $0x48] sm:$0xff]
    %v6668 = vld [vmem:[#allocation13 + $0x50] sm:$0xff]
    %v6669 = vld [vmem:[#allocation13 + $0x58] sm:$0xff]
    %v6670 = vld [vmem:[#allocation13 + $0x60] sm:$0xff]
    %v6671 = vld [vmem:[#allocation13 + $0x68] sm:$0xff]
    %v6672 = vld [vmem:[#allocation13 + $0x70] sm:$0xff]
    %v6673 = vld [vmem:[#allocation13 + $0x78] sm:$0xff]
    %v6674 = vld [vmem:[#allocation13 + $0x80] sm:$0xff]
    %v6675 = vld [vmem:[#allocation13 + $0x88] sm:$0xff]
    %v6676 = vld [vmem:[#allocation13 + $0x90] sm:$0xff]
    %v6677 = vld [vmem:[#allocation13 + $0x98] sm:$0xff]
    %v6678 = vld [vmem:[#allocation13 + $0xa0] sm:$0xff]
    %v6679 = vld [vmem:[#allocation13 + $0xa8] sm:$0xff]
    %v6680 = vld [vmem:[#allocation13 + $0xb0] sm:$0xff]
    %v6681 = vld [vmem:[#allocation13 + $0xb8] sm:$0xff]
    %v6682 = vld [vmem:[#allocation13 + $0xc0] sm:$0xff]
    %v6683 = vld [vmem:[#allocation13 + $0xc8] sm:$0xff]
    %v6684 = vld [vmem:[#allocation13 + $0xd0] sm:$0xff]
    %v6685 = vld [vmem:[#allocation13 + $0xd8] sm:$0xff]
    %v6686 = vld [vmem:[#allocation13 + $0xe0] sm:$0xff]
    %v6687 = vld [vmem:[#allocation13 + $0xe8] sm:$0xff]
    %v6688 = vld [vmem:[#allocation13 + $0xf0] sm:$0xff]
    %v6689 = vld [vmem:[#allocation13 + $0xf8] sm:$0xff]
    %v6690 = vld [vmem:[#allocation13 + $0x100] sm:$0xff]
    %v6691 = vld [vmem:[#allocation13 + $0x108] sm:$0xff]
    %v6692 = vld [vmem:[#allocation13 + $0x110] sm:$0xff]
    %v6693 = vld [vmem:[#allocation13 + $0x118] sm:$0xff]
    %v6694 = vld [vmem:[#allocation13 + $0x120] sm:$0xff]
    %v6695 = vld [vmem:[#allocation13 + $0x128] sm:$0xff]
    %v6696 = vld [vmem:[#allocation13 + $0x130] sm:$0xff]
    %v6697 = vld [vmem:[#allocation13 + $0x138] sm:$0xff]
    %v6698 = vld [vmem:[#allocation13 + $0x140] sm:$0xff]
    %v6699 = vld [vmem:[#allocation13 + $0x148] sm:$0xff]
    %v6700 = vld [vmem:[#allocation13 + $0x150] sm:$0xff]
    %v6701 = vld [vmem:[#allocation13 + $0x158] sm:$0xff]
    %v6702 = vld [vmem:[#allocation13 + $0x160] sm:$0xff]
    %v6703 = vld [vmem:[#allocation13 + $0x168] sm:$0xff]
    %v6704 = vld [vmem:[#allocation13 + $0x170] sm:$0xff]
    %v6705 = vld [vmem:[#allocation13 + $0x178] sm:$0xff]
    %v6706 = vld [vmem:[#allocation13 + $0x180] sm:$0xff]
    %v6707 = vld [vmem:[#allocation13 + $0x188] sm:$0xff]
    %v6708 = vld [vmem:[#allocation13 + $0x190] sm:$0xff]
    %v6709 = vld [vmem:[#allocation13 + $0x198] sm:$0xff]
    %v6710 = vld [vmem:[#allocation13 + $0x1a0] sm:$0xff]
    %v6711 = vld [vmem:[#allocation13 + $0x1a8] sm:$0xff]
    %v6712 = vld [vmem:[#allocation13 + $0x1b0] sm:$0xff]
    %v6713 = vld [vmem:[#allocation13 + $0x1b8] sm:$0xff]
    %v6714 = vld [vmem:[#allocation13 + $0x1c0] sm:$0xff]
    %v6715 = vld [vmem:[#allocation13 + $0x1c8] sm:$0xff]
    %v6716 = vld [vmem:[#allocation13 + $0x1d0] sm:$0xff]
    %v6717 = vld [vmem:[#allocation13 + $0x1d8] sm:$0xff]
    %v6718 = vld [vmem:[#allocation13 + $0x1e0] sm:$0xff]
    %v6719 = vld [vmem:[#allocation13 + $0x1e8] sm:$0xff]
    %v6720 = vld [vmem:[#allocation13 + $0x1f0] sm:$0xff]
    %v6721 = vld [vmem:[#allocation13 + $0x1f8] sm:$0xff]
    %v6722 = vld [vmem:[#allocation14] sm:$0x1]
    %v6724 = vperm.slane %v6722, 0
    %6726 = vmatpush.msra.mxu0 %v6673
    %6727 = vmatpush.msra.mxu0 %v6672
    %6728 = vmatpush.msra.mxu0 %v6671
    %6729 = vmatpush.msra.mxu0 %v6670
    %6730 = vmatpush.msra.mxu0 %v6669
    %6731 = vmatpush.msra.mxu0 %v6668
    %6732 = vmatpush.msra.mxu0 %v6667
    %6733 = vmatpush.msra.mxu0 %v6666
    %6734 = vmatpush.msra.mxu0 %v6665
    %6735 = vmatpush.msra.mxu0 %v6664
    %6736 = vmatpush.msra.mxu0 %v6663
    %6737 = vmatpush.msra.mxu0 %v6662
    %6738 = vmatpush.msra.mxu0 %v6661
    %6739 = vmatpush.msra.mxu0 %v6660
    %6740 = vmatpush.msra.mxu0 %v6659
    %6741 = vmatpush.msra.mxu0 %v6658
    %6742 = vmatmul.f32.gmra.mxu0 %v6654
    %v6743 = vpop.f32.mrf.mxu0
    %v6744 = vadd.f32 %v6724, %v6743
    %6745 = vdwg.mxu0
    %6746 = vmatpush.msra.mxu0 %v6689
    %6747 = vmatpush.msra.mxu0 %v6688
    %6748 = vmatpush.msra.mxu0 %v6687
    %6749 = vmatpush.msra.mxu0 %v6686
    %6750 = vmatpush.msra.mxu0 %v6685
    %6751 = vmatpush.msra.mxu0 %v6684
    %6752 = vmatpush.msra.mxu0 %v6683
    %6753 = vmatpush.msra.mxu0 %v6682
    %6754 = vmatpush.msra.mxu0 %v6681
    %6755 = vmatpush.msra.mxu0 %v6680
    %6756 = vmatpush.msra.mxu0 %v6679
    %6757 = vmatpush.msra.mxu0 %v6678
    %6758 = vmatpush.msra.mxu0 %v6677
    %6759 = vmatpush.msra.mxu0 %v6676
    %6760 = vmatpush.msra.mxu0 %v6675
    %6761 = vmatpush.msra.mxu0 %v6674
    %6762 = vmatmul.f32.gmra.mxu0 %v6655
    %v6763 = vpop.f32.mrf.mxu0
    %v6764 = vadd.f32 %v6744, %v6763
    %6765 = vdwg.mxu0
    %6766 = vmatpush.msra.mxu0 %v6705
    %6767 = vmatpush.msra.mxu0 %v6704
    %6768 = vmatpush.msra.mxu0 %v6703
    %6769 = vmatpush.msra.mxu0 %v6702
    %6770 = vmatpush.msra.mxu0 %v6701
    %6771 = vmatpush.msra.mxu0 %v6700
    %6772 = vmatpush.msra.mxu0 %v6699
    %6773 = vmatpush.msra.mxu0 %v6698
    %6774 = vmatpush.msra.mxu0 %v6697
    %6775 = vmatpush.msra.mxu0 %v6696
    %6776 = vmatpush.msra.mxu0 %v6695
    %6777 = vmatpush.msra.mxu0 %v6694
    %6778 = vmatpush.msra.mxu0 %v6693
    %6779 = vmatpush.msra.mxu0 %v6692
    %6780 = vmatpush.msra.mxu0 %v6691
    %6781 = vmatpush.msra.mxu0 %v6690
    %6782 = vmatmul.f32.gmra.mxu0 %v6656
    %v6783 = vpop.f32.mrf.mxu0
    %v6784 = vadd.f32 %v6764, %v6783
    %6785 = vdwg.mxu0
    %6786 = vmatpush.msra.mxu0 %v6721
    %6787 = vmatpush.msra.mxu0 %v6720
    %6788 = vmatpush.msra.mxu0 %v6719
    %6789 = vmatpush.msra.mxu0 %v6718
    %6790 = vmatpush.msra.mxu0 %v6717
    %6791 = vmatpush.msra.mxu0 %v6716
    %6792 = vmatpush.msra.mxu0 %v6715
    %6793 = vmatpush.msra.mxu0 %v6714
    %6794 = vmatpush.msra.mxu0 %v6713
    %6795 = vmatpush.msra.mxu0 %v6712
    %6796 = vmatpush.msra.mxu0 %v6711
    %6797 = vmatpush.msra.mxu0 %v6710
    %6798 = vmatpush.msra.mxu0 %v6709
    %6799 = vmatpush.msra.mxu0 %v6708
    %6800 = vmatpush.msra.mxu0 %v6707
    %6801 = vmatpush.msra.mxu0 %v6706
    %6802 = vmatmul.f32.gmra.mxu0 %v6657
    %v6803 = vpop.f32.mrf.mxu0
    %v6804 = vadd.f32 %v6784, %v6803
    %6805 = vdwg.mxu0
    %6806 = vst [vmem:[#allocation16] sm:$0x3] %v6804
    // Predicated region
    $region70: #{efficientnet_custom_head.1} parent=1 // pred_check
      _
    $region71: #{efficientnet_custom_head.1} parent=1 // pred_check_branch
      %6808 = sbr.rel (0) target = $region73
    $region72: #{efficientnet_custom_head.1} parent=1 // pred_region
      %6810 = vsyncadd [#allocation4], 0
      %s6812 = sshll.u32 [#allocation16], 4
      %s6813 = int_to_ptr.vmem [resolvable:$true] %s6812
      %s6814 = sshll.u32 %s9, 4
      %s6815 = int_to_ptr.hbm [resolvable:$true] %s6814
      %6817 = dma.vmem_to_hbm [thread:$0]  %s6813, 32, %s6815, [#allocation4]
    $region73: #{efficientnet_custom_head.1} parent=1 // pred_fallthru
      _
    // Predicated region
    $region74: #{efficientnet_custom_head.1} parent=1 // pred_check
      _
    $region75: #{efficientnet_custom_head.1} parent=1 // pred_check_branch
      %6819 = sbr.rel (0) target = $region77
    $region76: #{efficientnet_custom_head.1} parent=1 // pred_region
      %6821 = dma.done [#allocation4], 32
    $region77: #{efficientnet_custom_head.1} parent=1 // pred_fallthru
      _
    %6822 = vsyncpa [#allocation3], 1
    %6823 = vsyncpa [#allocation6], 1
    %6824 = vsyncpa [#allocation9], 1
    %6825 = vsyncpa [#allocation12], 1
    %6826 = vsyncpa [#allocation15], 1
    %6827 = vsyncpa [#allocation4], 1

</llo_original>
